<compile_context>
chip_gen: v6e
topology: v6e:2x2x1
jax: 0.10.0
libtpu: 0.0.40
codegen_flags: <defaults>
</compile_context>

<pallas_src>
import functools
import numpy as np

import jax
import jax.numpy as jnp
from jax.experimental import pallas as pl
from jax.experimental.pallas import tpu as pltpu

# -------------------- model configuration (small, deterministic) -------------
PATCH = 4                 # patch_size
EMBED = 16                # embed_dim
DEPTHS = [2, 1]           # depths per stage (2nd block of stage 1 is shifted)
NUM_HEADS = [2, 4]
WINDOW = (4, 4)           # window_size
MLP_RATIO = 4.0
NUM_CLASSES = 10
LN_EPS = 1e-5
BLOCK_M = 512             # row tile for the generic matmul kernels
_SQRT1_2 = 0.7071067811865476
MM_DTYPE = jnp.bfloat16   # MXU operand dtype inside the fused block kernel


def _tc_parallel_splits():
    """2 on v7x (two TensorCores per chip), else 1 (v5e/v6e are single-TC)."""
    try:
        kind = jax.devices()[0].device_kind.lower()
    except Exception:
        return 1
    return 2 if "7" in kind else 1


NUM_TC_SPLITS = _tc_parallel_splits()


def _full_spec(shape):
    nd = len(shape)
    return pl.BlockSpec(tuple(shape), lambda *_: (0,) * nd)


def _row_tile(m, block_m=BLOCK_M):
    # Only tile when the tile divides M exactly: no OOB trailing blocks.
    if m > block_m and m % block_m == 0:
        return block_m
    return m


# ============================ generic Pallas kernels =========================
def _matmul_kernel(x_ref, w_ref, b_ref, o_ref):
    y = jnp.dot(x_ref[...].astype(jnp.float32), w_ref[...].astype(jnp.float32),
                preferred_element_type=jnp.float32) + b_ref[...].astype(jnp.float32)
    o_ref[...] = y.astype(o_ref.dtype)


def pallas_linear(x, w, b=None):
    """x: (M, K), w: (K, N), b: (N,)|None -> (M, N); row-tiled, parallel grid."""
    M, K = x.shape
    Kw, N = w.shape
    assert K == Kw
    if b is None:
        b = jnp.zeros((N,), jnp.float32)
    tm = _row_tile(M)
    return pl.pallas_call(
        _matmul_kernel,
        out_shape=jax.ShapeDtypeStruct((M, N), jnp.float32),
        grid=(pl.cdiv(M, tm),),
        in_specs=[
            pl.BlockSpec((tm, K), lambda i: (i, 0)),
            pl.BlockSpec((K, N), lambda i: (0, 0)),
            pl.BlockSpec((1, N), lambda i: (0, 0)),
        ],
        out_specs=pl.BlockSpec((tm, N), lambda i: (i, 0)),
        compiler_params=pltpu.CompilerParams(dimension_semantics=("parallel",)),
    )(x.astype(jnp.float32), w.astype(jnp.float32),
      b.reshape(1, N).astype(jnp.float32))


def _matmul_ln_kernel(x_ref, w_ref, g_ref, b_ref, o_ref, *, eps):
    y = jnp.dot(x_ref[...].astype(jnp.float32), w_ref[...].astype(jnp.float32),
                preferred_element_type=jnp.float32)
    mu = jnp.mean(y, axis=-1, keepdims=True)
    yc = y - mu
    var = jnp.mean(yc * yc, axis=-1, keepdims=True)
    o_ref[...] = (yc * jax.lax.rsqrt(var + eps) * g_ref[...].astype(jnp.float32)
                  + b_ref[...].astype(jnp.float32)).astype(o_ref.dtype)


def pallas_linear_ln(x, w, gamma, beta, eps=LN_EPS):
    """(x @ w) followed by LayerNorm over output features (fused)."""
    M, K = x.shape
    _, N = w.shape
    tm = _row_tile(M)
    return pl.pallas_call(
        functools.partial(_matmul_ln_kernel, eps=eps),
        out_shape=jax.ShapeDtypeStruct((M, N), jnp.float32),
        grid=(pl.cdiv(M, tm),),
        in_specs=[
            pl.BlockSpec((tm, K), lambda i: (i, 0)),
            pl.BlockSpec((K, N), lambda i: (0, 0)),
            pl.BlockSpec((1, N), lambda i: (0, 0)),
            pl.BlockSpec((1, N), lambda i: (0, 0)),
        ],
        out_specs=pl.BlockSpec((tm, N), lambda i: (i, 0)),
        compiler_params=pltpu.CompilerParams(dimension_semantics=("parallel",)),
    )(x.astype(jnp.float32), w.astype(jnp.float32),
      gamma.reshape(1, N).astype(jnp.float32), beta.reshape(1, N).astype(jnp.float32))


def _ln_matmul_kernel(x_ref, g_ref, b_ref, w_ref, o_ref, *, eps):
    x = x_ref[...].astype(jnp.float32)
    mu = jnp.mean(x, axis=-1, keepdims=True)
    xc = x - mu
    var = jnp.mean(xc * xc, axis=-1, keepdims=True)
    y = xc * jax.lax.rsqrt(var + eps) * g_ref[...].astype(jnp.float32) \
        + b_ref[...].astype(jnp.float32)
    o_ref[...] = jnp.dot(y, w_ref[...].astype(jnp.float32),
                         preferred_element_type=jnp.float32).astype(o_ref.dtype)


def pallas_ln_linear(x, gamma, beta, w, eps=LN_EPS):
    """LayerNorm over x's features followed by x @ w (fused; no bias)."""
    M, K = x.shape
    _, N = w.shape
    tm = _row_tile(M)
    return pl.pallas_call(
        functools.partial(_ln_matmul_kernel, eps=eps),
        out_shape=jax.ShapeDtypeStruct((M, N), jnp.float32),
        grid=(pl.cdiv(M, tm),),
        in_specs=[
            pl.BlockSpec((tm, K), lambda i: (i, 0)),
            pl.BlockSpec((1, K), lambda i: (0, 0)),
            pl.BlockSpec((1, K), lambda i: (0, 0)),
            pl.BlockSpec((K, N), lambda i: (0, 0)),
        ],
        out_specs=pl.BlockSpec((tm, N), lambda i: (i, 0)),
        compiler_params=pltpu.CompilerParams(dimension_semantics=("parallel",)),
    )(x.astype(jnp.float32), gamma.reshape(1, K).astype(jnp.float32),
      beta.reshape(1, K).astype(jnp.float32), w.astype(jnp.float32))


def _head_kernel(x_ref, g_ref, b_ref, w_ref, hb_ref, o_ref, *, eps):
    x = x_ref[...].astype(jnp.float32)                    # (B, T, C)
    mu = jnp.mean(x, axis=-1, keepdims=True)
    xc = x - mu
    var = jnp.mean(xc * xc, axis=-1, keepdims=True)
    y = xc * jax.lax.rsqrt(var + eps) * g_ref[...].astype(jnp.float32) \
        + b_ref[...].astype(jnp.float32)
    pooled = jnp.mean(y, axis=1)                          # global average pool -> (B, C)
    logits = jnp.dot(pooled, w_ref[...].astype(jnp.float32),
                     preferred_element_type=jnp.float32) + hb_ref[...].astype(jnp.float32)
    o_ref[...] = logits.astype(o_ref.dtype)


def pallas_norm_pool_head(x, gamma, beta, w, hb, eps=LN_EPS):
    """Fused final LayerNorm + AdaptiveAvgPool2d(1) + classifier head."""
    B, T, C = x.shape
    NC = w.shape[1]
    return pl.pallas_call(
        functools.partial(_head_kernel, eps=eps),
        out_shape=jax.ShapeDtypeStruct((B, NC), jnp.float32),
        grid=(1,),
        in_specs=[
            _full_spec((B, T, C)),
            _full_spec((1, C)),
            _full_spec((1, C)),
            _full_spec((C, NC)),
            _full_spec((1, NC)),
        ],
        out_specs=_full_spec((B, NC)),
    )(x.astype(jnp.float32), gamma.reshape(1, C).astype(jnp.float32),
      beta.reshape(1, C).astype(jnp.float32), w.astype(jnp.float32),
      hb.reshape(1, NC).astype(jnp.float32))


# =========================== fused Swin block kernel =========================
def _swin_block_kernel(x_ref, bias_ref, n1g_ref, n1b_ref, qkvw_ref, qkvb_ref,
                       projw_ref, projb_ref, n2g_ref, n2b_ref,
                       fc1w_ref, fc1b_ref, fc2w_ref, fc2b_ref, o_ref,
                       *, num_heads, eps):
    f32 = jnp.float32
    x = x_ref[...].astype(f32)                           # (Bb, n_win, N, C)
    Bb, n_win, N, C = x.shape
    heads = num_heads
    hd = C // heads
    scale = float(hd) ** (-0.5)
    nw = Bb * n_win
    rows = nw * N
    x2 = x.reshape(rows, C)                              # leading-dim collapse (safe)

    def _ln(v, g_ref, b_ref):
        mu = jnp.mean(v, axis=-1, keepdims=True)
        vc = v - mu
        var = jnp.mean(vc * vc, axis=-1, keepdims=True)
        return vc * jax.lax.rsqrt(var + eps) * g_ref[...].astype(f32) \
            + b_ref[...].astype(f32)

    # ---- windowed multi-head self attention: fused QKV + fused projection ----
    y = _ln(x2, n1g_ref, n1b_ref)
    qkv = jnp.dot(y.astype(MM_DTYPE), qkvw_ref[...],
                  preferred_element_type=f32) + qkvb_ref[...].astype(f32)  # (rows, 3C)

    head_outs = []
    for h in range(heads):          # heads in {2,4}; only tiny per-window einsums here
        q = qkv[:, h * hd:(h + 1) * hd].reshape(nw, N, hd) * scale
        k = qkv[:, C + h * hd:C + (h + 1) * hd].reshape(nw, N, hd)
        v = qkv[:, 2 * C + h * hd:2 * C + (h + 1) * hd].reshape(nw, N, hd)
        s = jnp.einsum("wqd,wkd->wqk", q.astype(MM_DTYPE), k.astype(MM_DTYPE),
                       preferred_element_type=f32)        # (nw, N, N)
        # bias_ref: (heads, 1 or n_win, N, N) -> broadcast over folded batch
        s = (s.reshape(Bb, n_win, N, N) + bias_ref[h]).reshape(nw, N, N)
        s = s - jnp.max(s, axis=-1, keepdims=True)
        p = jnp.exp(s)
        p = p * pl.reciprocal(jnp.sum(p, axis=-1, keepdims=True), approx=True)
        head_outs.append(jnp.einsum("wqk,wkd->wqd",
                                    p.astype(MM_DTYPE), v.astype(MM_DTYPE),
                                    preferred_element_type=f32))
    attn = jnp.concatenate(head_outs, axis=-1).reshape(rows, C)
    x2 = x2 + jnp.dot(attn.astype(MM_DTYPE), projw_ref[...],
                      preferred_element_type=f32) + projb_ref[...].astype(f32)

    # ---- MLP (exact erf GELU) with residual ----
    y = _ln(x2, n2g_ref, n2b_ref)
    h1 = jnp.dot(y.astype(MM_DTYPE), fc1w_ref[...],
                 preferred_element_type=f32) + fc1b_ref[...].astype(f32)
    h1 = 0.5 * h1 * (1.0 + jax.lax.erf(h1 * _SQRT1_2))
    h2 = jnp.dot(h1.astype(MM_DTYPE), fc2w_ref[...],
                 preferred_element_type=f32) + fc2b_ref[...].astype(f32)
    x2 = x2 + h2

    o_ref[...] = x2.reshape(Bb, n_win, N, C).astype(o_ref.dtype)


def swin_block(x, p, cfg):
    """One fused DeformTransformerBlock; x: (B, H, W, C) NHWC."""
    B, H, W, C = x.shape
    ws0, ws1 = WINDOW
    shift = cfg["shift"]
    heads = cfg["heads"]
    pad_b = (ws0 - H % ws0) % ws0
    pad_r = (ws1 - W % ws1) % ws1
    # TODO(synk): if spatial padding were ever needed, padded tokens would pass
    # through LN1 inside the fused kernel (reference pads after norm1); this
    # never triggers here because H and W are multiples of the window size.
    xw = jnp.pad(x, ((0, 0), (0, pad_b), (0, pad_r), (0, 0))) if (pad_b or pad_r) else x
    pH, pW = H + pad_b, W + pad_r
    if sum(shift) > 0:
        xw = jnp.roll(xw, (-shift[0], -shift[1]), axis=(1, 2))
    nH, nWc = pH // ws0, pW // ws1
    n_win = nH * nWc
    N = ws0 * ws1
    xw = xw.reshape(B, nH, ws0, nWc, ws1, C).transpose(0, 1, 3, 2, 4, 5)
    xw = xw.reshape(B, n_win, N, C)

    # Fold the whole batch into one kernel invocation on single-TC chips;
    # keep a 2-way "parallel" batch split only when the chip has 2 TCs (v7x).
    G = NUM_TC_SPLITS if (NUM_TC_SPLITS > 1 and B % NUM_TC_SPLITS == 0) else 1
    Bb = B // G

    weights = (p["attn_bias"], p["n1_g"], p["n1_b"], p["qkv_w"], p["qkv_b"],
               p["proj_w"], p["proj_b"], p["n2_g"], p["n2_b"],
               p["fc1_w"], p["fc1_b"], p["fc2_w"], p["fc2_b"])
    in_specs = [pl.BlockSpec((Bb, n_win, N, C), lambda g: (g, 0, 0, 0))]
    in_specs += [_full_spec(a.shape) for a in weights]

    out = pl.pallas_call(
        functools.partial(_swin_block_kernel, num_heads=heads, eps=LN_EPS),
        out_shape=jax.ShapeDtypeStruct((B, n_win, N, C), jnp.float32),
        grid=(G,),
        in_specs=in_specs,
        out_specs=pl.BlockSpec((Bb, n_win, N, C), lambda g: (g, 0, 0, 0)),
        compiler_params=pltpu.CompilerParams(dimension_semantics=("parallel",)),
    )(xw.astype(jnp.float32), *weights)

    out = out.reshape(B, nH, nWc, ws0, ws1, C).transpose(0, 1, 3, 2, 4, 5)
    out = out.reshape(B, pH, pW, C)
    if sum(shift) > 0:
        out = jnp.roll(out, (shift[0], shift[1]), axis=(1, 2))
    return out[:, :H, :W, :]


def patch_merging(x, p):
    B, H, W, C = x.shape
    x = jnp.pad(x, ((0, 0), (0, H % 2), (0, W % 2), (0, 0)))
    x0 = x[:, 0::2, 0::2, :]
    x1 = x[:, 1::2, 0::2, :]
    x2 = x[:, 0::2, 1::2, :]
    x3 = x[:, 1::2, 1::2, :]
    xc = jnp.concatenate([x0, x1, x2, x3], -1)            # (B, H2, W2, 4C)
    Bo, Ho, Wo, C4 = xc.shape
    y = pallas_ln_linear(xc.reshape(-1, C4), p["n_g"], p["n_b"], p["red_w"])
    return y.reshape(Bo, Ho, Wo, C4 // 2)


# ============================ deformable patch embed =========================
def _im2col(x, kh, kw, stride, padding):
    """NCHW -> (B*Ho*Wo, Cin*kh*kw) patch matrix (rows ordered B, Ho, Wo)."""
    B, Cin, _, _ = x.shape
    xp = jnp.pad(x, ((0, 0), (0, 0), (padding, padding), (padding, padding))) if padding else x
    Hp, Wp = xp.shape[2], xp.shape[3]
    Ho = (Hp - kh) // stride + 1
    Wo = (Wp - kw) // stride + 1
    cols = []
    for ki in range(kh):
        for kj in range(kw):
            cols.append(xp[:, :, ki:ki + stride * (Ho - 1) + 1:stride,
                              kj:kj + stride * (Wo - 1) + 1:stride])
    col = jnp.stack(cols, axis=2)                         # (B, Cin, kh*kw, Ho, Wo)
    col = col.transpose(0, 3, 4, 1, 2).reshape(B * Ho * Wo, Cin * kh * kw)
    return col, (Ho, Wo)


def _get_p_const(ks, stride, N, h, w):
    """Constant sampling grid (kernel taps + output centers), layout (1, h, w, 2N)."""
    rng = np.arange(-(ks - 1) // 2, (ks - 1) // 2 + 1)
    p_n_x, p_n_y = np.meshgrid(rng, rng, indexing="ij")
    p_n = np.concatenate([p_n_x.flatten(), p_n_y.flatten()])            # (2N,)
    ax = np.arange(1, h * stride + 1, stride)
    ay = np.arange(1, w * stride + 1, stride)
    p0x, p0y = np.meshgrid(ax, ay, indexing="ij")                       # (h, w)
    p0 = np.concatenate([np.tile(p0x[:, :, None], (1, 1, N)),
                         np.tile(p0y[:, :, None], (1, 1, N))], axis=-1)  # (h, w, 2N)
    return (p0[None] + p_n.reshape(1, 1, 1, 2 * N)).astype(np.float32)


def _get_x_q(xp, q, N):
    B, C, Hp, Wp = xp.shape
    _, h, w, _ = q.shape
    x_flat = xp.reshape(B, C, Hp * Wp)
    index = q[..., :N] * Wp + q[..., N:]                                 # (B, h, w, N)
    index = jnp.broadcast_to(index.reshape(B, 1, h * w * N), (B, C, h * w * N))
    # TODO(synk): data-dependent gather has no rectangular BlockSpec form; kept in XLA.
    x_off = jnp.take_along_axis(x_flat, index, axis=-1)
    return x_off.reshape(B, C, h, w, N)


def deform_conv2d(x, p, ks, padding, stride):
    """Deformable patch embed: NCHW input -> NHWC (B, H/stride, W/stride, EMBED),
    with the trailing LayerNorm fused into the final conv matmul."""
    B = x.shape[0]
    # offset conv (kernel 3, pad 1, stride) -> offsets produced directly in NHWC
    col, (h, w) = _im2col(x, 3, 3, stride, 1)
    offset = pallas_linear(col, p["p_w"], p["p_b"]).reshape(B, h, w, -1)
    N = offset.shape[-1] // 2
    if padding:
        x = jnp.pad(x, ((0, 0), (0, 0), (padding, padding), (padding, padding)))
    Hp, Wp = x.shape[2], x.shape[3]

    pp = jnp.asarray(_get_p_const(ks, stride, N, h, w)) + offset          # (B, h, w, 2N)
    q_lt = jnp.floor(pp)
    q_rb = q_lt + 1.0
    q_lt = jnp.concatenate([jnp.clip(q_lt[..., :N], 0, Hp - 1),
                            jnp.clip(q_lt[..., N:], 0, Wp - 1)], -1).astype(jnp.int32)
    q_rb = jnp.concatenate([jnp.clip(q_rb[..., :N], 0, Hp - 1),
                            jnp.clip(q_rb[..., N:], 0, Wp - 1)], -1).astype(jnp.int32)
    q_lb = jnp.concatenate([q_lt[..., :N], q_rb[..., N:]], -1)
    q_rt = jnp.concatenate([q_rb[..., :N], q_lt[..., N:]], -1)
    pp = jnp.concatenate([jnp.clip(pp[..., :N], 0, Hp - 1),
                          jnp.clip(pp[..., N:], 0, Wp - 1)], -1)

    f = jnp.float32
    g_lt = (1 + (q_lt[..., :N].astype(f) - pp[..., :N])) * (1 + (q_lt[..., N:].astype(f) - pp[..., N:]))
    g_rb = (1 - (q_rb[..., :N].astype(f) - pp[..., :N])) * (1 - (q_rb[..., N:].astype(f) - pp[..., N:]))
    g_lb = (1 + (q_lb[..., :N].astype(f) - pp[..., :N])) * (1 - (q_lb[..., N:].astype(f) - pp[..., N:]))
    g_rt = (1 - (q_rt[..., :N].astype(f) - pp[..., :N])) * (1 + (q_rt[..., N:].astype(f) - pp[..., N:]))

    x_q_lt = _get_x_q(x, q_lt, N)
    x_q_rb = _get_x_q(x, q_rb, N)
    x_q_lb = _get_x_q(x, q_lb, N)
    x_q_rt = _get_x_q(x, q_rt, N)

    x_offset = (g_lt[:, None] * x_q_lt + g_rb[:, None] * x_q_rb +
                g_lb[:, None] * x_q_lb + g_rt[:, None] * x_q_rt)          # (B, Cin, h, w, N)

    # Final conv has kernel == stride == ks, so its im2col patch matrix is just
    # a permutation of the sample axis: build it directly from x_offset
    # (column order (Cin, ki*ks+kj) matches the conv weight layout), and fuse
    # the patch-embed LayerNorm into the same matmul kernel.
    col2 = x_offset.transpose(0, 2, 3, 1, 4).reshape(B * h * w, -1)       # (B*h*w, Cin*ks*ks)
    out = pallas_linear_ln(col2, p["conv_w"], p["n_g"], p["n_b"])
    return out.reshape(B, h, w, -1)                                       # NHWC


# ============================== full forward =================================
def deform_transformer_forward(params, x, config):
    # x: (B, 3, H, W) NCHW
    y = deform_conv2d(x, params["patch"], ks=PATCH, padding=1, stride=PATCH)
    for sp, scfg in zip(params["stages"], config["stages"]):
        for bp, bcfg in zip(sp["blocks"], scfg["blocks"]):
            y = swin_block(y, bp, bcfg)
        if scfg["has_merge"]:
            y = patch_merging(y, sp["merge"])
    B, H, W, C = y.shape
    return pallas_norm_pool_head(y.reshape(B, H * W, C),
                                 params["norm_g"], params["norm_b"],
                                 params["head_w"], params["head_b"])


# ============================ deterministic init =============================
def make_attn_bias(table, window, num_heads, feat_hw, shift):
    """Relative-position bias (+ shift mask): (heads, 1 or num_windows, N, N)."""
    wh, ww = window
    N = wh * ww
    ch, cw = np.meshgrid(np.arange(wh), np.arange(ww), indexing="ij")
    coords = np.stack([ch.reshape(-1), cw.reshape(-1)])
    rel = coords[:, :, None] - coords[:, None, :]
    rel = rel.transpose(1, 2, 0).copy()
    rel[..., 0] += wh - 1
    rel[..., 1] += ww - 1
    rel[..., 0] *= 2 * ww - 1
    idx = rel.sum(-1).reshape(-1)
    bias = table[jnp.asarray(idx)].reshape(N, N, num_heads).transpose(2, 0, 1)  # (heads, N, N)
    if sum(shift) == 0:
        # no mask -> keep compact; broadcast over windows happens in-kernel
        return bias[:, None, :, :].astype(jnp.float32)                    # (heads, 1, N, N)

    Hf, Wf = feat_hw
    pad_H = -(-Hf // wh) * wh
    pad_W = -(-Wf // ww) * ww
    n_win = (pad_H // wh) * (pad_W // ww)
    attn_mask = np.zeros((pad_H, pad_W), np.float32)
    h_slices = ((0, -wh), (-wh, -shift[0]), (-shift[0], None))
    w_slices = ((0, -ww), (-ww, -shift[1]), (-shift[1], None))
    count = 0
    for hs in h_slices:
        for wsl in w_slices:
            attn_mask[hs[0]:hs[1], wsl[0]:wsl[1]] = count
            count += 1
    attn_mask = attn_mask.reshape(pad_H // wh, wh, pad_W // ww, ww).transpose(0, 2, 1, 3)
    attn_mask = attn_mask.reshape(n_win, N)
    diff = attn_mask[:, None, :] - attn_mask[:, :, None]
    mask = np.where(diff != 0, -100.0, 0.0).astype(np.float32)            # (n_win, N, N)
    return (bias[:, None, :, :] + jnp.asarray(mask)[None, :, :, :]).astype(jnp.float32)


def init_model(key, img_hw=(32, 32)):
    keys = iter(jax.random.split(key, 64))

    def nrm(shape, std=0.02):
        return jax.random.normal(next(keys), shape, jnp.float32) * std

    params = {
        "patch": dict(
            # p_conv weight is zero-initialized in the reference module
            p_w=jnp.zeros((3 * 3 * 3, 2 * PATCH * PATCH), jnp.float32),   # (Cin*kh*kw, 2*ks*ks)
            p_b=nrm((2 * PATCH * PATCH,), 0.3),
            conv_w=nrm((EMBED, 3, PATCH, PATCH), 0.1).reshape(EMBED, -1).T,  # (Cin*ks*ks, EMBED)
            n_g=jnp.ones((EMBED,), jnp.float32),
            n_b=jnp.zeros((EMBED,), jnp.float32),
        )
    }

    Hf, Wf = img_hw[0] // PATCH, img_hw[1] // PATCH
    stages_p, stages_cfg = [], []
    for i_stage, depth in enumerate(DEPTHS):
        dim = EMBED * 2 ** i_stage
        heads = NUM_HEADS[i_stage]
        hidden = int(dim * MLP_RATIO)
        blocks_p, blocks_cfg = [], []
        for i_layer in range(depth):
            shift = [0 if i_layer % 2 == 0 else w_ // 2 for w_ in WINDOW]
            pad_H = -(-Hf // WINDOW[0]) * WINDOW[0]
            pad_W = -(-Wf // WINDOW[1]) * WINDOW[1]
            if WINDOW[0] >= pad_H:
                shift[0] = 0
            if WINDOW[1] >= pad_W:
                shift[1] = 0
            table = nrm(((2 * WINDOW[0] - 1) * (2 * WINDOW[1] - 1), heads), 0.02)
            qkv_w = nrm((3 * dim, dim))            # torch layout (out, in)
            proj_w = nrm((dim, dim))
            fc1_w = nrm((hidden, dim))
            fc2_w = nrm((dim, hidden))
            blocks_p.append(dict(
                n1_g=jnp.ones((1, dim), jnp.float32),
                n1_b=jnp.zeros((1, dim), jnp.float32),
                # fused (C, 3C) / (C, C) weight slabs, stored bf16 for the MXU
                qkv_w=qkv_w.T.astype(MM_DTYPE),
                qkv_b=jnp.zeros((1, 3 * dim), jnp.float32),
                proj_w=proj_w.T.astype(MM_DTYPE),
                proj_b=jnp.zeros((1, dim), jnp.float32),
                n2_g=jnp.ones((1, dim), jnp.float32),
                n2_b=jnp.zeros((1, dim), jnp.float32),
                fc1_w=fc1_w.T.astype(MM_DTYPE),
                fc1_b=jnp.zeros((1, hidden), jnp.float32),
                fc2_w=fc2_w.T.astype(MM_DTYPE),
                fc2_b=jnp.zeros((1, dim), jnp.float32),
                attn_bias=make_attn_bias(table, WINDOW, heads, (Hf, Wf), shift),
            ))
            blocks_cfg.append(dict(shift=tuple(shift), heads=heads))
        stage_p = {"blocks": blocks_p}
        has_merge = i_stage < len(DEPTHS) - 1
        if has_merge:
            stage_p["merge"] = dict(
                n_g=jnp.ones((4 * dim,), jnp.float32),
                n_b=jnp.zeros((4 * dim,), jnp.float32),
                red_w=nrm((2 * dim, 4 * dim)).T,            # (4*dim, 2*dim)
            )
            Hf, Wf = (Hf + 1) // 2, (Wf + 1) // 2
        stages_p.append(stage_p)
        stages_cfg.append(dict(blocks=blocks_cfg, has_merge=has_merge))
    params["stages"] = stages_p

    num_features = EMBED * 2 ** (len(DEPTHS) - 1)
    params["norm_g"] = jnp.ones((num_features,), jnp.float32)
    params["norm_b"] = jnp.zeros((num_features,), jnp.float32)
    params["head_w"] = nrm((NUM_CLASSES, num_features)).T   # (C, num_classes)
    params["head_b"] = jnp.zeros((NUM_CLASSES,), jnp.float32)
    return params, dict(stages=stages_cfg)


# ================================== main =====================================
if __name__ == "__main__":
    key = jax.random.PRNGKey(0)
    kx, kp = jax.random.split(key)
    x = jax.random.normal(kx, (2, 3, 32, 32), jnp.float32)   # NCHW input
    params, config = init_model(kp, img_hw=(32, 32))

    fwd = jax.jit(functools.partial(deform_transformer_forward, config=config))
    logits = jax.block_until_ready(fwd(params, x))
    assert logits.shape == (2, NUM_CLASSES), logits.shape
    assert bool(jnp.all(jnp.isfinite(logits)))
    print("KERNEL_OK")
</pallas_src>

<mosaic_0001>
module attributes {stable_mosaic.version = 11 : i64} {
  func.func @_matmul_kernel(%arg0: i32, %arg1: memref<128x27xf32, #tpu.memory_space<vmem>>, %arg2: memref<27x32xf32, #tpu.memory_space<vmem>>, %arg3: memref<1x32xf32, #tpu.memory_space<vmem>>, %arg4: memref<128x32xf32, #tpu.memory_space<vmem>>) attributes {dimension_semantics = [#tpu.dimension_semantics<parallel>], iteration_bounds = array<i64: 1>, scalar_prefetch = 0 : i64, scratch_operands = 0 : i64, tpu.core_type = #tpu.core_type<tc>, window_params = [{transform_indices = @transform_0, window_bounds = array<i64: 128, 27>}, {pipeline_mode = #tpu.pipeline_mode<synchronous>, transform_indices = @transform_1, window_bounds = array<i64: 27, 32>}, {pipeline_mode = #tpu.pipeline_mode<synchronous>, transform_indices = @transform_2, window_bounds = array<i64: 1, 32>}, {transform_indices = @transform_3, window_bounds = array<i64: 128, 32>}]} {
    %c0 = arith.constant 0 : index
    %c0_0 = arith.constant 0 : index
    %0 = vector.load %arg1[%c0, %c0_0] : memref<128x27xf32, #tpu.memory_space<vmem>>, vector<128x27xf32>
    %c0_1 = arith.constant 0 : index
    %c0_2 = arith.constant 0 : index
    %1 = vector.load %arg2[%c0_1, %c0_2] : memref<27x32xf32, #tpu.memory_space<vmem>>, vector<27x32xf32>
    %cst = arith.constant dense<0.000000e+00> : vector<128x32xf32>
    %2 = tpu.matmul %0, %1, %cst {dimension_numbers = #tpu.dot_dimension_numbers<[1], [0], [0], [1], [0, 0, 1, 1], [], []>} : vector<128x27xf32>, vector<27x32xf32>, vector<128x32xf32> -> vector<128x32xf32>
    %c0_3 = arith.constant 0 : index
    %c0_4 = arith.constant 0 : index
    %3 = vector.load %arg3[%c0_3, %c0_4] : memref<1x32xf32, #tpu.memory_space<vmem>>, vector<1x32xf32>
    %4 = vector.broadcast %3 : vector<1x32xf32> to vector<128x32xf32>
    %5 = arith.addf %2, %4 : vector<128x32xf32>
    %c0_5 = arith.constant 0 : index
    %c0_6 = arith.constant 0 : index
    %6 = vector.load %arg4[%c0_5, %c0_6] : memref<128x32xf32, #tpu.memory_space<vmem>>, vector<128x32xf32>
    tpu.vector_store %arg4[%c0_5, %c0_6], %5 {strides = array<i32>} : memref<128x32xf32, #tpu.memory_space<vmem>>, vector<128x32xf32>,
    return
  }
  func.func @transform_0(%arg0: i32) -> (i32, i32) {
    %c0_i32 = arith.constant 0 : i32
    %c0_i32_0 = arith.constant 0 : i32
    return %arg0, %c0_i32 : i32, i32
  }
  func.func @transform_1(%arg0: i32) -> (i32, i32) {
    %c0_i32 = arith.constant 0 : i32
    %c0_i32_0 = arith.constant 0 : i32
    %c0_i32_1 = arith.constant 0 : i32
    return %c0_i32, %c0_i32_0 : i32, i32
  }
  func.func @transform_2(%arg0: i32) -> (i32, i32) {
    %c0_i32 = arith.constant 0 : i32
    %c0_i32_0 = arith.constant 0 : i32
    %c0_i32_1 = arith.constant 0 : i32
    return %c0_i32, %c0_i32_0 : i32, i32
  }
  func.func @transform_3(%arg0: i32) -> (i32, i32) {
    %c0_i32 = arith.constant 0 : i32
    %c0_i32_0 = arith.constant 0 : i32
    return %arg0, %c0_i32 : i32, i32
  }
}

module attributes {stable_mosaic.version = 11 : i64} {
  func.func @_matmul_ln_kernel(%arg0: i32, %arg1: memref<128x48xf32, #tpu.memory_space<vmem>>, %arg2: memref<48x16xf32, #tpu.memory_space<vmem>>, %arg3: memref<1x16xf32, #tpu.memory_space<vmem>>, %arg4: memref<1x16xf32, #tpu.memory_space<vmem>>, %arg5: memref<128x16xf32, #tpu.memory_space<vmem>>) attributes {dimension_semantics = [#tpu.dimension_semantics<parallel>], iteration_bounds = array<i64: 1>, scalar_prefetch = 0 : i64, scratch_operands = 0 : i64, tpu.core_type = #tpu.core_type<tc>, window_params = [{transform_indices = @transform_0, window_bounds = array<i64: 128, 48>}, {pipeline_mode = #tpu.pipeline_mode<synchronous>, transform_indices = @transform_1, window_bounds = array<i64: 48, 16>}, {pipeline_mode = #tpu.pipeline_mode<synchronous>, transform_indices = @transform_2, window_bounds = array<i64: 1, 16>}, {pipeline_mode = #tpu.pipeline_mode<synchronous>, transform_indices = @transform_3, window_bounds = array<i64: 1, 16>}, {transform_indices = @transform_4, window_bounds = array<i64: 128, 16>}]} {
    %c0 = arith.constant 0 : index
    %c0_0 = arith.constant 0 : index
    %0 = vector.load %arg1[%c0, %c0_0] : memref<128x48xf32, #tpu.memory_space<vmem>>, vector<128x48xf32>
    %c0_1 = arith.constant 0 : index
    %c0_2 = arith.constant 0 : index
    %1 = vector.load %arg2[%c0_1, %c0_2] : memref<48x16xf32, #tpu.memory_space<vmem>>, vector<48x16xf32>
    %cst = arith.constant dense<0.000000e+00> : vector<128x16xf32>
    %2 = tpu.matmul %0, %1, %cst {dimension_numbers = #tpu.dot_dimension_numbers<[1], [0], [0], [1], [0, 0, 1, 1], [], []>} : vector<128x48xf32>, vector<48x16xf32>, vector<128x16xf32> -> vector<128x16xf32>
    %cst_3 = arith.constant dense<0.000000e+00> : vector<128xf32>
    %3 = vector.multi_reduction <add>, %2, %cst_3 [1] : vector<128x16xf32> to vector<128xf32>
    %4 = vector.shape_cast %3 : vector<128xf32> to vector<128x1xf32>
    %cst_4 = arith.constant 1.600000e+01 : f32
    %5 = vector.broadcast %cst_4 : f32 to vector<128x1xf32>
    %6 = arith.divf %4, %5 : vector<128x1xf32>
    %7 = vector.broadcast %6 : vector<128x1xf32> to vector<128x16xf32>
    %8 = arith.subf %2, %7 : vector<128x16xf32>
    %9 = arith.mulf %8, %8 : vector<128x16xf32>
    %cst_5 = arith.constant dense<0.000000e+00> : vector<128xf32>
    %10 = vector.multi_reduction <add>, %9, %cst_5 [1] : vector<128x16xf32> to vector<128xf32>
    %11 = vector.shape_cast %10 : vector<128xf32> to vector<128x1xf32>
    %cst_6 = arith.constant 1.600000e+01 : f32
    %12 = vector.broadcast %cst_6 : f32 to vector<128x1xf32>
    %13 = arith.divf %11, %12 : vector<128x1xf32>
    %cst_7 = arith.constant 9.99999974E-6 : f32
    %14 = vector.broadcast %cst_7 : f32 to vector<128x1xf32>
    %15 = arith.addf %13, %14 : vector<128x1xf32>
    %16 = math.rsqrt %15 : vector<128x1xf32>
    %17 = vector.broadcast %16 : vector<128x1xf32> to vector<128x16xf32>
    %18 = arith.mulf %8, %17 : vector<128x16xf32>
    %c0_8 = arith.constant 0 : index
    %c0_9 = arith.constant 0 : index
    %19 = vector.load %arg3[%c0_8, %c0_9] : memref<1x16xf32, #tpu.memory_space<vmem>>, vector<1x16xf32>
    %20 = vector.broadcast %19 : vector<1x16xf32> to vector<128x16xf32>
    %21 = arith.mulf %18, %20 : vector<128x16xf32>
    %c0_10 = arith.constant 0 : index
    %c0_11 = arith.constant 0 : index
    %22 = vector.load %arg4[%c0_10, %c0_11] : memref<1x16xf32, #tpu.memory_space<vmem>>, vector<1x16xf32>
    %23 = vector.broadcast %22 : vector<1x16xf32> to vector<128x16xf32>
    %24 = arith.addf %21, %23 : vector<128x16xf32>
    %c0_12 = arith.constant 0 : index
    %c0_13 = arith.constant 0 : index
    %25 = vector.load %arg5[%c0_12, %c0_13] : memref<128x16xf32, #tpu.memory_space<vmem>>, vector<128x16xf32>
    tpu.vector_store %arg5[%c0_12, %c0_13], %24 {strides = array<i32>} : memref<128x16xf32, #tpu.memory_space<vmem>>, vector<128x16xf32>,
    return
  }
  func.func @transform_0(%arg0: i32) -> (i32, i32) {
    %c0_i32 = arith.constant 0 : i32
    %c0_i32_0 = arith.constant 0 : i32
    return %arg0, %c0_i32 : i32, i32
  }
  func.func @transform_1(%arg0: i32) -> (i32, i32) {
    %c0_i32 = arith.constant 0 : i32
    %c0_i32_0 = arith.constant 0 : i32
    %c0_i32_1 = arith.constant 0 : i32
    return %c0_i32, %c0_i32_0 : i32, i32
  }
  func.func @transform_2(%arg0: i32) -> (i32, i32) {
    %c0_i32 = arith.constant 0 : i32
    %c0_i32_0 = arith.constant 0 : i32
    %c0_i32_1 = arith.constant 0 : i32
    return %c0_i32, %c0_i32_0 : i32, i32
  }
  func.func @transform_3(%arg0: i32) -> (i32, i32) {
    %c0_i32 = arith.constant 0 : i32
    %c0_i32_0 = arith.constant 0 : i32
    %c0_i32_1 = arith.constant 0 : i32
    return %c0_i32, %c0_i32_0 : i32, i32
  }
  func.func @transform_4(%arg0: i32) -> (i32, i32) {
    %c0_i32 = arith.constant 0 : i32
    %c0_i32_0 = arith.constant 0 : i32
    return %arg0, %c0_i32 : i32, i32
  }
}

module attributes {stable_mosaic.version = 11 : i64} {
  func.func @_swin_block_kernel(%arg0: i32, %arg1: memref<2x4x16x16xf32, #tpu.memory_space<vmem>>, %arg2: memref<2x1x16x16xf32, #tpu.memory_space<vmem>>, %arg3: memref<1x16xf32, #tpu.memory_space<vmem>>, %arg4: memref<1x16xf32, #tpu.memory_space<vmem>>, %arg5: memref<16x48xbf16, #tpu.memory_space<vmem>>, %arg6: memref<1x48xf32, #tpu.memory_space<vmem>>, %arg7: memref<16x16xbf16, #tpu.memory_space<vmem>>, %arg8: memref<1x16xf32, #tpu.memory_space<vmem>>, %arg9: memref<1x16xf32, #tpu.memory_space<vmem>>, %arg10: memref<1x16xf32, #tpu.memory_space<vmem>>, %arg11: memref<16x64xbf16, #tpu.memory_space<vmem>>, %arg12: memref<1x64xf32, #tpu.memory_space<vmem>>, %arg13: memref<64x16xbf16, #tpu.memory_space<vmem>>, %arg14: memref<1x16xf32, #tpu.memory_space<vmem>>, %arg15: memref<2x4x16x16xf32, #tpu.memory_space<vmem>>) attributes {dimension_semantics = [#tpu.dimension_semantics<parallel>], iteration_bounds = array<i64: 1>, scalar_prefetch = 0 : i64, scratch_operands = 0 : i64, tpu.core_type = #tpu.core_type<tc>, window_params = [{transform_indices = @transform_0, window_bounds = array<i64: 2, 4, 16, 16>}, {pipeline_mode = #tpu.pipeline_mode<synchronous>, transform_indices = @transform_1, window_bounds = array<i64: 2, 1, 16, 16>}, {pipeline_mode = #tpu.pipeline_mode<synchronous>, transform_indices = @transform_2, window_bounds = array<i64: 1, 16>}, {pipeline_mode = #tpu.pipeline_mode<synchronous>, transform_indices = @transform_3, window_bounds = array<i64: 1, 16>}, {pipeline_mode = #tpu.pipeline_mode<synchronous>, transform_indices = @transform_4, window_bounds = array<i64: 16, 48>}, {pipeline_mode = #tpu.pipeline_mode<synchronous>, transform_indices = @transform_5, window_bounds = array<i64: 1, 48>}, {pipeline_mode = #tpu.pipeline_mode<synchronous>, transform_indices = @transform_6, window_bounds = array<i64: 16, 16>}, {pipeline_mode = #tpu.pipeline_mode<synchronous>, transform_indices = @transform_7, window_bounds = array<i64: 1, 16>}, {pipeline_mode = #tpu.pipeline_mode<synchronous>, transform_indices = @transform_8, window_bounds = array<i64: 1, 16>}, {pipeline_mode = #tpu.pipeline_mode<synchronous>, transform_indices = @transform_9, window_bounds = array<i64: 1, 16>}, {pipeline_mode = #tpu.pipeline_mode<synchronous>, transform_indices = @transform_10, window_bounds = array<i64: 16, 64>}, {pipeline_mode = #tpu.pipeline_mode<synchronous>, transform_indices = @transform_11, window_bounds = array<i64: 1, 64>}, {pipeline_mode = #tpu.pipeline_mode<synchronous>, transform_indices = @transform_12, window_bounds = array<i64: 64, 16>}, {pipeline_mode = #tpu.pipeline_mode<synchronous>, transform_indices = @transform_13, window_bounds = array<i64: 1, 16>}, {transform_indices = @transform_14, window_bounds = array<i64: 2, 4, 16, 16>}]} {
    %c0 = arith.constant 0 : index
    %c0_0 = arith.constant 0 : index
    %c0_1 = arith.constant 0 : index
    %c0_2 = arith.constant 0 : index
    %0 = vector.load %arg1[%c0, %c0_0, %c0_1, %c0_2] : memref<2x4x16x16xf32, #tpu.memory_space<vmem>>, vector<2x4x16x16xf32>
    %1 = vector.shape_cast %0 : vector<2x4x16x16xf32> to vector<128x16xf32>
    %cst = arith.constant dense<0.000000e+00> : vector<128xf32>
    %2 = vector.multi_reduction <add>, %1, %cst [1] : vector<128x16xf32> to vector<128xf32>
    %3 = vector.shape_cast %2 : vector<128xf32> to vector<128x1xf32>
    %cst_3 = arith.constant 1.600000e+01 : f32
    %4 = vector.broadcast %cst_3 : f32 to vector<128x1xf32>
    %5 = arith.divf %3, %4 : vector<128x1xf32>
    %6 = vector.broadcast %5 : vector<128x1xf32> to vector<128x16xf32>
    %7 = arith.subf %1, %6 : vector<128x16xf32>
    %8 = arith.mulf %7, %7 : vector<128x16xf32>
    %cst_4 = arith.constant dense<0.000000e+00> : vector<128xf32>
    %9 = vector.multi_reduction <add>, %8, %cst_4 [1] : vector<128x16xf32> to vector<128xf32>
    %10 = vector.shape_cast %9 : vector<128xf32> to vector<128x1xf32>
    %cst_5 = arith.constant 1.600000e+01 : f32
    %11 = vector.broadcast %cst_5 : f32 to vector<128x1xf32>
    %12 = arith.divf %10, %11 : vector<128x1xf32>
    %cst_6 = arith.constant 9.99999974E-6 : f32
    %13 = vector.broadcast %cst_6 : f32 to vector<128x1xf32>
    %14 = arith.addf %12, %13 : vector<128x1xf32>
    %15 = math.rsqrt %14 : vector<128x1xf32>
    %16 = vector.broadcast %15 : vector<128x1xf32> to vector<128x16xf32>
    %17 = arith.mulf %7, %16 : vector<128x16xf32>
    %c0_7 = arith.constant 0 : index
    %c0_8 = arith.constant 0 : index
    %18 = vector.load %arg3[%c0_7, %c0_8] : memref<1x16xf32, #tpu.memory_space<vmem>>, vector<1x16xf32>
    %19 = vector.broadcast %18 : vector<1x16xf32> to vector<128x16xf32>
    %20 = arith.mulf %17, %19 : vector<128x16xf32>
    %c0_9 = arith.constant 0 : index
    %c0_10 = arith.constant 0 : index
    %21 = vector.load %arg4[%c0_9, %c0_10] : memref<1x16xf32, #tpu.memory_space<vmem>>, vector<1x16xf32>
    %22 = vector.broadcast %21 : vector<1x16xf32> to vector<128x16xf32>
    %23 = arith.addf %20, %22 : vector<128x16xf32>
    %24 = arith.truncf %23 : vector<128x16xf32> to vector<128x16xbf16>
    %c0_11 = arith.constant 0 : index
    %c0_12 = arith.constant 0 : index
    %25 = vector.load %arg5[%c0_11, %c0_12] : memref<16x48xbf16, #tpu.memory_space<vmem>>, vector<16x48xbf16>
    %cst_13 = arith.constant dense<0.000000e+00> : vector<128x48xf32>
    %26 = tpu.matmul %24, %25, %cst_13 {dimension_numbers = #tpu.dot_dimension_numbers<[1], [0], [0], [1], [0, 0, 1, 1], [], []>} : vector<128x16xbf16>, vector<16x48xbf16>, vector<128x48xf32> -> vector<128x48xf32>
    %c0_14 = arith.constant 0 : index
    %c0_15 = arith.constant 0 : index
    %27 = vector.load %arg6[%c0_14, %c0_15] : memref<1x48xf32, #tpu.memory_space<vmem>>, vector<1x48xf32>
    %28 = vector.broadcast %27 : vector<1x48xf32> to vector<128x48xf32>
    %29 = arith.addf %26, %28 : vector<128x48xf32>
    %30 = vector.extract_strided_slice %29 {offsets = [0, 0], sizes = [128, 8], strides = [1, 1]} : vector<128x48xf32> to vector<128x8xf32>
    %31 = vector.shape_cast %30 : vector<128x8xf32> to vector<8x16x8xf32>
    %cst_16 = arith.constant 0.353553385 : f32
    %32 = vector.broadcast %cst_16 : f32 to vector<8x16x8xf32>
    %33 = arith.mulf %31, %32 : vector<8x16x8xf32>
    %34 = vector.extract_strided_slice %29 {offsets = [0, 16], sizes = [128, 8], strides = [1, 1]} : vector<128x48xf32> to vector<128x8xf32>
    %35 = vector.shape_cast %34 : vector<128x8xf32> to vector<8x16x8xf32>
    %36 = vector.extract_strided_slice %29 {offsets = [0, 32], sizes = [128, 8], strides = [1, 1]} : vector<128x48xf32> to vector<128x8xf32>
    %37 = vector.shape_cast %36 : vector<128x8xf32> to vector<8x16x8xf32>
    %38 = arith.truncf %33 : vector<8x16x8xf32> to vector<8x16x8xbf16>
    %39 = arith.truncf %35 : vector<8x16x8xf32> to vector<8x16x8xbf16>
    "tpu.trace_start"() <{level = 10 : i32, message = "wqd,wkd->wqk"}> : () -> ()
    %cst_17 = arith.constant dense<0.000000e+00> : vector<8x16x16xf32>
    %40 = tpu.matmul %38, %39, %cst_17 {dimension_numbers = #tpu.dot_dimension_numbers<[2], [2], [1], [1], [0, 0, 0, 1, 1, 1], [0], [0]>} : vector<8x16x8xbf16>, vector<8x16x8xbf16>, vector<8x16x16xf32> -> vector<8x16x16xf32>
    "tpu.trace_stop"() : () -> ()
    %41 = vector.shape_cast %40 : vector<8x16x16xf32> to vector<2x4x16x16xf32>
    %c0_18 = arith.constant 0 : index
    %c0_19 = arith.constant 0 : index
    %c0_20 = arith.constant 0 : index
    %c0_21 = arith.constant 0 : index
    %42 = vector.load %arg2[%c0_18, %c0_19, %c0_20, %c0_21] : memref<2x1x16x16xf32, #tpu.memory_space<vmem>>, vector<1x1x16x16xf32>
    %43 = vector.shape_cast %42 : vector<1x1x16x16xf32> to vector<1x16x16xf32>
    %44 = vector.shape_cast %43 : vector<1x16x16xf32> to vector<1x1x16x16xf32>
    %45 = vector.broadcast %44 : vector<1x1x16x16xf32> to vector<2x4x16x16xf32>
    %46 = arith.addf %41, %45 : vector<2x4x16x16xf32>
    %47 = vector.shape_cast %46 : vector<2x4x16x16xf32> to vector<8x16x16xf32>
    %cst_22 = arith.constant dense<0xFF800000> : vector<8x16xf32>
    %48 = vector.multi_reduction <maximumf>, %47, %cst_22 [2] : vector<8x16x16xf32> to vector<8x16xf32>
    %49 = vector.shape_cast %48 : vector<8x16xf32> to vector<8x16x1xf32>
    %50 = vector.broadcast %49 : vector<8x16x1xf32> to vector<8x16x16xf32>
    %51 = arith.subf %47, %50 : vector<8x16x16xf32>
    %52 = math.exp %51 : vector<8x16x16xf32>
    %cst_23 = arith.constant dense<0.000000e+00> : vector<8x16xf32>
    %53 = vector.multi_reduction <add>, %52, %cst_23 [2] : vector<8x16x16xf32> to vector<8x16xf32>
    %54 = vector.shape_cast %53 : vector<8x16xf32> to vector<8x16x1xf32>
    %55 = tpu.reciprocal %54 {approx = true} : vector<8x16x1xf32> -> vector<8x16x1xf32>
    %56 = vector.broadcast %55 : vector<8x16x1xf32> to vector<8x16x16xf32>
    %57 = arith.mulf %52, %56 : vector<8x16x16xf32>
    %58 = arith.truncf %57 : vector<8x16x16xf32> to vector<8x16x16xbf16>
    %59 = arith.truncf %37 : vector<8x16x8xf32> to vector<8x16x8xbf16>
    "tpu.trace_start"() <{level = 10 : i32, message = "wqk,wkd->wqd"}> : () -> ()
    %cst_24 = arith.constant dense<0.000000e+00> : vector<8x16x8xf32>
    %60 = tpu.matmul %58, %59, %cst_24 {dimension_numbers = #tpu.dot_dimension_numbers<[2], [1], [1], [2], [0, 0, 0, 1, 1, 2], [0], [0]>} : vector<8x16x16xbf16>, vector<8x16x8xbf16>, vector<8x16x8xf32> -> vector<8x16x8xf32>
    "tpu.trace_stop"() : () -> ()
    %61 = vector.extract_strided_slice %29 {offsets = [0, 8], sizes = [128, 8], strides = [1, 1]} : vector<128x48xf32> to vector<128x8xf32>
    %62 = vector.shape_cast %61 : vector<128x8xf32> to vector<8x16x8xf32>
    %cst_25 = arith.constant 0.353553385 : f32
    %63 = vector.broadcast %cst_25 : f32 to vector<8x16x8xf32>
    %64 = arith.mulf %62, %63 : vector<8x16x8xf32>
    %65 = vector.extract_strided_slice %29 {offsets = [0, 24], sizes = [128, 8], strides = [1, 1]} : vector<128x48xf32> to vector<128x8xf32>
    %66 = vector.shape_cast %65 : vector<128x8xf32> to vector<8x16x8xf32>
    %67 = vector.extract_strided_slice %29 {offsets = [0, 40], sizes = [128, 8], strides = [1, 1]} : vector<128x48xf32> to vector<128x8xf32>
    %68 = vector.shape_cast %67 : vector<128x8xf32> to vector<8x16x8xf32>
    %69 = arith.truncf %64 : vector<8x16x8xf32> to vector<8x16x8xbf16>
    %70 = arith.truncf %66 : vector<8x16x8xf32> to vector<8x16x8xbf16>
    "tpu.trace_start"() <{level = 10 : i32, message = "wqd,wkd->wqk"}> : () -> ()
    %cst_26 = arith.constant dense<0.000000e+00> : vector<8x16x16xf32>
    %71 = tpu.matmul %69, %70, %cst_26 {dimension_numbers = #tpu.dot_dimension_numbers<[2], [2], [1], [1], [0, 0, 0, 1, 1, 1], [0], [0]>} : vector<8x16x8xbf16>, vector<8x16x8xbf16>, vector<8x16x16xf32> -> vector<8x16x16xf32>
    "tpu.trace_stop"() : () -> ()
    %72 = vector.shape_cast %71 : vector<8x16x16xf32> to vector<2x4x16x16xf32>
    %c1 = arith.constant 1 : index
    %c0_27 = arith.constant 0 : index
    %c0_28 = arith.constant 0 : index
    %c0_29 = arith.constant 0 : index
    %73 = vector.load %arg2[%c1, %c0_27, %c0_28, %c0_29] : memref<2x1x16x16xf32, #tpu.memory_space<vmem>>, vector<1x1x16x16xf32>
    %74 = vector.shape_cast %73 : vector<1x1x16x16xf32> to vector<1x16x16xf32>
    %75 = vector.shape_cast %74 : vector<1x16x16xf32> to vector<1x1x16x16xf32>
    %76 = vector.broadcast %75 : vector<1x1x16x16xf32> to vector<2x4x16x16xf32>
    %77 = arith.addf %72, %76 : vector<2x4x16x16xf32>
    %78 = vector.shape_cast %77 : vector<2x4x16x16xf32> to vector<8x16x16xf32>
    %cst_30 = arith.constant dense<0xFF800000> : vector<8x16xf32>
    %79 = vector.multi_reduction <maximumf>, %78, %cst_30 [2] : vector<8x16x16xf32> to vector<8x16xf32>
    %80 = vector.shape_cast %79 : vector<8x16xf32> to vector<8x16x1xf32>
    %81 = vector.broadcast %80 : vector<8x16x1xf32> to vector<8x16x16xf32>
    %82 = arith.subf %78, %81 : vector<8x16x16xf32>
    %83 = math.exp %82 : vector<8x16x16xf32>
    %cst_31 = arith.constant dense<0.000000e+00> : vector<8x16xf32>
    %84 = vector.multi_reduction <add>, %83, %cst_31 [2] : vector<8x16x16xf32> to vector<8x16xf32>
    %85 = vector.shape_cast %84 : vector<8x16xf32> to vector<8x16x1xf32>
    %86 = tpu.reciprocal %85 {approx = true} : vector<8x16x1xf32> -> vector<8x16x1xf32>
    %87 = vector.broadcast %86 : vector<8x16x1xf32> to vector<8x16x16xf32>
    %88 = arith.mulf %83, %87 : vector<8x16x16xf32>
    %89 = arith.truncf %88 : vector<8x16x16xf32> to vector<8x16x16xbf16>
    %90 = arith.truncf %68 : vector<8x16x8xf32> to vector<8x16x8xbf16>
    "tpu.trace_start"() <{level = 10 : i32, message = "wqk,wkd->wqd"}> : () -> ()
    %cst_32 = arith.constant dense<0.000000e+00> : vector<8x16x8xf32>
    %91 = tpu.matmul %89, %90, %cst_32 {dimension_numbers = #tpu.dot_dimension_numbers<[2], [1], [1], [2], [0, 0, 0, 1, 1, 2], [0], [0]>} : vector<8x16x16xbf16>, vector<8x16x8xbf16>, vector<8x16x8xf32> -> vector<8x16x8xf32>
    "tpu.trace_stop"() : () -> ()
    %92 = tpu.concatenate %60, %91 in 2 : vector<8x16x8xf32>, vector<8x16x8xf32> -> vector<8x16x16xf32>
    %93 = vector.shape_cast %92 : vector<8x16x16xf32> to vector<128x16xf32>
    %94 = arith.truncf %93 : vector<128x16xf32> to vector<128x16xbf16>
    %c0_33 = arith.constant 0 : index
    %c0_34 = arith.constant 0 : index
    %95 = vector.load %arg7[%c0_33, %c0_34] : memref<16x16xbf16, #tpu.memory_space<vmem>>, vector<16x16xbf16>
    %cst_35 = arith.constant dense<0.000000e+00> : vector<128x16xf32>
    %96 = tpu.matmul %94, %95, %cst_35 {dimension_numbers = #tpu.dot_dimension_numbers<[1], [0], [0], [1], [0, 0, 1, 1], [], []>} : vector<128x16xbf16>, vector<16x16xbf16>, vector<128x16xf32> -> vector<128x16xf32>
    %97 = arith.addf %1, %96 : vector<128x16xf32>
    %c0_36 = arith.constant 0 : index
    %c0_37 = arith.constant 0 : index
    %98 = vector.load %arg8[%c0_36, %c0_37] : memref<1x16xf32, #tpu.memory_space<vmem>>, vector<1x16xf32>
    %99 = vector.broadcast %98 : vector<1x16xf32> to vector<128x16xf32>
    %100 = arith.addf %97, %99 : vector<128x16xf32>
    %cst_38 = arith.constant dense<0.000000e+00> : vector<128xf32>
    %101 = vector.multi_reduction <add>, %100, %cst_38 [1] : vector<128x16xf32> to vector<128xf32>
    %102 = vector.shape_cast %101 : vector<128xf32> to vector<128x1xf32>
    %cst_39 = arith.constant 1.600000e+01 : f32
    %103 = vector.broadcast %cst_39 : f32 to vector<128x1xf32>
    %104 = arith.divf %102, %103 : vector<128x1xf32>
    %105 = vector.broadcast %104 : vector<128x1xf32> to vector<128x16xf32>
    %106 = arith.subf %100, %105 : vector<128x16xf32>
    %107 = arith.mulf %106, %106 : vector<128x16xf32>
    %cst_40 = arith.constant dense<0.000000e+00> : vector<128xf32>
    %108 = vector.multi_reduction <add>, %107, %cst_40 [1] : vector<128x16xf32> to vector<128xf32>
    %109 = vector.shape_cast %108 : vector<128xf32> to vector<128x1xf32>
    %cst_41 = arith.constant 1.600000e+01 : f32
    %110 = vector.broadcast %cst_41 : f32 to vector<128x1xf32>
    %111 = arith.divf %109, %110 : vector<128x1xf32>
    %cst_42 = arith.constant 9.99999974E-6 : f32
    %112 = vector.broadcast %cst_42 : f32 to vector<128x1xf32>
    %113 = arith.addf %111, %112 : vector<128x1xf32>
    %114 = math.rsqrt %113 : vector<128x1xf32>
    %115 = vector.broadcast %114 : vector<128x1xf32> to vector<128x16xf32>
    %116 = arith.mulf %106, %115 : vector<128x16xf32>
    %c0_43 = arith.constant 0 : index
    %c0_44 = arith.constant 0 : index
    %117 = vector.load %arg9[%c0_43, %c0_44] : memref<1x16xf32, #tpu.memory_space<vmem>>, vector<1x16xf32>
    %118 = vector.broadcast %117 : vector<1x16xf32> to vector<128x16xf32>
    %119 = arith.mulf %116, %118 : vector<128x16xf32>
    %c0_45 = arith.constant 0 : index
    %c0_46 = arith.constant 0 : index
    %120 = vector.load %arg10[%c0_45, %c0_46] : memref<1x16xf32, #tpu.memory_space<vmem>>, vector<1x16xf32>
    %121 = vector.broadcast %120 : vector<1x16xf32> to vector<128x16xf32>
    %122 = arith.addf %119, %121 : vector<128x16xf32>
    %123 = arith.truncf %122 : vector<128x16xf32> to vector<128x16xbf16>
    %c0_47 = arith.constant 0 : index
    %c0_48 = arith.constant 0 : index
    %124 = vector.load %arg11[%c0_47, %c0_48] : memref<16x64xbf16, #tpu.memory_space<vmem>>, vector<16x64xbf16>
    %cst_49 = arith.constant dense<0.000000e+00> : vector<128x64xf32>
    %125 = tpu.matmul %123, %124, %cst_49 {dimension_numbers = #tpu.dot_dimension_numbers<[1], [0], [0], [1], [0, 0, 1, 1], [], []>} : vector<128x16xbf16>, vector<16x64xbf16>, vector<128x64xf32> -> vector<128x64xf32>
    %c0_50 = arith.constant 0 : index
    %c0_51 = arith.constant 0 : index
    %126 = vector.load %arg12[%c0_50, %c0_51] : memref<1x64xf32, #tpu.memory_space<vmem>>, vector<1x64xf32>
    %127 = vector.broadcast %126 : vector<1x64xf32> to vector<128x64xf32>
    %128 = arith.addf %125, %127 : vector<128x64xf32>
    %cst_52 = arith.constant 5.000000e-01 : f32
    %129 = vector.broadcast %cst_52 : f32 to vector<128x64xf32>
    %130 = arith.mulf %129, %128 : vector<128x64xf32>
    %cst_53 = arith.constant 0.707106769 : f32
    %131 = vector.broadcast %cst_53 : f32 to vector<128x64xf32>
    %132 = arith.mulf %128, %131 : vector<128x64xf32>
    %133 = math.erf %132 : vector<128x64xf32>
    %cst_54 = arith.constant 1.000000e+00 : f32
    %134 = vector.broadcast %cst_54 : f32 to vector<128x64xf32>
    %135 = arith.addf %134, %133 : vector<128x64xf32>
    %136 = arith.mulf %130, %135 : vector<128x64xf32>
    %137 = arith.truncf %136 : vector<128x64xf32> to vector<128x64xbf16>
    %c0_55 = arith.constant 0 : index
    %c0_56 = arith.constant 0 : index
    %138 = vector.load %arg13[%c0_55, %c0_56] : memref<64x16xbf16, #tpu.memory_space<vmem>>, vector<64x16xbf16>
    %cst_57 = arith.constant dense<0.000000e+00> : vector<128x16xf32>
    %139 = tpu.matmul %137, %138, %cst_57 {dimension_numbers = #tpu.dot_dimension_numbers<[1], [0], [0], [1], [0, 0, 1, 1], [], []>} : vector<128x64xbf16>, vector<64x16xbf16>, vector<128x16xf32> -> vector<128x16xf32>
    %c0_58 = arith.constant 0 : index
    %c0_59 = arith.constant 0 : index
    %140 = vector.load %arg14[%c0_58, %c0_59] : memref<1x16xf32, #tpu.memory_space<vmem>>, vector<1x16xf32>
    %141 = vector.broadcast %140 : vector<1x16xf32> to vector<128x16xf32>
    %142 = arith.addf %139, %141 : vector<128x16xf32>
    %143 = arith.addf %100, %142 : vector<128x16xf32>
    %144 = vector.shape_cast %143 : vector<128x16xf32> to vector<2x4x16x16xf32>
    %c0_60 = arith.constant 0 : index
    %c0_61 = arith.constant 0 : index
    %c0_62 = arith.constant 0 : index
    %c0_63 = arith.constant 0 : index
    %145 = vector.load %arg15[%c0_60, %c0_61, %c0_62, %c0_63] : memref<2x4x16x16xf32, #tpu.memory_space<vmem>>, vector<2x4x16x16xf32>
    tpu.vector_store %arg15[%c0_60, %c0_61, %c0_62, %c0_63], %144 {strides = array<i32>} : memref<2x4x16x16xf32, #tpu.memory_space<vmem>>, vector<2x4x16x16xf32>,
    return
  }
  func.func @transform_0(%arg0: i32) -> (i32, i32, i32, i32) {
    %c0_i32 = arith.constant 0 : i32
    %c0_i32_0 = arith.constant 0 : i32
    %c0_i32_1 = arith.constant 0 : i32
    %c0_i32_2 = arith.constant 0 : i32
    return %arg0, %c0_i32, %c0_i32_0, %c0_i32_1 : i32, i32, i32, i32
  }
  func.func @transform_1(%arg0: i32) -> (i32, i32, i32, i32) {
    %c0_i32 = arith.constant 0 : i32
    %c0_i32_0 = arith.constant 0 : i32
    %c0_i32_1 = arith.constant 0 : i32
    %c0_i32_2 = arith.constant 0 : i32
    %c0_i32_3 = arith.constant 0 : i32
    return %c0_i32, %c0_i32_0, %c0_i32_1, %c0_i32_2 : i32, i32, i32, i32
  }
  func.func @transform_2(%arg0: i32) -> (i32, i32) {
    %c0_i32 = arith.constant 0 : i32
    %c0_i32_0 = arith.constant 0 : i32
    %c0_i32_1 = arith.constant 0 : i32
    return %c0_i32, %c0_i32_0 : i32, i32
  }
  func.func @transform_3(%arg0: i32) -> (i32, i32) {
    %c0_i32 = arith.constant 0 : i32
    %c0_i32_0 = arith.constant 0 : i32
    %c0_i32_1 = arith.constant 0 : i32
    return %c0_i32, %c0_i32_0 : i32, i32
  }
  func.func @transform_4(%arg0: i32) -> (i32, i32) {
    %c0_i32 = arith.constant 0 : i32
    %c0_i32_0 = arith.constant 0 : i32
    %c0_i32_1 = arith.constant 0 : i32
    return %c0_i32, %c0_i32_0 : i32, i32
  }
  func.func @transform_5(%arg0: i32) -> (i32, i32) {
    %c0_i32 = arith.constant 0 : i32
    %c0_i32_0 = arith.constant 0 : i32
    %c0_i32_1 = arith.constant 0 : i32
    return %c0_i32, %c0_i32_0 : i32, i32
  }
  func.func @transform_6(%arg0: i32) -> (i32, i32) {
    %c0_i32 = arith.constant 0 : i32
    %c0_i32_0 = arith.constant 0 : i32
    %c0_i32_1 = arith.constant 0 : i32
    return %c0_i32, %c0_i32_0 : i32, i32
  }
  func.func @transform_7(%arg0: i32) -> (i32, i32) {
    %c0_i32 = arith.constant 0 : i32
    %c0_i32_0 = arith.constant 0 : i32
    %c0_i32_1 = arith.constant 0 : i32
    return %c0_i32, %c0_i32_0 : i32, i32
  }
  func.func @transform_8(%arg0: i32) -> (i32, i32) {
    %c0_i32 = arith.constant 0 : i32
    %c0_i32_0 = arith.constant 0 : i32
    %c0_i32_1 = arith.constant 0 : i32
    return %c0_i32, %c0_i32_0 : i32, i32
  }
  func.func @transform_9(%arg0: i32) -> (i32, i32) {
    %c0_i32 = arith.constant 0 : i32
    %c0_i32_0 = arith.constant 0 : i32
    %c0_i32_1 = arith.constant 0 : i32
    return %c0_i32, %c0_i32_0 : i32, i32
  }
  func.func @transform_10(%arg0: i32) -> (i32, i32) {
    %c0_i32 = arith.constant 0 : i32
    %c0_i32_0 = arith.constant 0 : i32
    %c0_i32_1 = arith.constant 0 : i32
    return %c0_i32, %c0_i32_0 : i32, i32
  }
  func.func @transform_11(%arg0: i32) -> (i32, i32) {
    %c0_i32 = arith.constant 0 : i32
    %c0_i32_0 = arith.constant 0 : i32
    %c0_i32_1 = arith.constant 0 : i32
    return %c0_i32, %c0_i32_0 : i32, i32
  }
  func.func @transform_12(%arg0: i32) -> (i32, i32) {
    %c0_i32 = arith.constant 0 : i32
    %c0_i32_0 = arith.constant 0 : i32
    %c0_i32_1 = arith.constant 0 : i32
    return %c0_i32, %c0_i32_0 : i32, i32
  }
  func.func @transform_13(%arg0: i32) -> (i32, i32) {
    %c0_i32 = arith.constant 0 : i32
    %c0_i32_0 = arith.constant 0 : i32
    %c0_i32_1 = arith.constant 0 : i32
    return %c0_i32, %c0_i32_0 : i32, i32
  }
  func.func @transform_14(%arg0: i32) -> (i32, i32, i32, i32) {
    %c0_i32 = arith.constant 0 : i32
    %c0_i32_0 = arith.constant 0 : i32
    %c0_i32_1 = arith.constant 0 : i32
    %c0_i32_2 = arith.constant 0 : i32
    return %arg0, %c0_i32, %c0_i32_0, %c0_i32_1 : i32, i32, i32, i32
  }
}

module attributes {stable_mosaic.version = 11 : i64} {
  func.func @_swin_block_kernel(%arg0: i32, %arg1: memref<2x4x16x16xf32, #tpu.memory_space<vmem>>, %arg2: memref<2x4x16x16xf32, #tpu.memory_space<vmem>>, %arg3: memref<1x16xf32, #tpu.memory_space<vmem>>, %arg4: memref<1x16xf32, #tpu.memory_space<vmem>>, %arg5: memref<16x48xbf16, #tpu.memory_space<vmem>>, %arg6: memref<1x48xf32, #tpu.memory_space<vmem>>, %arg7: memref<16x16xbf16, #tpu.memory_space<vmem>>, %arg8: memref<1x16xf32, #tpu.memory_space<vmem>>, %arg9: memref<1x16xf32, #tpu.memory_space<vmem>>, %arg10: memref<1x16xf32, #tpu.memory_space<vmem>>, %arg11: memref<16x64xbf16, #tpu.memory_space<vmem>>, %arg12: memref<1x64xf32, #tpu.memory_space<vmem>>, %arg13: memref<64x16xbf16, #tpu.memory_space<vmem>>, %arg14: memref<1x16xf32, #tpu.memory_space<vmem>>, %arg15: memref<2x4x16x16xf32, #tpu.memory_space<vmem>>) attributes {dimension_semantics = [#tpu.dimension_semantics<parallel>], iteration_bounds = array<i64: 1>, scalar_prefetch = 0 : i64, scratch_operands = 0 : i64, tpu.core_type = #tpu.core_type<tc>, window_params = [{transform_indices = @transform_0, window_bounds = array<i64: 2, 4, 16, 16>}, {pipeline_mode = #tpu.pipeline_mode<synchronous>, transform_indices = @transform_1, window_bounds = array<i64: 2, 4, 16, 16>}, {pipeline_mode = #tpu.pipeline_mode<synchronous>, transform_indices = @transform_2, window_bounds = array<i64: 1, 16>}, {pipeline_mode = #tpu.pipeline_mode<synchronous>, transform_indices = @transform_3, window_bounds = array<i64: 1, 16>}, {pipeline_mode = #tpu.pipeline_mode<synchronous>, transform_indices = @transform_4, window_bounds = array<i64: 16, 48>}, {pipeline_mode = #tpu.pipeline_mode<synchronous>, transform_indices = @transform_5, window_bounds = array<i64: 1, 48>}, {pipeline_mode = #tpu.pipeline_mode<synchronous>, transform_indices = @transform_6, window_bounds = array<i64: 16, 16>}, {pipeline_mode = #tpu.pipeline_mode<synchronous>, transform_indices = @transform_7, window_bounds = array<i64: 1, 16>}, {pipeline_mode = #tpu.pipeline_mode<synchronous>, transform_indices = @transform_8, window_bounds = array<i64: 1, 16>}, {pipeline_mode = #tpu.pipeline_mode<synchronous>, transform_indices = @transform_9, window_bounds = array<i64: 1, 16>}, {pipeline_mode = #tpu.pipeline_mode<synchronous>, transform_indices = @transform_10, window_bounds = array<i64: 16, 64>}, {pipeline_mode = #tpu.pipeline_mode<synchronous>, transform_indices = @transform_11, window_bounds = array<i64: 1, 64>}, {pipeline_mode = #tpu.pipeline_mode<synchronous>, transform_indices = @transform_12, window_bounds = array<i64: 64, 16>}, {pipeline_mode = #tpu.pipeline_mode<synchronous>, transform_indices = @transform_13, window_bounds = array<i64: 1, 16>}, {transform_indices = @transform_14, window_bounds = array<i64: 2, 4, 16, 16>}]} {
    %c0 = arith.constant 0 : index
    %c0_0 = arith.constant 0 : index
    %c0_1 = arith.constant 0 : index
    %c0_2 = arith.constant 0 : index
    %0 = vector.load %arg1[%c0, %c0_0, %c0_1, %c0_2] : memref<2x4x16x16xf32, #tpu.memory_space<vmem>>, vector<2x4x16x16xf32>
    %1 = vector.shape_cast %0 : vector<2x4x16x16xf32> to vector<128x16xf32>
    %cst = arith.constant dense<0.000000e+00> : vector<128xf32>
    %2 = vector.multi_reduction <add>, %1, %cst [1] : vector<128x16xf32> to vector<128xf32>
    %3 = vector.shape_cast %2 : vector<128xf32> to vector<128x1xf32>
    %cst_3 = arith.constant 1.600000e+01 : f32
    %4 = vector.broadcast %cst_3 : f32 to vector<128x1xf32>
    %5 = arith.divf %3, %4 : vector<128x1xf32>
    %6 = vector.broadcast %5 : vector<128x1xf32> to vector<128x16xf32>
    %7 = arith.subf %1, %6 : vector<128x16xf32>
    %8 = arith.mulf %7, %7 : vector<128x16xf32>
    %cst_4 = arith.constant dense<0.000000e+00> : vector<128xf32>
    %9 = vector.multi_reduction <add>, %8, %cst_4 [1] : vector<128x16xf32> to vector<128xf32>
    %10 = vector.shape_cast %9 : vector<128xf32> to vector<128x1xf32>
    %cst_5 = arith.constant 1.600000e+01 : f32
    %11 = vector.broadcast %cst_5 : f32 to vector<128x1xf32>
    %12 = arith.divf %10, %11 : vector<128x1xf32>
    %cst_6 = arith.constant 9.99999974E-6 : f32
    %13 = vector.broadcast %cst_6 : f32 to vector<128x1xf32>
    %14 = arith.addf %12, %13 : vector<128x1xf32>
    %15 = math.rsqrt %14 : vector<128x1xf32>
    %16 = vector.broadcast %15 : vector<128x1xf32> to vector<128x16xf32>
    %17 = arith.mulf %7, %16 : vector<128x16xf32>
    %c0_7 = arith.constant 0 : index
    %c0_8 = arith.constant 0 : index
    %18 = vector.load %arg3[%c0_7, %c0_8] : memref<1x16xf32, #tpu.memory_space<vmem>>, vector<1x16xf32>
    %19 = vector.broadcast %18 : vector<1x16xf32> to vector<128x16xf32>
    %20 = arith.mulf %17, %19 : vector<128x16xf32>
    %c0_9 = arith.constant 0 : index
    %c0_10 = arith.constant 0 : index
    %21 = vector.load %arg4[%c0_9, %c0_10] : memref<1x16xf32, #tpu.memory_space<vmem>>, vector<1x16xf32>
    %22 = vector.broadcast %21 : vector<1x16xf32> to vector<128x16xf32>
    %23 = arith.addf %20, %22 : vector<128x16xf32>
    %24 = arith.truncf %23 : vector<128x16xf32> to vector<128x16xbf16>
    %c0_11 = arith.constant 0 : index
    %c0_12 = arith.constant 0 : index
    %25 = vector.load %arg5[%c0_11, %c0_12] : memref<16x48xbf16, #tpu.memory_space<vmem>>, vector<16x48xbf16>
    %cst_13 = arith.constant dense<0.000000e+00> : vector<128x48xf32>
    %26 = tpu.matmul %24, %25, %cst_13 {dimension_numbers = #tpu.dot_dimension_numbers<[1], [0], [0], [1], [0, 0, 1, 1], [], []>} : vector<128x16xbf16>, vector<16x48xbf16>, vector<128x48xf32> -> vector<128x48xf32>
    %c0_14 = arith.constant 0 : index
    %c0_15 = arith.constant 0 : index
    %27 = vector.load %arg6[%c0_14, %c0_15] : memref<1x48xf32, #tpu.memory_space<vmem>>, vector<1x48xf32>
    %28 = vector.broadcast %27 : vector<1x48xf32> to vector<128x48xf32>
    %29 = arith.addf %26, %28 : vector<128x48xf32>
    %30 = vector.extract_strided_slice %29 {offsets = [0, 0], sizes = [128, 8], strides = [1, 1]} : vector<128x48xf32> to vector<128x8xf32>
    %31 = vector.shape_cast %30 : vector<128x8xf32> to vector<8x16x8xf32>
    %cst_16 = arith.constant 0.353553385 : f32
    %32 = vector.broadcast %cst_16 : f32 to vector<8x16x8xf32>
    %33 = arith.mulf %31, %32 : vector<8x16x8xf32>
    %34 = vector.extract_strided_slice %29 {offsets = [0, 16], sizes = [128, 8], strides = [1, 1]} : vector<128x48xf32> to vector<128x8xf32>
    %35 = vector.shape_cast %34 : vector<128x8xf32> to vector<8x16x8xf32>
    %36 = vector.extract_strided_slice %29 {offsets = [0, 32], sizes = [128, 8], strides = [1, 1]} : vector<128x48xf32> to vector<128x8xf32>
    %37 = vector.shape_cast %36 : vector<128x8xf32> to vector<8x16x8xf32>
    %38 = arith.truncf %33 : vector<8x16x8xf32> to vector<8x16x8xbf16>
    %39 = arith.truncf %35 : vector<8x16x8xf32> to vector<8x16x8xbf16>
    "tpu.trace_start"() <{level = 10 : i32, message = "wqd,wkd->wqk"}> : () -> ()
    %cst_17 = arith.constant dense<0.000000e+00> : vector<8x16x16xf32>
    %40 = tpu.matmul %38, %39, %cst_17 {dimension_numbers = #tpu.dot_dimension_numbers<[2], [2], [1], [1], [0, 0, 0, 1, 1, 1], [0], [0]>} : vector<8x16x8xbf16>, vector<8x16x8xbf16>, vector<8x16x16xf32> -> vector<8x16x16xf32>
    "tpu.trace_stop"() : () -> ()
    %41 = vector.shape_cast %40 : vector<8x16x16xf32> to vector<2x4x16x16xf32>
    %c0_18 = arith.constant 0 : index
    %c0_19 = arith.constant 0 : index
    %c0_20 = arith.constant 0 : index
    %c0_21 = arith.constant 0 : index
    %42 = vector.load %arg2[%c0_18, %c0_19, %c0_20, %c0_21] : memref<2x4x16x16xf32, #tpu.memory_space<vmem>>, vector<1x4x16x16xf32>
    %43 = vector.shape_cast %42 : vector<1x4x16x16xf32> to vector<4x16x16xf32>
    %44 = vector.shape_cast %43 : vector<4x16x16xf32> to vector<1x4x16x16xf32>
    %45 = vector.broadcast %44 : vector<1x4x16x16xf32> to vector<2x4x16x16xf32>
    %46 = arith.addf %41, %45 : vector<2x4x16x16xf32>
    %47 = vector.shape_cast %46 : vector<2x4x16x16xf32> to vector<8x16x16xf32>
    %cst_22 = arith.constant dense<0xFF800000> : vector<8x16xf32>
    %48 = vector.multi_reduction <maximumf>, %47, %cst_22 [2] : vector<8x16x16xf32> to vector<8x16xf32>
    %49 = vector.shape_cast %48 : vector<8x16xf32> to vector<8x16x1xf32>
    %50 = vector.broadcast %49 : vector<8x16x1xf32> to vector<8x16x16xf32>
    %51 = arith.subf %47, %50 : vector<8x16x16xf32>
    %52 = math.exp %51 : vector<8x16x16xf32>
    %cst_23 = arith.constant dense<0.000000e+00> : vector<8x16xf32>
    %53 = vector.multi_reduction <add>, %52, %cst_23 [2] : vector<8x16x16xf32> to vector<8x16xf32>
    %54 = vector.shape_cast %53 : vector<8x16xf32> to vector<8x16x1xf32>
    %55 = tpu.reciprocal %54 {approx = true} : vector<8x16x1xf32> -> vector<8x16x1xf32>
    %56 = vector.broadcast %55 : vector<8x16x1xf32> to vector<8x16x16xf32>
    %57 = arith.mulf %52, %56 : vector<8x16x16xf32>
    %58 = arith.truncf %57 : vector<8x16x16xf32> to vector<8x16x16xbf16>
    %59 = arith.truncf %37 : vector<8x16x8xf32> to vector<8x16x8xbf16>
    "tpu.trace_start"() <{level = 10 : i32, message = "wqk,wkd->wqd"}> : () -> ()
    %cst_24 = arith.constant dense<0.000000e+00> : vector<8x16x8xf32>
    %60 = tpu.matmul %58, %59, %cst_24 {dimension_numbers = #tpu.dot_dimension_numbers<[2], [1], [1], [2], [0, 0, 0, 1, 1, 2], [0], [0]>} : vector<8x16x16xbf16>, vector<8x16x8xbf16>, vector<8x16x8xf32> -> vector<8x16x8xf32>
    "tpu.trace_stop"() : () -> ()
    %61 = vector.extract_strided_slice %29 {offsets = [0, 8], sizes = [128, 8], strides = [1, 1]} : vector<128x48xf32> to vector<128x8xf32>
    %62 = vector.shape_cast %61 : vector<128x8xf32> to vector<8x16x8xf32>
    %cst_25 = arith.constant 0.353553385 : f32
    %63 = vector.broadcast %cst_25 : f32 to vector<8x16x8xf32>
    %64 = arith.mulf %62, %63 : vector<8x16x8xf32>
    %65 = vector.extract_strided_slice %29 {offsets = [0, 24], sizes = [128, 8], strides = [1, 1]} : vector<128x48xf32> to vector<128x8xf32>
    %66 = vector.shape_cast %65 : vector<128x8xf32> to vector<8x16x8xf32>
    %67 = vector.extract_strided_slice %29 {offsets = [0, 40], sizes = [128, 8], strides = [1, 1]} : vector<128x48xf32> to vector<128x8xf32>
    %68 = vector.shape_cast %67 : vector<128x8xf32> to vector<8x16x8xf32>
    %69 = arith.truncf %64 : vector<8x16x8xf32> to vector<8x16x8xbf16>
    %70 = arith.truncf %66 : vector<8x16x8xf32> to vector<8x16x8xbf16>
    "tpu.trace_start"() <{level = 10 : i32, message = "wqd,wkd->wqk"}> : () -> ()
    %cst_26 = arith.constant dense<0.000000e+00> : vector<8x16x16xf32>
    %71 = tpu.matmul %69, %70, %cst_26 {dimension_numbers = #tpu.dot_dimension_numbers<[2], [2], [1], [1], [0, 0, 0, 1, 1, 1], [0], [0]>} : vector<8x16x8xbf16>, vector<8x16x8xbf16>, vector<8x16x16xf32> -> vector<8x16x16xf32>
    "tpu.trace_stop"() : () -> ()
    %72 = vector.shape_cast %71 : vector<8x16x16xf32> to vector<2x4x16x16xf32>
    %c1 = arith.constant 1 : index
    %c0_27 = arith.constant 0 : index
    %c0_28 = arith.constant 0 : index
    %c0_29 = arith.constant 0 : index
    %73 = vector.load %arg2[%c1, %c0_27, %c0_28, %c0_29] : memref<2x4x16x16xf32, #tpu.memory_space<vmem>>, vector<1x4x16x16xf32>
    %74 = vector.shape_cast %73 : vector<1x4x16x16xf32> to vector<4x16x16xf32>
    %75 = vector.shape_cast %74 : vector<4x16x16xf32> to vector<1x4x16x16xf32>
    %76 = vector.broadcast %75 : vector<1x4x16x16xf32> to vector<2x4x16x16xf32>
    %77 = arith.addf %72, %76 : vector<2x4x16x16xf32>
    %78 = vector.shape_cast %77 : vector<2x4x16x16xf32> to vector<8x16x16xf32>
    %cst_30 = arith.constant dense<0xFF800000> : vector<8x16xf32>
    %79 = vector.multi_reduction <maximumf>, %78, %cst_30 [2] : vector<8x16x16xf32> to vector<8x16xf32>
    %80 = vector.shape_cast %79 : vector<8x16xf32> to vector<8x16x1xf32>
    %81 = vector.broadcast %80 : vector<8x16x1xf32> to vector<8x16x16xf32>
    %82 = arith.subf %78, %81 : vector<8x16x16xf32>
    %83 = math.exp %82 : vector<8x16x16xf32>
    %cst_31 = arith.constant dense<0.000000e+00> : vector<8x16xf32>
    %84 = vector.multi_reduction <add>, %83, %cst_31 [2] : vector<8x16x16xf32> to vector<8x16xf32>
    %85 = vector.shape_cast %84 : vector<8x16xf32> to vector<8x16x1xf32>
    %86 = tpu.reciprocal %85 {approx = true} : vector<8x16x1xf32> -> vector<8x16x1xf32>
    %87 = vector.broadcast %86 : vector<8x16x1xf32> to vector<8x16x16xf32>
    %88 = arith.mulf %83, %87 : vector<8x16x16xf32>
    %89 = arith.truncf %88 : vector<8x16x16xf32> to vector<8x16x16xbf16>
    %90 = arith.truncf %68 : vector<8x16x8xf32> to vector<8x16x8xbf16>
    "tpu.trace_start"() <{level = 10 : i32, message = "wqk,wkd->wqd"}> : () -> ()
    %cst_32 = arith.constant dense<0.000000e+00> : vector<8x16x8xf32>
    %91 = tpu.matmul %89, %90, %cst_32 {dimension_numbers = #tpu.dot_dimension_numbers<[2], [1], [1], [2], [0, 0, 0, 1, 1, 2], [0], [0]>} : vector<8x16x16xbf16>, vector<8x16x8xbf16>, vector<8x16x8xf32> -> vector<8x16x8xf32>
    "tpu.trace_stop"() : () -> ()
    %92 = tpu.concatenate %60, %91 in 2 : vector<8x16x8xf32>, vector<8x16x8xf32> -> vector<8x16x16xf32>
    %93 = vector.shape_cast %92 : vector<8x16x16xf32> to vector<128x16xf32>
    %94 = arith.truncf %93 : vector<128x16xf32> to vector<128x16xbf16>
    %c0_33 = arith.constant 0 : index
    %c0_34 = arith.constant 0 : index
    %95 = vector.load %arg7[%c0_33, %c0_34] : memref<16x16xbf16, #tpu.memory_space<vmem>>, vector<16x16xbf16>
    %cst_35 = arith.constant dense<0.000000e+00> : vector<128x16xf32>
    %96 = tpu.matmul %94, %95, %cst_35 {dimension_numbers = #tpu.dot_dimension_numbers<[1], [0], [0], [1], [0, 0, 1, 1], [], []>} : vector<128x16xbf16>, vector<16x16xbf16>, vector<128x16xf32> -> vector<128x16xf32>
    %97 = arith.addf %1, %96 : vector<128x16xf32>
    %c0_36 = arith.constant 0 : index
    %c0_37 = arith.constant 0 : index
    %98 = vector.load %arg8[%c0_36, %c0_37] : memref<1x16xf32, #tpu.memory_space<vmem>>, vector<1x16xf32>
    %99 = vector.broadcast %98 : vector<1x16xf32> to vector<128x16xf32>
    %100 = arith.addf %97, %99 : vector<128x16xf32>
    %cst_38 = arith.constant dense<0.000000e+00> : vector<128xf32>
    %101 = vector.multi_reduction <add>, %100, %cst_38 [1] : vector<128x16xf32> to vector<128xf32>
    %102 = vector.shape_cast %101 : vector<128xf32> to vector<128x1xf32>
    %cst_39 = arith.constant 1.600000e+01 : f32
    %103 = vector.broadcast %cst_39 : f32 to vector<128x1xf32>
    %104 = arith.divf %102, %103 : vector<128x1xf32>
    %105 = vector.broadcast %104 : vector<128x1xf32> to vector<128x16xf32>
    %106 = arith.subf %100, %105 : vector<128x16xf32>
    %107 = arith.mulf %106, %106 : vector<128x16xf32>
    %cst_40 = arith.constant dense<0.000000e+00> : vector<128xf32>
    %108 = vector.multi_reduction <add>, %107, %cst_40 [1] : vector<128x16xf32> to vector<128xf32>
    %109 = vector.shape_cast %108 : vector<128xf32> to vector<128x1xf32>
    %cst_41 = arith.constant 1.600000e+01 : f32
    %110 = vector.broadcast %cst_41 : f32 to vector<128x1xf32>
    %111 = arith.divf %109, %110 : vector<128x1xf32>
    %cst_42 = arith.constant 9.99999974E-6 : f32
    %112 = vector.broadcast %cst_42 : f32 to vector<128x1xf32>
    %113 = arith.addf %111, %112 : vector<128x1xf32>
    %114 = math.rsqrt %113 : vector<128x1xf32>
    %115 = vector.broadcast %114 : vector<128x1xf32> to vector<128x16xf32>
    %116 = arith.mulf %106, %115 : vector<128x16xf32>
    %c0_43 = arith.constant 0 : index
    %c0_44 = arith.constant 0 : index
    %117 = vector.load %arg9[%c0_43, %c0_44] : memref<1x16xf32, #tpu.memory_space<vmem>>, vector<1x16xf32>
    %118 = vector.broadcast %117 : vector<1x16xf32> to vector<128x16xf32>
    %119 = arith.mulf %116, %118 : vector<128x16xf32>
    %c0_45 = arith.constant 0 : index
    %c0_46 = arith.constant 0 : index
    %120 = vector.load %arg10[%c0_45, %c0_46] : memref<1x16xf32, #tpu.memory_space<vmem>>, vector<1x16xf32>
    %121 = vector.broadcast %120 : vector<1x16xf32> to vector<128x16xf32>
    %122 = arith.addf %119, %121 : vector<128x16xf32>
    %123 = arith.truncf %122 : vector<128x16xf32> to vector<128x16xbf16>
    %c0_47 = arith.constant 0 : index
    %c0_48 = arith.constant 0 : index
    %124 = vector.load %arg11[%c0_47, %c0_48] : memref<16x64xbf16, #tpu.memory_space<vmem>>, vector<16x64xbf16>
    %cst_49 = arith.constant dense<0.000000e+00> : vector<128x64xf32>
    %125 = tpu.matmul %123, %124, %cst_49 {dimension_numbers = #tpu.dot_dimension_numbers<[1], [0], [0], [1], [0, 0, 1, 1], [], []>} : vector<128x16xbf16>, vector<16x64xbf16>, vector<128x64xf32> -> vector<128x64xf32>
    %c0_50 = arith.constant 0 : index
    %c0_51 = arith.constant 0 : index
    %126 = vector.load %arg12[%c0_50, %c0_51] : memref<1x64xf32, #tpu.memory_space<vmem>>, vector<1x64xf32>
    %127 = vector.broadcast %126 : vector<1x64xf32> to vector<128x64xf32>
    %128 = arith.addf %125, %127 : vector<128x64xf32>
    %cst_52 = arith.constant 5.000000e-01 : f32
    %129 = vector.broadcast %cst_52 : f32 to vector<128x64xf32>
    %130 = arith.mulf %129, %128 : vector<128x64xf32>
    %cst_53 = arith.constant 0.707106769 : f32
    %131 = vector.broadcast %cst_53 : f32 to vector<128x64xf32>
    %132 = arith.mulf %128, %131 : vector<128x64xf32>
    %133 = math.erf %132 : vector<128x64xf32>
    %cst_54 = arith.constant 1.000000e+00 : f32
    %134 = vector.broadcast %cst_54 : f32 to vector<128x64xf32>
    %135 = arith.addf %134, %133 : vector<128x64xf32>
    %136 = arith.mulf %130, %135 : vector<128x64xf32>
    %137 = arith.truncf %136 : vector<128x64xf32> to vector<128x64xbf16>
    %c0_55 = arith.constant 0 : index
    %c0_56 = arith.constant 0 : index
    %138 = vector.load %arg13[%c0_55, %c0_56] : memref<64x16xbf16, #tpu.memory_space<vmem>>, vector<64x16xbf16>
    %cst_57 = arith.constant dense<0.000000e+00> : vector<128x16xf32>
    %139 = tpu.matmul %137, %138, %cst_57 {dimension_numbers = #tpu.dot_dimension_numbers<[1], [0], [0], [1], [0, 0, 1, 1], [], []>} : vector<128x64xbf16>, vector<64x16xbf16>, vector<128x16xf32> -> vector<128x16xf32>
    %c0_58 = arith.constant 0 : index
    %c0_59 = arith.constant 0 : index
    %140 = vector.load %arg14[%c0_58, %c0_59] : memref<1x16xf32, #tpu.memory_space<vmem>>, vector<1x16xf32>
    %141 = vector.broadcast %140 : vector<1x16xf32> to vector<128x16xf32>
    %142 = arith.addf %139, %141 : vector<128x16xf32>
    %143 = arith.addf %100, %142 : vector<128x16xf32>
    %144 = vector.shape_cast %143 : vector<128x16xf32> to vector<2x4x16x16xf32>
    %c0_60 = arith.constant 0 : index
    %c0_61 = arith.constant 0 : index
    %c0_62 = arith.constant 0 : index
    %c0_63 = arith.constant 0 : index
    %145 = vector.load %arg15[%c0_60, %c0_61, %c0_62, %c0_63] : memref<2x4x16x16xf32, #tpu.memory_space<vmem>>, vector<2x4x16x16xf32>
    tpu.vector_store %arg15[%c0_60, %c0_61, %c0_62, %c0_63], %144 {strides = array<i32>} : memref<2x4x16x16xf32, #tpu.memory_space<vmem>>, vector<2x4x16x16xf32>,
    return
  }
  func.func @transform_0(%arg0: i32) -> (i32, i32, i32, i32) {
    %c0_i32 = arith.constant 0 : i32
    %c0_i32_0 = arith.constant 0 : i32
    %c0_i32_1 = arith.constant 0 : i32
    %c0_i32_2 = arith.constant 0 : i32
    return %arg0, %c0_i32, %c0_i32_0, %c0_i32_1 : i32, i32, i32, i32
  }
  func.func @transform_1(%arg0: i32) -> (i32, i32, i32, i32) {
    %c0_i32 = arith.constant 0 : i32
    %c0_i32_0 = arith.constant 0 : i32
    %c0_i32_1 = arith.constant 0 : i32
    %c0_i32_2 = arith.constant 0 : i32
    %c0_i32_3 = arith.constant 0 : i32
    return %c0_i32, %c0_i32_0, %c0_i32_1, %c0_i32_2 : i32, i32, i32, i32
  }
  func.func @transform_2(%arg0: i32) -> (i32, i32) {
    %c0_i32 = arith.constant 0 : i32
    %c0_i32_0 = arith.constant 0 : i32
    %c0_i32_1 = arith.constant 0 : i32
    return %c0_i32, %c0_i32_0 : i32, i32
  }
  func.func @transform_3(%arg0: i32) -> (i32, i32) {
    %c0_i32 = arith.constant 0 : i32
    %c0_i32_0 = arith.constant 0 : i32
    %c0_i32_1 = arith.constant 0 : i32
    return %c0_i32, %c0_i32_0 : i32, i32
  }
  func.func @transform_4(%arg0: i32) -> (i32, i32) {
    %c0_i32 = arith.constant 0 : i32
    %c0_i32_0 = arith.constant 0 : i32
    %c0_i32_1 = arith.constant 0 : i32
    return %c0_i32, %c0_i32_0 : i32, i32
  }
  func.func @transform_5(%arg0: i32) -> (i32, i32) {
    %c0_i32 = arith.constant 0 : i32
    %c0_i32_0 = arith.constant 0 : i32
    %c0_i32_1 = arith.constant 0 : i32
    return %c0_i32, %c0_i32_0 : i32, i32
  }
  func.func @transform_6(%arg0: i32) -> (i32, i32) {
    %c0_i32 = arith.constant 0 : i32
    %c0_i32_0 = arith.constant 0 : i32
    %c0_i32_1 = arith.constant 0 : i32
    return %c0_i32, %c0_i32_0 : i32, i32
  }
  func.func @transform_7(%arg0: i32) -> (i32, i32) {
    %c0_i32 = arith.constant 0 : i32
    %c0_i32_0 = arith.constant 0 : i32
    %c0_i32_1 = arith.constant 0 : i32
    return %c0_i32, %c0_i32_0 : i32, i32
  }
  func.func @transform_8(%arg0: i32) -> (i32, i32) {
    %c0_i32 = arith.constant 0 : i32
    %c0_i32_0 = arith.constant 0 : i32
    %c0_i32_1 = arith.constant 0 : i32
    return %c0_i32, %c0_i32_0 : i32, i32
  }
  func.func @transform_9(%arg0: i32) -> (i32, i32) {
    %c0_i32 = arith.constant 0 : i32
    %c0_i32_0 = arith.constant 0 : i32
    %c0_i32_1 = arith.constant 0 : i32
    return %c0_i32, %c0_i32_0 : i32, i32
  }
  func.func @transform_10(%arg0: i32) -> (i32, i32) {
    %c0_i32 = arith.constant 0 : i32
    %c0_i32_0 = arith.constant 0 : i32
    %c0_i32_1 = arith.constant 0 : i32
    return %c0_i32, %c0_i32_0 : i32, i32
  }
  func.func @transform_11(%arg0: i32) -> (i32, i32) {
    %c0_i32 = arith.constant 0 : i32
    %c0_i32_0 = arith.constant 0 : i32
    %c0_i32_1 = arith.constant 0 : i32
    return %c0_i32, %c0_i32_0 : i32, i32
  }
  func.func @transform_12(%arg0: i32) -> (i32, i32) {
    %c0_i32 = arith.constant 0 : i32
    %c0_i32_0 = arith.constant 0 : i32
    %c0_i32_1 = arith.constant 0 : i32
    return %c0_i32, %c0_i32_0 : i32, i32
  }
  func.func @transform_13(%arg0: i32) -> (i32, i32) {
    %c0_i32 = arith.constant 0 : i32
    %c0_i32_0 = arith.constant 0 : i32
    %c0_i32_1 = arith.constant 0 : i32
    return %c0_i32, %c0_i32_0 : i32, i32
  }
  func.func @transform_14(%arg0: i32) -> (i32, i32, i32, i32) {
    %c0_i32 = arith.constant 0 : i32
    %c0_i32_0 = arith.constant 0 : i32
    %c0_i32_1 = arith.constant 0 : i32
    %c0_i32_2 = arith.constant 0 : i32
    return %arg0, %c0_i32, %c0_i32_0, %c0_i32_1 : i32, i32, i32, i32
  }
}

module attributes {stable_mosaic.version = 11 : i64} {
  func.func @_ln_matmul_kernel(%arg0: i32, %arg1: memref<32x64xf32, #tpu.memory_space<vmem>>, %arg2: memref<1x64xf32, #tpu.memory_space<vmem>>, %arg3: memref<1x64xf32, #tpu.memory_space<vmem>>, %arg4: memref<64x32xf32, #tpu.memory_space<vmem>>, %arg5: memref<32x32xf32, #tpu.memory_space<vmem>>) attributes {dimension_semantics = [#tpu.dimension_semantics<parallel>], iteration_bounds = array<i64: 1>, scalar_prefetch = 0 : i64, scratch_operands = 0 : i64, tpu.core_type = #tpu.core_type<tc>, window_params = [{transform_indices = @transform_0, window_bounds = array<i64: 32, 64>}, {pipeline_mode = #tpu.pipeline_mode<synchronous>, transform_indices = @transform_1, window_bounds = array<i64: 1, 64>}, {pipeline_mode = #tpu.pipeline_mode<synchronous>, transform_indices = @transform_2, window_bounds = array<i64: 1, 64>}, {pipeline_mode = #tpu.pipeline_mode<synchronous>, transform_indices = @transform_3, window_bounds = array<i64: 64, 32>}, {transform_indices = @transform_4, window_bounds = array<i64: 32, 32>}]} {
    %c0 = arith.constant 0 : index
    %c0_0 = arith.constant 0 : index
    %0 = vector.load %arg1[%c0, %c0_0] : memref<32x64xf32, #tpu.memory_space<vmem>>, vector<32x64xf32>
    %cst = arith.constant dense<0.000000e+00> : vector<32xf32>
    %1 = vector.multi_reduction <add>, %0, %cst [1] : vector<32x64xf32> to vector<32xf32>
    %2 = vector.shape_cast %1 : vector<32xf32> to vector<32x1xf32>
    %cst_1 = arith.constant 6.400000e+01 : f32
    %3 = vector.broadcast %cst_1 : f32 to vector<32x1xf32>
    %4 = arith.divf %2, %3 : vector<32x1xf32>
    %5 = vector.broadcast %4 : vector<32x1xf32> to vector<32x64xf32>
    %6 = arith.subf %0, %5 : vector<32x64xf32>
    %7 = arith.mulf %6, %6 : vector<32x64xf32>
    %cst_2 = arith.constant dense<0.000000e+00> : vector<32xf32>
    %8 = vector.multi_reduction <add>, %7, %cst_2 [1] : vector<32x64xf32> to vector<32xf32>
    %9 = vector.shape_cast %8 : vector<32xf32> to vector<32x1xf32>
    %cst_3 = arith.constant 6.400000e+01 : f32
    %10 = vector.broadcast %cst_3 : f32 to vector<32x1xf32>
    %11 = arith.divf %9, %10 : vector<32x1xf32>
    %cst_4 = arith.constant 9.99999974E-6 : f32
    %12 = vector.broadcast %cst_4 : f32 to vector<32x1xf32>
    %13 = arith.addf %11, %12 : vector<32x1xf32>
    %14 = math.rsqrt %13 : vector<32x1xf32>
    %15 = vector.broadcast %14 : vector<32x1xf32> to vector<32x64xf32>
    %16 = arith.mulf %6, %15 : vector<32x64xf32>
    %c0_5 = arith.constant 0 : index
    %c0_6 = arith.constant 0 : index
    %17 = vector.load %arg2[%c0_5, %c0_6] : memref<1x64xf32, #tpu.memory_space<vmem>>, vector<1x64xf32>
    %18 = vector.broadcast %17 : vector<1x64xf32> to vector<32x64xf32>
    %19 = arith.mulf %16, %18 : vector<32x64xf32>
    %c0_7 = arith.constant 0 : index
    %c0_8 = arith.constant 0 : index
    %20 = vector.load %arg3[%c0_7, %c0_8] : memref<1x64xf32, #tpu.memory_space<vmem>>, vector<1x64xf32>
    %21 = vector.broadcast %20 : vector<1x64xf32> to vector<32x64xf32>
    %22 = arith.addf %19, %21 : vector<32x64xf32>
    %c0_9 = arith.constant 0 : index
    %c0_10 = arith.constant 0 : index
    %23 = vector.load %arg4[%c0_9, %c0_10] : memref<64x32xf32, #tpu.memory_space<vmem>>, vector<64x32xf32>
    %cst_11 = arith.constant dense<0.000000e+00> : vector<32x32xf32>
    %24 = tpu.matmul %22, %23, %cst_11 {dimension_numbers = #tpu.dot_dimension_numbers<[1], [0], [0], [1], [0, 0, 1, 1], [], []>} : vector<32x64xf32>, vector<64x32xf32>, vector<32x32xf32> -> vector<32x32xf32>
    %c0_12 = arith.constant 0 : index
    %c0_13 = arith.constant 0 : index
    %25 = vector.load %arg5[%c0_12, %c0_13] : memref<32x32xf32, #tpu.memory_space<vmem>>, vector<32x32xf32>
    tpu.vector_store %arg5[%c0_12, %c0_13], %24 {strides = array<i32>} : memref<32x32xf32, #tpu.memory_space<vmem>>, vector<32x32xf32>,
    return
  }
  func.func @transform_0(%arg0: i32) -> (i32, i32) {
    %c0_i32 = arith.constant 0 : i32
    %c0_i32_0 = arith.constant 0 : i32
    return %arg0, %c0_i32 : i32, i32
  }
  func.func @transform_1(%arg0: i32) -> (i32, i32) {
    %c0_i32 = arith.constant 0 : i32
    %c0_i32_0 = arith.constant 0 : i32
    %c0_i32_1 = arith.constant 0 : i32
    return %c0_i32, %c0_i32_0 : i32, i32
  }
  func.func @transform_2(%arg0: i32) -> (i32, i32) {
    %c0_i32 = arith.constant 0 : i32
    %c0_i32_0 = arith.constant 0 : i32
    %c0_i32_1 = arith.constant 0 : i32
    return %c0_i32, %c0_i32_0 : i32, i32
  }
  func.func @transform_3(%arg0: i32) -> (i32, i32) {
    %c0_i32 = arith.constant 0 : i32
    %c0_i32_0 = arith.constant 0 : i32
    %c0_i32_1 = arith.constant 0 : i32
    return %c0_i32, %c0_i32_0 : i32, i32
  }
  func.func @transform_4(%arg0: i32) -> (i32, i32) {
    %c0_i32 = arith.constant 0 : i32
    %c0_i32_0 = arith.constant 0 : i32
    return %arg0, %c0_i32 : i32, i32
  }
}

module attributes {stable_mosaic.version = 11 : i64} {
  func.func @_swin_block_kernel(%arg0: i32, %arg1: memref<2x1x16x32xf32, #tpu.memory_space<vmem>>, %arg2: memref<4x1x16x16xf32, #tpu.memory_space<vmem>>, %arg3: memref<1x32xf32, #tpu.memory_space<vmem>>, %arg4: memref<1x32xf32, #tpu.memory_space<vmem>>, %arg5: memref<32x96xbf16, #tpu.memory_space<vmem>>, %arg6: memref<1x96xf32, #tpu.memory_space<vmem>>, %arg7: memref<32x32xbf16, #tpu.memory_space<vmem>>, %arg8: memref<1x32xf32, #tpu.memory_space<vmem>>, %arg9: memref<1x32xf32, #tpu.memory_space<vmem>>, %arg10: memref<1x32xf32, #tpu.memory_space<vmem>>, %arg11: memref<32x128xbf16, #tpu.memory_space<vmem>>, %arg12: memref<1x128xf32, #tpu.memory_space<vmem>>, %arg13: memref<128x32xbf16, #tpu.memory_space<vmem>>, %arg14: memref<1x32xf32, #tpu.memory_space<vmem>>, %arg15: memref<2x1x16x32xf32, #tpu.memory_space<vmem>>) attributes {dimension_semantics = [#tpu.dimension_semantics<parallel>], iteration_bounds = array<i64: 1>, scalar_prefetch = 0 : i64, scratch_operands = 0 : i64, tpu.core_type = #tpu.core_type<tc>, window_params = [{transform_indices = @transform_0, window_bounds = array<i64: 2, 1, 16, 32>}, {pipeline_mode = #tpu.pipeline_mode<synchronous>, transform_indices = @transform_1, window_bounds = array<i64: 4, 1, 16, 16>}, {pipeline_mode = #tpu.pipeline_mode<synchronous>, transform_indices = @transform_2, window_bounds = array<i64: 1, 32>}, {pipeline_mode = #tpu.pipeline_mode<synchronous>, transform_indices = @transform_3, window_bounds = array<i64: 1, 32>}, {pipeline_mode = #tpu.pipeline_mode<synchronous>, transform_indices = @transform_4, window_bounds = array<i64: 32, 96>}, {pipeline_mode = #tpu.pipeline_mode<synchronous>, transform_indices = @transform_5, window_bounds = array<i64: 1, 96>}, {pipeline_mode = #tpu.pipeline_mode<synchronous>, transform_indices = @transform_6, window_bounds = array<i64: 32, 32>}, {pipeline_mode = #tpu.pipeline_mode<synchronous>, transform_indices = @transform_7, window_bounds = array<i64: 1, 32>}, {pipeline_mode = #tpu.pipeline_mode<synchronous>, transform_indices = @transform_8, window_bounds = array<i64: 1, 32>}, {pipeline_mode = #tpu.pipeline_mode<synchronous>, transform_indices = @transform_9, window_bounds = array<i64: 1, 32>}, {pipeline_mode = #tpu.pipeline_mode<synchronous>, transform_indices = @transform_10, window_bounds = array<i64: 32, 128>}, {pipeline_mode = #tpu.pipeline_mode<synchronous>, transform_indices = @transform_11, window_bounds = array<i64: 1, 128>}, {pipeline_mode = #tpu.pipeline_mode<synchronous>, transform_indices = @transform_12, window_bounds = array<i64: 128, 32>}, {pipeline_mode = #tpu.pipeline_mode<synchronous>, transform_indices = @transform_13, window_bounds = array<i64: 1, 32>}, {transform_indices = @transform_14, window_bounds = array<i64: 2, 1, 16, 32>}]} {
    %c0 = arith.constant 0 : index
    %c0_0 = arith.constant 0 : index
    %c0_1 = arith.constant 0 : index
    %c0_2 = arith.constant 0 : index
    %0 = vector.load %arg1[%c0, %c0_0, %c0_1, %c0_2] : memref<2x1x16x32xf32, #tpu.memory_space<vmem>>, vector<2x1x16x32xf32>
    %1 = vector.shape_cast %0 : vector<2x1x16x32xf32> to vector<32x32xf32>
    %cst = arith.constant dense<0.000000e+00> : vector<32xf32>
    %2 = vector.multi_reduction <add>, %1, %cst [1] : vector<32x32xf32> to vector<32xf32>
    %3 = vector.shape_cast %2 : vector<32xf32> to vector<32x1xf32>
    %cst_3 = arith.constant 3.200000e+01 : f32
    %4 = vector.broadcast %cst_3 : f32 to vector<32x1xf32>
    %5 = arith.divf %3, %4 : vector<32x1xf32>
    %6 = vector.broadcast %5 : vector<32x1xf32> to vector<32x32xf32>
    %7 = arith.subf %1, %6 : vector<32x32xf32>
    %8 = arith.mulf %7, %7 : vector<32x32xf32>
    %cst_4 = arith.constant dense<0.000000e+00> : vector<32xf32>
    %9 = vector.multi_reduction <add>, %8, %cst_4 [1] : vector<32x32xf32> to vector<32xf32>
    %10 = vector.shape_cast %9 : vector<32xf32> to vector<32x1xf32>
    %cst_5 = arith.constant 3.200000e+01 : f32
    %11 = vector.broadcast %cst_5 : f32 to vector<32x1xf32>
    %12 = arith.divf %10, %11 : vector<32x1xf32>
    %cst_6 = arith.constant 9.99999974E-6 : f32
    %13 = vector.broadcast %cst_6 : f32 to vector<32x1xf32>
    %14 = arith.addf %12, %13 : vector<32x1xf32>
    %15 = math.rsqrt %14 : vector<32x1xf32>
    %16 = vector.broadcast %15 : vector<32x1xf32> to vector<32x32xf32>
    %17 = arith.mulf %7, %16 : vector<32x32xf32>
    %c0_7 = arith.constant 0 : index
    %c0_8 = arith.constant 0 : index
    %18 = vector.load %arg3[%c0_7, %c0_8] : memref<1x32xf32, #tpu.memory_space<vmem>>, vector<1x32xf32>
    %19 = vector.broadcast %18 : vector<1x32xf32> to vector<32x32xf32>
    %20 = arith.mulf %17, %19 : vector<32x32xf32>
    %c0_9 = arith.constant 0 : index
    %c0_10 = arith.constant 0 : index
    %21 = vector.load %arg4[%c0_9, %c0_10] : memref<1x32xf32, #tpu.memory_space<vmem>>, vector<1x32xf32>
    %22 = vector.broadcast %21 : vector<1x32xf32> to vector<32x32xf32>
    %23 = arith.addf %20, %22 : vector<32x32xf32>
    %24 = arith.truncf %23 : vector<32x32xf32> to vector<32x32xbf16>
    %c0_11 = arith.constant 0 : index
    %c0_12 = arith.constant 0 : index
    %25 = vector.load %arg5[%c0_11, %c0_12] : memref<32x96xbf16, #tpu.memory_space<vmem>>, vector<32x96xbf16>
    %cst_13 = arith.constant dense<0.000000e+00> : vector<32x96xf32>
    %26 = tpu.matmul %24, %25, %cst_13 {dimension_numbers = #tpu.dot_dimension_numbers<[1], [0], [0], [1], [0, 0, 1, 1], [], []>} : vector<32x32xbf16>, vector<32x96xbf16>, vector<32x96xf32> -> vector<32x96xf32>
    %c0_14 = arith.constant 0 : index
    %c0_15 = arith.constant 0 : index
    %27 = vector.load %arg6[%c0_14, %c0_15] : memref<1x96xf32, #tpu.memory_space<vmem>>, vector<1x96xf32>
    %28 = vector.broadcast %27 : vector<1x96xf32> to vector<32x96xf32>
    %29 = arith.addf %26, %28 : vector<32x96xf32>
    %30 = vector.extract_strided_slice %29 {offsets = [0, 0], sizes = [32, 8], strides = [1, 1]} : vector<32x96xf32> to vector<32x8xf32>
    %31 = vector.shape_cast %30 : vector<32x8xf32> to vector<2x16x8xf32>
    %cst_16 = arith.constant 0.353553385 : f32
    %32 = vector.broadcast %cst_16 : f32 to vector<2x16x8xf32>
    %33 = arith.mulf %31, %32 : vector<2x16x8xf32>
    %34 = vector.extract_strided_slice %29 {offsets = [0, 32], sizes = [32, 8], strides = [1, 1]} : vector<32x96xf32> to vector<32x8xf32>
    %35 = vector.shape_cast %34 : vector<32x8xf32> to vector<2x16x8xf32>
    %36 = vector.extract_strided_slice %29 {offsets = [0, 64], sizes = [32, 8], strides = [1, 1]} : vector<32x96xf32> to vector<32x8xf32>
    %37 = vector.shape_cast %36 : vector<32x8xf32> to vector<2x16x8xf32>
    %38 = arith.truncf %33 : vector<2x16x8xf32> to vector<2x16x8xbf16>
    %39 = arith.truncf %35 : vector<2x16x8xf32> to vector<2x16x8xbf16>
    "tpu.trace_start"() <{level = 10 : i32, message = "wqd,wkd->wqk"}> : () -> ()
    %cst_17 = arith.constant dense<0.000000e+00> : vector<2x16x16xf32>
    %40 = tpu.matmul %38, %39, %cst_17 {dimension_numbers = #tpu.dot_dimension_numbers<[2], [2], [1], [1], [0, 0, 0, 1, 1, 1], [0], [0]>} : vector<2x16x8xbf16>, vector<2x16x8xbf16>, vector<2x16x16xf32> -> vector<2x16x16xf32>
    "tpu.trace_stop"() : () -> ()
    %41 = vector.shape_cast %40 : vector<2x16x16xf32> to vector<2x1x16x16xf32>
    %c0_18 = arith.constant 0 : index
    %c0_19 = arith.constant 0 : index
    %c0_20 = arith.constant 0 : index
    %c0_21 = arith.constant 0 : index
    %42 = vector.load %arg2[%c0_18, %c0_19, %c0_20, %c0_21] : memref<4x1x16x16xf32, #tpu.memory_space<vmem>>, vector<1x1x16x16xf32>
    %43 = vector.shape_cast %42 : vector<1x1x16x16xf32> to vector<1x16x16xf32>
    %44 = vector.shape_cast %43 : vector<1x16x16xf32> to vector<1x1x16x16xf32>
    %45 = vector.broadcast %44 : vector<1x1x16x16xf32> to vector<2x1x16x16xf32>
    %46 = arith.addf %41, %45 : vector<2x1x16x16xf32>
    %47 = vector.shape_cast %46 : vector<2x1x16x16xf32> to vector<2x16x16xf32>
    %cst_22 = arith.constant dense<0xFF800000> : vector<2x16xf32>
    %48 = vector.multi_reduction <maximumf>, %47, %cst_22 [2] : vector<2x16x16xf32> to vector<2x16xf32>
    %49 = vector.shape_cast %48 : vector<2x16xf32> to vector<2x16x1xf32>
    %50 = vector.broadcast %49 : vector<2x16x1xf32> to vector<2x16x16xf32>
    %51 = arith.subf %47, %50 : vector<2x16x16xf32>
    %52 = math.exp %51 : vector<2x16x16xf32>
    %cst_23 = arith.constant dense<0.000000e+00> : vector<2x16xf32>
    %53 = vector.multi_reduction <add>, %52, %cst_23 [2] : vector<2x16x16xf32> to vector<2x16xf32>
    %54 = vector.shape_cast %53 : vector<2x16xf32> to vector<2x16x1xf32>
    %55 = tpu.reciprocal %54 {approx = true} : vector<2x16x1xf32> -> vector<2x16x1xf32>
    %56 = vector.broadcast %55 : vector<2x16x1xf32> to vector<2x16x16xf32>
    %57 = arith.mulf %52, %56 : vector<2x16x16xf32>
    %58 = arith.truncf %57 : vector<2x16x16xf32> to vector<2x16x16xbf16>
    %59 = arith.truncf %37 : vector<2x16x8xf32> to vector<2x16x8xbf16>
    "tpu.trace_start"() <{level = 10 : i32, message = "wqk,wkd->wqd"}> : () -> ()
    %cst_24 = arith.constant dense<0.000000e+00> : vector<2x16x8xf32>
    %60 = tpu.matmul %58, %59, %cst_24 {dimension_numbers = #tpu.dot_dimension_numbers<[2], [1], [1], [2], [0, 0, 0, 1, 1, 2], [0], [0]>} : vector<2x16x16xbf16>, vector<2x16x8xbf16>, vector<2x16x8xf32> -> vector<2x16x8xf32>
    "tpu.trace_stop"() : () -> ()
    %61 = vector.extract_strided_slice %29 {offsets = [0, 8], sizes = [32, 8], strides = [1, 1]} : vector<32x96xf32> to vector<32x8xf32>
    %62 = vector.shape_cast %61 : vector<32x8xf32> to vector<2x16x8xf32>
    %cst_25 = arith.constant 0.353553385 : f32
    %63 = vector.broadcast %cst_25 : f32 to vector<2x16x8xf32>
    %64 = arith.mulf %62, %63 : vector<2x16x8xf32>
    %65 = vector.extract_strided_slice %29 {offsets = [0, 40], sizes = [32, 8], strides = [1, 1]} : vector<32x96xf32> to vector<32x8xf32>
    %66 = vector.shape_cast %65 : vector<32x8xf32> to vector<2x16x8xf32>
    %67 = vector.extract_strided_slice %29 {offsets = [0, 72], sizes = [32, 8], strides = [1, 1]} : vector<32x96xf32> to vector<32x8xf32>
    %68 = vector.shape_cast %67 : vector<32x8xf32> to vector<2x16x8xf32>
    %69 = arith.truncf %64 : vector<2x16x8xf32> to vector<2x16x8xbf16>
    %70 = arith.truncf %66 : vector<2x16x8xf32> to vector<2x16x8xbf16>
    "tpu.trace_start"() <{level = 10 : i32, message = "wqd,wkd->wqk"}> : () -> ()
    %cst_26 = arith.constant dense<0.000000e+00> : vector<2x16x16xf32>
    %71 = tpu.matmul %69, %70, %cst_26 {dimension_numbers = #tpu.dot_dimension_numbers<[2], [2], [1], [1], [0, 0, 0, 1, 1, 1], [0], [0]>} : vector<2x16x8xbf16>, vector<2x16x8xbf16>, vector<2x16x16xf32> -> vector<2x16x16xf32>
    "tpu.trace_stop"() : () -> ()
    %72 = vector.shape_cast %71 : vector<2x16x16xf32> to vector<2x1x16x16xf32>
    %c1 = arith.constant 1 : index
    %c0_27 = arith.constant 0 : index
    %c0_28 = arith.constant 0 : index
    %c0_29 = arith.constant 0 : index
    %73 = vector.load %arg2[%c1, %c0_27, %c0_28, %c0_29] : memref<4x1x16x16xf32, #tpu.memory_space<vmem>>, vector<1x1x16x16xf32>
    %74 = vector.shape_cast %73 : vector<1x1x16x16xf32> to vector<1x16x16xf32>
    %75 = vector.shape_cast %74 : vector<1x16x16xf32> to vector<1x1x16x16xf32>
    %76 = vector.broadcast %75 : vector<1x1x16x16xf32> to vector<2x1x16x16xf32>
    %77 = arith.addf %72, %76 : vector<2x1x16x16xf32>
    %78 = vector.shape_cast %77 : vector<2x1x16x16xf32> to vector<2x16x16xf32>
    %cst_30 = arith.constant dense<0xFF800000> : vector<2x16xf32>
    %79 = vector.multi_reduction <maximumf>, %78, %cst_30 [2] : vector<2x16x16xf32> to vector<2x16xf32>
    %80 = vector.shape_cast %79 : vector<2x16xf32> to vector<2x16x1xf32>
    %81 = vector.broadcast %80 : vector<2x16x1xf32> to vector<2x16x16xf32>
    %82 = arith.subf %78, %81 : vector<2x16x16xf32>
    %83 = math.exp %82 : vector<2x16x16xf32>
    %cst_31 = arith.constant dense<0.000000e+00> : vector<2x16xf32>
    %84 = vector.multi_reduction <add>, %83, %cst_31 [2] : vector<2x16x16xf32> to vector<2x16xf32>
    %85 = vector.shape_cast %84 : vector<2x16xf32> to vector<2x16x1xf32>
    %86 = tpu.reciprocal %85 {approx = true} : vector<2x16x1xf32> -> vector<2x16x1xf32>
    %87 = vector.broadcast %86 : vector<2x16x1xf32> to vector<2x16x16xf32>
    %88 = arith.mulf %83, %87 : vector<2x16x16xf32>
    %89 = arith.truncf %88 : vector<2x16x16xf32> to vector<2x16x16xbf16>
    %90 = arith.truncf %68 : vector<2x16x8xf32> to vector<2x16x8xbf16>
    "tpu.trace_start"() <{level = 10 : i32, message = "wqk,wkd->wqd"}> : () -> ()
    %cst_32 = arith.constant dense<0.000000e+00> : vector<2x16x8xf32>
    %91 = tpu.matmul %89, %90, %cst_32 {dimension_numbers = #tpu.dot_dimension_numbers<[2], [1], [1], [2], [0, 0, 0, 1, 1, 2], [0], [0]>} : vector<2x16x16xbf16>, vector<2x16x8xbf16>, vector<2x16x8xf32> -> vector<2x16x8xf32>
    "tpu.trace_stop"() : () -> ()
    %92 = vector.extract_strided_slice %29 {offsets = [0, 16], sizes = [32, 8], strides = [1, 1]} : vector<32x96xf32> to vector<32x8xf32>
    %93 = vector.shape_cast %92 : vector<32x8xf32> to vector<2x16x8xf32>
    %cst_33 = arith.constant 0.353553385 : f32
    %94 = vector.broadcast %cst_33 : f32 to vector<2x16x8xf32>
    %95 = arith.mulf %93, %94 : vector<2x16x8xf32>
    %96 = vector.extract_strided_slice %29 {offsets = [0, 48], sizes = [32, 8], strides = [1, 1]} : vector<32x96xf32> to vector<32x8xf32>
    %97 = vector.shape_cast %96 : vector<32x8xf32> to vector<2x16x8xf32>
    %98 = vector.extract_strided_slice %29 {offsets = [0, 80], sizes = [32, 8], strides = [1, 1]} : vector<32x96xf32> to vector<32x8xf32>
    %99 = vector.shape_cast %98 : vector<32x8xf32> to vector<2x16x8xf32>
    %100 = arith.truncf %95 : vector<2x16x8xf32> to vector<2x16x8xbf16>
    %101 = arith.truncf %97 : vector<2x16x8xf32> to vector<2x16x8xbf16>
    "tpu.trace_start"() <{level = 10 : i32, message = "wqd,wkd->wqk"}> : () -> ()
    %cst_34 = arith.constant dense<0.000000e+00> : vector<2x16x16xf32>
    %102 = tpu.matmul %100, %101, %cst_34 {dimension_numbers = #tpu.dot_dimension_numbers<[2], [2], [1], [1], [0, 0, 0, 1, 1, 1], [0], [0]>} : vector<2x16x8xbf16>, vector<2x16x8xbf16>, vector<2x16x16xf32> -> vector<2x16x16xf32>
    "tpu.trace_stop"() : () -> ()
    %103 = vector.shape_cast %102 : vector<2x16x16xf32> to vector<2x1x16x16xf32>
    %c2 = arith.constant 2 : index
    %c0_35 = arith.constant 0 : index
    %c0_36 = arith.constant 0 : index
    %c0_37 = arith.constant 0 : index
    %104 = vector.load %arg2[%c2, %c0_35, %c0_36, %c0_37] : memref<4x1x16x16xf32, #tpu.memory_space<vmem>>, vector<1x1x16x16xf32>
    %105 = vector.shape_cast %104 : vector<1x1x16x16xf32> to vector<1x16x16xf32>
    %106 = vector.shape_cast %105 : vector<1x16x16xf32> to vector<1x1x16x16xf32>
    %107 = vector.broadcast %106 : vector<1x1x16x16xf32> to vector<2x1x16x16xf32>
    %108 = arith.addf %103, %107 : vector<2x1x16x16xf32>
    %109 = vector.shape_cast %108 : vector<2x1x16x16xf32> to vector<2x16x16xf32>
    %cst_38 = arith.constant dense<0xFF800000> : vector<2x16xf32>
    %110 = vector.multi_reduction <maximumf>, %109, %cst_38 [2] : vector<2x16x16xf32> to vector<2x16xf32>
    %111 = vector.shape_cast %110 : vector<2x16xf32> to vector<2x16x1xf32>
    %112 = vector.broadcast %111 : vector<2x16x1xf32> to vector<2x16x16xf32>
    %113 = arith.subf %109, %112 : vector<2x16x16xf32>
    %114 = math.exp %113 : vector<2x16x16xf32>
    %cst_39 = arith.constant dense<0.000000e+00> : vector<2x16xf32>
    %115 = vector.multi_reduction <add>, %114, %cst_39 [2] : vector<2x16x16xf32> to vector<2x16xf32>
    %116 = vector.shape_cast %115 : vector<2x16xf32> to vector<2x16x1xf32>
    %117 = tpu.reciprocal %116 {approx = true} : vector<2x16x1xf32> -> vector<2x16x1xf32>
    %118 = vector.broadcast %117 : vector<2x16x1xf32> to vector<2x16x16xf32>
    %119 = arith.mulf %114, %118 : vector<2x16x16xf32>
    %120 = arith.truncf %119 : vector<2x16x16xf32> to vector<2x16x16xbf16>
    %121 = arith.truncf %99 : vector<2x16x8xf32> to vector<2x16x8xbf16>
    "tpu.trace_start"() <{level = 10 : i32, message = "wqk,wkd->wqd"}> : () -> ()
    %cst_40 = arith.constant dense<0.000000e+00> : vector<2x16x8xf32>
    %122 = tpu.matmul %120, %121, %cst_40 {dimension_numbers = #tpu.dot_dimension_numbers<[2], [1], [1], [2], [0, 0, 0, 1, 1, 2], [0], [0]>} : vector<2x16x16xbf16>, vector<2x16x8xbf16>, vector<2x16x8xf32> -> vector<2x16x8xf32>
    "tpu.trace_stop"() : () -> ()
    %123 = vector.extract_strided_slice %29 {offsets = [0, 24], sizes = [32, 8], strides = [1, 1]} : vector<32x96xf32> to vector<32x8xf32>
    %124 = vector.shape_cast %123 : vector<32x8xf32> to vector<2x16x8xf32>
    %cst_41 = arith.constant 0.353553385 : f32
    %125 = vector.broadcast %cst_41 : f32 to vector<2x16x8xf32>
    %126 = arith.mulf %124, %125 : vector<2x16x8xf32>
    %127 = vector.extract_strided_slice %29 {offsets = [0, 56], sizes = [32, 8], strides = [1, 1]} : vector<32x96xf32> to vector<32x8xf32>
    %128 = vector.shape_cast %127 : vector<32x8xf32> to vector<2x16x8xf32>
    %129 = vector.extract_strided_slice %29 {offsets = [0, 88], sizes = [32, 8], strides = [1, 1]} : vector<32x96xf32> to vector<32x8xf32>
    %130 = vector.shape_cast %129 : vector<32x8xf32> to vector<2x16x8xf32>
    %131 = arith.truncf %126 : vector<2x16x8xf32> to vector<2x16x8xbf16>
    %132 = arith.truncf %128 : vector<2x16x8xf32> to vector<2x16x8xbf16>
    "tpu.trace_start"() <{level = 10 : i32, message = "wqd,wkd->wqk"}> : () -> ()
    %cst_42 = arith.constant dense<0.000000e+00> : vector<2x16x16xf32>
    %133 = tpu.matmul %131, %132, %cst_42 {dimension_numbers = #tpu.dot_dimension_numbers<[2], [2], [1], [1], [0, 0, 0, 1, 1, 1], [0], [0]>} : vector<2x16x8xbf16>, vector<2x16x8xbf16>, vector<2x16x16xf32> -> vector<2x16x16xf32>
    "tpu.trace_stop"() : () -> ()
    %134 = vector.shape_cast %133 : vector<2x16x16xf32> to vector<2x1x16x16xf32>
    %c3 = arith.constant 3 : index
    %c0_43 = arith.constant 0 : index
    %c0_44 = arith.constant 0 : index
    %c0_45 = arith.constant 0 : index
    %135 = vector.load %arg2[%c3, %c0_43, %c0_44, %c0_45] : memref<4x1x16x16xf32, #tpu.memory_space<vmem>>, vector<1x1x16x16xf32>
    %136 = vector.shape_cast %135 : vector<1x1x16x16xf32> to vector<1x16x16xf32>
    %137 = vector.shape_cast %136 : vector<1x16x16xf32> to vector<1x1x16x16xf32>
    %138 = vector.broadcast %137 : vector<1x1x16x16xf32> to vector<2x1x16x16xf32>
    %139 = arith.addf %134, %138 : vector<2x1x16x16xf32>
    %140 = vector.shape_cast %139 : vector<2x1x16x16xf32> to vector<2x16x16xf32>
    %cst_46 = arith.constant dense<0xFF800000> : vector<2x16xf32>
    %141 = vector.multi_reduction <maximumf>, %140, %cst_46 [2] : vector<2x16x16xf32> to vector<2x16xf32>
    %142 = vector.shape_cast %141 : vector<2x16xf32> to vector<2x16x1xf32>
    %143 = vector.broadcast %142 : vector<2x16x1xf32> to vector<2x16x16xf32>
    %144 = arith.subf %140, %143 : vector<2x16x16xf32>
    %145 = math.exp %144 : vector<2x16x16xf32>
    %cst_47 = arith.constant dense<0.000000e+00> : vector<2x16xf32>
    %146 = vector.multi_reduction <add>, %145, %cst_47 [2] : vector<2x16x16xf32> to vector<2x16xf32>
    %147 = vector.shape_cast %146 : vector<2x16xf32> to vector<2x16x1xf32>
    %148 = tpu.reciprocal %147 {approx = true} : vector<2x16x1xf32> -> vector<2x16x1xf32>
    %149 = vector.broadcast %148 : vector<2x16x1xf32> to vector<2x16x16xf32>
    %150 = arith.mulf %145, %149 : vector<2x16x16xf32>
    %151 = arith.truncf %150 : vector<2x16x16xf32> to vector<2x16x16xbf16>
    %152 = arith.truncf %130 : vector<2x16x8xf32> to vector<2x16x8xbf16>
    "tpu.trace_start"() <{level = 10 : i32, message = "wqk,wkd->wqd"}> : () -> ()
    %cst_48 = arith.constant dense<0.000000e+00> : vector<2x16x8xf32>
    %153 = tpu.matmul %151, %152, %cst_48 {dimension_numbers = #tpu.dot_dimension_numbers<[2], [1], [1], [2], [0, 0, 0, 1, 1, 2], [0], [0]>} : vector<2x16x16xbf16>, vector<2x16x8xbf16>, vector<2x16x8xf32> -> vector<2x16x8xf32>
    "tpu.trace_stop"() : () -> ()
    %154 = tpu.concatenate %60, %91, %122, %153 in 2 : vector<2x16x8xf32>, vector<2x16x8xf32>, vector<2x16x8xf32>, vector<2x16x8xf32> -> vector<2x16x32xf32>
    %155 = vector.shape_cast %154 : vector<2x16x32xf32> to vector<32x32xf32>
    %156 = arith.truncf %155 : vector<32x32xf32> to vector<32x32xbf16>
    %c0_49 = arith.constant 0 : index
    %c0_50 = arith.constant 0 : index
    %157 = vector.load %arg7[%c0_49, %c0_50] : memref<32x32xbf16, #tpu.memory_space<vmem>>, vector<32x32xbf16>
    %cst_51 = arith.constant dense<0.000000e+00> : vector<32x32xf32>
    %158 = tpu.matmul %156, %157, %cst_51 {dimension_numbers = #tpu.dot_dimension_numbers<[1], [0], [0], [1], [0, 0, 1, 1], [], []>} : vector<32x32xbf16>, vector<32x32xbf16>, vector<32x32xf32> -> vector<32x32xf32>
    %159 = arith.addf %1, %158 : vector<32x32xf32>
    %c0_52 = arith.constant 0 : index
    %c0_53 = arith.constant 0 : index
    %160 = vector.load %arg8[%c0_52, %c0_53] : memref<1x32xf32, #tpu.memory_space<vmem>>, vector<1x32xf32>
    %161 = vector.broadcast %160 : vector<1x32xf32> to vector<32x32xf32>
    %162 = arith.addf %159, %161 : vector<32x32xf32>
    %cst_54 = arith.constant dense<0.000000e+00> : vector<32xf32>
    %163 = vector.multi_reduction <add>, %162, %cst_54 [1] : vector<32x32xf32> to vector<32xf32>
    %164 = vector.shape_cast %163 : vector<32xf32> to vector<32x1xf32>
    %cst_55 = arith.constant 3.200000e+01 : f32
    %165 = vector.broadcast %cst_55 : f32 to vector<32x1xf32>
    %166 = arith.divf %164, %165 : vector<32x1xf32>
    %167 = vector.broadcast %166 : vector<32x1xf32> to vector<32x32xf32>
    %168 = arith.subf %162, %167 : vector<32x32xf32>
    %169 = arith.mulf %168, %168 : vector<32x32xf32>
    %cst_56 = arith.constant dense<0.000000e+00> : vector<32xf32>
    %170 = vector.multi_reduction <add>, %169, %cst_56 [1] : vector<32x32xf32> to vector<32xf32>
    %171 = vector.shape_cast %170 : vector<32xf32> to vector<32x1xf32>
    %cst_57 = arith.constant 3.200000e+01 : f32
    %172 = vector.broadcast %cst_57 : f32 to vector<32x1xf32>
    %173 = arith.divf %171, %172 : vector<32x1xf32>
    %cst_58 = arith.constant 9.99999974E-6 : f32
    %174 = vector.broadcast %cst_58 : f32 to vector<32x1xf32>
    %175 = arith.addf %173, %174 : vector<32x1xf32>
    %176 = math.rsqrt %175 : vector<32x1xf32>
    %177 = vector.broadcast %176 : vector<32x1xf32> to vector<32x32xf32>
    %178 = arith.mulf %168, %177 : vector<32x32xf32>
    %c0_59 = arith.constant 0 : index
    %c0_60 = arith.constant 0 : index
    %179 = vector.load %arg9[%c0_59, %c0_60] : memref<1x32xf32, #tpu.memory_space<vmem>>, vector<1x32xf32>
    %180 = vector.broadcast %179 : vector<1x32xf32> to vector<32x32xf32>
    %181 = arith.mulf %178, %180 : vector<32x32xf32>
    %c0_61 = arith.constant 0 : index
    %c0_62 = arith.constant 0 : index
    %182 = vector.load %arg10[%c0_61, %c0_62] : memref<1x32xf32, #tpu.memory_space<vmem>>, vector<1x32xf32>
    %183 = vector.broadcast %182 : vector<1x32xf32> to vector<32x32xf32>
    %184 = arith.addf %181, %183 : vector<32x32xf32>
    %185 = arith.truncf %184 : vector<32x32xf32> to vector<32x32xbf16>
    %c0_63 = arith.constant 0 : index
    %c0_64 = arith.constant 0 : index
    %186 = vector.load %arg11[%c0_63, %c0_64] : memref<32x128xbf16, #tpu.memory_space<vmem>>, vector<32x128xbf16>
    %cst_65 = arith.constant dense<0.000000e+00> : vector<32x128xf32>
    %187 = tpu.matmul %185, %186, %cst_65 {dimension_numbers = #tpu.dot_dimension_numbers<[1], [0], [0], [1], [0, 0, 1, 1], [], []>} : vector<32x32xbf16>, vector<32x128xbf16>, vector<32x128xf32> -> vector<32x128xf32>
    %c0_66 = arith.constant 0 : index
    %c0_67 = arith.constant 0 : index
    %188 = vector.load %arg12[%c0_66, %c0_67] : memref<1x128xf32, #tpu.memory_space<vmem>>, vector<1x128xf32>
    %189 = vector.broadcast %188 : vector<1x128xf32> to vector<32x128xf32>
    %190 = arith.addf %187, %189 : vector<32x128xf32>
    %cst_68 = arith.constant 5.000000e-01 : f32
    %191 = vector.broadcast %cst_68 : f32 to vector<32x128xf32>
    %192 = arith.mulf %191, %190 : vector<32x128xf32>
    %cst_69 = arith.constant 0.707106769 : f32
    %193 = vector.broadcast %cst_69 : f32 to vector<32x128xf32>
    %194 = arith.mulf %190, %193 : vector<32x128xf32>
    %195 = math.erf %194 : vector<32x128xf32>
    %cst_70 = arith.constant 1.000000e+00 : f32
    %196 = vector.broadcast %cst_70 : f32 to vector<32x128xf32>
    %197 = arith.addf %196, %195 : vector<32x128xf32>
    %198 = arith.mulf %192, %197 : vector<32x128xf32>
    %199 = arith.truncf %198 : vector<32x128xf32> to vector<32x128xbf16>
    %c0_71 = arith.constant 0 : index
    %c0_72 = arith.constant 0 : index
    %200 = vector.load %arg13[%c0_71, %c0_72] : memref<128x32xbf16, #tpu.memory_space<vmem>>, vector<128x32xbf16>
    %cst_73 = arith.constant dense<0.000000e+00> : vector<32x32xf32>
    %201 = tpu.matmul %199, %200, %cst_73 {dimension_numbers = #tpu.dot_dimension_numbers<[1], [0], [0], [1], [0, 0, 1, 1], [], []>} : vector<32x128xbf16>, vector<128x32xbf16>, vector<32x32xf32> -> vector<32x32xf32>
    %c0_74 = arith.constant 0 : index
    %c0_75 = arith.constant 0 : index
    %202 = vector.load %arg14[%c0_74, %c0_75] : memref<1x32xf32, #tpu.memory_space<vmem>>, vector<1x32xf32>
    %203 = vector.broadcast %202 : vector<1x32xf32> to vector<32x32xf32>
    %204 = arith.addf %201, %203 : vector<32x32xf32>
    %205 = arith.addf %162, %204 : vector<32x32xf32>
    %206 = vector.shape_cast %205 : vector<32x32xf32> to vector<2x1x16x32xf32>
    %c0_76 = arith.constant 0 : index
    %c0_77 = arith.constant 0 : index
    %c0_78 = arith.constant 0 : index
    %c0_79 = arith.constant 0 : index
    %207 = vector.load %arg15[%c0_76, %c0_77, %c0_78, %c0_79] : memref<2x1x16x32xf32, #tpu.memory_space<vmem>>, vector<2x1x16x32xf32>
    tpu.vector_store %arg15[%c0_76, %c0_77, %c0_78, %c0_79], %206 {strides = array<i32>} : memref<2x1x16x32xf32, #tpu.memory_space<vmem>>, vector<2x1x16x32xf32>,
    return
  }
  func.func @transform_0(%arg0: i32) -> (i32, i32, i32, i32) {
    %c0_i32 = arith.constant 0 : i32
    %c0_i32_0 = arith.constant 0 : i32
    %c0_i32_1 = arith.constant 0 : i32
    %c0_i32_2 = arith.constant 0 : i32
    return %arg0, %c0_i32, %c0_i32_0, %c0_i32_1 : i32, i32, i32, i32
  }
  func.func @transform_1(%arg0: i32) -> (i32, i32, i32, i32) {
    %c0_i32 = arith.constant 0 : i32
    %c0_i32_0 = arith.constant 0 : i32
    %c0_i32_1 = arith.constant 0 : i32
    %c0_i32_2 = arith.constant 0 : i32
    %c0_i32_3 = arith.constant 0 : i32
    return %c0_i32, %c0_i32_0, %c0_i32_1, %c0_i32_2 : i32, i32, i32, i32
  }
  func.func @transform_2(%arg0: i32) -> (i32, i32) {
    %c0_i32 = arith.constant 0 : i32
    %c0_i32_0 = arith.constant 0 : i32
    %c0_i32_1 = arith.constant 0 : i32
    return %c0_i32, %c0_i32_0 : i32, i32
  }
  func.func @transform_3(%arg0: i32) -> (i32, i32) {
    %c0_i32 = arith.constant 0 : i32
    %c0_i32_0 = arith.constant 0 : i32
    %c0_i32_1 = arith.constant 0 : i32
    return %c0_i32, %c0_i32_0 : i32, i32
  }
  func.func @transform_4(%arg0: i32) -> (i32, i32) {
    %c0_i32 = arith.constant 0 : i32
    %c0_i32_0 = arith.constant 0 : i32
    %c0_i32_1 = arith.constant 0 : i32
    return %c0_i32, %c0_i32_0 : i32, i32
  }
  func.func @transform_5(%arg0: i32) -> (i32, i32) {
    %c0_i32 = arith.constant 0 : i32
    %c0_i32_0 = arith.constant 0 : i32
    %c0_i32_1 = arith.constant 0 : i32
    return %c0_i32, %c0_i32_0 : i32, i32
  }
  func.func @transform_6(%arg0: i32) -> (i32, i32) {
    %c0_i32 = arith.constant 0 : i32
    %c0_i32_0 = arith.constant 0 : i32
    %c0_i32_1 = arith.constant 0 : i32
    return %c0_i32, %c0_i32_0 : i32, i32
  }
  func.func @transform_7(%arg0: i32) -> (i32, i32) {
    %c0_i32 = arith.constant 0 : i32
    %c0_i32_0 = arith.constant 0 : i32
    %c0_i32_1 = arith.constant 0 : i32
    return %c0_i32, %c0_i32_0 : i32, i32
  }
  func.func @transform_8(%arg0: i32) -> (i32, i32) {
    %c0_i32 = arith.constant 0 : i32
    %c0_i32_0 = arith.constant 0 : i32
    %c0_i32_1 = arith.constant 0 : i32
    return %c0_i32, %c0_i32_0 : i32, i32
  }
  func.func @transform_9(%arg0: i32) -> (i32, i32) {
    %c0_i32 = arith.constant 0 : i32
    %c0_i32_0 = arith.constant 0 : i32
    %c0_i32_1 = arith.constant 0 : i32
    return %c0_i32, %c0_i32_0 : i32, i32
  }
  func.func @transform_10(%arg0: i32) -> (i32, i32) {
    %c0_i32 = arith.constant 0 : i32
    %c0_i32_0 = arith.constant 0 : i32
    %c0_i32_1 = arith.constant 0 : i32
    return %c0_i32, %c0_i32_0 : i32, i32
  }
  func.func @transform_11(%arg0: i32) -> (i32, i32) {
    %c0_i32 = arith.constant 0 : i32
    %c0_i32_0 = arith.constant 0 : i32
    %c0_i32_1 = arith.constant 0 : i32
    return %c0_i32, %c0_i32_0 : i32, i32
  }
  func.func @transform_12(%arg0: i32) -> (i32, i32) {
    %c0_i32 = arith.constant 0 : i32
    %c0_i32_0 = arith.constant 0 : i32
    %c0_i32_1 = arith.constant 0 : i32
    return %c0_i32, %c0_i32_0 : i32, i32
  }
  func.func @transform_13(%arg0: i32) -> (i32, i32) {
    %c0_i32 = arith.constant 0 : i32
    %c0_i32_0 = arith.constant 0 : i32
    %c0_i32_1 = arith.constant 0 : i32
    return %c0_i32, %c0_i32_0 : i32, i32
  }
  func.func @transform_14(%arg0: i32) -> (i32, i32, i32, i32) {
    %c0_i32 = arith.constant 0 : i32
    %c0_i32_0 = arith.constant 0 : i32
    %c0_i32_1 = arith.constant 0 : i32
    %c0_i32_2 = arith.constant 0 : i32
    return %arg0, %c0_i32, %c0_i32_0, %c0_i32_1 : i32, i32, i32, i32
  }
}

module attributes {stable_mosaic.version = 11 : i64} {
  func.func @_head_kernel(%arg0: i32, %arg1: memref<2x16x32xf32, #tpu.memory_space<vmem>>, %arg2: memref<1x32xf32, #tpu.memory_space<vmem>>, %arg3: memref<1x32xf32, #tpu.memory_space<vmem>>, %arg4: memref<32x10xf32, #tpu.memory_space<vmem>>, %arg5: memref<1x10xf32, #tpu.memory_space<vmem>>, %arg6: memref<2x10xf32, #tpu.memory_space<vmem>>) attributes {dimension_semantics = [#tpu.dimension_semantics<arbitrary>], iteration_bounds = array<i64: 1>, scalar_prefetch = 0 : i64, scratch_operands = 0 : i64, tpu.core_type = #tpu.core_type<tc>, window_params = [{pipeline_mode = #tpu.pipeline_mode<synchronous>, transform_indices = @transform_0, window_bounds = array<i64: 2, 16, 32>}, {pipeline_mode = #tpu.pipeline_mode<synchronous>, transform_indices = @transform_1, window_bounds = array<i64: 1, 32>}, {pipeline_mode = #tpu.pipeline_mode<synchronous>, transform_indices = @transform_2, window_bounds = array<i64: 1, 32>}, {pipeline_mode = #tpu.pipeline_mode<synchronous>, transform_indices = @transform_3, window_bounds = array<i64: 32, 10>}, {pipeline_mode = #tpu.pipeline_mode<synchronous>, transform_indices = @transform_4, window_bounds = array<i64: 1, 10>}, {pipeline_mode = #tpu.pipeline_mode<synchronous>, transform_indices = @transform_5, window_bounds = array<i64: 2, 10>}]} {
    %c0 = arith.constant 0 : index
    %c0_0 = arith.constant 0 : index
    %c0_1 = arith.constant 0 : index
    %0 = vector.load %arg1[%c0, %c0_0, %c0_1] : memref<2x16x32xf32, #tpu.memory_space<vmem>>, vector<2x16x32xf32>
    %cst = arith.constant dense<0.000000e+00> : vector<2x16xf32>
    %1 = vector.multi_reduction <add>, %0, %cst [2] : vector<2x16x32xf32> to vector<2x16xf32>
    %2 = vector.shape_cast %1 : vector<2x16xf32> to vector<2x16x1xf32>
    %cst_2 = arith.constant 3.200000e+01 : f32
    %3 = vector.broadcast %cst_2 : f32 to vector<2x16x1xf32>
    %4 = arith.divf %2, %3 : vector<2x16x1xf32>
    %5 = vector.broadcast %4 : vector<2x16x1xf32> to vector<2x16x32xf32>
    %6 = arith.subf %0, %5 : vector<2x16x32xf32>
    %7 = arith.mulf %6, %6 : vector<2x16x32xf32>
    %cst_3 = arith.constant dense<0.000000e+00> : vector<2x16xf32>
    %8 = vector.multi_reduction <add>, %7, %cst_3 [2] : vector<2x16x32xf32> to vector<2x16xf32>
    %9 = vector.shape_cast %8 : vector<2x16xf32> to vector<2x16x1xf32>
    %cst_4 = arith.constant 3.200000e+01 : f32
    %10 = vector.broadcast %cst_4 : f32 to vector<2x16x1xf32>
    %11 = arith.divf %9, %10 : vector<2x16x1xf32>
    %cst_5 = arith.constant 9.99999974E-6 : f32
    %12 = vector.broadcast %cst_5 : f32 to vector<2x16x1xf32>
    %13 = arith.addf %11, %12 : vector<2x16x1xf32>
    %14 = math.rsqrt %13 : vector<2x16x1xf32>
    %15 = vector.broadcast %14 : vector<2x16x1xf32> to vector<2x16x32xf32>
    %16 = arith.mulf %6, %15 : vector<2x16x32xf32>
    %c0_6 = arith.constant 0 : index
    %c0_7 = arith.constant 0 : index
    %17 = vector.load %arg2[%c0_6, %c0_7] : memref<1x32xf32, #tpu.memory_space<vmem>>, vector<1x32xf32>
    %18 = vector.shape_cast %17 : vector<1x32xf32> to vector<1x1x32xf32>
    %19 = vector.broadcast %18 : vector<1x1x32xf32> to vector<2x16x32xf32>
    %20 = arith.mulf %16, %19 : vector<2x16x32xf32>
    %c0_8 = arith.constant 0 : index
    %c0_9 = arith.constant 0 : index
    %21 = vector.load %arg3[%c0_8, %c0_9] : memref<1x32xf32, #tpu.memory_space<vmem>>, vector<1x32xf32>
    %22 = vector.shape_cast %21 : vector<1x32xf32> to vector<1x1x32xf32>
    %23 = vector.broadcast %22 : vector<1x1x32xf32> to vector<2x16x32xf32>
    %24 = arith.addf %20, %23 : vector<2x16x32xf32>
    %cst_10 = arith.constant dense<0.000000e+00> : vector<2x32xf32>
    %25 = vector.multi_reduction <add>, %24, %cst_10 [1] : vector<2x16x32xf32> to vector<2x32xf32>
    %cst_11 = arith.constant 1.600000e+01 : f32
    %26 = vector.broadcast %cst_11 : f32 to vector<2x32xf32>
    %27 = arith.divf %25, %26 : vector<2x32xf32>
    %c0_12 = arith.constant 0 : index
    %c0_13 = arith.constant 0 : index
    %28 = vector.load %arg4[%c0_12, %c0_13] : memref<32x10xf32, #tpu.memory_space<vmem>>, vector<32x10xf32>
    %cst_14 = arith.constant dense<0.000000e+00> : vector<2x10xf32>
    %29 = tpu.matmul %27, %28, %cst_14 {dimension_numbers = #tpu.dot_dimension_numbers<[1], [0], [0], [1], [0, 0, 1, 1], [], []>} : vector<2x32xf32>, vector<32x10xf32>, vector<2x10xf32> -> vector<2x10xf32>
    %c0_15 = arith.constant 0 : index
    %c0_16 = arith.constant 0 : index
    %30 = vector.load %arg5[%c0_15, %c0_16] : memref<1x10xf32, #tpu.memory_space<vmem>>, vector<1x10xf32>
    %31 = vector.broadcast %30 : vector<1x10xf32> to vector<2x10xf32>
    %32 = arith.addf %29, %31 : vector<2x10xf32>
    %c0_17 = arith.constant 0 : index
    %c0_18 = arith.constant 0 : index
    %33 = vector.load %arg6[%c0_17, %c0_18] : memref<2x10xf32, #tpu.memory_space<vmem>>, vector<2x10xf32>
    tpu.vector_store %arg6[%c0_17, %c0_18], %32 {strides = array<i32>} : memref<2x10xf32, #tpu.memory_space<vmem>>, vector<2x10xf32>,
    return
  }
  func.func @transform_0(%arg0: i32) -> (i32, i32, i32) {
    %c0_i32 = arith.constant 0 : i32
    %c0_i32_0 = arith.constant 0 : i32
    %c0_i32_1 = arith.constant 0 : i32
    %c0_i32_2 = arith.constant 0 : i32
    return %c0_i32, %c0_i32_0, %c0_i32_1 : i32, i32, i32
  }
  func.func @transform_1(%arg0: i32) -> (i32, i32) {
    %c0_i32 = arith.constant 0 : i32
    %c0_i32_0 = arith.constant 0 : i32
    %c0_i32_1 = arith.constant 0 : i32
    return %c0_i32, %c0_i32_0 : i32, i32
  }
  func.func @transform_2(%arg0: i32) -> (i32, i32) {
    %c0_i32 = arith.constant 0 : i32
    %c0_i32_0 = arith.constant 0 : i32
    %c0_i32_1 = arith.constant 0 : i32
    return %c0_i32, %c0_i32_0 : i32, i32
  }
  func.func @transform_3(%arg0: i32) -> (i32, i32) {
    %c0_i32 = arith.constant 0 : i32
    %c0_i32_0 = arith.constant 0 : i32
    %c0_i32_1 = arith.constant 0 : i32
    return %c0_i32, %c0_i32_0 : i32, i32
  }
  func.func @transform_4(%arg0: i32) -> (i32, i32) {
    %c0_i32 = arith.constant 0 : i32
    %c0_i32_0 = arith.constant 0 : i32
    %c0_i32_1 = arith.constant 0 : i32
    return %c0_i32, %c0_i32_0 : i32, i32
  }
  func.func @transform_5(%arg0: i32) -> (i32, i32) {
    %c0_i32 = arith.constant 0 : i32
    %c0_i32_0 = arith.constant 0 : i32
    %c0_i32_1 = arith.constant 0 : i32
    return %c0_i32, %c0_i32_0 : i32, i32
  }
}

</mosaic_0001>

<llo_original>
// kernel: deform_transformer_forward.7
$region0: #{deform_transformer_forward.7}
  #allocation0 [shape = 'u32[]', space=smem, size = 0x4, offset = 0x4, fixed_abs, tag = 'smem constant byte address 0x4 - core index']
  #allocation1 [shape = 'u32[144,128]{1,0:T(1,128)}', space=vmem, size = 0x12000, scoped, tag = 'internal scratch']
  %s0 = inlined_call_operand.vmem [shape: f32[128,27], index: 0, kind: input, shape index: {}]
  %s1 = inlined_call_operand.vmem [shape: f32[27,32], index: 1, kind: input, shape index: {}]
  %s2 = inlined_call_operand.vmem [shape: f32[1,32], index: 2, kind: input, shape index: {}]
  %s3 = inlined_call_operand.vmem [shape: f32[128,32], index: 3, kind: output, shape index: {}]
  %s4 = sld [smem:[#allocation0]]
  $region22: #{deform_transformer_forward.7} parent=0
    _
  %s6 = ssub.s32 1, %s4
  %s7 = scalar_select 0, %s6, %s4
  // Predicated region
  $region2: #{deform_transformer_forward.7} parent=0 // pred_check
    _
  $region3: #{deform_transformer_forward.7} parent=0 // pred_check_branch
    %9 = sbr.rel (0) target = $region5
  $region4: #{deform_transformer_forward.7} parent=0 // pred_region
    _
  $region5: #{deform_transformer_forward.7} parent=0 // pred_fallthru
    _
  // Predicated region
  $region6: #{deform_transformer_forward.7} parent=0 // pred_check
    _
  $region7: #{deform_transformer_forward.7} parent=0 // pred_check_branch
    %11 = sbr.rel (0) target = $region9
  $region8: #{deform_transformer_forward.7} parent=0 // pred_region
    _
  $region9: #{deform_transformer_forward.7} parent=0 // pred_fallthru
    _
  // Predicated region
  $region10: #{deform_transformer_forward.7} parent=0 // pred_check
    _
  $region11: #{deform_transformer_forward.7} parent=0 // pred_check_branch
    %13 = sbr.rel (0) target = $region13
  $region12: #{deform_transformer_forward.7} parent=0 // pred_region
    _
  $region13: #{deform_transformer_forward.7} parent=0 // pred_fallthru
    _
  %v14 = vld [vmem:[%s0] sm:$0xff]
  %v15 = vld [vmem:[%s0 + $0x8] sm:$0xff]
  %v16 = vld [vmem:[%s0 + $0x10] sm:$0xff]
  %v17 = vld [vmem:[%s0 + $0x18] sm:$0xff]
  %v18 = vld [vmem:[%s0 + $0x20] sm:$0xff]
  %v19 = vld [vmem:[%s0 + $0x28] sm:$0xff]
  %v20 = vld [vmem:[%s0 + $0x30] sm:$0xff]
  %v21 = vld [vmem:[%s0 + $0x38] sm:$0xff]
  %v22 = vld [vmem:[%s0 + $0x40] sm:$0xff]
  %v23 = vld [vmem:[%s0 + $0x48] sm:$0xff]
  %v24 = vld [vmem:[%s0 + $0x50] sm:$0xff]
  %v25 = vld [vmem:[%s0 + $0x58] sm:$0xff]
  %v26 = vld [vmem:[%s0 + $0x60] sm:$0xff]
  %v27 = vld [vmem:[%s0 + $0x68] sm:$0xff]
  %v28 = vld [vmem:[%s0 + $0x70] sm:$0xff]
  %v29 = vld [vmem:[%s0 + $0x78] sm:$0xff]
  %v30 = vld [vmem:[%s1] sm:$0xff]
  %v31 = vld [vmem:[%s1 + $0x8] sm:$0xff]
  %v32 = vld [vmem:[%s1 + $0x10] sm:$0xff]
  %v33 = vld [vmem:[%s1 + $0x18] sm:$0x7]
  %v34 = vld [vmem:[%s2] sm:$0x1]
  %v36 = vlaneseq
  %v37 = vshrl.u32 %v36, 7
  %v38 = vsub.s32 0, %v37
  %v39 = vrot.slane %v34, %v38
  %vm41 = vcmask 220160
  %v43 = vsel %vm41, %v14, 0
  %v46 = vsel %vm41, %v15, 0
  %v49 = vsel %vm41, %v16, 0
  %v52 = vsel %vm41, %v17, 0
  %v55 = vsel %vm41, %v18, 0
  %v58 = vsel %vm41, %v19, 0
  %v61 = vsel %vm41, %v20, 0
  %v64 = vsel %vm41, %v21, 0
  %v67 = vsel %vm41, %v22, 0
  %v70 = vsel %vm41, %v23, 0
  %v73 = vsel %vm41, %v24, 0
  %v76 = vsel %vm41, %v25, 0
  %v79 = vsel %vm41, %v26, 0
  %v82 = vsel %vm41, %v27, 0
  %v85 = vsel %vm41, %v28, 0
  %v88 = vsel %vm41, %v29, 0
  %vm90 = vcmask 1042432
  %v92 = vsel %vm90, %v33, 0
  %94 = vmatprep.subr.mxu0 0.0
  %95 = vmatpush1.msra.mxu0 0.0
  %96 = vmatprep.subr.mxu0 0.0
  %97 = vmatpush1.msra.mxu0 0.0
  %98 = vmatprep.subr.mxu0 0.0
  %99 = vmatpush1.msra.mxu0 0.0
  %100 = vmatprep.subr.mxu0 0.0
  %101 = vmatpush1.msra.mxu0 0.0
  %102 = vmatprep.subr.mxu0 0.0
  %103 = vmatpush1.msra.mxu0 0.0
  %104 = vmatprep.subr.mxu0 0.0
  %105 = vmatpush1.msra.mxu0 0.0
  %106 = vmatprep.subr.mxu0 0.0
  %107 = vmatpush1.msra.mxu0 0.0
  %108 = vmatprep.subr.mxu0 0.0
  %109 = vmatpush1.msra.mxu0 0.0
  %110 = vmatprep.subr.mxu0 0.0
  %111 = vmatpush1.msra.mxu0 0.0
  %112 = vmatprep.subr.mxu0 0.0
  %113 = vmatpush1.msra.mxu0 0.0
  %114 = vmatprep.subr.mxu0 0.0
  %115 = vmatpush1.msra.mxu0 0.0
  %116 = vmatprep.subr.mxu0 0.0
  %117 = vmatpush1.msra.mxu0 0.0
  %118 = vmatprep.subr.mxu0 0.0
  %119 = vmatpush1.msra.mxu0 %v92
  %120 = vmatprep.subr.mxu0 0.0
  %121 = vmatpush1.msra.mxu0 %v32
  %122 = vmatprep.subr.mxu0 0.0
  %123 = vmatpush1.msra.mxu0 %v31
  %124 = vmatprep.subr.mxu0 0.0
  %125 = vmatpush1.msra.mxu0 %v30
  %126 = vmatprep.subr.mxu0 0.0
  %127 = vmatpush2.msra.mxu0 0.0
  %128 = vmatprep.subr.mxu0 0.0
  %129 = vmatpush2.msra.mxu0 0.0
  %130 = vmatprep.subr.mxu0 0.0
  %131 = vmatpush2.msra.mxu0 0.0
  %132 = vmatprep.subr.mxu0 0.0
  %133 = vmatpush2.msra.mxu0 0.0
  %134 = vmatprep.subr.mxu0 0.0
  %135 = vmatpush2.msra.mxu0 0.0
  %136 = vmatprep.subr.mxu0 0.0
  %137 = vmatpush2.msra.mxu0 0.0
  %138 = vmatprep.subr.mxu0 0.0
  %139 = vmatpush2.msra.mxu0 0.0
  %140 = vmatprep.subr.mxu0 0.0
  %141 = vmatpush2.msra.mxu0 0.0
  %142 = vmatprep.subr.mxu0 0.0
  %143 = vmatpush2.msra.mxu0 0.0
  %144 = vmatprep.subr.mxu0 0.0
  %145 = vmatpush2.msra.mxu0 0.0
  %146 = vmatprep.subr.mxu0 0.0
  %147 = vmatpush2.msra.mxu0 0.0
  %148 = vmatprep.subr.mxu0 0.0
  %149 = vmatpush2.msra.mxu0 0.0
  %150 = vmatprep.subr.mxu0 0.0
  %151 = vmatpush2.msra.mxu0 0.0
  %152 = vmatprep.subr.mxu0 0.0
  %153 = vmatpush2.msra.mxu0 0.0
  %154 = vmatprep.subr.mxu0 0.0
  %155 = vmatpush2.msra.mxu0 0.0
  %156 = vmatprep.subr.mxu0 0.0
  %157 = vmatpush2.msra.mxu0 0.0
  %158 = vmatprep.mubr.f32.mxu0 0.0
  %159 = vmatmul.mubr.f32.gmra.mxu0 %v43
  %v160 = vpop.f32.mrf.mxu0
  %v161 = vadd.f32 %v39, %v160
  %v162 = vpop.f32.mrf.mxu0
  %163 = vmatprep.mubr.f32.mxu0 0.0
  %164 = vmatmul.mubr.f32.gmra.mxu0 %v46
  %v165 = vpop.f32.mrf.mxu0
  %v166 = vadd.f32 %v39, %v165
  %v167 = vpop.f32.mrf.mxu0
  %168 = vmatprep.mubr.f32.mxu0 0.0
  %169 = vmatmul.mubr.f32.gmra.mxu0 %v49
  %v170 = vpop.f32.mrf.mxu0
  %v171 = vadd.f32 %v39, %v170
  %v172 = vpop.f32.mrf.mxu0
  %173 = vmatprep.mubr.f32.mxu0 0.0
  %174 = vmatmul.mubr.f32.gmra.mxu0 %v52
  %v175 = vpop.f32.mrf.mxu0
  %v176 = vadd.f32 %v39, %v175
  %v177 = vpop.f32.mrf.mxu0
  %178 = vmatprep.mubr.f32.mxu0 0.0
  %179 = vmatmul.mubr.f32.gmra.mxu0 %v55
  %v180 = vpop.f32.mrf.mxu0
  %v181 = vadd.f32 %v39, %v180
  %v182 = vpop.f32.mrf.mxu0
  %183 = vmatprep.mubr.f32.mxu0 0.0
  %184 = vmatmul.mubr.f32.gmra.mxu0 %v58
  %v185 = vpop.f32.mrf.mxu0
  %v186 = vadd.f32 %v39, %v185
  %v187 = vpop.f32.mrf.mxu0
  %188 = vmatprep.mubr.f32.mxu0 0.0
  %189 = vmatmul.mubr.f32.gmra.mxu0 %v61
  %v190 = vpop.f32.mrf.mxu0
  %v191 = vadd.f32 %v39, %v190
  %v192 = vpop.f32.mrf.mxu0
  %193 = vmatprep.mubr.f32.mxu0 0.0
  %194 = vmatmul.mubr.f32.gmra.mxu0 %v64
  %v195 = vpop.f32.mrf.mxu0
  %v196 = vadd.f32 %v39, %v195
  %v197 = vpop.f32.mrf.mxu0
  %198 = vmatprep.mubr.f32.mxu0 0.0
  %199 = vmatmul.mubr.f32.gmra.mxu0 %v67
  %v200 = vpop.f32.mrf.mxu0
  %v201 = vadd.f32 %v39, %v200
  %v202 = vpop.f32.mrf.mxu0
  %203 = vmatprep.mubr.f32.mxu0 0.0
  %204 = vmatmul.mubr.f32.gmra.mxu0 %v70
  %v205 = vpop.f32.mrf.mxu0
  %v206 = vadd.f32 %v39, %v205
  %v207 = vpop.f32.mrf.mxu0
  %208 = vmatprep.mubr.f32.mxu0 0.0
  %209 = vmatmul.mubr.f32.gmra.mxu0 %v73
  %v210 = vpop.f32.mrf.mxu0
  %v211 = vadd.f32 %v39, %v210
  %v212 = vpop.f32.mrf.mxu0
  %213 = vmatprep.mubr.f32.mxu0 0.0
  %214 = vmatmul.mubr.f32.gmra.mxu0 %v76
  %v215 = vpop.f32.mrf.mxu0
  %v216 = vadd.f32 %v39, %v215
  %v217 = vpop.f32.mrf.mxu0
  %218 = vmatprep.mubr.f32.mxu0 0.0
  %219 = vmatmul.mubr.f32.gmra.mxu0 %v79
  %v220 = vpop.f32.mrf.mxu0
  %v221 = vadd.f32 %v39, %v220
  %v222 = vpop.f32.mrf.mxu0
  %223 = vmatprep.mubr.f32.mxu0 0.0
  %224 = vmatmul.mubr.f32.gmra.mxu0 %v82
  %v225 = vpop.f32.mrf.mxu0
  %v226 = vadd.f32 %v39, %v225
  %v227 = vpop.f32.mrf.mxu0
  %228 = vmatprep.mubr.f32.mxu0 0.0
  %229 = vmatmul.mubr.f32.gmra.mxu0 %v85
  %v230 = vpop.f32.mrf.mxu0
  %v231 = vadd.f32 %v39, %v230
  %v232 = vpop.f32.mrf.mxu0
  %233 = vmatprep.mubr.f32.mxu0 0.0
  %234 = vmatmul.mubr.f32.gmra.mxu0 %v88
  %v235 = vpop.f32.mrf.mxu0
  %v236 = vadd.f32 %v39, %v235
  %v237 = vpop.f32.mrf.mxu0
  %238 = vdwg.mxu0
  %vm239 = vcmask 261120
  %240 = vst.msk [vmem:[%s3] sm:$0xff] %vm239, %v161
  %241 = vst.msk [vmem:[%s3 + $0x8] sm:$0xff] %vm239, %v166
  %242 = vst.msk [vmem:[%s3 + $0x10] sm:$0xff] %vm239, %v171
  %243 = vst.msk [vmem:[%s3 + $0x18] sm:$0xff] %vm239, %v176
  %244 = vst.msk [vmem:[%s3 + $0x20] sm:$0xff] %vm239, %v181
  %245 = vst.msk [vmem:[%s3 + $0x28] sm:$0xff] %vm239, %v186
  %246 = vst.msk [vmem:[%s3 + $0x30] sm:$0xff] %vm239, %v191
  %247 = vst.msk [vmem:[%s3 + $0x38] sm:$0xff] %vm239, %v196
  %248 = vst.msk [vmem:[%s3 + $0x40] sm:$0xff] %vm239, %v201
  %249 = vst.msk [vmem:[%s3 + $0x48] sm:$0xff] %vm239, %v206
  %250 = vst.msk [vmem:[%s3 + $0x50] sm:$0xff] %vm239, %v211
  %251 = vst.msk [vmem:[%s3 + $0x58] sm:$0xff] %vm239, %v216
  %252 = vst.msk [vmem:[%s3 + $0x60] sm:$0xff] %vm239, %v221
  %253 = vst.msk [vmem:[%s3 + $0x68] sm:$0xff] %vm239, %v226
  %254 = vst.msk [vmem:[%s3 + $0x70] sm:$0xff] %vm239, %v231
  %255 = vst.msk [vmem:[%s3 + $0x78] sm:$0xff] %vm239, %v236
  // Predicated region
  $region14: #{deform_transformer_forward.7} parent=0 // pred_check
    _
  $region15: #{deform_transformer_forward.7} parent=0 // pred_check_branch
    %257 = sbr.rel (0) target = $region17
  $region16: #{deform_transformer_forward.7} parent=0 // pred_region
    _
  $region17: #{deform_transformer_forward.7} parent=0 // pred_fallthru
    _
  // Predicated region
  $region18: #{deform_transformer_forward.7} parent=0 // pred_check
    _
  $region19: #{deform_transformer_forward.7} parent=0 // pred_check_branch
    %259 = sbr.rel (0) target = $region21
  $region20: #{deform_transformer_forward.7} parent=0 // pred_region
    _
  $region21: #{deform_transformer_forward.7} parent=0 // pred_fallthru
    _

// kernel: deform_transformer_forward.8
$region0: #{deform_transformer_forward.8}
  #allocation0 [shape = 'u32[]', space=smem, size = 0x4, offset = 0x4, fixed_abs, tag = 'smem constant byte address 0x4 - core index']
  #allocation1 [shape = 'u32[144,128]{1,0:T(1,128)}', space=vmem, size = 0x12000, scoped, tag = 'internal scratch']
  %s0 = inlined_call_operand.vmem [shape: f32[128,48], index: 0, kind: input, shape index: {}]
  %s1 = inlined_call_operand.vmem [shape: f32[48,16], index: 1, kind: input, shape index: {}]
  %s2 = inlined_call_operand.vmem [shape: f32[1,16], index: 2, kind: input, shape index: {}]
  %s3 = inlined_call_operand.vmem [shape: f32[1,16], index: 3, kind: input, shape index: {}]
  %s4 = inlined_call_operand.vmem [shape: f32[128,16], index: 4, kind: output, shape index: {}]
  %s5 = sld [smem:[#allocation0]]
  $region26: #{deform_transformer_forward.8} parent=0
    _
  %s7 = ssub.s32 1, %s5
  %s8 = scalar_select 0, %s7, %s5
  // Predicated region
  $region2: #{deform_transformer_forward.8} parent=0 // pred_check
    _
  $region3: #{deform_transformer_forward.8} parent=0 // pred_check_branch
    %10 = sbr.rel (0) target = $region5
  $region4: #{deform_transformer_forward.8} parent=0 // pred_region
    _
  $region5: #{deform_transformer_forward.8} parent=0 // pred_fallthru
    _
  // Predicated region
  $region6: #{deform_transformer_forward.8} parent=0 // pred_check
    _
  $region7: #{deform_transformer_forward.8} parent=0 // pred_check_branch
    %12 = sbr.rel (0) target = $region9
  $region8: #{deform_transformer_forward.8} parent=0 // pred_region
    _
  $region9: #{deform_transformer_forward.8} parent=0 // pred_fallthru
    _
  // Predicated region
  $region10: #{deform_transformer_forward.8} parent=0 // pred_check
    _
  $region11: #{deform_transformer_forward.8} parent=0 // pred_check_branch
    %14 = sbr.rel (0) target = $region13
  $region12: #{deform_transformer_forward.8} parent=0 // pred_region
    _
  $region13: #{deform_transformer_forward.8} parent=0 // pred_fallthru
    _
  // Predicated region
  $region14: #{deform_transformer_forward.8} parent=0 // pred_check
    _
  $region15: #{deform_transformer_forward.8} parent=0 // pred_check_branch
    %16 = sbr.rel (0) target = $region17
  $region16: #{deform_transformer_forward.8} parent=0 // pred_region
    _
  $region17: #{deform_transformer_forward.8} parent=0 // pred_fallthru
    _
  %v17 = vld [vmem:[%s0] sm:$0xff]
  %v18 = vld [vmem:[%s0 + $0x8] sm:$0xff]
  %v19 = vld [vmem:[%s0 + $0x10] sm:$0xff]
  %v20 = vld [vmem:[%s0 + $0x18] sm:$0xff]
  %v21 = vld [vmem:[%s0 + $0x20] sm:$0xff]
  %v22 = vld [vmem:[%s0 + $0x28] sm:$0xff]
  %v23 = vld [vmem:[%s0 + $0x30] sm:$0xff]
  %v24 = vld [vmem:[%s0 + $0x38] sm:$0xff]
  %v25 = vld [vmem:[%s0 + $0x40] sm:$0xff]
  %v26 = vld [vmem:[%s0 + $0x48] sm:$0xff]
  %v27 = vld [vmem:[%s0 + $0x50] sm:$0xff]
  %v28 = vld [vmem:[%s0 + $0x58] sm:$0xff]
  %v29 = vld [vmem:[%s0 + $0x60] sm:$0xff]
  %v30 = vld [vmem:[%s0 + $0x68] sm:$0xff]
  %v31 = vld [vmem:[%s0 + $0x70] sm:$0xff]
  %v32 = vld [vmem:[%s0 + $0x78] sm:$0xff]
  %v33 = vld [vmem:[%s1] sm:$0xff]
  %v34 = vld [vmem:[%s1 + $0x8] sm:$0xff]
  %v35 = vld [vmem:[%s1 + $0x10] sm:$0xff]
  %v36 = vld [vmem:[%s1 + $0x18] sm:$0xff]
  %v37 = vld [vmem:[%s1 + $0x20] sm:$0xff]
  %v38 = vld [vmem:[%s1 + $0x28] sm:$0xff]
  %vm39 = vcmask 392192
  %v41 = vsel %vm39, %v17, 0
  %v44 = vsel %vm39, %v18, 0
  %v47 = vsel %vm39, %v19, 0
  %v50 = vsel %vm39, %v20, 0
  %v53 = vsel %vm39, %v21, 0
  %v56 = vsel %vm39, %v22, 0
  %v59 = vsel %vm39, %v23, 0
  %v62 = vsel %vm39, %v24, 0
  %v65 = vsel %vm39, %v25, 0
  %v68 = vsel %vm39, %v26, 0
  %v71 = vsel %vm39, %v27, 0
  %v74 = vsel %vm39, %v28, 0
  %v77 = vsel %vm39, %v29, 0
  %v80 = vsel %vm39, %v30, 0
  %v83 = vsel %vm39, %v31, 0
  %v86 = vsel %vm39, %v32, 0
  %88 = vmatprep.subr.mxu0 0.0
  %89 = vmatpush1.msra.mxu0 0.0
  %90 = vmatprep.subr.mxu0 0.0
  %91 = vmatpush1.msra.mxu0 0.0
  %92 = vmatprep.subr.mxu0 0.0
  %93 = vmatpush1.msra.mxu0 0.0
  %94 = vmatprep.subr.mxu0 0.0
  %95 = vmatpush1.msra.mxu0 0.0
  %96 = vmatprep.subr.mxu0 0.0
  %97 = vmatpush1.msra.mxu0 0.0
  %98 = vmatprep.subr.mxu0 0.0
  %99 = vmatpush1.msra.mxu0 0.0
  %100 = vmatprep.subr.mxu0 0.0
  %101 = vmatpush1.msra.mxu0 0.0
  %102 = vmatprep.subr.mxu0 0.0
  %103 = vmatpush1.msra.mxu0 0.0
  %104 = vmatprep.subr.mxu0 0.0
  %105 = vmatpush1.msra.mxu0 0.0
  %106 = vmatprep.subr.mxu0 0.0
  %107 = vmatpush1.msra.mxu0 0.0
  %108 = vmatprep.subr.mxu0 0.0
  %109 = vmatpush1.msra.mxu0 %v38
  %110 = vmatprep.subr.mxu0 0.0
  %111 = vmatpush1.msra.mxu0 %v37
  %112 = vmatprep.subr.mxu0 0.0
  %113 = vmatpush1.msra.mxu0 %v36
  %114 = vmatprep.subr.mxu0 0.0
  %115 = vmatpush1.msra.mxu0 %v35
  %116 = vmatprep.subr.mxu0 0.0
  %117 = vmatpush1.msra.mxu0 %v34
  %118 = vmatprep.subr.mxu0 0.0
  %119 = vmatpush1.msra.mxu0 %v33
  %120 = vmatprep.subr.mxu0 0.0
  %121 = vmatpush2.msra.mxu0 0.0
  %122 = vmatprep.subr.mxu0 0.0
  %123 = vmatpush2.msra.mxu0 0.0
  %124 = vmatprep.subr.mxu0 0.0
  %125 = vmatpush2.msra.mxu0 0.0
  %126 = vmatprep.subr.mxu0 0.0
  %127 = vmatpush2.msra.mxu0 0.0
  %128 = vmatprep.subr.mxu0 0.0
  %129 = vmatpush2.msra.mxu0 0.0
  %130 = vmatprep.subr.mxu0 0.0
  %131 = vmatpush2.msra.mxu0 0.0
  %132 = vmatprep.subr.mxu0 0.0
  %133 = vmatpush2.msra.mxu0 0.0
  %134 = vmatprep.subr.mxu0 0.0
  %135 = vmatpush2.msra.mxu0 0.0
  %136 = vmatprep.subr.mxu0 0.0
  %137 = vmatpush2.msra.mxu0 0.0
  %138 = vmatprep.subr.mxu0 0.0
  %139 = vmatpush2.msra.mxu0 0.0
  %140 = vmatprep.subr.mxu0 0.0
  %141 = vmatpush2.msra.mxu0 0.0
  %142 = vmatprep.subr.mxu0 0.0
  %143 = vmatpush2.msra.mxu0 0.0
  %144 = vmatprep.subr.mxu0 0.0
  %145 = vmatpush2.msra.mxu0 0.0
  %146 = vmatprep.subr.mxu0 0.0
  %147 = vmatpush2.msra.mxu0 0.0
  %148 = vmatprep.subr.mxu0 0.0
  %149 = vmatpush2.msra.mxu0 0.0
  %150 = vmatprep.subr.mxu0 0.0
  %151 = vmatpush2.msra.mxu0 0.0
  %152 = vmatprep.mubr.f32.mxu0 0.0
  %153 = vmatmul.mubr.f32.gmra.mxu0 %v41
  %v154 = vpop.f32.mrf.mxu0
  %v155 = vadd.f32 0.0, %v154
  %v156 = vpop.f32.mrf.mxu0
  %157 = vmatprep.mubr.f32.mxu0 0.0
  %158 = vmatmul.mubr.f32.gmra.mxu0 %v44
  %v159 = vpop.f32.mrf.mxu0
  %v160 = vadd.f32 0.0, %v159
  %v161 = vpop.f32.mrf.mxu0
  %162 = vmatprep.mubr.f32.mxu0 0.0
  %163 = vmatmul.mubr.f32.gmra.mxu0 %v47
  %v164 = vpop.f32.mrf.mxu0
  %v165 = vadd.f32 0.0, %v164
  %v166 = vpop.f32.mrf.mxu0
  %167 = vmatprep.mubr.f32.mxu0 0.0
  %168 = vmatmul.mubr.f32.gmra.mxu0 %v50
  %v169 = vpop.f32.mrf.mxu0
  %v170 = vadd.f32 0.0, %v169
  %v171 = vpop.f32.mrf.mxu0
  %172 = vmatprep.mubr.f32.mxu0 0.0
  %173 = vmatmul.mubr.f32.gmra.mxu0 %v53
  %v174 = vpop.f32.mrf.mxu0
  %v175 = vadd.f32 0.0, %v174
  %v176 = vpop.f32.mrf.mxu0
  %177 = vmatprep.mubr.f32.mxu0 0.0
  %178 = vmatmul.mubr.f32.gmra.mxu0 %v56
  %v179 = vpop.f32.mrf.mxu0
  %v180 = vadd.f32 0.0, %v179
  %v181 = vpop.f32.mrf.mxu0
  %182 = vmatprep.mubr.f32.mxu0 0.0
  %183 = vmatmul.mubr.f32.gmra.mxu0 %v59
  %v184 = vpop.f32.mrf.mxu0
  %v185 = vadd.f32 0.0, %v184
  %v186 = vpop.f32.mrf.mxu0
  %187 = vmatprep.mubr.f32.mxu0 0.0
  %188 = vmatmul.mubr.f32.gmra.mxu0 %v62
  %v189 = vpop.f32.mrf.mxu0
  %v190 = vadd.f32 0.0, %v189
  %v191 = vpop.f32.mrf.mxu0
  %192 = vmatprep.mubr.f32.mxu0 0.0
  %193 = vmatmul.mubr.f32.gmra.mxu0 %v65
  %v194 = vpop.f32.mrf.mxu0
  %v195 = vadd.f32 0.0, %v194
  %v196 = vpop.f32.mrf.mxu0
  %197 = vmatprep.mubr.f32.mxu0 0.0
  %198 = vmatmul.mubr.f32.gmra.mxu0 %v68
  %v199 = vpop.f32.mrf.mxu0
  %v200 = vadd.f32 0.0, %v199
  %v201 = vpop.f32.mrf.mxu0
  %202 = vmatprep.mubr.f32.mxu0 0.0
  %203 = vmatmul.mubr.f32.gmra.mxu0 %v71
  %v204 = vpop.f32.mrf.mxu0
  %v205 = vadd.f32 0.0, %v204
  %v206 = vpop.f32.mrf.mxu0
  %207 = vmatprep.mubr.f32.mxu0 0.0
  %208 = vmatmul.mubr.f32.gmra.mxu0 %v74
  %v209 = vpop.f32.mrf.mxu0
  %v210 = vadd.f32 0.0, %v209
  %v211 = vpop.f32.mrf.mxu0
  %212 = vmatprep.mubr.f32.mxu0 0.0
  %213 = vmatmul.mubr.f32.gmra.mxu0 %v77
  %v214 = vpop.f32.mrf.mxu0
  %v215 = vadd.f32 0.0, %v214
  %v216 = vpop.f32.mrf.mxu0
  %217 = vmatprep.mubr.f32.mxu0 0.0
  %218 = vmatmul.mubr.f32.gmra.mxu0 %v80
  %v219 = vpop.f32.mrf.mxu0
  %v220 = vadd.f32 0.0, %v219
  %v221 = vpop.f32.mrf.mxu0
  %222 = vmatprep.mubr.f32.mxu0 0.0
  %223 = vmatmul.mubr.f32.gmra.mxu0 %v83
  %v224 = vpop.f32.mrf.mxu0
  %v225 = vadd.f32 0.0, %v224
  %v226 = vpop.f32.mrf.mxu0
  %227 = vmatprep.mubr.f32.mxu0 0.0
  %228 = vmatmul.mubr.f32.gmra.mxu0 %v86
  %v229 = vpop.f32.mrf.mxu0
  %v230 = vadd.f32 0.0, %v229
  %v231 = vpop.f32.mrf.mxu0
  %232 = vdwg.mxu0
  %vm233 = vcmask 130048
  %v234 = vsel %vm233, %v155, 0.0
  %235 = vadd.xlane.f32.xlu0 %v234
  %v236 = vpop.xlane.xlu0 %235
  %v237 = vsel %vm233, %v160, 0.0
  %238 = vadd.xlane.f32.xlu0 %v237
  %v239 = vpop.xlane.xlu0 %238
  %v240 = vsel %vm233, %v165, 0.0
  %241 = vadd.xlane.f32.xlu0 %v240
  %v242 = vpop.xlane.xlu0 %241
  %v243 = vsel %vm233, %v170, 0.0
  %244 = vadd.xlane.f32.xlu0 %v243
  %v245 = vpop.xlane.xlu0 %244
  %v246 = vsel %vm233, %v175, 0.0
  %247 = vadd.xlane.f32.xlu0 %v246
  %v248 = vpop.xlane.xlu0 %247
  %v249 = vsel %vm233, %v180, 0.0
  %250 = vadd.xlane.f32.xlu0 %v249
  %v251 = vpop.xlane.xlu0 %250
  %v252 = vsel %vm233, %v185, 0.0
  %253 = vadd.xlane.f32.xlu0 %v252
  %v254 = vpop.xlane.xlu0 %253
  %v255 = vsel %vm233, %v190, 0.0
  %256 = vadd.xlane.f32.xlu0 %v255
  %v257 = vpop.xlane.xlu0 %256
  %v258 = vsel %vm233, %v195, 0.0
  %259 = vadd.xlane.f32.xlu0 %v258
  %v260 = vpop.xlane.xlu0 %259
  %v261 = vsel %vm233, %v200, 0.0
  %262 = vadd.xlane.f32.xlu0 %v261
  %v263 = vpop.xlane.xlu0 %262
  %v264 = vsel %vm233, %v205, 0.0
  %265 = vadd.xlane.f32.xlu0 %v264
  %v266 = vpop.xlane.xlu0 %265
  %v267 = vsel %vm233, %v210, 0.0
  %268 = vadd.xlane.f32.xlu0 %v267
  %v269 = vpop.xlane.xlu0 %268
  %v270 = vsel %vm233, %v215, 0.0
  %271 = vadd.xlane.f32.xlu0 %v270
  %v272 = vpop.xlane.xlu0 %271
  %v273 = vsel %vm233, %v220, 0.0
  %274 = vadd.xlane.f32.xlu0 %v273
  %v275 = vpop.xlane.xlu0 %274
  %v276 = vsel %vm233, %v225, 0.0
  %277 = vadd.xlane.f32.xlu0 %v276
  %v278 = vpop.xlane.xlu0 %277
  %v279 = vsel %vm233, %v230, 0.0
  %280 = vadd.xlane.f32.xlu0 %v279
  %v281 = vpop.xlane.xlu0 %280
  %v282 = vrcp.pop 16.0
  %v283 = vmul.f32 %v236, %v282
  %v284 = vmul.f32 %v239, %v282
  %v285 = vmul.f32 %v242, %v282
  %v286 = vmul.f32 %v245, %v282
  %v287 = vmul.f32 %v248, %v282
  %v288 = vmul.f32 %v251, %v282
  %v289 = vmul.f32 %v254, %v282
  %v290 = vmul.f32 %v257, %v282
  %v291 = vmul.f32 %v260, %v282
  %v292 = vmul.f32 %v263, %v282
  %v293 = vmul.f32 %v266, %v282
  %v294 = vmul.f32 %v269, %v282
  %v295 = vmul.f32 %v272, %v282
  %v296 = vmul.f32 %v275, %v282
  %v297 = vmul.f32 %v278, %v282
  %v298 = vmul.f32 %v281, %v282
  %v299 = vsub.f32 %v155, %v283
  %v300 = vsub.f32 %v160, %v284
  %v301 = vsub.f32 %v165, %v285
  %v302 = vsub.f32 %v170, %v286
  %v303 = vsub.f32 %v175, %v287
  %v304 = vsub.f32 %v180, %v288
  %v305 = vsub.f32 %v185, %v289
  %v306 = vsub.f32 %v190, %v290
  %v307 = vsub.f32 %v195, %v291
  %v308 = vsub.f32 %v200, %v292
  %v309 = vsub.f32 %v205, %v293
  %v310 = vsub.f32 %v210, %v294
  %v311 = vsub.f32 %v215, %v295
  %v312 = vsub.f32 %v220, %v296
  %v313 = vsub.f32 %v225, %v297
  %v314 = vsub.f32 %v230, %v298
  %v315 = vmul.f32 %v299, %v299
  %v316 = vmul.f32 %v300, %v300
  %v317 = vmul.f32 %v301, %v301
  %v318 = vmul.f32 %v302, %v302
  %v319 = vmul.f32 %v303, %v303
  %v320 = vmul.f32 %v304, %v304
  %v321 = vmul.f32 %v305, %v305
  %v322 = vmul.f32 %v306, %v306
  %v323 = vmul.f32 %v307, %v307
  %v324 = vmul.f32 %v308, %v308
  %v325 = vmul.f32 %v309, %v309
  %v326 = vmul.f32 %v310, %v310
  %v327 = vmul.f32 %v311, %v311
  %v328 = vmul.f32 %v312, %v312
  %v329 = vmul.f32 %v313, %v313
  %v330 = vmul.f32 %v314, %v314
  %v331 = vsel %vm233, %v315, 0.0
  %332 = vadd.xlane.f32.xlu0 %v331
  %v333 = vpop.xlane.xlu0 %332
  %v334 = vsel %vm233, %v316, 0.0
  %335 = vadd.xlane.f32.xlu0 %v334
  %v336 = vpop.xlane.xlu0 %335
  %v337 = vsel %vm233, %v317, 0.0
  %338 = vadd.xlane.f32.xlu0 %v337
  %v339 = vpop.xlane.xlu0 %338
  %v340 = vsel %vm233, %v318, 0.0
  %341 = vadd.xlane.f32.xlu0 %v340
  %v342 = vpop.xlane.xlu0 %341
  %v343 = vsel %vm233, %v319, 0.0
  %344 = vadd.xlane.f32.xlu0 %v343
  %v345 = vpop.xlane.xlu0 %344
  %v346 = vsel %vm233, %v320, 0.0
  %347 = vadd.xlane.f32.xlu0 %v346
  %v348 = vpop.xlane.xlu0 %347
  %v349 = vsel %vm233, %v321, 0.0
  %350 = vadd.xlane.f32.xlu0 %v349
  %v351 = vpop.xlane.xlu0 %350
  %v352 = vsel %vm233, %v322, 0.0
  %353 = vadd.xlane.f32.xlu0 %v352
  %v354 = vpop.xlane.xlu0 %353
  %v355 = vsel %vm233, %v323, 0.0
  %356 = vadd.xlane.f32.xlu0 %v355
  %v357 = vpop.xlane.xlu0 %356
  %v358 = vsel %vm233, %v324, 0.0
  %359 = vadd.xlane.f32.xlu0 %v358
  %v360 = vpop.xlane.xlu0 %359
  %v361 = vsel %vm233, %v325, 0.0
  %362 = vadd.xlane.f32.xlu0 %v361
  %v363 = vpop.xlane.xlu0 %362
  %v364 = vsel %vm233, %v326, 0.0
  %365 = vadd.xlane.f32.xlu0 %v364
  %v366 = vpop.xlane.xlu0 %365
  %v367 = vsel %vm233, %v327, 0.0
  %368 = vadd.xlane.f32.xlu0 %v367
  %v369 = vpop.xlane.xlu0 %368
  %v370 = vsel %vm233, %v328, 0.0
  %371 = vadd.xlane.f32.xlu0 %v370
  %v372 = vpop.xlane.xlu0 %371
  %v373 = vsel %vm233, %v329, 0.0
  %374 = vadd.xlane.f32.xlu0 %v373
  %v375 = vpop.xlane.xlu0 %374
  %v376 = vsel %vm233, %v330, 0.0
  %377 = vadd.xlane.f32.xlu0 %v376
  %v378 = vpop.xlane.xlu0 %377
  %v379 = vmul.f32 %v333, %v282
  %v380 = vmul.f32 %v336, %v282
  %v381 = vmul.f32 %v339, %v282
  %v382 = vmul.f32 %v342, %v282
  %v383 = vmul.f32 %v345, %v282
  %v384 = vmul.f32 %v348, %v282
  %v385 = vmul.f32 %v351, %v282
  %v386 = vmul.f32 %v354, %v282
  %v387 = vmul.f32 %v357, %v282
  %v388 = vmul.f32 %v360, %v282
  %v389 = vmul.f32 %v363, %v282
  %v390 = vmul.f32 %v366, %v282
  %v391 = vmul.f32 %v369, %v282
  %v392 = vmul.f32 %v372, %v282
  %v393 = vmul.f32 %v375, %v282
  %v394 = vmul.f32 %v378, %v282
  %v395 = vadd.f32 %v379, 1e-05
  %v396 = vadd.f32 %v380, 1e-05
  %v397 = vadd.f32 %v381, 1e-05
  %v398 = vadd.f32 %v382, 1e-05
  %v399 = vadd.f32 %v383, 1e-05
  %v400 = vadd.f32 %v384, 1e-05
  %v401 = vadd.f32 %v385, 1e-05
  %v402 = vadd.f32 %v386, 1e-05
  %v403 = vadd.f32 %v387, 1e-05
  %v404 = vadd.f32 %v388, 1e-05
  %v405 = vadd.f32 %v389, 1e-05
  %v406 = vadd.f32 %v390, 1e-05
  %v407 = vadd.f32 %v391, 1e-05
  %v408 = vadd.f32 %v392, 1e-05
  %v409 = vadd.f32 %v393, 1e-05
  %v410 = vadd.f32 %v394, 1e-05
  %v411 = vrsqrt.pop %v395
  %v412 = vrsqrt.pop %v396
  %v413 = vrsqrt.pop %v397
  %v414 = vrsqrt.pop %v398
  %v415 = vrsqrt.pop %v399
  %v416 = vrsqrt.pop %v400
  %v417 = vrsqrt.pop %v401
  %v418 = vrsqrt.pop %v402
  %v419 = vrsqrt.pop %v403
  %v420 = vrsqrt.pop %v404
  %v421 = vrsqrt.pop %v405
  %v422 = vrsqrt.pop %v406
  %v423 = vrsqrt.pop %v407
  %v424 = vrsqrt.pop %v408
  %v425 = vrsqrt.pop %v409
  %v426 = vrsqrt.pop %v410
  %v427 = vmul.f32 %v299, %v411
  %v428 = vmul.f32 %v300, %v412
  %v429 = vmul.f32 %v301, %v413
  %v430 = vmul.f32 %v302, %v414
  %v431 = vmul.f32 %v303, %v415
  %v432 = vmul.f32 %v304, %v416
  %v433 = vmul.f32 %v305, %v417
  %v434 = vmul.f32 %v306, %v418
  %v435 = vmul.f32 %v307, %v419
  %v436 = vmul.f32 %v308, %v420
  %v437 = vmul.f32 %v309, %v421
  %v438 = vmul.f32 %v310, %v422
  %v439 = vmul.f32 %v311, %v423
  %v440 = vmul.f32 %v312, %v424
  %v441 = vmul.f32 %v313, %v425
  %v442 = vmul.f32 %v314, %v426
  %v443 = vld [vmem:[%s2] sm:$0x1]
  %v445 = vlaneseq
  %v446 = vshrl.u32 %v445, 7
  %v447 = vsub.s32 0, %v446
  %v448 = vrot.slane %v443, %v447
  %v450 = vmul.f32 %v427, %v448
  %v451 = vmul.f32 %v428, %v448
  %v452 = vmul.f32 %v429, %v448
  %v453 = vmul.f32 %v430, %v448
  %v454 = vmul.f32 %v431, %v448
  %v455 = vmul.f32 %v432, %v448
  %v456 = vmul.f32 %v433, %v448
  %v457 = vmul.f32 %v434, %v448
  %v458 = vmul.f32 %v435, %v448
  %v459 = vmul.f32 %v436, %v448
  %v460 = vmul.f32 %v437, %v448
  %v461 = vmul.f32 %v438, %v448
  %v462 = vmul.f32 %v439, %v448
  %v463 = vmul.f32 %v440, %v448
  %v464 = vmul.f32 %v441, %v448
  %v465 = vmul.f32 %v442, %v448
  %v466 = vld [vmem:[%s3] sm:$0x1]
  %v468 = vlaneseq
  %v469 = vshrl.u32 %v468, 7
  %v470 = vsub.s32 0, %v469
  %v471 = vrot.slane %v466, %v470
  %v473 = vadd.f32 %v450, %v471
  %v474 = vadd.f32 %v451, %v471
  %v475 = vadd.f32 %v452, %v471
  %v476 = vadd.f32 %v453, %v471
  %v477 = vadd.f32 %v454, %v471
  %v478 = vadd.f32 %v455, %v471
  %v479 = vadd.f32 %v456, %v471
  %v480 = vadd.f32 %v457, %v471
  %v481 = vadd.f32 %v458, %v471
  %v482 = vadd.f32 %v459, %v471
  %v483 = vadd.f32 %v460, %v471
  %v484 = vadd.f32 %v461, %v471
  %v485 = vadd.f32 %v462, %v471
  %v486 = vadd.f32 %v463, %v471
  %v487 = vadd.f32 %v464, %v471
  %v488 = vadd.f32 %v465, %v471
  %489 = vst.msk [vmem:[%s4] sm:$0xff] %vm233, %v473
  %490 = vst.msk [vmem:[%s4 + $0x8] sm:$0xff] %vm233, %v474
  %491 = vst.msk [vmem:[%s4 + $0x10] sm:$0xff] %vm233, %v475
  %492 = vst.msk [vmem:[%s4 + $0x18] sm:$0xff] %vm233, %v476
  %493 = vst.msk [vmem:[%s4 + $0x20] sm:$0xff] %vm233, %v477
  %494 = vst.msk [vmem:[%s4 + $0x28] sm:$0xff] %vm233, %v478
  %495 = vst.msk [vmem:[%s4 + $0x30] sm:$0xff] %vm233, %v479
  %496 = vst.msk [vmem:[%s4 + $0x38] sm:$0xff] %vm233, %v480
  %497 = vst.msk [vmem:[%s4 + $0x40] sm:$0xff] %vm233, %v481
  %498 = vst.msk [vmem:[%s4 + $0x48] sm:$0xff] %vm233, %v482
  %499 = vst.msk [vmem:[%s4 + $0x50] sm:$0xff] %vm233, %v483
  %500 = vst.msk [vmem:[%s4 + $0x58] sm:$0xff] %vm233, %v484
  %501 = vst.msk [vmem:[%s4 + $0x60] sm:$0xff] %vm233, %v485
  %502 = vst.msk [vmem:[%s4 + $0x68] sm:$0xff] %vm233, %v486
  %503 = vst.msk [vmem:[%s4 + $0x70] sm:$0xff] %vm233, %v487
  %504 = vst.msk [vmem:[%s4 + $0x78] sm:$0xff] %vm233, %v488
  // Predicated region
  $region18: #{deform_transformer_forward.8} parent=0 // pred_check
    _
  $region19: #{deform_transformer_forward.8} parent=0 // pred_check_branch
    %506 = sbr.rel (0) target = $region21
  $region20: #{deform_transformer_forward.8} parent=0 // pred_region
    _
  $region21: #{deform_transformer_forward.8} parent=0 // pred_fallthru
    _
  // Predicated region
  $region22: #{deform_transformer_forward.8} parent=0 // pred_check
    _
  $region23: #{deform_transformer_forward.8} parent=0 // pred_check_branch
    %508 = sbr.rel (0) target = $region25
  $region24: #{deform_transformer_forward.8} parent=0 // pred_region
    _
  $region25: #{deform_transformer_forward.8} parent=0 // pred_fallthru
    _

// kernel: deform_transformer_forward.11
$region0: #{deform_transformer_forward.11}
  #allocation0 [shape = 'u32[]', space=smem, size = 0x4, offset = 0x4, fixed_abs, tag = 'smem constant byte address 0x4 - core index']
  #allocation1 [shape = 'u32[144,128]{1,0:T(1,128)}', space=vmem, size = 0x12000, scoped, tag = 'internal scratch']
  %s0 = inlined_call_operand.vmem [shape: f32[32,64], index: 0, kind: input, shape index: {}]
  %s1 = inlined_call_operand.vmem [shape: f32[1,64], index: 1, kind: input, shape index: {}]
  %s2 = inlined_call_operand.vmem [shape: f32[1,64], index: 2, kind: input, shape index: {}]
  %s3 = inlined_call_operand.vmem [shape: f32[64,32], index: 3, kind: input, shape index: {}]
  %s4 = inlined_call_operand.vmem [shape: f32[32,32], index: 4, kind: output, shape index: {}]
  %s5 = sld [smem:[#allocation0]]
  $region26: #{deform_transformer_forward.11} parent=0
    _
  %s7 = ssub.s32 1, %s5
  %s8 = scalar_select 0, %s7, %s5
  // Predicated region
  $region2: #{deform_transformer_forward.11} parent=0 // pred_check
    _
  $region3: #{deform_transformer_forward.11} parent=0 // pred_check_branch
    %10 = sbr.rel (0) target = $region5
  $region4: #{deform_transformer_forward.11} parent=0 // pred_region
    _
  $region5: #{deform_transformer_forward.11} parent=0 // pred_fallthru
    _
  // Predicated region
  $region6: #{deform_transformer_forward.11} parent=0 // pred_check
    _
  $region7: #{deform_transformer_forward.11} parent=0 // pred_check_branch
    %12 = sbr.rel (0) target = $region9
  $region8: #{deform_transformer_forward.11} parent=0 // pred_region
    _
  $region9: #{deform_transformer_forward.11} parent=0 // pred_fallthru
    _
  // Predicated region
  $region10: #{deform_transformer_forward.11} parent=0 // pred_check
    _
  $region11: #{deform_transformer_forward.11} parent=0 // pred_check_branch
    %14 = sbr.rel (0) target = $region13
  $region12: #{deform_transformer_forward.11} parent=0 // pred_region
    _
  $region13: #{deform_transformer_forward.11} parent=0 // pred_fallthru
    _
  // Predicated region
  $region14: #{deform_transformer_forward.11} parent=0 // pred_check
    _
  $region15: #{deform_transformer_forward.11} parent=0 // pred_check_branch
    %16 = sbr.rel (0) target = $region17
  $region16: #{deform_transformer_forward.11} parent=0 // pred_region
    _
  $region17: #{deform_transformer_forward.11} parent=0 // pred_fallthru
    _
  %v17 = vld [vmem:[%s0] sm:$0xff]
  %v18 = vld [vmem:[%s0 + $0x8] sm:$0xff]
  %v19 = vld [vmem:[%s0 + $0x10] sm:$0xff]
  %v20 = vld [vmem:[%s0 + $0x18] sm:$0xff]
  %vm21 = vcmask 523264
  %v22 = vsel %vm21, %v17, 0.0
  %23 = vadd.xlane.f32.xlu0 %v22
  %v24 = vpop.xlane.xlu0 %23
  %v25 = vsel %vm21, %v18, 0.0
  %26 = vadd.xlane.f32.xlu0 %v25
  %v27 = vpop.xlane.xlu0 %26
  %v28 = vsel %vm21, %v19, 0.0
  %29 = vadd.xlane.f32.xlu0 %v28
  %v30 = vpop.xlane.xlu0 %29
  %v31 = vsel %vm21, %v20, 0.0
  %32 = vadd.xlane.f32.xlu0 %v31
  %v33 = vpop.xlane.xlu0 %32
  %v34 = vrcp.pop 64.0
  %v35 = vmul.f32 %v24, %v34
  %v36 = vmul.f32 %v27, %v34
  %v37 = vmul.f32 %v30, %v34
  %v38 = vmul.f32 %v33, %v34
  %v39 = vsub.f32 %v17, %v35
  %v40 = vsub.f32 %v18, %v36
  %v41 = vsub.f32 %v19, %v37
  %v42 = vsub.f32 %v20, %v38
  %v43 = vmul.f32 %v39, %v39
  %v44 = vmul.f32 %v40, %v40
  %v45 = vmul.f32 %v41, %v41
  %v46 = vmul.f32 %v42, %v42
  %v47 = vsel %vm21, %v43, 0.0
  %48 = vadd.xlane.f32.xlu0 %v47
  %v49 = vpop.xlane.xlu0 %48
  %v50 = vsel %vm21, %v44, 0.0
  %51 = vadd.xlane.f32.xlu0 %v50
  %v52 = vpop.xlane.xlu0 %51
  %v53 = vsel %vm21, %v45, 0.0
  %54 = vadd.xlane.f32.xlu0 %v53
  %v55 = vpop.xlane.xlu0 %54
  %v56 = vsel %vm21, %v46, 0.0
  %57 = vadd.xlane.f32.xlu0 %v56
  %v58 = vpop.xlane.xlu0 %57
  %v59 = vmul.f32 %v49, %v34
  %v60 = vmul.f32 %v52, %v34
  %v61 = vmul.f32 %v55, %v34
  %v62 = vmul.f32 %v58, %v34
  %v63 = vadd.f32 %v59, 1e-05
  %v64 = vadd.f32 %v60, 1e-05
  %v65 = vadd.f32 %v61, 1e-05
  %v66 = vadd.f32 %v62, 1e-05
  %v67 = vrsqrt.pop %v63
  %v68 = vrsqrt.pop %v64
  %v69 = vrsqrt.pop %v65
  %v70 = vrsqrt.pop %v66
  %v71 = vmul.f32 %v39, %v67
  %v72 = vmul.f32 %v40, %v68
  %v73 = vmul.f32 %v41, %v69
  %v74 = vmul.f32 %v42, %v70
  %v75 = vld [vmem:[%s1] sm:$0x1]
  %v77 = vlaneseq
  %v78 = vshrl.u32 %v77, 7
  %v79 = vsub.s32 0, %v78
  %v80 = vrot.slane %v75, %v79
  %v82 = vmul.f32 %v71, %v80
  %v83 = vmul.f32 %v72, %v80
  %v84 = vmul.f32 %v73, %v80
  %v85 = vmul.f32 %v74, %v80
  %v86 = vld [vmem:[%s2] sm:$0x1]
  %v88 = vlaneseq
  %v89 = vshrl.u32 %v88, 7
  %v90 = vsub.s32 0, %v89
  %v91 = vrot.slane %v86, %v90
  %v93 = vadd.f32 %v82, %v91
  %v94 = vadd.f32 %v83, %v91
  %v95 = vadd.f32 %v84, %v91
  %v96 = vadd.f32 %v85, %v91
  %v97 = vld [vmem:[%s3] sm:$0xff]
  %v98 = vld [vmem:[%s3 + $0x8] sm:$0xff]
  %v99 = vld [vmem:[%s3 + $0x10] sm:$0xff]
  %v100 = vld [vmem:[%s3 + $0x18] sm:$0xff]
  %v101 = vld [vmem:[%s3 + $0x20] sm:$0xff]
  %v102 = vld [vmem:[%s3 + $0x28] sm:$0xff]
  %v103 = vld [vmem:[%s3 + $0x30] sm:$0xff]
  %v104 = vld [vmem:[%s3 + $0x38] sm:$0xff]
  %v106 = vsel %vm21, %v93, 0
  %v109 = vsel %vm21, %v94, 0
  %v112 = vsel %vm21, %v95, 0
  %v115 = vsel %vm21, %v96, 0
  %117 = vmatprep.subr.mxu0 0.0
  %118 = vmatpush1.msra.mxu0 0.0
  %119 = vmatprep.subr.mxu0 0.0
  %120 = vmatpush1.msra.mxu0 0.0
  %121 = vmatprep.subr.mxu0 0.0
  %122 = vmatpush1.msra.mxu0 0.0
  %123 = vmatprep.subr.mxu0 0.0
  %124 = vmatpush1.msra.mxu0 0.0
  %125 = vmatprep.subr.mxu0 0.0
  %126 = vmatpush1.msra.mxu0 0.0
  %127 = vmatprep.subr.mxu0 0.0
  %128 = vmatpush1.msra.mxu0 0.0
  %129 = vmatprep.subr.mxu0 0.0
  %130 = vmatpush1.msra.mxu0 0.0
  %131 = vmatprep.subr.mxu0 0.0
  %132 = vmatpush1.msra.mxu0 0.0
  %133 = vmatprep.subr.mxu0 0.0
  %134 = vmatpush1.msra.mxu0 %v104
  %135 = vmatprep.subr.mxu0 0.0
  %136 = vmatpush1.msra.mxu0 %v103
  %137 = vmatprep.subr.mxu0 0.0
  %138 = vmatpush1.msra.mxu0 %v102
  %139 = vmatprep.subr.mxu0 0.0
  %140 = vmatpush1.msra.mxu0 %v101
  %141 = vmatprep.subr.mxu0 0.0
  %142 = vmatpush1.msra.mxu0 %v100
  %143 = vmatprep.subr.mxu0 0.0
  %144 = vmatpush1.msra.mxu0 %v99
  %145 = vmatprep.subr.mxu0 0.0
  %146 = vmatpush1.msra.mxu0 %v98
  %147 = vmatprep.subr.mxu0 0.0
  %148 = vmatpush1.msra.mxu0 %v97
  %149 = vmatprep.subr.mxu0 0.0
  %150 = vmatpush2.msra.mxu0 0.0
  %151 = vmatprep.subr.mxu0 0.0
  %152 = vmatpush2.msra.mxu0 0.0
  %153 = vmatprep.subr.mxu0 0.0
  %154 = vmatpush2.msra.mxu0 0.0
  %155 = vmatprep.subr.mxu0 0.0
  %156 = vmatpush2.msra.mxu0 0.0
  %157 = vmatprep.subr.mxu0 0.0
  %158 = vmatpush2.msra.mxu0 0.0
  %159 = vmatprep.subr.mxu0 0.0
  %160 = vmatpush2.msra.mxu0 0.0
  %161 = vmatprep.subr.mxu0 0.0
  %162 = vmatpush2.msra.mxu0 0.0
  %163 = vmatprep.subr.mxu0 0.0
  %164 = vmatpush2.msra.mxu0 0.0
  %165 = vmatprep.subr.mxu0 0.0
  %166 = vmatpush2.msra.mxu0 0.0
  %167 = vmatprep.subr.mxu0 0.0
  %168 = vmatpush2.msra.mxu0 0.0
  %169 = vmatprep.subr.mxu0 0.0
  %170 = vmatpush2.msra.mxu0 0.0
  %171 = vmatprep.subr.mxu0 0.0
  %172 = vmatpush2.msra.mxu0 0.0
  %173 = vmatprep.subr.mxu0 0.0
  %174 = vmatpush2.msra.mxu0 0.0
  %175 = vmatprep.subr.mxu0 0.0
  %176 = vmatpush2.msra.mxu0 0.0
  %177 = vmatprep.subr.mxu0 0.0
  %178 = vmatpush2.msra.mxu0 0.0
  %179 = vmatprep.subr.mxu0 0.0
  %180 = vmatpush2.msra.mxu0 0.0
  %181 = vmatprep.mubr.f32.mxu0 0.0
  %182 = vmatmul.mubr.f32.gmra.mxu0 %v106
  %v183 = vpop.f32.mrf.mxu0
  %v184 = vadd.f32 0.0, %v183
  %v185 = vpop.f32.mrf.mxu0
  %186 = vmatprep.mubr.f32.mxu0 0.0
  %187 = vmatmul.mubr.f32.gmra.mxu0 %v109
  %v188 = vpop.f32.mrf.mxu0
  %v189 = vadd.f32 0.0, %v188
  %v190 = vpop.f32.mrf.mxu0
  %191 = vmatprep.mubr.f32.mxu0 0.0
  %192 = vmatmul.mubr.f32.gmra.mxu0 %v112
  %v193 = vpop.f32.mrf.mxu0
  %v194 = vadd.f32 0.0, %v193
  %v195 = vpop.f32.mrf.mxu0
  %196 = vmatprep.mubr.f32.mxu0 0.0
  %197 = vmatmul.mubr.f32.gmra.mxu0 %v115
  %v198 = vpop.f32.mrf.mxu0
  %v199 = vadd.f32 0.0, %v198
  %v200 = vpop.f32.mrf.mxu0
  %201 = vdwg.mxu0
  %vm202 = vcmask 261120
  %203 = vst.msk [vmem:[%s4] sm:$0xff] %vm202, %v184
  %204 = vst.msk [vmem:[%s4 + $0x8] sm:$0xff] %vm202, %v189
  %205 = vst.msk [vmem:[%s4 + $0x10] sm:$0xff] %vm202, %v194
  %206 = vst.msk [vmem:[%s4 + $0x18] sm:$0xff] %vm202, %v199
  // Predicated region
  $region18: #{deform_transformer_forward.11} parent=0 // pred_check
    _
  $region19: #{deform_transformer_forward.11} parent=0 // pred_check_branch
    %208 = sbr.rel (0) target = $region21
  $region20: #{deform_transformer_forward.11} parent=0 // pred_region
    _
  $region21: #{deform_transformer_forward.11} parent=0 // pred_fallthru
    _
  // Predicated region
  $region22: #{deform_transformer_forward.11} parent=0 // pred_check
    _
  $region23: #{deform_transformer_forward.11} parent=0 // pred_check_branch
    %210 = sbr.rel (0) target = $region25
  $region24: #{deform_transformer_forward.11} parent=0 // pred_region
    _
  $region25: #{deform_transformer_forward.11} parent=0 // pred_fallthru
    _

// kernel: deform_transformer_forward.9
$region0: #{deform_transformer_forward.9}
  #allocation0 [shape = 'u32[]', space=smem, size = 0x4, offset = 0x4, fixed_abs, tag = 'smem constant byte address 0x4 - core index']
  #allocation1 [shape = 'u32[144,128]{1,0:T(1,128)}', space=vmem, size = 0x12000, scoped, tag = 'internal scratch']
  %s0 = inlined_call_operand.vmem [shape: f32[2,4,16,16], index: 0, kind: input, shape index: {}]
  %s1 = inlined_call_operand.vmem [shape: f32[2,1,16,16], index: 1, kind: input, shape index: {}]
  %s2 = inlined_call_operand.vmem [shape: f32[1,16], index: 2, kind: input, shape index: {}]
  %s3 = inlined_call_operand.vmem [shape: f32[1,16], index: 3, kind: input, shape index: {}]
  %s4 = inlined_call_operand.vmem [shape: bf16[16,48], index: 4, kind: input, shape index: {}]
  %s5 = inlined_call_operand.vmem [shape: f32[1,48], index: 5, kind: input, shape index: {}]
  %s6 = inlined_call_operand.vmem [shape: bf16[16,16], index: 6, kind: input, shape index: {}]
  %s7 = inlined_call_operand.vmem [shape: f32[1,16], index: 7, kind: input, shape index: {}]
  %s8 = inlined_call_operand.vmem [shape: f32[1,16], index: 8, kind: input, shape index: {}]
  %s9 = inlined_call_operand.vmem [shape: f32[1,16], index: 9, kind: input, shape index: {}]
  %s10 = inlined_call_operand.vmem [shape: bf16[16,64], index: 10, kind: input, shape index: {}]
  %s11 = inlined_call_operand.vmem [shape: f32[1,64], index: 11, kind: input, shape index: {}]
  %s12 = inlined_call_operand.vmem [shape: bf16[64,16], index: 12, kind: input, shape index: {}]
  %s13 = inlined_call_operand.vmem [shape: f32[1,16], index: 13, kind: input, shape index: {}]
  %s14 = inlined_call_operand.vmem [shape: f32[2,4,16,16], index: 14, kind: output, shape index: {}]
  %s15 = sld [smem:[#allocation0]]
  $region66: #{deform_transformer_forward.9} parent=0
    _
  %s17 = ssub.s32 1, %s15
  %s18 = scalar_select 0, %s17, %s15
  // Predicated region
  $region2: #{deform_transformer_forward.9} parent=0 // pred_check
    _
  $region3: #{deform_transformer_forward.9} parent=0 // pred_check_branch
    %20 = sbr.rel (0) target = $region5
  $region4: #{deform_transformer_forward.9} parent=0 // pred_region
    _
  $region5: #{deform_transformer_forward.9} parent=0 // pred_fallthru
    _
  // Predicated region
  $region6: #{deform_transformer_forward.9} parent=0 // pred_check
    _
  $region7: #{deform_transformer_forward.9} parent=0 // pred_check_branch
    %22 = sbr.rel (0) target = $region9
  $region8: #{deform_transformer_forward.9} parent=0 // pred_region
    _
  $region9: #{deform_transformer_forward.9} parent=0 // pred_fallthru
    _
  // Predicated region
  $region10: #{deform_transformer_forward.9} parent=0 // pred_check
    _
  $region11: #{deform_transformer_forward.9} parent=0 // pred_check_branch
    %24 = sbr.rel (0) target = $region13
  $region12: #{deform_transformer_forward.9} parent=0 // pred_region
    _
  $region13: #{deform_transformer_forward.9} parent=0 // pred_fallthru
    _
  // Predicated region
  $region14: #{deform_transformer_forward.9} parent=0 // pred_check
    _
  $region15: #{deform_transformer_forward.9} parent=0 // pred_check_branch
    %26 = sbr.rel (0) target = $region17
  $region16: #{deform_transformer_forward.9} parent=0 // pred_region
    _
  $region17: #{deform_transformer_forward.9} parent=0 // pred_fallthru
    _
  // Predicated region
  $region18: #{deform_transformer_forward.9} parent=0 // pred_check
    _
  $region19: #{deform_transformer_forward.9} parent=0 // pred_check_branch
    %28 = sbr.rel (0) target = $region21
  $region20: #{deform_transformer_forward.9} parent=0 // pred_region
    _
  $region21: #{deform_transformer_forward.9} parent=0 // pred_fallthru
    _
  // Predicated region
  $region22: #{deform_transformer_forward.9} parent=0 // pred_check
    _
  $region23: #{deform_transformer_forward.9} parent=0 // pred_check_branch
    %30 = sbr.rel (0) target = $region25
  $region24: #{deform_transformer_forward.9} parent=0 // pred_region
    _
  $region25: #{deform_transformer_forward.9} parent=0 // pred_fallthru
    _
  // Predicated region
  $region26: #{deform_transformer_forward.9} parent=0 // pred_check
    _
  $region27: #{deform_transformer_forward.9} parent=0 // pred_check_branch
    %32 = sbr.rel (0) target = $region29
  $region28: #{deform_transformer_forward.9} parent=0 // pred_region
    _
  $region29: #{deform_transformer_forward.9} parent=0 // pred_fallthru
    _
  // Predicated region
  $region30: #{deform_transformer_forward.9} parent=0 // pred_check
    _
  $region31: #{deform_transformer_forward.9} parent=0 // pred_check_branch
    %34 = sbr.rel (0) target = $region33
  $region32: #{deform_transformer_forward.9} parent=0 // pred_region
    _
  $region33: #{deform_transformer_forward.9} parent=0 // pred_fallthru
    _
  // Predicated region
  $region34: #{deform_transformer_forward.9} parent=0 // pred_check
    _
  $region35: #{deform_transformer_forward.9} parent=0 // pred_check_branch
    %36 = sbr.rel (0) target = $region37
  $region36: #{deform_transformer_forward.9} parent=0 // pred_region
    _
  $region37: #{deform_transformer_forward.9} parent=0 // pred_fallthru
    _
  // Predicated region
  $region38: #{deform_transformer_forward.9} parent=0 // pred_check
    _
  $region39: #{deform_transformer_forward.9} parent=0 // pred_check_branch
    %38 = sbr.rel (0) target = $region41
  $region40: #{deform_transformer_forward.9} parent=0 // pred_region
    _
  $region41: #{deform_transformer_forward.9} parent=0 // pred_fallthru
    _
  // Predicated region
  $region42: #{deform_transformer_forward.9} parent=0 // pred_check
    _
  $region43: #{deform_transformer_forward.9} parent=0 // pred_check_branch
    %40 = sbr.rel (0) target = $region45
  $region44: #{deform_transformer_forward.9} parent=0 // pred_region
    _
  $region45: #{deform_transformer_forward.9} parent=0 // pred_fallthru
    _
  // Predicated region
  $region46: #{deform_transformer_forward.9} parent=0 // pred_check
    _
  $region47: #{deform_transformer_forward.9} parent=0 // pred_check_branch
    %42 = sbr.rel (0) target = $region49
  $region48: #{deform_transformer_forward.9} parent=0 // pred_region
    _
  $region49: #{deform_transformer_forward.9} parent=0 // pred_fallthru
    _
  // Predicated region
  $region50: #{deform_transformer_forward.9} parent=0 // pred_check
    _
  $region51: #{deform_transformer_forward.9} parent=0 // pred_check_branch
    %44 = sbr.rel (0) target = $region53
  $region52: #{deform_transformer_forward.9} parent=0 // pred_region
    _
  $region53: #{deform_transformer_forward.9} parent=0 // pred_fallthru
    _
  // Predicated region
  $region54: #{deform_transformer_forward.9} parent=0 // pred_check
    _
  $region55: #{deform_transformer_forward.9} parent=0 // pred_check_branch
    %46 = sbr.rel (0) target = $region57
  $region56: #{deform_transformer_forward.9} parent=0 // pred_region
    _
  $region57: #{deform_transformer_forward.9} parent=0 // pred_fallthru
    _
  %v48 = vld [vmem:[%s0] sm:$0xff]
  %v49 = vld [vmem:[%s0 + $0x8] sm:$0xff]
  %v50 = vld [vmem:[%s0 + $0x10] sm:$0xff]
  %v51 = vld [vmem:[%s0 + $0x18] sm:$0xff]
  %v52 = vld [vmem:[%s0 + $0x20] sm:$0xff]
  %v53 = vld [vmem:[%s0 + $0x28] sm:$0xff]
  %v54 = vld [vmem:[%s0 + $0x30] sm:$0xff]
  %v55 = vld [vmem:[%s0 + $0x38] sm:$0xff]
  %v56 = vld [vmem:[%s0 + $0x40] sm:$0xff]
  %v57 = vld [vmem:[%s0 + $0x48] sm:$0xff]
  %v58 = vld [vmem:[%s0 + $0x50] sm:$0xff]
  %v59 = vld [vmem:[%s0 + $0x58] sm:$0xff]
  %v60 = vld [vmem:[%s0 + $0x60] sm:$0xff]
  %v61 = vld [vmem:[%s0 + $0x68] sm:$0xff]
  %v62 = vld [vmem:[%s0 + $0x70] sm:$0xff]
  %v63 = vld [vmem:[%s0 + $0x78] sm:$0xff]
  %vm64 = vcmask 130048
  %v65 = vsel %vm64, %v48, 0.0
  %66 = vadd.xlane.f32.xlu0 %v65
  %v67 = vpop.xlane.xlu0 %66
  %v68 = vsel %vm64, %v49, 0.0
  %69 = vadd.xlane.f32.xlu0 %v68
  %v70 = vpop.xlane.xlu0 %69
  %v71 = vsel %vm64, %v50, 0.0
  %72 = vadd.xlane.f32.xlu0 %v71
  %v73 = vpop.xlane.xlu0 %72
  %v74 = vsel %vm64, %v51, 0.0
  %75 = vadd.xlane.f32.xlu0 %v74
  %v76 = vpop.xlane.xlu0 %75
  %v77 = vsel %vm64, %v52, 0.0
  %78 = vadd.xlane.f32.xlu0 %v77
  %v79 = vpop.xlane.xlu0 %78
  %v80 = vsel %vm64, %v53, 0.0
  %81 = vadd.xlane.f32.xlu0 %v80
  %v82 = vpop.xlane.xlu0 %81
  %v83 = vsel %vm64, %v54, 0.0
  %84 = vadd.xlane.f32.xlu0 %v83
  %v85 = vpop.xlane.xlu0 %84
  %v86 = vsel %vm64, %v55, 0.0
  %87 = vadd.xlane.f32.xlu0 %v86
  %v88 = vpop.xlane.xlu0 %87
  %v89 = vsel %vm64, %v56, 0.0
  %90 = vadd.xlane.f32.xlu0 %v89
  %v91 = vpop.xlane.xlu0 %90
  %v92 = vsel %vm64, %v57, 0.0
  %93 = vadd.xlane.f32.xlu0 %v92
  %v94 = vpop.xlane.xlu0 %93
  %v95 = vsel %vm64, %v58, 0.0
  %96 = vadd.xlane.f32.xlu0 %v95
  %v97 = vpop.xlane.xlu0 %96
  %v98 = vsel %vm64, %v59, 0.0
  %99 = vadd.xlane.f32.xlu0 %v98
  %v100 = vpop.xlane.xlu0 %99
  %v101 = vsel %vm64, %v60, 0.0
  %102 = vadd.xlane.f32.xlu0 %v101
  %v103 = vpop.xlane.xlu0 %102
  %v104 = vsel %vm64, %v61, 0.0
  %105 = vadd.xlane.f32.xlu0 %v104
  %v106 = vpop.xlane.xlu0 %105
  %v107 = vsel %vm64, %v62, 0.0
  %108 = vadd.xlane.f32.xlu0 %v107
  %v109 = vpop.xlane.xlu0 %108
  %v110 = vsel %vm64, %v63, 0.0
  %111 = vadd.xlane.f32.xlu0 %v110
  %v112 = vpop.xlane.xlu0 %111
  %v113 = vrcp.pop 16.0
  %v114 = vmul.f32 %v67, %v113
  %v115 = vmul.f32 %v70, %v113
  %v116 = vmul.f32 %v73, %v113
  %v117 = vmul.f32 %v76, %v113
  %v118 = vmul.f32 %v79, %v113
  %v119 = vmul.f32 %v82, %v113
  %v120 = vmul.f32 %v85, %v113
  %v121 = vmul.f32 %v88, %v113
  %v122 = vmul.f32 %v91, %v113
  %v123 = vmul.f32 %v94, %v113
  %v124 = vmul.f32 %v97, %v113
  %v125 = vmul.f32 %v100, %v113
  %v126 = vmul.f32 %v103, %v113
  %v127 = vmul.f32 %v106, %v113
  %v128 = vmul.f32 %v109, %v113
  %v129 = vmul.f32 %v112, %v113
  %v130 = vsub.f32 %v48, %v114
  %v131 = vsub.f32 %v49, %v115
  %v132 = vsub.f32 %v50, %v116
  %v133 = vsub.f32 %v51, %v117
  %v134 = vsub.f32 %v52, %v118
  %v135 = vsub.f32 %v53, %v119
  %v136 = vsub.f32 %v54, %v120
  %v137 = vsub.f32 %v55, %v121
  %v138 = vsub.f32 %v56, %v122
  %v139 = vsub.f32 %v57, %v123
  %v140 = vsub.f32 %v58, %v124
  %v141 = vsub.f32 %v59, %v125
  %v142 = vsub.f32 %v60, %v126
  %v143 = vsub.f32 %v61, %v127
  %v144 = vsub.f32 %v62, %v128
  %v145 = vsub.f32 %v63, %v129
  %v146 = vmul.f32 %v130, %v130
  %v147 = vmul.f32 %v131, %v131
  %v148 = vmul.f32 %v132, %v132
  %v149 = vmul.f32 %v133, %v133
  %v150 = vmul.f32 %v134, %v134
  %v151 = vmul.f32 %v135, %v135
  %v152 = vmul.f32 %v136, %v136
  %v153 = vmul.f32 %v137, %v137
  %v154 = vmul.f32 %v138, %v138
  %v155 = vmul.f32 %v139, %v139
  %v156 = vmul.f32 %v140, %v140
  %v157 = vmul.f32 %v141, %v141
  %v158 = vmul.f32 %v142, %v142
  %v159 = vmul.f32 %v143, %v143
  %v160 = vmul.f32 %v144, %v144
  %v161 = vmul.f32 %v145, %v145
  %v162 = vsel %vm64, %v146, 0.0
  %163 = vadd.xlane.f32.xlu0 %v162
  %v164 = vpop.xlane.xlu0 %163
  %v165 = vsel %vm64, %v147, 0.0
  %166 = vadd.xlane.f32.xlu0 %v165
  %v167 = vpop.xlane.xlu0 %166
  %v168 = vsel %vm64, %v148, 0.0
  %169 = vadd.xlane.f32.xlu0 %v168
  %v170 = vpop.xlane.xlu0 %169
  %v171 = vsel %vm64, %v149, 0.0
  %172 = vadd.xlane.f32.xlu0 %v171
  %v173 = vpop.xlane.xlu0 %172
  %v174 = vsel %vm64, %v150, 0.0
  %175 = vadd.xlane.f32.xlu0 %v174
  %v176 = vpop.xlane.xlu0 %175
  %v177 = vsel %vm64, %v151, 0.0
  %178 = vadd.xlane.f32.xlu0 %v177
  %v179 = vpop.xlane.xlu0 %178
  %v180 = vsel %vm64, %v152, 0.0
  %181 = vadd.xlane.f32.xlu0 %v180
  %v182 = vpop.xlane.xlu0 %181
  %v183 = vsel %vm64, %v153, 0.0
  %184 = vadd.xlane.f32.xlu0 %v183
  %v185 = vpop.xlane.xlu0 %184
  %v186 = vsel %vm64, %v154, 0.0
  %187 = vadd.xlane.f32.xlu0 %v186
  %v188 = vpop.xlane.xlu0 %187
  %v189 = vsel %vm64, %v155, 0.0
  %190 = vadd.xlane.f32.xlu0 %v189
  %v191 = vpop.xlane.xlu0 %190
  %v192 = vsel %vm64, %v156, 0.0
  %193 = vadd.xlane.f32.xlu0 %v192
  %v194 = vpop.xlane.xlu0 %193
  %v195 = vsel %vm64, %v157, 0.0
  %196 = vadd.xlane.f32.xlu0 %v195
  %v197 = vpop.xlane.xlu0 %196
  %v198 = vsel %vm64, %v158, 0.0
  %199 = vadd.xlane.f32.xlu0 %v198
  %v200 = vpop.xlane.xlu0 %199
  %v201 = vsel %vm64, %v159, 0.0
  %202 = vadd.xlane.f32.xlu0 %v201
  %v203 = vpop.xlane.xlu0 %202
  %v204 = vsel %vm64, %v160, 0.0
  %205 = vadd.xlane.f32.xlu0 %v204
  %v206 = vpop.xlane.xlu0 %205
  %v207 = vsel %vm64, %v161, 0.0
  %208 = vadd.xlane.f32.xlu0 %v207
  %v209 = vpop.xlane.xlu0 %208
  %v210 = vmul.f32 %v164, %v113
  %v211 = vmul.f32 %v167, %v113
  %v212 = vmul.f32 %v170, %v113
  %v213 = vmul.f32 %v173, %v113
  %v214 = vmul.f32 %v176, %v113
  %v215 = vmul.f32 %v179, %v113
  %v216 = vmul.f32 %v182, %v113
  %v217 = vmul.f32 %v185, %v113
  %v218 = vmul.f32 %v188, %v113
  %v219 = vmul.f32 %v191, %v113
  %v220 = vmul.f32 %v194, %v113
  %v221 = vmul.f32 %v197, %v113
  %v222 = vmul.f32 %v200, %v113
  %v223 = vmul.f32 %v203, %v113
  %v224 = vmul.f32 %v206, %v113
  %v225 = vmul.f32 %v209, %v113
  %v226 = vadd.f32 %v210, 1e-05
  %v227 = vadd.f32 %v211, 1e-05
  %v228 = vadd.f32 %v212, 1e-05
  %v229 = vadd.f32 %v213, 1e-05
  %v230 = vadd.f32 %v214, 1e-05
  %v231 = vadd.f32 %v215, 1e-05
  %v232 = vadd.f32 %v216, 1e-05
  %v233 = vadd.f32 %v217, 1e-05
  %v234 = vadd.f32 %v218, 1e-05
  %v235 = vadd.f32 %v219, 1e-05
  %v236 = vadd.f32 %v220, 1e-05
  %v237 = vadd.f32 %v221, 1e-05
  %v238 = vadd.f32 %v222, 1e-05
  %v239 = vadd.f32 %v223, 1e-05
  %v240 = vadd.f32 %v224, 1e-05
  %v241 = vadd.f32 %v225, 1e-05
  %v242 = vrsqrt.pop %v226
  %v243 = vrsqrt.pop %v227
  %v244 = vrsqrt.pop %v228
  %v245 = vrsqrt.pop %v229
  %v246 = vrsqrt.pop %v230
  %v247 = vrsqrt.pop %v231
  %v248 = vrsqrt.pop %v232
  %v249 = vrsqrt.pop %v233
  %v250 = vrsqrt.pop %v234
  %v251 = vrsqrt.pop %v235
  %v252 = vrsqrt.pop %v236
  %v253 = vrsqrt.pop %v237
  %v254 = vrsqrt.pop %v238
  %v255 = vrsqrt.pop %v239
  %v256 = vrsqrt.pop %v240
  %v257 = vrsqrt.pop %v241
  %v258 = vmul.f32 %v130, %v242
  %v259 = vmul.f32 %v131, %v243
  %v260 = vmul.f32 %v132, %v244
  %v261 = vmul.f32 %v133, %v245
  %v262 = vmul.f32 %v134, %v246
  %v263 = vmul.f32 %v135, %v247
  %v264 = vmul.f32 %v136, %v248
  %v265 = vmul.f32 %v137, %v249
  %v266 = vmul.f32 %v138, %v250
  %v267 = vmul.f32 %v139, %v251
  %v268 = vmul.f32 %v140, %v252
  %v269 = vmul.f32 %v141, %v253
  %v270 = vmul.f32 %v142, %v254
  %v271 = vmul.f32 %v143, %v255
  %v272 = vmul.f32 %v144, %v256
  %v273 = vmul.f32 %v145, %v257
  %v274 = vld [vmem:[%s2] sm:$0x1]
  %v276 = vlaneseq
  %v277 = vshrl.u32 %v276, 7
  %v278 = vsub.s32 0, %v277
  %v279 = vrot.slane %v274, %v278
  %v281 = vmul.f32 %v258, %v279
  %v282 = vmul.f32 %v259, %v279
  %v283 = vmul.f32 %v260, %v279
  %v284 = vmul.f32 %v261, %v279
  %v285 = vmul.f32 %v262, %v279
  %v286 = vmul.f32 %v263, %v279
  %v287 = vmul.f32 %v264, %v279
  %v288 = vmul.f32 %v265, %v279
  %v289 = vmul.f32 %v266, %v279
  %v290 = vmul.f32 %v267, %v279
  %v291 = vmul.f32 %v268, %v279
  %v292 = vmul.f32 %v269, %v279
  %v293 = vmul.f32 %v270, %v279
  %v294 = vmul.f32 %v271, %v279
  %v295 = vmul.f32 %v272, %v279
  %v296 = vmul.f32 %v273, %v279
  %v297 = vld [vmem:[%s3] sm:$0x1]
  %v299 = vlaneseq
  %v300 = vshrl.u32 %v299, 7
  %v301 = vsub.s32 0, %v300
  %v302 = vrot.slane %v297, %v301
  %v304 = vadd.f32 %v281, %v302
  %v305 = vadd.f32 %v282, %v302
  %v306 = vadd.f32 %v283, %v302
  %v307 = vadd.f32 %v284, %v302
  %v308 = vadd.f32 %v285, %v302
  %v309 = vadd.f32 %v286, %v302
  %v310 = vadd.f32 %v287, %v302
  %v311 = vadd.f32 %v288, %v302
  %v312 = vadd.f32 %v289, %v302
  %v313 = vadd.f32 %v290, %v302
  %v314 = vadd.f32 %v291, %v302
  %v315 = vadd.f32 %v292, %v302
  %v316 = vadd.f32 %v293, %v302
  %v317 = vadd.f32 %v294, %v302
  %v318 = vadd.f32 %v295, %v302
  %v319 = vadd.f32 %v296, %v302
  %v320 = vpack.c.bf16 %v305, %v304
  %v321 = vpack.c.bf16 %v307, %v306
  %v322 = vpack.c.bf16 %v309, %v308
  %v323 = vpack.c.bf16 %v311, %v310
  %v324 = vpack.c.bf16 %v313, %v312
  %v325 = vpack.c.bf16 %v315, %v314
  %v326 = vpack.c.bf16 %v317, %v316
  %v327 = vpack.c.bf16 %v319, %v318
  %v328 = vld [vmem:[%s4] sm:$0xf]
  %v329 = vld [vmem:[%s4 + $0x4] sm:$0xf]
  %v330 = vld [vmem:[%s5] sm:$0x1]
  %v332 = vlaneseq
  %v333 = vshrl.u32 %v332, 7
  %v334 = vsub.s32 0, %v333
  %v335 = vrot.slane %v330, %v334
  %v339 = vunpack.c.l.b16 %v328
  %v340 = vunpack.c.l.b16 %v329
  %v341 = vpack.c.b16 %v340, %v339
  %v344 = vsel %vm64, %v320, 0
  %v347 = vsel %vm64, %v321, 0
  %v350 = vsel %vm64, %v322, 0
  %v353 = vsel %vm64, %v323, 0
  %v356 = vsel %vm64, %v324, 0
  %v359 = vsel %vm64, %v325, 0
  %v362 = vsel %vm64, %v326, 0
  %v365 = vsel %vm64, %v327, 0
  %367 = vmatprep.subr.bf16.mxu0 0
  %368 = vmatpush1.bf16.msra.mxu0 0
  %369 = vmatprep.subr.bf16.mxu0 0
  %370 = vmatpush1.bf16.msra.mxu0 0
  %371 = vmatprep.subr.bf16.mxu0 0
  %372 = vmatpush1.bf16.msra.mxu0 0
  %373 = vmatprep.subr.bf16.mxu0 0
  %374 = vmatpush1.bf16.msra.mxu0 0
  %375 = vmatprep.subr.bf16.mxu0 0
  %376 = vmatpush1.bf16.msra.mxu0 0
  %377 = vmatprep.subr.bf16.mxu0 0
  %378 = vmatpush1.bf16.msra.mxu0 0
  %379 = vmatprep.subr.bf16.mxu0 0
  %380 = vmatpush1.bf16.msra.mxu0 0
  %381 = vmatprep.subr.bf16.mxu0 0
  %382 = vmatpush1.bf16.msra.mxu0 %v341
  %383 = vmatprep.subr.bf16.mxu0 0
  %384 = vmatpush2.bf16.msra.mxu0 0
  %385 = vmatprep.subr.bf16.mxu0 0
  %386 = vmatpush2.bf16.msra.mxu0 0
  %387 = vmatprep.subr.bf16.mxu0 0
  %388 = vmatpush2.bf16.msra.mxu0 0
  %389 = vmatprep.subr.bf16.mxu0 0
  %390 = vmatpush2.bf16.msra.mxu0 0
  %391 = vmatprep.subr.bf16.mxu0 0
  %392 = vmatpush2.bf16.msra.mxu0 0
  %393 = vmatprep.subr.bf16.mxu0 0
  %394 = vmatpush2.bf16.msra.mxu0 0
  %395 = vmatprep.subr.bf16.mxu0 0
  %396 = vmatpush2.bf16.msra.mxu0 0
  %397 = vmatprep.subr.bf16.mxu0 0
  %398 = vmatpush2.bf16.msra.mxu0 0
  %399 = vmatprep.mubr.bf16.mxu0 0
  %400 = vmatmul.mubr.bf16.gmra.mxu0 %v344
  %v401 = vpop.f32.mrf.mxu0
  %v402 = vadd.f32 %v335, %v401
  %v403 = vpop.f32.mrf.mxu0
  %v404 = vpop.f32.mrf.mxu0
  %v405 = vadd.f32 %v335, %v404
  %v406 = vpop.f32.mrf.mxu0
  %407 = vmatprep.mubr.bf16.mxu0 0
  %408 = vmatmul.mubr.bf16.gmra.mxu0 %v347
  %v409 = vpop.f32.mrf.mxu0
  %v410 = vadd.f32 %v335, %v409
  %v411 = vpop.f32.mrf.mxu0
  %v412 = vpop.f32.mrf.mxu0
  %v413 = vadd.f32 %v335, %v412
  %v414 = vpop.f32.mrf.mxu0
  %415 = vmatprep.mubr.bf16.mxu0 0
  %416 = vmatmul.mubr.bf16.gmra.mxu0 %v350
  %v417 = vpop.f32.mrf.mxu0
  %v418 = vadd.f32 %v335, %v417
  %v419 = vpop.f32.mrf.mxu0
  %v420 = vpop.f32.mrf.mxu0
  %v421 = vadd.f32 %v335, %v420
  %v422 = vpop.f32.mrf.mxu0
  %423 = vmatprep.mubr.bf16.mxu0 0
  %424 = vmatmul.mubr.bf16.gmra.mxu0 %v353
  %v425 = vpop.f32.mrf.mxu0
  %v426 = vadd.f32 %v335, %v425
  %v427 = vpop.f32.mrf.mxu0
  %v428 = vpop.f32.mrf.mxu0
  %v429 = vadd.f32 %v335, %v428
  %v430 = vpop.f32.mrf.mxu0
  %431 = vmatprep.mubr.bf16.mxu0 0
  %432 = vmatmul.mubr.bf16.gmra.mxu0 %v356
  %v433 = vpop.f32.mrf.mxu0
  %v434 = vadd.f32 %v335, %v433
  %v435 = vpop.f32.mrf.mxu0
  %v436 = vpop.f32.mrf.mxu0
  %v437 = vadd.f32 %v335, %v436
  %v438 = vpop.f32.mrf.mxu0
  %439 = vmatprep.mubr.bf16.mxu0 0
  %440 = vmatmul.mubr.bf16.gmra.mxu0 %v359
  %v441 = vpop.f32.mrf.mxu0
  %v442 = vadd.f32 %v335, %v441
  %v443 = vpop.f32.mrf.mxu0
  %v444 = vpop.f32.mrf.mxu0
  %v445 = vadd.f32 %v335, %v444
  %v446 = vpop.f32.mrf.mxu0
  %447 = vmatprep.mubr.bf16.mxu0 0
  %448 = vmatmul.mubr.bf16.gmra.mxu0 %v362
  %v449 = vpop.f32.mrf.mxu0
  %v450 = vadd.f32 %v335, %v449
  %v451 = vpop.f32.mrf.mxu0
  %v452 = vpop.f32.mrf.mxu0
  %v453 = vadd.f32 %v335, %v452
  %v454 = vpop.f32.mrf.mxu0
  %455 = vmatprep.mubr.bf16.mxu0 0
  %456 = vmatmul.mubr.bf16.gmra.mxu0 %v365
  %v457 = vpop.f32.mrf.mxu0
  %v458 = vadd.f32 %v335, %v457
  %v459 = vpop.f32.mrf.mxu0
  %v460 = vpop.f32.mrf.mxu0
  %v461 = vadd.f32 %v335, %v460
  %v462 = vpop.f32.mrf.mxu0
  %463 = vdwg.mxu0
  %v464 = vmul.f32 %v402, 0.35355338
  %v465 = vmul.f32 %v405, 0.35355338
  %v466 = vmul.f32 %v410, 0.35355338
  %v467 = vmul.f32 %v413, 0.35355338
  %v468 = vmul.f32 %v418, 0.35355338
  %v469 = vmul.f32 %v421, 0.35355338
  %v470 = vmul.f32 %v426, 0.35355338
  %v471 = vmul.f32 %v429, 0.35355338
  %v472 = vmul.f32 %v434, 0.35355338
  %v473 = vmul.f32 %v437, 0.35355338
  %v474 = vmul.f32 %v442, 0.35355338
  %v475 = vmul.f32 %v445, 0.35355338
  %v476 = vmul.f32 %v450, 0.35355338
  %v477 = vmul.f32 %v453, 0.35355338
  %v478 = vmul.f32 %v458, 0.35355338
  %v479 = vmul.f32 %v461, 0.35355338
  %v480 = vpack.c.bf16 %v465, %v464
  %v481 = vpack.c.bf16 %v467, %v466
  %v482 = vpack.c.bf16 %v469, %v468
  %v483 = vpack.c.bf16 %v471, %v470
  %v484 = vpack.c.bf16 %v473, %v472
  %v485 = vpack.c.bf16 %v475, %v474
  %v486 = vpack.c.bf16 %v477, %v476
  %v487 = vpack.c.bf16 %v479, %v478
  %v488 = vpack.c.bf16 %v405, %v402
  %v489 = vpack.c.bf16 %v413, %v410
  %v490 = vpack.c.bf16 %v421, %v418
  %v491 = vpack.c.bf16 %v429, %v426
  %v492 = vpack.c.bf16 %v437, %v434
  %v493 = vpack.c.bf16 %v445, %v442
  %v494 = vpack.c.bf16 %v453, %v450
  %v495 = vpack.c.bf16 %v461, %v458
  %497 = vrot.lane.b32.xlu0 %v488, 112
  %v498 = vpop.permute.xlu0 %497
  %vm499 = vcmask 64512
  %v501 = vsel %vm499, %v480, 0
  %v504 = vsel %vm499, %v498, 0
  %506 = vmatprep.subr.bf16.mxu0 0
  %507 = vmatpush1.bf16.xpose.msra.mxu0 0
  %508 = vmatprep.subr.bf16.mxu0 0
  %509 = vmatpush1.bf16.xpose.msra.mxu0 0
  %510 = vmatprep.subr.bf16.mxu0 0
  %511 = vmatpush1.bf16.xpose.msra.mxu0 0
  %512 = vmatprep.subr.bf16.mxu0 0
  %513 = vmatpush1.bf16.xpose.msra.mxu0 0
  %514 = vmatprep.subr.bf16.mxu0 0
  %515 = vmatpush1.bf16.xpose.msra.mxu0 0
  %516 = vmatprep.subr.bf16.mxu0 0
  %517 = vmatpush1.bf16.xpose.msra.mxu0 0
  %518 = vmatprep.subr.bf16.mxu0 0
  %519 = vmatpush1.bf16.xpose.msra.mxu0 0
  %520 = vmatprep.subr.bf16.mxu0 0
  %521 = vmatpush1.bf16.xpose.msra.mxu0 %v504
  %522 = vmatprep.subr.bf16.mxu0 0
  %523 = vmatpush2.bf16.xpose.msra.mxu0 0
  %524 = vmatprep.subr.bf16.mxu0 0
  %525 = vmatpush2.bf16.xpose.msra.mxu0 0
  %526 = vmatprep.subr.bf16.mxu0 0
  %527 = vmatpush2.bf16.xpose.msra.mxu0 0
  %528 = vmatprep.subr.bf16.mxu0 0
  %529 = vmatpush2.bf16.xpose.msra.mxu0 0
  %530 = vmatprep.subr.bf16.mxu0 0
  %531 = vmatpush2.bf16.xpose.msra.mxu0 0
  %532 = vmatprep.subr.bf16.mxu0 0
  %533 = vmatpush2.bf16.xpose.msra.mxu0 0
  %534 = vmatprep.subr.bf16.mxu0 0
  %535 = vmatpush2.bf16.xpose.msra.mxu0 0
  %536 = vmatprep.subr.bf16.mxu0 0
  %537 = vmatpush2.bf16.xpose.msra.mxu0 0
  %538 = vmatprep.mubr.bf16.mxu0 0
  %539 = vmatmul.mubr.bf16.gmra.mxu0 %v501
  %v540 = vpop.f32.mrf.mxu0
  %v541 = vadd.f32 0.0, %v540
  %v542 = vpop.f32.mrf.mxu0
  %v543 = vpop.f32.mrf.mxu0
  %v544 = vadd.f32 0.0, %v543
  %v545 = vpop.f32.mrf.mxu0
  %546 = vdwg.mxu0
  %548 = vrot.lane.b32.xlu0 %v489, 112
  %v549 = vpop.permute.xlu0 %548
  %v551 = vsel %vm499, %v481, 0
  %v554 = vsel %vm499, %v549, 0
  %556 = vmatprep.subr.bf16.mxu0 0
  %557 = vmatpush1.bf16.xpose.msra.mxu0 0
  %558 = vmatprep.subr.bf16.mxu0 0
  %559 = vmatpush1.bf16.xpose.msra.mxu0 0
  %560 = vmatprep.subr.bf16.mxu0 0
  %561 = vmatpush1.bf16.xpose.msra.mxu0 0
  %562 = vmatprep.subr.bf16.mxu0 0
  %563 = vmatpush1.bf16.xpose.msra.mxu0 0
  %564 = vmatprep.subr.bf16.mxu0 0
  %565 = vmatpush1.bf16.xpose.msra.mxu0 0
  %566 = vmatprep.subr.bf16.mxu0 0
  %567 = vmatpush1.bf16.xpose.msra.mxu0 0
  %568 = vmatprep.subr.bf16.mxu0 0
  %569 = vmatpush1.bf16.xpose.msra.mxu0 0
  %570 = vmatprep.subr.bf16.mxu0 0
  %571 = vmatpush1.bf16.xpose.msra.mxu0 %v554
  %572 = vmatprep.subr.bf16.mxu0 0
  %573 = vmatpush2.bf16.xpose.msra.mxu0 0
  %574 = vmatprep.subr.bf16.mxu0 0
  %575 = vmatpush2.bf16.xpose.msra.mxu0 0
  %576 = vmatprep.subr.bf16.mxu0 0
  %577 = vmatpush2.bf16.xpose.msra.mxu0 0
  %578 = vmatprep.subr.bf16.mxu0 0
  %579 = vmatpush2.bf16.xpose.msra.mxu0 0
  %580 = vmatprep.subr.bf16.mxu0 0
  %581 = vmatpush2.bf16.xpose.msra.mxu0 0
  %582 = vmatprep.subr.bf16.mxu0 0
  %583 = vmatpush2.bf16.xpose.msra.mxu0 0
  %584 = vmatprep.subr.bf16.mxu0 0
  %585 = vmatpush2.bf16.xpose.msra.mxu0 0
  %586 = vmatprep.subr.bf16.mxu0 0
  %587 = vmatpush2.bf16.xpose.msra.mxu0 0
  %588 = vmatprep.mubr.bf16.mxu0 0
  %589 = vmatmul.mubr.bf16.gmra.mxu0 %v551
  %v590 = vpop.f32.mrf.mxu0
  %v591 = vadd.f32 0.0, %v590
  %v592 = vpop.f32.mrf.mxu0
  %v593 = vpop.f32.mrf.mxu0
  %v594 = vadd.f32 0.0, %v593
  %v595 = vpop.f32.mrf.mxu0
  %596 = vdwg.mxu0
  %598 = vrot.lane.b32.xlu0 %v490, 112
  %v599 = vpop.permute.xlu0 %598
  %v601 = vsel %vm499, %v482, 0
  %v604 = vsel %vm499, %v599, 0
  %606 = vmatprep.subr.bf16.mxu0 0
  %607 = vmatpush1.bf16.xpose.msra.mxu0 0
  %608 = vmatprep.subr.bf16.mxu0 0
  %609 = vmatpush1.bf16.xpose.msra.mxu0 0
  %610 = vmatprep.subr.bf16.mxu0 0
  %611 = vmatpush1.bf16.xpose.msra.mxu0 0
  %612 = vmatprep.subr.bf16.mxu0 0
  %613 = vmatpush1.bf16.xpose.msra.mxu0 0
  %614 = vmatprep.subr.bf16.mxu0 0
  %615 = vmatpush1.bf16.xpose.msra.mxu0 0
  %616 = vmatprep.subr.bf16.mxu0 0
  %617 = vmatpush1.bf16.xpose.msra.mxu0 0
  %618 = vmatprep.subr.bf16.mxu0 0
  %619 = vmatpush1.bf16.xpose.msra.mxu0 0
  %620 = vmatprep.subr.bf16.mxu0 0
  %621 = vmatpush1.bf16.xpose.msra.mxu0 %v604
  %622 = vmatprep.subr.bf16.mxu0 0
  %623 = vmatpush2.bf16.xpose.msra.mxu0 0
  %624 = vmatprep.subr.bf16.mxu0 0
  %625 = vmatpush2.bf16.xpose.msra.mxu0 0
  %626 = vmatprep.subr.bf16.mxu0 0
  %627 = vmatpush2.bf16.xpose.msra.mxu0 0
  %628 = vmatprep.subr.bf16.mxu0 0
  %629 = vmatpush2.bf16.xpose.msra.mxu0 0
  %630 = vmatprep.subr.bf16.mxu0 0
  %631 = vmatpush2.bf16.xpose.msra.mxu0 0
  %632 = vmatprep.subr.bf16.mxu0 0
  %633 = vmatpush2.bf16.xpose.msra.mxu0 0
  %634 = vmatprep.subr.bf16.mxu0 0
  %635 = vmatpush2.bf16.xpose.msra.mxu0 0
  %636 = vmatprep.subr.bf16.mxu0 0
  %637 = vmatpush2.bf16.xpose.msra.mxu0 0
  %638 = vmatprep.mubr.bf16.mxu0 0
  %639 = vmatmul.mubr.bf16.gmra.mxu0 %v601
  %v640 = vpop.f32.mrf.mxu0
  %v641 = vadd.f32 0.0, %v640
  %v642 = vpop.f32.mrf.mxu0
  %v643 = vpop.f32.mrf.mxu0
  %v644 = vadd.f32 0.0, %v643
  %v645 = vpop.f32.mrf.mxu0
  %646 = vdwg.mxu0
  %648 = vrot.lane.b32.xlu0 %v491, 112
  %v649 = vpop.permute.xlu0 %648
  %v651 = vsel %vm499, %v483, 0
  %v654 = vsel %vm499, %v649, 0
  %656 = vmatprep.subr.bf16.mxu0 0
  %657 = vmatpush1.bf16.xpose.msra.mxu0 0
  %658 = vmatprep.subr.bf16.mxu0 0
  %659 = vmatpush1.bf16.xpose.msra.mxu0 0
  %660 = vmatprep.subr.bf16.mxu0 0
  %661 = vmatpush1.bf16.xpose.msra.mxu0 0
  %662 = vmatprep.subr.bf16.mxu0 0
  %663 = vmatpush1.bf16.xpose.msra.mxu0 0
  %664 = vmatprep.subr.bf16.mxu0 0
  %665 = vmatpush1.bf16.xpose.msra.mxu0 0
  %666 = vmatprep.subr.bf16.mxu0 0
  %667 = vmatpush1.bf16.xpose.msra.mxu0 0
  %668 = vmatprep.subr.bf16.mxu0 0
  %669 = vmatpush1.bf16.xpose.msra.mxu0 0
  %670 = vmatprep.subr.bf16.mxu0 0
  %671 = vmatpush1.bf16.xpose.msra.mxu0 %v654
  %672 = vmatprep.subr.bf16.mxu0 0
  %673 = vmatpush2.bf16.xpose.msra.mxu0 0
  %674 = vmatprep.subr.bf16.mxu0 0
  %675 = vmatpush2.bf16.xpose.msra.mxu0 0
  %676 = vmatprep.subr.bf16.mxu0 0
  %677 = vmatpush2.bf16.xpose.msra.mxu0 0
  %678 = vmatprep.subr.bf16.mxu0 0
  %679 = vmatpush2.bf16.xpose.msra.mxu0 0
  %680 = vmatprep.subr.bf16.mxu0 0
  %681 = vmatpush2.bf16.xpose.msra.mxu0 0
  %682 = vmatprep.subr.bf16.mxu0 0
  %683 = vmatpush2.bf16.xpose.msra.mxu0 0
  %684 = vmatprep.subr.bf16.mxu0 0
  %685 = vmatpush2.bf16.xpose.msra.mxu0 0
  %686 = vmatprep.subr.bf16.mxu0 0
  %687 = vmatpush2.bf16.xpose.msra.mxu0 0
  %688 = vmatprep.mubr.bf16.mxu0 0
  %689 = vmatmul.mubr.bf16.gmra.mxu0 %v651
  %v690 = vpop.f32.mrf.mxu0
  %v691 = vadd.f32 0.0, %v690
  %v692 = vpop.f32.mrf.mxu0
  %v693 = vpop.f32.mrf.mxu0
  %v694 = vadd.f32 0.0, %v693
  %v695 = vpop.f32.mrf.mxu0
  %696 = vdwg.mxu0
  %698 = vrot.lane.b32.xlu0 %v492, 112
  %v699 = vpop.permute.xlu0 %698
  %v701 = vsel %vm499, %v484, 0
  %v704 = vsel %vm499, %v699, 0
  %706 = vmatprep.subr.bf16.mxu0 0
  %707 = vmatpush1.bf16.xpose.msra.mxu0 0
  %708 = vmatprep.subr.bf16.mxu0 0
  %709 = vmatpush1.bf16.xpose.msra.mxu0 0
  %710 = vmatprep.subr.bf16.mxu0 0
  %711 = vmatpush1.bf16.xpose.msra.mxu0 0
  %712 = vmatprep.subr.bf16.mxu0 0
  %713 = vmatpush1.bf16.xpose.msra.mxu0 0
  %714 = vmatprep.subr.bf16.mxu0 0
  %715 = vmatpush1.bf16.xpose.msra.mxu0 0
  %716 = vmatprep.subr.bf16.mxu0 0
  %717 = vmatpush1.bf16.xpose.msra.mxu0 0
  %718 = vmatprep.subr.bf16.mxu0 0
  %719 = vmatpush1.bf16.xpose.msra.mxu0 0
  %720 = vmatprep.subr.bf16.mxu0 0
  %721 = vmatpush1.bf16.xpose.msra.mxu0 %v704
  %722 = vmatprep.subr.bf16.mxu0 0
  %723 = vmatpush2.bf16.xpose.msra.mxu0 0
  %724 = vmatprep.subr.bf16.mxu0 0
  %725 = vmatpush2.bf16.xpose.msra.mxu0 0
  %726 = vmatprep.subr.bf16.mxu0 0
  %727 = vmatpush2.bf16.xpose.msra.mxu0 0
  %728 = vmatprep.subr.bf16.mxu0 0
  %729 = vmatpush2.bf16.xpose.msra.mxu0 0
  %730 = vmatprep.subr.bf16.mxu0 0
  %731 = vmatpush2.bf16.xpose.msra.mxu0 0
  %732 = vmatprep.subr.bf16.mxu0 0
  %733 = vmatpush2.bf16.xpose.msra.mxu0 0
  %734 = vmatprep.subr.bf16.mxu0 0
  %735 = vmatpush2.bf16.xpose.msra.mxu0 0
  %736 = vmatprep.subr.bf16.mxu0 0
  %737 = vmatpush2.bf16.xpose.msra.mxu0 0
  %738 = vmatprep.mubr.bf16.mxu0 0
  %739 = vmatmul.mubr.bf16.gmra.mxu0 %v701
  %v740 = vpop.f32.mrf.mxu0
  %v741 = vadd.f32 0.0, %v740
  %v742 = vpop.f32.mrf.mxu0
  %v743 = vpop.f32.mrf.mxu0
  %v744 = vadd.f32 0.0, %v743
  %v745 = vpop.f32.mrf.mxu0
  %746 = vdwg.mxu0
  %748 = vrot.lane.b32.xlu0 %v493, 112
  %v749 = vpop.permute.xlu0 %748
  %v751 = vsel %vm499, %v485, 0
  %v754 = vsel %vm499, %v749, 0
  %756 = vmatprep.subr.bf16.mxu0 0
  %757 = vmatpush1.bf16.xpose.msra.mxu0 0
  %758 = vmatprep.subr.bf16.mxu0 0
  %759 = vmatpush1.bf16.xpose.msra.mxu0 0
  %760 = vmatprep.subr.bf16.mxu0 0
  %761 = vmatpush1.bf16.xpose.msra.mxu0 0
  %762 = vmatprep.subr.bf16.mxu0 0
  %763 = vmatpush1.bf16.xpose.msra.mxu0 0
  %764 = vmatprep.subr.bf16.mxu0 0
  %765 = vmatpush1.bf16.xpose.msra.mxu0 0
  %766 = vmatprep.subr.bf16.mxu0 0
  %767 = vmatpush1.bf16.xpose.msra.mxu0 0
  %768 = vmatprep.subr.bf16.mxu0 0
  %769 = vmatpush1.bf16.xpose.msra.mxu0 0
  %770 = vmatprep.subr.bf16.mxu0 0
  %771 = vmatpush1.bf16.xpose.msra.mxu0 %v754
  %772 = vmatprep.subr.bf16.mxu0 0
  %773 = vmatpush2.bf16.xpose.msra.mxu0 0
  %774 = vmatprep.subr.bf16.mxu0 0
  %775 = vmatpush2.bf16.xpose.msra.mxu0 0
  %776 = vmatprep.subr.bf16.mxu0 0
  %777 = vmatpush2.bf16.xpose.msra.mxu0 0
  %778 = vmatprep.subr.bf16.mxu0 0
  %779 = vmatpush2.bf16.xpose.msra.mxu0 0
  %780 = vmatprep.subr.bf16.mxu0 0
  %781 = vmatpush2.bf16.xpose.msra.mxu0 0
  %782 = vmatprep.subr.bf16.mxu0 0
  %783 = vmatpush2.bf16.xpose.msra.mxu0 0
  %784 = vmatprep.subr.bf16.mxu0 0
  %785 = vmatpush2.bf16.xpose.msra.mxu0 0
  %786 = vmatprep.subr.bf16.mxu0 0
  %787 = vmatpush2.bf16.xpose.msra.mxu0 0
  %788 = vmatprep.mubr.bf16.mxu0 0
  %789 = vmatmul.mubr.bf16.gmra.mxu0 %v751
  %v790 = vpop.f32.mrf.mxu0
  %v791 = vadd.f32 0.0, %v790
  %v792 = vpop.f32.mrf.mxu0
  %v793 = vpop.f32.mrf.mxu0
  %v794 = vadd.f32 0.0, %v793
  %v795 = vpop.f32.mrf.mxu0
  %796 = vdwg.mxu0
  %798 = vrot.lane.b32.xlu0 %v494, 112
  %v799 = vpop.permute.xlu0 %798
  %v801 = vsel %vm499, %v486, 0
  %v804 = vsel %vm499, %v799, 0
  %806 = vmatprep.subr.bf16.mxu0 0
  %807 = vmatpush1.bf16.xpose.msra.mxu0 0
  %808 = vmatprep.subr.bf16.mxu0 0
  %809 = vmatpush1.bf16.xpose.msra.mxu0 0
  %810 = vmatprep.subr.bf16.mxu0 0
  %811 = vmatpush1.bf16.xpose.msra.mxu0 0
  %812 = vmatprep.subr.bf16.mxu0 0
  %813 = vmatpush1.bf16.xpose.msra.mxu0 0
  %814 = vmatprep.subr.bf16.mxu0 0
  %815 = vmatpush1.bf16.xpose.msra.mxu0 0
  %816 = vmatprep.subr.bf16.mxu0 0
  %817 = vmatpush1.bf16.xpose.msra.mxu0 0
  %818 = vmatprep.subr.bf16.mxu0 0
  %819 = vmatpush1.bf16.xpose.msra.mxu0 0
  %820 = vmatprep.subr.bf16.mxu0 0
  %821 = vmatpush1.bf16.xpose.msra.mxu0 %v804
  %822 = vmatprep.subr.bf16.mxu0 0
  %823 = vmatpush2.bf16.xpose.msra.mxu0 0
  %824 = vmatprep.subr.bf16.mxu0 0
  %825 = vmatpush2.bf16.xpose.msra.mxu0 0
  %826 = vmatprep.subr.bf16.mxu0 0
  %827 = vmatpush2.bf16.xpose.msra.mxu0 0
  %828 = vmatprep.subr.bf16.mxu0 0
  %829 = vmatpush2.bf16.xpose.msra.mxu0 0
  %830 = vmatprep.subr.bf16.mxu0 0
  %831 = vmatpush2.bf16.xpose.msra.mxu0 0
  %832 = vmatprep.subr.bf16.mxu0 0
  %833 = vmatpush2.bf16.xpose.msra.mxu0 0
  %834 = vmatprep.subr.bf16.mxu0 0
  %835 = vmatpush2.bf16.xpose.msra.mxu0 0
  %836 = vmatprep.subr.bf16.mxu0 0
  %837 = vmatpush2.bf16.xpose.msra.mxu0 0
  %838 = vmatprep.mubr.bf16.mxu0 0
  %839 = vmatmul.mubr.bf16.gmra.mxu0 %v801
  %v840 = vpop.f32.mrf.mxu0
  %v841 = vadd.f32 0.0, %v840
  %v842 = vpop.f32.mrf.mxu0
  %v843 = vpop.f32.mrf.mxu0
  %v844 = vadd.f32 0.0, %v843
  %v845 = vpop.f32.mrf.mxu0
  %846 = vdwg.mxu0
  %848 = vrot.lane.b32.xlu0 %v495, 112
  %v849 = vpop.permute.xlu0 %848
  %v851 = vsel %vm499, %v487, 0
  %v854 = vsel %vm499, %v849, 0
  %856 = vmatprep.subr.bf16.mxu0 0
  %857 = vmatpush1.bf16.xpose.msra.mxu0 0
  %858 = vmatprep.subr.bf16.mxu0 0
  %859 = vmatpush1.bf16.xpose.msra.mxu0 0
  %860 = vmatprep.subr.bf16.mxu0 0
  %861 = vmatpush1.bf16.xpose.msra.mxu0 0
  %862 = vmatprep.subr.bf16.mxu0 0
  %863 = vmatpush1.bf16.xpose.msra.mxu0 0
  %864 = vmatprep.subr.bf16.mxu0 0
  %865 = vmatpush1.bf16.xpose.msra.mxu0 0
  %866 = vmatprep.subr.bf16.mxu0 0
  %867 = vmatpush1.bf16.xpose.msra.mxu0 0
  %868 = vmatprep.subr.bf16.mxu0 0
  %869 = vmatpush1.bf16.xpose.msra.mxu0 0
  %870 = vmatprep.subr.bf16.mxu0 0
  %871 = vmatpush1.bf16.xpose.msra.mxu0 %v854
  %872 = vmatprep.subr.bf16.mxu0 0
  %873 = vmatpush2.bf16.xpose.msra.mxu0 0
  %874 = vmatprep.subr.bf16.mxu0 0
  %875 = vmatpush2.bf16.xpose.msra.mxu0 0
  %876 = vmatprep.subr.bf16.mxu0 0
  %877 = vmatpush2.bf16.xpose.msra.mxu0 0
  %878 = vmatprep.subr.bf16.mxu0 0
  %879 = vmatpush2.bf16.xpose.msra.mxu0 0
  %880 = vmatprep.subr.bf16.mxu0 0
  %881 = vmatpush2.bf16.xpose.msra.mxu0 0
  %882 = vmatprep.subr.bf16.mxu0 0
  %883 = vmatpush2.bf16.xpose.msra.mxu0 0
  %884 = vmatprep.subr.bf16.mxu0 0
  %885 = vmatpush2.bf16.xpose.msra.mxu0 0
  %886 = vmatprep.subr.bf16.mxu0 0
  %887 = vmatpush2.bf16.xpose.msra.mxu0 0
  %888 = vmatprep.mubr.bf16.mxu0 0
  %889 = vmatmul.mubr.bf16.gmra.mxu0 %v851
  %v890 = vpop.f32.mrf.mxu0
  %v891 = vadd.f32 0.0, %v890
  %v892 = vpop.f32.mrf.mxu0
  %v893 = vpop.f32.mrf.mxu0
  %v894 = vadd.f32 0.0, %v893
  %v895 = vpop.f32.mrf.mxu0
  %896 = vdwg.mxu0
  %v897 = vld [vmem:[%s1] sm:$0xff]
  %v898 = vld [vmem:[%s1 + $0x8] sm:$0xff]
  %v899 = vadd.f32 %v541, %v897
  %v900 = vadd.f32 %v544, %v898
  %v901 = vadd.f32 %v591, %v897
  %v902 = vadd.f32 %v594, %v898
  %v903 = vadd.f32 %v641, %v897
  %v904 = vadd.f32 %v644, %v898
  %v905 = vadd.f32 %v691, %v897
  %v906 = vadd.f32 %v694, %v898
  %v907 = vadd.f32 %v741, %v897
  %v908 = vadd.f32 %v744, %v898
  %v909 = vadd.f32 %v791, %v897
  %v910 = vadd.f32 %v794, %v898
  %v911 = vadd.f32 %v841, %v897
  %v912 = vadd.f32 %v844, %v898
  %v913 = vadd.f32 %v891, %v897
  %v914 = vadd.f32 %v894, %v898
  %v915 = vsel %vm64, %v899, -inf
  %916 = vmax.xlane.f32.xlu0 %v915
  %v917 = vpop.xlane.xlu0 %916
  %v918 = vsel %vm64, %v900, -inf
  %919 = vmax.xlane.f32.xlu0 %v918
  %v920 = vpop.xlane.xlu0 %919
  %v921 = vsel %vm64, %v901, -inf
  %922 = vmax.xlane.f32.xlu0 %v921
  %v923 = vpop.xlane.xlu0 %922
  %v924 = vsel %vm64, %v902, -inf
  %925 = vmax.xlane.f32.xlu0 %v924
  %v926 = vpop.xlane.xlu0 %925
  %v927 = vsel %vm64, %v903, -inf
  %928 = vmax.xlane.f32.xlu0 %v927
  %v929 = vpop.xlane.xlu0 %928
  %v930 = vsel %vm64, %v904, -inf
  %931 = vmax.xlane.f32.xlu0 %v930
  %v932 = vpop.xlane.xlu0 %931
  %v933 = vsel %vm64, %v905, -inf
  %934 = vmax.xlane.f32.xlu0 %v933
  %v935 = vpop.xlane.xlu0 %934
  %v936 = vsel %vm64, %v906, -inf
  %937 = vmax.xlane.f32.xlu0 %v936
  %v938 = vpop.xlane.xlu0 %937
  %v939 = vsel %vm64, %v907, -inf
  %940 = vmax.xlane.f32.xlu0 %v939
  %v941 = vpop.xlane.xlu0 %940
  %v942 = vsel %vm64, %v908, -inf
  %943 = vmax.xlane.f32.xlu0 %v942
  %v944 = vpop.xlane.xlu0 %943
  %v945 = vsel %vm64, %v909, -inf
  %946 = vmax.xlane.f32.xlu0 %v945
  %v947 = vpop.xlane.xlu0 %946
  %v948 = vsel %vm64, %v910, -inf
  %949 = vmax.xlane.f32.xlu0 %v948
  %v950 = vpop.xlane.xlu0 %949
  %v951 = vsel %vm64, %v911, -inf
  %952 = vmax.xlane.f32.xlu0 %v951
  %v953 = vpop.xlane.xlu0 %952
  %v954 = vsel %vm64, %v912, -inf
  %955 = vmax.xlane.f32.xlu0 %v954
  %v956 = vpop.xlane.xlu0 %955
  %v957 = vsel %vm64, %v913, -inf
  %958 = vmax.xlane.f32.xlu0 %v957
  %v959 = vpop.xlane.xlu0 %958
  %v960 = vsel %vm64, %v914, -inf
  %961 = vmax.xlane.f32.xlu0 %v960
  %v962 = vpop.xlane.xlu0 %961
  %v963 = vsub.f32 %v899, %v917
  %v964 = vsub.f32 %v900, %v920
  %v965 = vsub.f32 %v901, %v923
  %v966 = vsub.f32 %v902, %v926
  %v967 = vsub.f32 %v903, %v929
  %v968 = vsub.f32 %v904, %v932
  %v969 = vsub.f32 %v905, %v935
  %v970 = vsub.f32 %v906, %v938
  %v971 = vsub.f32 %v907, %v941
  %v972 = vsub.f32 %v908, %v944
  %v973 = vsub.f32 %v909, %v947
  %v974 = vsub.f32 %v910, %v950
  %v975 = vsub.f32 %v911, %v953
  %v976 = vsub.f32 %v912, %v956
  %v977 = vsub.f32 %v913, %v959
  %v978 = vsub.f32 %v914, %v962
  %v979 = vmul.f32 %v963, 1.442695
  %v980 = vpow.pop %v979
  %v981 = vmul.f32 %v964, 1.442695
  %v982 = vpow.pop %v981
  %v983 = vmul.f32 %v965, 1.442695
  %v984 = vpow.pop %v983
  %v985 = vmul.f32 %v966, 1.442695
  %v986 = vpow.pop %v985
  %v987 = vmul.f32 %v967, 1.442695
  %v988 = vpow.pop %v987
  %v989 = vmul.f32 %v968, 1.442695
  %v990 = vpow.pop %v989
  %v991 = vmul.f32 %v969, 1.442695
  %v992 = vpow.pop %v991
  %v993 = vmul.f32 %v970, 1.442695
  %v994 = vpow.pop %v993
  %v995 = vmul.f32 %v971, 1.442695
  %v996 = vpow.pop %v995
  %v997 = vmul.f32 %v972, 1.442695
  %v998 = vpow.pop %v997
  %v999 = vmul.f32 %v973, 1.442695
  %v1000 = vpow.pop %v999
  %v1001 = vmul.f32 %v974, 1.442695
  %v1002 = vpow.pop %v1001
  %v1003 = vmul.f32 %v975, 1.442695
  %v1004 = vpow.pop %v1003
  %v1005 = vmul.f32 %v976, 1.442695
  %v1006 = vpow.pop %v1005
  %v1007 = vmul.f32 %v977, 1.442695
  %v1008 = vpow.pop %v1007
  %v1009 = vmul.f32 %v978, 1.442695
  %v1010 = vpow.pop %v1009
  %v1011 = vsel %vm64, %v980, 0.0
  %1012 = vadd.xlane.f32.xlu0 %v1011
  %v1013 = vpop.xlane.xlu0 %1012
  %v1014 = vsel %vm64, %v982, 0.0
  %1015 = vadd.xlane.f32.xlu0 %v1014
  %v1016 = vpop.xlane.xlu0 %1015
  %v1017 = vsel %vm64, %v984, 0.0
  %1018 = vadd.xlane.f32.xlu0 %v1017
  %v1019 = vpop.xlane.xlu0 %1018
  %v1020 = vsel %vm64, %v986, 0.0
  %1021 = vadd.xlane.f32.xlu0 %v1020
  %v1022 = vpop.xlane.xlu0 %1021
  %v1023 = vsel %vm64, %v988, 0.0
  %1024 = vadd.xlane.f32.xlu0 %v1023
  %v1025 = vpop.xlane.xlu0 %1024
  %v1026 = vsel %vm64, %v990, 0.0
  %1027 = vadd.xlane.f32.xlu0 %v1026
  %v1028 = vpop.xlane.xlu0 %1027
  %v1029 = vsel %vm64, %v992, 0.0
  %1030 = vadd.xlane.f32.xlu0 %v1029
  %v1031 = vpop.xlane.xlu0 %1030
  %v1032 = vsel %vm64, %v994, 0.0
  %1033 = vadd.xlane.f32.xlu0 %v1032
  %v1034 = vpop.xlane.xlu0 %1033
  %v1035 = vsel %vm64, %v996, 0.0
  %1036 = vadd.xlane.f32.xlu0 %v1035
  %v1037 = vpop.xlane.xlu0 %1036
  %v1038 = vsel %vm64, %v998, 0.0
  %1039 = vadd.xlane.f32.xlu0 %v1038
  %v1040 = vpop.xlane.xlu0 %1039
  %v1041 = vsel %vm64, %v1000, 0.0
  %1042 = vadd.xlane.f32.xlu0 %v1041
  %v1043 = vpop.xlane.xlu0 %1042
  %v1044 = vsel %vm64, %v1002, 0.0
  %1045 = vadd.xlane.f32.xlu0 %v1044
  %v1046 = vpop.xlane.xlu0 %1045
  %v1047 = vsel %vm64, %v1004, 0.0
  %1048 = vadd.xlane.f32.xlu0 %v1047
  %v1049 = vpop.xlane.xlu0 %1048
  %v1050 = vsel %vm64, %v1006, 0.0
  %1051 = vadd.xlane.f32.xlu0 %v1050
  %v1052 = vpop.xlane.xlu0 %1051
  %v1053 = vsel %vm64, %v1008, 0.0
  %1054 = vadd.xlane.f32.xlu0 %v1053
  %v1055 = vpop.xlane.xlu0 %1054
  %v1056 = vsel %vm64, %v1010, 0.0
  %1057 = vadd.xlane.f32.xlu0 %v1056
  %v1058 = vpop.xlane.xlu0 %1057
  %v1059 = vrcp.pop %v1013
  %v1060 = vrcp.pop %v1016
  %v1061 = vrcp.pop %v1019
  %v1062 = vrcp.pop %v1022
  %v1063 = vrcp.pop %v1025
  %v1064 = vrcp.pop %v1028
  %v1065 = vrcp.pop %v1031
  %v1066 = vrcp.pop %v1034
  %v1067 = vrcp.pop %v1037
  %v1068 = vrcp.pop %v1040
  %v1069 = vrcp.pop %v1043
  %v1070 = vrcp.pop %v1046
  %v1071 = vrcp.pop %v1049
  %v1072 = vrcp.pop %v1052
  %v1073 = vrcp.pop %v1055
  %v1074 = vrcp.pop %v1058
  %v1075 = vmul.f32 %v980, %v1059
  %v1076 = vmul.f32 %v982, %v1060
  %v1077 = vmul.f32 %v984, %v1061
  %v1078 = vmul.f32 %v986, %v1062
  %v1079 = vmul.f32 %v988, %v1063
  %v1080 = vmul.f32 %v990, %v1064
  %v1081 = vmul.f32 %v992, %v1065
  %v1082 = vmul.f32 %v994, %v1066
  %v1083 = vmul.f32 %v996, %v1067
  %v1084 = vmul.f32 %v998, %v1068
  %v1085 = vmul.f32 %v1000, %v1069
  %v1086 = vmul.f32 %v1002, %v1070
  %v1087 = vmul.f32 %v1004, %v1071
  %v1088 = vmul.f32 %v1006, %v1072
  %v1089 = vmul.f32 %v1008, %v1073
  %v1090 = vmul.f32 %v1010, %v1074
  %v1091 = vpack.c.bf16 %v1076, %v1075
  %v1092 = vpack.c.bf16 %v1078, %v1077
  %v1093 = vpack.c.bf16 %v1080, %v1079
  %v1094 = vpack.c.bf16 %v1082, %v1081
  %v1095 = vpack.c.bf16 %v1084, %v1083
  %v1096 = vpack.c.bf16 %v1086, %v1085
  %v1097 = vpack.c.bf16 %v1088, %v1087
  %v1098 = vpack.c.bf16 %v1090, %v1089
  %1099 = vrot.lane.b32.xlu0 %v488, 96
  %v1100 = vpop.permute.xlu0 %1099
  %v1103 = vsel %vm64, %v1091, 0
  %1105 = vmatprep.subr.bf16.mxu0 0
  %1106 = vmatpush1.bf16.msra.mxu0 0
  %1107 = vmatprep.subr.bf16.mxu0 0
  %1108 = vmatpush1.bf16.msra.mxu0 0
  %1109 = vmatprep.subr.bf16.mxu0 0
  %1110 = vmatpush1.bf16.msra.mxu0 0
  %1111 = vmatprep.subr.bf16.mxu0 0
  %1112 = vmatpush1.bf16.msra.mxu0 0
  %1113 = vmatprep.subr.bf16.mxu0 0
  %1114 = vmatpush1.bf16.msra.mxu0 0
  %1115 = vmatprep.subr.bf16.mxu0 0
  %1116 = vmatpush1.bf16.msra.mxu0 0
  %1117 = vmatprep.subr.bf16.mxu0 0
  %1118 = vmatpush1.bf16.msra.mxu0 0
  %1119 = vmatprep.subr.bf16.mxu0 0
  %1120 = vmatpush1.bf16.msra.mxu0 %v1100
  %1121 = vmatprep.subr.bf16.mxu0 0
  %1122 = vmatpush2.bf16.msra.mxu0 0
  %1123 = vmatprep.subr.bf16.mxu0 0
  %1124 = vmatpush2.bf16.msra.mxu0 0
  %1125 = vmatprep.subr.bf16.mxu0 0
  %1126 = vmatpush2.bf16.msra.mxu0 0
  %1127 = vmatprep.subr.bf16.mxu0 0
  %1128 = vmatpush2.bf16.msra.mxu0 0
  %1129 = vmatprep.subr.bf16.mxu0 0
  %1130 = vmatpush2.bf16.msra.mxu0 0
  %1131 = vmatprep.subr.bf16.mxu0 0
  %1132 = vmatpush2.bf16.msra.mxu0 0
  %1133 = vmatprep.subr.bf16.mxu0 0
  %1134 = vmatpush2.bf16.msra.mxu0 0
  %1135 = vmatprep.subr.bf16.mxu0 0
  %1136 = vmatpush2.bf16.msra.mxu0 0
  %1137 = vmatprep.mubr.bf16.mxu0 0
  %1138 = vmatmul.mubr.bf16.gmra.mxu0 %v1103
  %v1139 = vpop.f32.mrf.mxu0
  %v1140 = vadd.f32 0.0, %v1139
  %v1141 = vpop.f32.mrf.mxu0
  %v1142 = vpop.f32.mrf.mxu0
  %v1143 = vadd.f32 0.0, %v1142
  %v1144 = vpop.f32.mrf.mxu0
  %1145 = vdwg.mxu0
  %1146 = vrot.lane.b32.xlu0 %v489, 96
  %v1147 = vpop.permute.xlu0 %1146
  %v1150 = vsel %vm64, %v1092, 0
  %1152 = vmatprep.subr.bf16.mxu0 0
  %1153 = vmatpush1.bf16.msra.mxu0 0
  %1154 = vmatprep.subr.bf16.mxu0 0
  %1155 = vmatpush1.bf16.msra.mxu0 0
  %1156 = vmatprep.subr.bf16.mxu0 0
  %1157 = vmatpush1.bf16.msra.mxu0 0
  %1158 = vmatprep.subr.bf16.mxu0 0
  %1159 = vmatpush1.bf16.msra.mxu0 0
  %1160 = vmatprep.subr.bf16.mxu0 0
  %1161 = vmatpush1.bf16.msra.mxu0 0
  %1162 = vmatprep.subr.bf16.mxu0 0
  %1163 = vmatpush1.bf16.msra.mxu0 0
  %1164 = vmatprep.subr.bf16.mxu0 0
  %1165 = vmatpush1.bf16.msra.mxu0 0
  %1166 = vmatprep.subr.bf16.mxu0 0
  %1167 = vmatpush1.bf16.msra.mxu0 %v1147
  %1168 = vmatprep.subr.bf16.mxu0 0
  %1169 = vmatpush2.bf16.msra.mxu0 0
  %1170 = vmatprep.subr.bf16.mxu0 0
  %1171 = vmatpush2.bf16.msra.mxu0 0
  %1172 = vmatprep.subr.bf16.mxu0 0
  %1173 = vmatpush2.bf16.msra.mxu0 0
  %1174 = vmatprep.subr.bf16.mxu0 0
  %1175 = vmatpush2.bf16.msra.mxu0 0
  %1176 = vmatprep.subr.bf16.mxu0 0
  %1177 = vmatpush2.bf16.msra.mxu0 0
  %1178 = vmatprep.subr.bf16.mxu0 0
  %1179 = vmatpush2.bf16.msra.mxu0 0
  %1180 = vmatprep.subr.bf16.mxu0 0
  %1181 = vmatpush2.bf16.msra.mxu0 0
  %1182 = vmatprep.subr.bf16.mxu0 0
  %1183 = vmatpush2.bf16.msra.mxu0 0
  %1184 = vmatprep.mubr.bf16.mxu0 0
  %1185 = vmatmul.mubr.bf16.gmra.mxu0 %v1150
  %v1186 = vpop.f32.mrf.mxu0
  %v1187 = vadd.f32 0.0, %v1186
  %v1188 = vpop.f32.mrf.mxu0
  %v1189 = vpop.f32.mrf.mxu0
  %v1190 = vadd.f32 0.0, %v1189
  %v1191 = vpop.f32.mrf.mxu0
  %1192 = vdwg.mxu0
  %1193 = vrot.lane.b32.xlu0 %v490, 96
  %v1194 = vpop.permute.xlu0 %1193
  %v1197 = vsel %vm64, %v1093, 0
  %1199 = vmatprep.subr.bf16.mxu0 0
  %1200 = vmatpush1.bf16.msra.mxu0 0
  %1201 = vmatprep.subr.bf16.mxu0 0
  %1202 = vmatpush1.bf16.msra.mxu0 0
  %1203 = vmatprep.subr.bf16.mxu0 0
  %1204 = vmatpush1.bf16.msra.mxu0 0
  %1205 = vmatprep.subr.bf16.mxu0 0
  %1206 = vmatpush1.bf16.msra.mxu0 0
  %1207 = vmatprep.subr.bf16.mxu0 0
  %1208 = vmatpush1.bf16.msra.mxu0 0
  %1209 = vmatprep.subr.bf16.mxu0 0
  %1210 = vmatpush1.bf16.msra.mxu0 0
  %1211 = vmatprep.subr.bf16.mxu0 0
  %1212 = vmatpush1.bf16.msra.mxu0 0
  %1213 = vmatprep.subr.bf16.mxu0 0
  %1214 = vmatpush1.bf16.msra.mxu0 %v1194
  %1215 = vmatprep.subr.bf16.mxu0 0
  %1216 = vmatpush2.bf16.msra.mxu0 0
  %1217 = vmatprep.subr.bf16.mxu0 0
  %1218 = vmatpush2.bf16.msra.mxu0 0
  %1219 = vmatprep.subr.bf16.mxu0 0
  %1220 = vmatpush2.bf16.msra.mxu0 0
  %1221 = vmatprep.subr.bf16.mxu0 0
  %1222 = vmatpush2.bf16.msra.mxu0 0
  %1223 = vmatprep.subr.bf16.mxu0 0
  %1224 = vmatpush2.bf16.msra.mxu0 0
  %1225 = vmatprep.subr.bf16.mxu0 0
  %1226 = vmatpush2.bf16.msra.mxu0 0
  %1227 = vmatprep.subr.bf16.mxu0 0
  %1228 = vmatpush2.bf16.msra.mxu0 0
  %1229 = vmatprep.subr.bf16.mxu0 0
  %1230 = vmatpush2.bf16.msra.mxu0 0
  %1231 = vmatprep.mubr.bf16.mxu0 0
  %1232 = vmatmul.mubr.bf16.gmra.mxu0 %v1197
  %v1233 = vpop.f32.mrf.mxu0
  %v1234 = vadd.f32 0.0, %v1233
  %v1235 = vpop.f32.mrf.mxu0
  %v1236 = vpop.f32.mrf.mxu0
  %v1237 = vadd.f32 0.0, %v1236
  %v1238 = vpop.f32.mrf.mxu0
  %1239 = vdwg.mxu0
  %1240 = vrot.lane.b32.xlu0 %v491, 96
  %v1241 = vpop.permute.xlu0 %1240
  %v1244 = vsel %vm64, %v1094, 0
  %1246 = vmatprep.subr.bf16.mxu0 0
  %1247 = vmatpush1.bf16.msra.mxu0 0
  %1248 = vmatprep.subr.bf16.mxu0 0
  %1249 = vmatpush1.bf16.msra.mxu0 0
  %1250 = vmatprep.subr.bf16.mxu0 0
  %1251 = vmatpush1.bf16.msra.mxu0 0
  %1252 = vmatprep.subr.bf16.mxu0 0
  %1253 = vmatpush1.bf16.msra.mxu0 0
  %1254 = vmatprep.subr.bf16.mxu0 0
  %1255 = vmatpush1.bf16.msra.mxu0 0
  %1256 = vmatprep.subr.bf16.mxu0 0
  %1257 = vmatpush1.bf16.msra.mxu0 0
  %1258 = vmatprep.subr.bf16.mxu0 0
  %1259 = vmatpush1.bf16.msra.mxu0 0
  %1260 = vmatprep.subr.bf16.mxu0 0
  %1261 = vmatpush1.bf16.msra.mxu0 %v1241
  %1262 = vmatprep.subr.bf16.mxu0 0
  %1263 = vmatpush2.bf16.msra.mxu0 0
  %1264 = vmatprep.subr.bf16.mxu0 0
  %1265 = vmatpush2.bf16.msra.mxu0 0
  %1266 = vmatprep.subr.bf16.mxu0 0
  %1267 = vmatpush2.bf16.msra.mxu0 0
  %1268 = vmatprep.subr.bf16.mxu0 0
  %1269 = vmatpush2.bf16.msra.mxu0 0
  %1270 = vmatprep.subr.bf16.mxu0 0
  %1271 = vmatpush2.bf16.msra.mxu0 0
  %1272 = vmatprep.subr.bf16.mxu0 0
  %1273 = vmatpush2.bf16.msra.mxu0 0
  %1274 = vmatprep.subr.bf16.mxu0 0
  %1275 = vmatpush2.bf16.msra.mxu0 0
  %1276 = vmatprep.subr.bf16.mxu0 0
  %1277 = vmatpush2.bf16.msra.mxu0 0
  %1278 = vmatprep.mubr.bf16.mxu0 0
  %1279 = vmatmul.mubr.bf16.gmra.mxu0 %v1244
  %v1280 = vpop.f32.mrf.mxu0
  %v1281 = vadd.f32 0.0, %v1280
  %v1282 = vpop.f32.mrf.mxu0
  %v1283 = vpop.f32.mrf.mxu0
  %v1284 = vadd.f32 0.0, %v1283
  %v1285 = vpop.f32.mrf.mxu0
  %1286 = vdwg.mxu0
  %1287 = vrot.lane.b32.xlu0 %v492, 96
  %v1288 = vpop.permute.xlu0 %1287
  %v1291 = vsel %vm64, %v1095, 0
  %1293 = vmatprep.subr.bf16.mxu0 0
  %1294 = vmatpush1.bf16.msra.mxu0 0
  %1295 = vmatprep.subr.bf16.mxu0 0
  %1296 = vmatpush1.bf16.msra.mxu0 0
  %1297 = vmatprep.subr.bf16.mxu0 0
  %1298 = vmatpush1.bf16.msra.mxu0 0
  %1299 = vmatprep.subr.bf16.mxu0 0
  %1300 = vmatpush1.bf16.msra.mxu0 0
  %1301 = vmatprep.subr.bf16.mxu0 0
  %1302 = vmatpush1.bf16.msra.mxu0 0
  %1303 = vmatprep.subr.bf16.mxu0 0
  %1304 = vmatpush1.bf16.msra.mxu0 0
  %1305 = vmatprep.subr.bf16.mxu0 0
  %1306 = vmatpush1.bf16.msra.mxu0 0
  %1307 = vmatprep.subr.bf16.mxu0 0
  %1308 = vmatpush1.bf16.msra.mxu0 %v1288
  %1309 = vmatprep.subr.bf16.mxu0 0
  %1310 = vmatpush2.bf16.msra.mxu0 0
  %1311 = vmatprep.subr.bf16.mxu0 0
  %1312 = vmatpush2.bf16.msra.mxu0 0
  %1313 = vmatprep.subr.bf16.mxu0 0
  %1314 = vmatpush2.bf16.msra.mxu0 0
  %1315 = vmatprep.subr.bf16.mxu0 0
  %1316 = vmatpush2.bf16.msra.mxu0 0
  %1317 = vmatprep.subr.bf16.mxu0 0
  %1318 = vmatpush2.bf16.msra.mxu0 0
  %1319 = vmatprep.subr.bf16.mxu0 0
  %1320 = vmatpush2.bf16.msra.mxu0 0
  %1321 = vmatprep.subr.bf16.mxu0 0
  %1322 = vmatpush2.bf16.msra.mxu0 0
  %1323 = vmatprep.subr.bf16.mxu0 0
  %1324 = vmatpush2.bf16.msra.mxu0 0
  %1325 = vmatprep.mubr.bf16.mxu0 0
  %1326 = vmatmul.mubr.bf16.gmra.mxu0 %v1291
  %v1327 = vpop.f32.mrf.mxu0
  %v1328 = vadd.f32 0.0, %v1327
  %v1329 = vpop.f32.mrf.mxu0
  %v1330 = vpop.f32.mrf.mxu0
  %v1331 = vadd.f32 0.0, %v1330
  %v1332 = vpop.f32.mrf.mxu0
  %1333 = vdwg.mxu0
  %1334 = vrot.lane.b32.xlu0 %v493, 96
  %v1335 = vpop.permute.xlu0 %1334
  %v1338 = vsel %vm64, %v1096, 0
  %1340 = vmatprep.subr.bf16.mxu0 0
  %1341 = vmatpush1.bf16.msra.mxu0 0
  %1342 = vmatprep.subr.bf16.mxu0 0
  %1343 = vmatpush1.bf16.msra.mxu0 0
  %1344 = vmatprep.subr.bf16.mxu0 0
  %1345 = vmatpush1.bf16.msra.mxu0 0
  %1346 = vmatprep.subr.bf16.mxu0 0
  %1347 = vmatpush1.bf16.msra.mxu0 0
  %1348 = vmatprep.subr.bf16.mxu0 0
  %1349 = vmatpush1.bf16.msra.mxu0 0
  %1350 = vmatprep.subr.bf16.mxu0 0
  %1351 = vmatpush1.bf16.msra.mxu0 0
  %1352 = vmatprep.subr.bf16.mxu0 0
  %1353 = vmatpush1.bf16.msra.mxu0 0
  %1354 = vmatprep.subr.bf16.mxu0 0
  %1355 = vmatpush1.bf16.msra.mxu0 %v1335
  %1356 = vmatprep.subr.bf16.mxu0 0
  %1357 = vmatpush2.bf16.msra.mxu0 0
  %1358 = vmatprep.subr.bf16.mxu0 0
  %1359 = vmatpush2.bf16.msra.mxu0 0
  %1360 = vmatprep.subr.bf16.mxu0 0
  %1361 = vmatpush2.bf16.msra.mxu0 0
  %1362 = vmatprep.subr.bf16.mxu0 0
  %1363 = vmatpush2.bf16.msra.mxu0 0
  %1364 = vmatprep.subr.bf16.mxu0 0
  %1365 = vmatpush2.bf16.msra.mxu0 0
  %1366 = vmatprep.subr.bf16.mxu0 0
  %1367 = vmatpush2.bf16.msra.mxu0 0
  %1368 = vmatprep.subr.bf16.mxu0 0
  %1369 = vmatpush2.bf16.msra.mxu0 0
  %1370 = vmatprep.subr.bf16.mxu0 0
  %1371 = vmatpush2.bf16.msra.mxu0 0
  %1372 = vmatprep.mubr.bf16.mxu0 0
  %1373 = vmatmul.mubr.bf16.gmra.mxu0 %v1338
  %v1374 = vpop.f32.mrf.mxu0
  %v1375 = vadd.f32 0.0, %v1374
  %v1376 = vpop.f32.mrf.mxu0
  %v1377 = vpop.f32.mrf.mxu0
  %v1378 = vadd.f32 0.0, %v1377
  %v1379 = vpop.f32.mrf.mxu0
  %1380 = vdwg.mxu0
  %1381 = vrot.lane.b32.xlu0 %v494, 96
  %v1382 = vpop.permute.xlu0 %1381
  %v1385 = vsel %vm64, %v1097, 0
  %1387 = vmatprep.subr.bf16.mxu0 0
  %1388 = vmatpush1.bf16.msra.mxu0 0
  %1389 = vmatprep.subr.bf16.mxu0 0
  %1390 = vmatpush1.bf16.msra.mxu0 0
  %1391 = vmatprep.subr.bf16.mxu0 0
  %1392 = vmatpush1.bf16.msra.mxu0 0
  %1393 = vmatprep.subr.bf16.mxu0 0
  %1394 = vmatpush1.bf16.msra.mxu0 0
  %1395 = vmatprep.subr.bf16.mxu0 0
  %1396 = vmatpush1.bf16.msra.mxu0 0
  %1397 = vmatprep.subr.bf16.mxu0 0
  %1398 = vmatpush1.bf16.msra.mxu0 0
  %1399 = vmatprep.subr.bf16.mxu0 0
  %1400 = vmatpush1.bf16.msra.mxu0 0
  %1401 = vmatprep.subr.bf16.mxu0 0
  %1402 = vmatpush1.bf16.msra.mxu0 %v1382
  %1403 = vmatprep.subr.bf16.mxu0 0
  %1404 = vmatpush2.bf16.msra.mxu0 0
  %1405 = vmatprep.subr.bf16.mxu0 0
  %1406 = vmatpush2.bf16.msra.mxu0 0
  %1407 = vmatprep.subr.bf16.mxu0 0
  %1408 = vmatpush2.bf16.msra.mxu0 0
  %1409 = vmatprep.subr.bf16.mxu0 0
  %1410 = vmatpush2.bf16.msra.mxu0 0
  %1411 = vmatprep.subr.bf16.mxu0 0
  %1412 = vmatpush2.bf16.msra.mxu0 0
  %1413 = vmatprep.subr.bf16.mxu0 0
  %1414 = vmatpush2.bf16.msra.mxu0 0
  %1415 = vmatprep.subr.bf16.mxu0 0
  %1416 = vmatpush2.bf16.msra.mxu0 0
  %1417 = vmatprep.subr.bf16.mxu0 0
  %1418 = vmatpush2.bf16.msra.mxu0 0
  %1419 = vmatprep.mubr.bf16.mxu0 0
  %1420 = vmatmul.mubr.bf16.gmra.mxu0 %v1385
  %v1421 = vpop.f32.mrf.mxu0
  %v1422 = vadd.f32 0.0, %v1421
  %v1423 = vpop.f32.mrf.mxu0
  %v1424 = vpop.f32.mrf.mxu0
  %v1425 = vadd.f32 0.0, %v1424
  %v1426 = vpop.f32.mrf.mxu0
  %1427 = vdwg.mxu0
  %1428 = vrot.lane.b32.xlu0 %v495, 96
  %v1429 = vpop.permute.xlu0 %1428
  %v1432 = vsel %vm64, %v1098, 0
  %1434 = vmatprep.subr.bf16.mxu0 0
  %1435 = vmatpush1.bf16.msra.mxu0 0
  %1436 = vmatprep.subr.bf16.mxu0 0
  %1437 = vmatpush1.bf16.msra.mxu0 0
  %1438 = vmatprep.subr.bf16.mxu0 0
  %1439 = vmatpush1.bf16.msra.mxu0 0
  %1440 = vmatprep.subr.bf16.mxu0 0
  %1441 = vmatpush1.bf16.msra.mxu0 0
  %1442 = vmatprep.subr.bf16.mxu0 0
  %1443 = vmatpush1.bf16.msra.mxu0 0
  %1444 = vmatprep.subr.bf16.mxu0 0
  %1445 = vmatpush1.bf16.msra.mxu0 0
  %1446 = vmatprep.subr.bf16.mxu0 0
  %1447 = vmatpush1.bf16.msra.mxu0 0
  %1448 = vmatprep.subr.bf16.mxu0 0
  %1449 = vmatpush1.bf16.msra.mxu0 %v1429
  %1450 = vmatprep.subr.bf16.mxu0 0
  %1451 = vmatpush2.bf16.msra.mxu0 0
  %1452 = vmatprep.subr.bf16.mxu0 0
  %1453 = vmatpush2.bf16.msra.mxu0 0
  %1454 = vmatprep.subr.bf16.mxu0 0
  %1455 = vmatpush2.bf16.msra.mxu0 0
  %1456 = vmatprep.subr.bf16.mxu0 0
  %1457 = vmatpush2.bf16.msra.mxu0 0
  %1458 = vmatprep.subr.bf16.mxu0 0
  %1459 = vmatpush2.bf16.msra.mxu0 0
  %1460 = vmatprep.subr.bf16.mxu0 0
  %1461 = vmatpush2.bf16.msra.mxu0 0
  %1462 = vmatprep.subr.bf16.mxu0 0
  %1463 = vmatpush2.bf16.msra.mxu0 0
  %1464 = vmatprep.subr.bf16.mxu0 0
  %1465 = vmatpush2.bf16.msra.mxu0 0
  %1466 = vmatprep.mubr.bf16.mxu0 0
  %1467 = vmatmul.mubr.bf16.gmra.mxu0 %v1432
  %v1468 = vpop.f32.mrf.mxu0
  %v1469 = vadd.f32 0.0, %v1468
  %v1470 = vpop.f32.mrf.mxu0
  %v1471 = vpop.f32.mrf.mxu0
  %v1472 = vadd.f32 0.0, %v1471
  %v1473 = vpop.f32.mrf.mxu0
  %1474 = vdwg.mxu0
  %1476 = vrot.lane.b32.xlu0 %v480, 120
  %v1477 = vpop.permute.xlu0 %1476
  %1478 = vrot.lane.b32.xlu0 %v488, 104
  %v1479 = vpop.permute.xlu0 %1478
  %v1481 = vsel %vm499, %v1477, 0
  %v1484 = vsel %vm499, %v1479, 0
  %1486 = vmatprep.subr.bf16.mxu0 0
  %1487 = vmatpush1.bf16.xpose.msra.mxu0 0
  %1488 = vmatprep.subr.bf16.mxu0 0
  %1489 = vmatpush1.bf16.xpose.msra.mxu0 0
  %1490 = vmatprep.subr.bf16.mxu0 0
  %1491 = vmatpush1.bf16.xpose.msra.mxu0 0
  %1492 = vmatprep.subr.bf16.mxu0 0
  %1493 = vmatpush1.bf16.xpose.msra.mxu0 0
  %1494 = vmatprep.subr.bf16.mxu0 0
  %1495 = vmatpush1.bf16.xpose.msra.mxu0 0
  %1496 = vmatprep.subr.bf16.mxu0 0
  %1497 = vmatpush1.bf16.xpose.msra.mxu0 0
  %1498 = vmatprep.subr.bf16.mxu0 0
  %1499 = vmatpush1.bf16.xpose.msra.mxu0 0
  %1500 = vmatprep.subr.bf16.mxu0 0
  %1501 = vmatpush1.bf16.xpose.msra.mxu0 %v1484
  %1502 = vmatprep.subr.bf16.mxu0 0
  %1503 = vmatpush2.bf16.xpose.msra.mxu0 0
  %1504 = vmatprep.subr.bf16.mxu0 0
  %1505 = vmatpush2.bf16.xpose.msra.mxu0 0
  %1506 = vmatprep.subr.bf16.mxu0 0
  %1507 = vmatpush2.bf16.xpose.msra.mxu0 0
  %1508 = vmatprep.subr.bf16.mxu0 0
  %1509 = vmatpush2.bf16.xpose.msra.mxu0 0
  %1510 = vmatprep.subr.bf16.mxu0 0
  %1511 = vmatpush2.bf16.xpose.msra.mxu0 0
  %1512 = vmatprep.subr.bf16.mxu0 0
  %1513 = vmatpush2.bf16.xpose.msra.mxu0 0
  %1514 = vmatprep.subr.bf16.mxu0 0
  %1515 = vmatpush2.bf16.xpose.msra.mxu0 0
  %1516 = vmatprep.subr.bf16.mxu0 0
  %1517 = vmatpush2.bf16.xpose.msra.mxu0 0
  %1518 = vmatprep.mubr.bf16.mxu0 0
  %1519 = vmatmul.mubr.bf16.gmra.mxu0 %v1481
  %v1520 = vpop.f32.mrf.mxu0
  %v1521 = vadd.f32 0.0, %v1520
  %v1522 = vpop.f32.mrf.mxu0
  %v1523 = vpop.f32.mrf.mxu0
  %v1524 = vadd.f32 0.0, %v1523
  %v1525 = vpop.f32.mrf.mxu0
  %1526 = vdwg.mxu0
  %1528 = vrot.lane.b32.xlu0 %v481, 120
  %v1529 = vpop.permute.xlu0 %1528
  %1530 = vrot.lane.b32.xlu0 %v489, 104
  %v1531 = vpop.permute.xlu0 %1530
  %v1533 = vsel %vm499, %v1529, 0
  %v1536 = vsel %vm499, %v1531, 0
  %1538 = vmatprep.subr.bf16.mxu0 0
  %1539 = vmatpush1.bf16.xpose.msra.mxu0 0
  %1540 = vmatprep.subr.bf16.mxu0 0
  %1541 = vmatpush1.bf16.xpose.msra.mxu0 0
  %1542 = vmatprep.subr.bf16.mxu0 0
  %1543 = vmatpush1.bf16.xpose.msra.mxu0 0
  %1544 = vmatprep.subr.bf16.mxu0 0
  %1545 = vmatpush1.bf16.xpose.msra.mxu0 0
  %1546 = vmatprep.subr.bf16.mxu0 0
  %1547 = vmatpush1.bf16.xpose.msra.mxu0 0
  %1548 = vmatprep.subr.bf16.mxu0 0
  %1549 = vmatpush1.bf16.xpose.msra.mxu0 0
  %1550 = vmatprep.subr.bf16.mxu0 0
  %1551 = vmatpush1.bf16.xpose.msra.mxu0 0
  %1552 = vmatprep.subr.bf16.mxu0 0
  %1553 = vmatpush1.bf16.xpose.msra.mxu0 %v1536
  %1554 = vmatprep.subr.bf16.mxu0 0
  %1555 = vmatpush2.bf16.xpose.msra.mxu0 0
  %1556 = vmatprep.subr.bf16.mxu0 0
  %1557 = vmatpush2.bf16.xpose.msra.mxu0 0
  %1558 = vmatprep.subr.bf16.mxu0 0
  %1559 = vmatpush2.bf16.xpose.msra.mxu0 0
  %1560 = vmatprep.subr.bf16.mxu0 0
  %1561 = vmatpush2.bf16.xpose.msra.mxu0 0
  %1562 = vmatprep.subr.bf16.mxu0 0
  %1563 = vmatpush2.bf16.xpose.msra.mxu0 0
  %1564 = vmatprep.subr.bf16.mxu0 0
  %1565 = vmatpush2.bf16.xpose.msra.mxu0 0
  %1566 = vmatprep.subr.bf16.mxu0 0
  %1567 = vmatpush2.bf16.xpose.msra.mxu0 0
  %1568 = vmatprep.subr.bf16.mxu0 0
  %1569 = vmatpush2.bf16.xpose.msra.mxu0 0
  %1570 = vmatprep.mubr.bf16.mxu0 0
  %1571 = vmatmul.mubr.bf16.gmra.mxu0 %v1533
  %v1572 = vpop.f32.mrf.mxu0
  %v1573 = vadd.f32 0.0, %v1572
  %v1574 = vpop.f32.mrf.mxu0
  %v1575 = vpop.f32.mrf.mxu0
  %v1576 = vadd.f32 0.0, %v1575
  %v1577 = vpop.f32.mrf.mxu0
  %1578 = vdwg.mxu0
  %1580 = vrot.lane.b32.xlu0 %v482, 120
  %v1581 = vpop.permute.xlu0 %1580
  %1582 = vrot.lane.b32.xlu0 %v490, 104
  %v1583 = vpop.permute.xlu0 %1582
  %v1585 = vsel %vm499, %v1581, 0
  %v1588 = vsel %vm499, %v1583, 0
  %1590 = vmatprep.subr.bf16.mxu0 0
  %1591 = vmatpush1.bf16.xpose.msra.mxu0 0
  %1592 = vmatprep.subr.bf16.mxu0 0
  %1593 = vmatpush1.bf16.xpose.msra.mxu0 0
  %1594 = vmatprep.subr.bf16.mxu0 0
  %1595 = vmatpush1.bf16.xpose.msra.mxu0 0
  %1596 = vmatprep.subr.bf16.mxu0 0
  %1597 = vmatpush1.bf16.xpose.msra.mxu0 0
  %1598 = vmatprep.subr.bf16.mxu0 0
  %1599 = vmatpush1.bf16.xpose.msra.mxu0 0
  %1600 = vmatprep.subr.bf16.mxu0 0
  %1601 = vmatpush1.bf16.xpose.msra.mxu0 0
  %1602 = vmatprep.subr.bf16.mxu0 0
  %1603 = vmatpush1.bf16.xpose.msra.mxu0 0
  %1604 = vmatprep.subr.bf16.mxu0 0
  %1605 = vmatpush1.bf16.xpose.msra.mxu0 %v1588
  %1606 = vmatprep.subr.bf16.mxu0 0
  %1607 = vmatpush2.bf16.xpose.msra.mxu0 0
  %1608 = vmatprep.subr.bf16.mxu0 0
  %1609 = vmatpush2.bf16.xpose.msra.mxu0 0
  %1610 = vmatprep.subr.bf16.mxu0 0
  %1611 = vmatpush2.bf16.xpose.msra.mxu0 0
  %1612 = vmatprep.subr.bf16.mxu0 0
  %1613 = vmatpush2.bf16.xpose.msra.mxu0 0
  %1614 = vmatprep.subr.bf16.mxu0 0
  %1615 = vmatpush2.bf16.xpose.msra.mxu0 0
  %1616 = vmatprep.subr.bf16.mxu0 0
  %1617 = vmatpush2.bf16.xpose.msra.mxu0 0
  %1618 = vmatprep.subr.bf16.mxu0 0
  %1619 = vmatpush2.bf16.xpose.msra.mxu0 0
  %1620 = vmatprep.subr.bf16.mxu0 0
  %1621 = vmatpush2.bf16.xpose.msra.mxu0 0
  %1622 = vmatprep.mubr.bf16.mxu0 0
  %1623 = vmatmul.mubr.bf16.gmra.mxu0 %v1585
  %v1624 = vpop.f32.mrf.mxu0
  %v1625 = vadd.f32 0.0, %v1624
  %v1626 = vpop.f32.mrf.mxu0
  %v1627 = vpop.f32.mrf.mxu0
  %v1628 = vadd.f32 0.0, %v1627
  %v1629 = vpop.f32.mrf.mxu0
  %1630 = vdwg.mxu0
  %1632 = vrot.lane.b32.xlu0 %v483, 120
  %v1633 = vpop.permute.xlu0 %1632
  %1634 = vrot.lane.b32.xlu0 %v491, 104
  %v1635 = vpop.permute.xlu0 %1634
  %v1637 = vsel %vm499, %v1633, 0
  %v1640 = vsel %vm499, %v1635, 0
  %1642 = vmatprep.subr.bf16.mxu0 0
  %1643 = vmatpush1.bf16.xpose.msra.mxu0 0
  %1644 = vmatprep.subr.bf16.mxu0 0
  %1645 = vmatpush1.bf16.xpose.msra.mxu0 0
  %1646 = vmatprep.subr.bf16.mxu0 0
  %1647 = vmatpush1.bf16.xpose.msra.mxu0 0
  %1648 = vmatprep.subr.bf16.mxu0 0
  %1649 = vmatpush1.bf16.xpose.msra.mxu0 0
  %1650 = vmatprep.subr.bf16.mxu0 0
  %1651 = vmatpush1.bf16.xpose.msra.mxu0 0
  %1652 = vmatprep.subr.bf16.mxu0 0
  %1653 = vmatpush1.bf16.xpose.msra.mxu0 0
  %1654 = vmatprep.subr.bf16.mxu0 0
  %1655 = vmatpush1.bf16.xpose.msra.mxu0 0
  %1656 = vmatprep.subr.bf16.mxu0 0
  %1657 = vmatpush1.bf16.xpose.msra.mxu0 %v1640
  %1658 = vmatprep.subr.bf16.mxu0 0
  %1659 = vmatpush2.bf16.xpose.msra.mxu0 0
  %1660 = vmatprep.subr.bf16.mxu0 0
  %1661 = vmatpush2.bf16.xpose.msra.mxu0 0
  %1662 = vmatprep.subr.bf16.mxu0 0
  %1663 = vmatpush2.bf16.xpose.msra.mxu0 0
  %1664 = vmatprep.subr.bf16.mxu0 0
  %1665 = vmatpush2.bf16.xpose.msra.mxu0 0
  %1666 = vmatprep.subr.bf16.mxu0 0
  %1667 = vmatpush2.bf16.xpose.msra.mxu0 0
  %1668 = vmatprep.subr.bf16.mxu0 0
  %1669 = vmatpush2.bf16.xpose.msra.mxu0 0
  %1670 = vmatprep.subr.bf16.mxu0 0
  %1671 = vmatpush2.bf16.xpose.msra.mxu0 0
  %1672 = vmatprep.subr.bf16.mxu0 0
  %1673 = vmatpush2.bf16.xpose.msra.mxu0 0
  %1674 = vmatprep.mubr.bf16.mxu0 0
  %1675 = vmatmul.mubr.bf16.gmra.mxu0 %v1637
  %v1676 = vpop.f32.mrf.mxu0
  %v1677 = vadd.f32 0.0, %v1676
  %v1678 = vpop.f32.mrf.mxu0
  %v1679 = vpop.f32.mrf.mxu0
  %v1680 = vadd.f32 0.0, %v1679
  %v1681 = vpop.f32.mrf.mxu0
  %1682 = vdwg.mxu0
  %1684 = vrot.lane.b32.xlu0 %v484, 120
  %v1685 = vpop.permute.xlu0 %1684
  %1686 = vrot.lane.b32.xlu0 %v492, 104
  %v1687 = vpop.permute.xlu0 %1686
  %v1689 = vsel %vm499, %v1685, 0
  %v1692 = vsel %vm499, %v1687, 0
  %1694 = vmatprep.subr.bf16.mxu0 0
  %1695 = vmatpush1.bf16.xpose.msra.mxu0 0
  %1696 = vmatprep.subr.bf16.mxu0 0
  %1697 = vmatpush1.bf16.xpose.msra.mxu0 0
  %1698 = vmatprep.subr.bf16.mxu0 0
  %1699 = vmatpush1.bf16.xpose.msra.mxu0 0
  %1700 = vmatprep.subr.bf16.mxu0 0
  %1701 = vmatpush1.bf16.xpose.msra.mxu0 0
  %1702 = vmatprep.subr.bf16.mxu0 0
  %1703 = vmatpush1.bf16.xpose.msra.mxu0 0
  %1704 = vmatprep.subr.bf16.mxu0 0
  %1705 = vmatpush1.bf16.xpose.msra.mxu0 0
  %1706 = vmatprep.subr.bf16.mxu0 0
  %1707 = vmatpush1.bf16.xpose.msra.mxu0 0
  %1708 = vmatprep.subr.bf16.mxu0 0
  %1709 = vmatpush1.bf16.xpose.msra.mxu0 %v1692
  %1710 = vmatprep.subr.bf16.mxu0 0
  %1711 = vmatpush2.bf16.xpose.msra.mxu0 0
  %1712 = vmatprep.subr.bf16.mxu0 0
  %1713 = vmatpush2.bf16.xpose.msra.mxu0 0
  %1714 = vmatprep.subr.bf16.mxu0 0
  %1715 = vmatpush2.bf16.xpose.msra.mxu0 0
  %1716 = vmatprep.subr.bf16.mxu0 0
  %1717 = vmatpush2.bf16.xpose.msra.mxu0 0
  %1718 = vmatprep.subr.bf16.mxu0 0
  %1719 = vmatpush2.bf16.xpose.msra.mxu0 0
  %1720 = vmatprep.subr.bf16.mxu0 0
  %1721 = vmatpush2.bf16.xpose.msra.mxu0 0
  %1722 = vmatprep.subr.bf16.mxu0 0
  %1723 = vmatpush2.bf16.xpose.msra.mxu0 0
  %1724 = vmatprep.subr.bf16.mxu0 0
  %1725 = vmatpush2.bf16.xpose.msra.mxu0 0
  %1726 = vmatprep.mubr.bf16.mxu0 0
  %1727 = vmatmul.mubr.bf16.gmra.mxu0 %v1689
  %v1728 = vpop.f32.mrf.mxu0
  %v1729 = vadd.f32 0.0, %v1728
  %v1730 = vpop.f32.mrf.mxu0
  %v1731 = vpop.f32.mrf.mxu0
  %v1732 = vadd.f32 0.0, %v1731
  %v1733 = vpop.f32.mrf.mxu0
  %1734 = vdwg.mxu0
  %1736 = vrot.lane.b32.xlu0 %v485, 120
  %v1737 = vpop.permute.xlu0 %1736
  %1738 = vrot.lane.b32.xlu0 %v493, 104
  %v1739 = vpop.permute.xlu0 %1738
  %v1741 = vsel %vm499, %v1737, 0
  %v1744 = vsel %vm499, %v1739, 0
  %1746 = vmatprep.subr.bf16.mxu0 0
  %1747 = vmatpush1.bf16.xpose.msra.mxu0 0
  %1748 = vmatprep.subr.bf16.mxu0 0
  %1749 = vmatpush1.bf16.xpose.msra.mxu0 0
  %1750 = vmatprep.subr.bf16.mxu0 0
  %1751 = vmatpush1.bf16.xpose.msra.mxu0 0
  %1752 = vmatprep.subr.bf16.mxu0 0
  %1753 = vmatpush1.bf16.xpose.msra.mxu0 0
  %1754 = vmatprep.subr.bf16.mxu0 0
  %1755 = vmatpush1.bf16.xpose.msra.mxu0 0
  %1756 = vmatprep.subr.bf16.mxu0 0
  %1757 = vmatpush1.bf16.xpose.msra.mxu0 0
  %1758 = vmatprep.subr.bf16.mxu0 0
  %1759 = vmatpush1.bf16.xpose.msra.mxu0 0
  %1760 = vmatprep.subr.bf16.mxu0 0
  %1761 = vmatpush1.bf16.xpose.msra.mxu0 %v1744
  %1762 = vmatprep.subr.bf16.mxu0 0
  %1763 = vmatpush2.bf16.xpose.msra.mxu0 0
  %1764 = vmatprep.subr.bf16.mxu0 0
  %1765 = vmatpush2.bf16.xpose.msra.mxu0 0
  %1766 = vmatprep.subr.bf16.mxu0 0
  %1767 = vmatpush2.bf16.xpose.msra.mxu0 0
  %1768 = vmatprep.subr.bf16.mxu0 0
  %1769 = vmatpush2.bf16.xpose.msra.mxu0 0
  %1770 = vmatprep.subr.bf16.mxu0 0
  %1771 = vmatpush2.bf16.xpose.msra.mxu0 0
  %1772 = vmatprep.subr.bf16.mxu0 0
  %1773 = vmatpush2.bf16.xpose.msra.mxu0 0
  %1774 = vmatprep.subr.bf16.mxu0 0
  %1775 = vmatpush2.bf16.xpose.msra.mxu0 0
  %1776 = vmatprep.subr.bf16.mxu0 0
  %1777 = vmatpush2.bf16.xpose.msra.mxu0 0
  %1778 = vmatprep.mubr.bf16.mxu0 0
  %1779 = vmatmul.mubr.bf16.gmra.mxu0 %v1741
  %v1780 = vpop.f32.mrf.mxu0
  %v1781 = vadd.f32 0.0, %v1780
  %v1782 = vpop.f32.mrf.mxu0
  %v1783 = vpop.f32.mrf.mxu0
  %v1784 = vadd.f32 0.0, %v1783
  %v1785 = vpop.f32.mrf.mxu0
  %1786 = vdwg.mxu0
  %1788 = vrot.lane.b32.xlu0 %v486, 120
  %v1789 = vpop.permute.xlu0 %1788
  %1790 = vrot.lane.b32.xlu0 %v494, 104
  %v1791 = vpop.permute.xlu0 %1790
  %v1793 = vsel %vm499, %v1789, 0
  %v1796 = vsel %vm499, %v1791, 0
  %1798 = vmatprep.subr.bf16.mxu0 0
  %1799 = vmatpush1.bf16.xpose.msra.mxu0 0
  %1800 = vmatprep.subr.bf16.mxu0 0
  %1801 = vmatpush1.bf16.xpose.msra.mxu0 0
  %1802 = vmatprep.subr.bf16.mxu0 0
  %1803 = vmatpush1.bf16.xpose.msra.mxu0 0
  %1804 = vmatprep.subr.bf16.mxu0 0
  %1805 = vmatpush1.bf16.xpose.msra.mxu0 0
  %1806 = vmatprep.subr.bf16.mxu0 0
  %1807 = vmatpush1.bf16.xpose.msra.mxu0 0
  %1808 = vmatprep.subr.bf16.mxu0 0
  %1809 = vmatpush1.bf16.xpose.msra.mxu0 0
  %1810 = vmatprep.subr.bf16.mxu0 0
  %1811 = vmatpush1.bf16.xpose.msra.mxu0 0
  %1812 = vmatprep.subr.bf16.mxu0 0
  %1813 = vmatpush1.bf16.xpose.msra.mxu0 %v1796
  %1814 = vmatprep.subr.bf16.mxu0 0
  %1815 = vmatpush2.bf16.xpose.msra.mxu0 0
  %1816 = vmatprep.subr.bf16.mxu0 0
  %1817 = vmatpush2.bf16.xpose.msra.mxu0 0
  %1818 = vmatprep.subr.bf16.mxu0 0
  %1819 = vmatpush2.bf16.xpose.msra.mxu0 0
  %1820 = vmatprep.subr.bf16.mxu0 0
  %1821 = vmatpush2.bf16.xpose.msra.mxu0 0
  %1822 = vmatprep.subr.bf16.mxu0 0
  %1823 = vmatpush2.bf16.xpose.msra.mxu0 0
  %1824 = vmatprep.subr.bf16.mxu0 0
  %1825 = vmatpush2.bf16.xpose.msra.mxu0 0
  %1826 = vmatprep.subr.bf16.mxu0 0
  %1827 = vmatpush2.bf16.xpose.msra.mxu0 0
  %1828 = vmatprep.subr.bf16.mxu0 0
  %1829 = vmatpush2.bf16.xpose.msra.mxu0 0
  %1830 = vmatprep.mubr.bf16.mxu0 0
  %1831 = vmatmul.mubr.bf16.gmra.mxu0 %v1793
  %v1832 = vpop.f32.mrf.mxu0
  %v1833 = vadd.f32 0.0, %v1832
  %v1834 = vpop.f32.mrf.mxu0
  %v1835 = vpop.f32.mrf.mxu0
  %v1836 = vadd.f32 0.0, %v1835
  %v1837 = vpop.f32.mrf.mxu0
  %1838 = vdwg.mxu0
  %1840 = vrot.lane.b32.xlu0 %v487, 120
  %v1841 = vpop.permute.xlu0 %1840
  %1842 = vrot.lane.b32.xlu0 %v495, 104
  %v1843 = vpop.permute.xlu0 %1842
  %v1845 = vsel %vm499, %v1841, 0
  %v1848 = vsel %vm499, %v1843, 0
  %1850 = vmatprep.subr.bf16.mxu0 0
  %1851 = vmatpush1.bf16.xpose.msra.mxu0 0
  %1852 = vmatprep.subr.bf16.mxu0 0
  %1853 = vmatpush1.bf16.xpose.msra.mxu0 0
  %1854 = vmatprep.subr.bf16.mxu0 0
  %1855 = vmatpush1.bf16.xpose.msra.mxu0 0
  %1856 = vmatprep.subr.bf16.mxu0 0
  %1857 = vmatpush1.bf16.xpose.msra.mxu0 0
  %1858 = vmatprep.subr.bf16.mxu0 0
  %1859 = vmatpush1.bf16.xpose.msra.mxu0 0
  %1860 = vmatprep.subr.bf16.mxu0 0
  %1861 = vmatpush1.bf16.xpose.msra.mxu0 0
  %1862 = vmatprep.subr.bf16.mxu0 0
  %1863 = vmatpush1.bf16.xpose.msra.mxu0 0
  %1864 = vmatprep.subr.bf16.mxu0 0
  %1865 = vmatpush1.bf16.xpose.msra.mxu0 %v1848
  %1866 = vmatprep.subr.bf16.mxu0 0
  %1867 = vmatpush2.bf16.xpose.msra.mxu0 0
  %1868 = vmatprep.subr.bf16.mxu0 0
  %1869 = vmatpush2.bf16.xpose.msra.mxu0 0
  %1870 = vmatprep.subr.bf16.mxu0 0
  %1871 = vmatpush2.bf16.xpose.msra.mxu0 0
  %1872 = vmatprep.subr.bf16.mxu0 0
  %1873 = vmatpush2.bf16.xpose.msra.mxu0 0
  %1874 = vmatprep.subr.bf16.mxu0 0
  %1875 = vmatpush2.bf16.xpose.msra.mxu0 0
  %1876 = vmatprep.subr.bf16.mxu0 0
  %1877 = vmatpush2.bf16.xpose.msra.mxu0 0
  %1878 = vmatprep.subr.bf16.mxu0 0
  %1879 = vmatpush2.bf16.xpose.msra.mxu0 0
  %1880 = vmatprep.subr.bf16.mxu0 0
  %1881 = vmatpush2.bf16.xpose.msra.mxu0 0
  %1882 = vmatprep.mubr.bf16.mxu0 0
  %1883 = vmatmul.mubr.bf16.gmra.mxu0 %v1845
  %v1884 = vpop.f32.mrf.mxu0
  %v1885 = vadd.f32 0.0, %v1884
  %v1886 = vpop.f32.mrf.mxu0
  %v1887 = vpop.f32.mrf.mxu0
  %v1888 = vadd.f32 0.0, %v1887
  %v1889 = vpop.f32.mrf.mxu0
  %1890 = vdwg.mxu0
  %s1891 = scalar_lea.vmem %s1, 16
  %v1892 = vld [vmem:[%s1891] sm:$0xff]
  %v1893 = vld [vmem:[%s1891 + $0x8] sm:$0xff]
  %v1894 = vadd.f32 %v1521, %v1892
  %v1895 = vadd.f32 %v1524, %v1893
  %v1896 = vadd.f32 %v1573, %v1892
  %v1897 = vadd.f32 %v1576, %v1893
  %v1898 = vadd.f32 %v1625, %v1892
  %v1899 = vadd.f32 %v1628, %v1893
  %v1900 = vadd.f32 %v1677, %v1892
  %v1901 = vadd.f32 %v1680, %v1893
  %v1902 = vadd.f32 %v1729, %v1892
  %v1903 = vadd.f32 %v1732, %v1893
  %v1904 = vadd.f32 %v1781, %v1892
  %v1905 = vadd.f32 %v1784, %v1893
  %v1906 = vadd.f32 %v1833, %v1892
  %v1907 = vadd.f32 %v1836, %v1893
  %v1908 = vadd.f32 %v1885, %v1892
  %v1909 = vadd.f32 %v1888, %v1893
  %v1910 = vsel %vm64, %v1894, -inf
  %1911 = vmax.xlane.f32.xlu0 %v1910
  %v1912 = vpop.xlane.xlu0 %1911
  %v1913 = vsel %vm64, %v1895, -inf
  %1914 = vmax.xlane.f32.xlu0 %v1913
  %v1915 = vpop.xlane.xlu0 %1914
  %v1916 = vsel %vm64, %v1896, -inf
  %1917 = vmax.xlane.f32.xlu0 %v1916
  %v1918 = vpop.xlane.xlu0 %1917
  %v1919 = vsel %vm64, %v1897, -inf
  %1920 = vmax.xlane.f32.xlu0 %v1919
  %v1921 = vpop.xlane.xlu0 %1920
  %v1922 = vsel %vm64, %v1898, -inf
  %1923 = vmax.xlane.f32.xlu0 %v1922
  %v1924 = vpop.xlane.xlu0 %1923
  %v1925 = vsel %vm64, %v1899, -inf
  %1926 = vmax.xlane.f32.xlu0 %v1925
  %v1927 = vpop.xlane.xlu0 %1926
  %v1928 = vsel %vm64, %v1900, -inf
  %1929 = vmax.xlane.f32.xlu0 %v1928
  %v1930 = vpop.xlane.xlu0 %1929
  %v1931 = vsel %vm64, %v1901, -inf
  %1932 = vmax.xlane.f32.xlu0 %v1931
  %v1933 = vpop.xlane.xlu0 %1932
  %v1934 = vsel %vm64, %v1902, -inf
  %1935 = vmax.xlane.f32.xlu0 %v1934
  %v1936 = vpop.xlane.xlu0 %1935
  %v1937 = vsel %vm64, %v1903, -inf
  %1938 = vmax.xlane.f32.xlu0 %v1937
  %v1939 = vpop.xlane.xlu0 %1938
  %v1940 = vsel %vm64, %v1904, -inf
  %1941 = vmax.xlane.f32.xlu0 %v1940
  %v1942 = vpop.xlane.xlu0 %1941
  %v1943 = vsel %vm64, %v1905, -inf
  %1944 = vmax.xlane.f32.xlu0 %v1943
  %v1945 = vpop.xlane.xlu0 %1944
  %v1946 = vsel %vm64, %v1906, -inf
  %1947 = vmax.xlane.f32.xlu0 %v1946
  %v1948 = vpop.xlane.xlu0 %1947
  %v1949 = vsel %vm64, %v1907, -inf
  %1950 = vmax.xlane.f32.xlu0 %v1949
  %v1951 = vpop.xlane.xlu0 %1950
  %v1952 = vsel %vm64, %v1908, -inf
  %1953 = vmax.xlane.f32.xlu0 %v1952
  %v1954 = vpop.xlane.xlu0 %1953
  %v1955 = vsel %vm64, %v1909, -inf
  %1956 = vmax.xlane.f32.xlu0 %v1955
  %v1957 = vpop.xlane.xlu0 %1956
  %v1958 = vsub.f32 %v1894, %v1912
  %v1959 = vsub.f32 %v1895, %v1915
  %v1960 = vsub.f32 %v1896, %v1918
  %v1961 = vsub.f32 %v1897, %v1921
  %v1962 = vsub.f32 %v1898, %v1924
  %v1963 = vsub.f32 %v1899, %v1927
  %v1964 = vsub.f32 %v1900, %v1930
  %v1965 = vsub.f32 %v1901, %v1933
  %v1966 = vsub.f32 %v1902, %v1936
  %v1967 = vsub.f32 %v1903, %v1939
  %v1968 = vsub.f32 %v1904, %v1942
  %v1969 = vsub.f32 %v1905, %v1945
  %v1970 = vsub.f32 %v1906, %v1948
  %v1971 = vsub.f32 %v1907, %v1951
  %v1972 = vsub.f32 %v1908, %v1954
  %v1973 = vsub.f32 %v1909, %v1957
  %v1974 = vmul.f32 %v1958, 1.442695
  %v1975 = vpow.pop %v1974
  %v1976 = vmul.f32 %v1959, 1.442695
  %v1977 = vpow.pop %v1976
  %v1978 = vmul.f32 %v1960, 1.442695
  %v1979 = vpow.pop %v1978
  %v1980 = vmul.f32 %v1961, 1.442695
  %v1981 = vpow.pop %v1980
  %v1982 = vmul.f32 %v1962, 1.442695
  %v1983 = vpow.pop %v1982
  %v1984 = vmul.f32 %v1963, 1.442695
  %v1985 = vpow.pop %v1984
  %v1986 = vmul.f32 %v1964, 1.442695
  %v1987 = vpow.pop %v1986
  %v1988 = vmul.f32 %v1965, 1.442695
  %v1989 = vpow.pop %v1988
  %v1990 = vmul.f32 %v1966, 1.442695
  %v1991 = vpow.pop %v1990
  %v1992 = vmul.f32 %v1967, 1.442695
  %v1993 = vpow.pop %v1992
  %v1994 = vmul.f32 %v1968, 1.442695
  %v1995 = vpow.pop %v1994
  %v1996 = vmul.f32 %v1969, 1.442695
  %v1997 = vpow.pop %v1996
  %v1998 = vmul.f32 %v1970, 1.442695
  %v1999 = vpow.pop %v1998
  %v2000 = vmul.f32 %v1971, 1.442695
  %v2001 = vpow.pop %v2000
  %v2002 = vmul.f32 %v1972, 1.442695
  %v2003 = vpow.pop %v2002
  %v2004 = vmul.f32 %v1973, 1.442695
  %v2005 = vpow.pop %v2004
  %v2006 = vsel %vm64, %v1975, 0.0
  %2007 = vadd.xlane.f32.xlu0 %v2006
  %v2008 = vpop.xlane.xlu0 %2007
  %v2009 = vsel %vm64, %v1977, 0.0
  %2010 = vadd.xlane.f32.xlu0 %v2009
  %v2011 = vpop.xlane.xlu0 %2010
  %v2012 = vsel %vm64, %v1979, 0.0
  %2013 = vadd.xlane.f32.xlu0 %v2012
  %v2014 = vpop.xlane.xlu0 %2013
  %v2015 = vsel %vm64, %v1981, 0.0
  %2016 = vadd.xlane.f32.xlu0 %v2015
  %v2017 = vpop.xlane.xlu0 %2016
  %v2018 = vsel %vm64, %v1983, 0.0
  %2019 = vadd.xlane.f32.xlu0 %v2018
  %v2020 = vpop.xlane.xlu0 %2019
  %v2021 = vsel %vm64, %v1985, 0.0
  %2022 = vadd.xlane.f32.xlu0 %v2021
  %v2023 = vpop.xlane.xlu0 %2022
  %v2024 = vsel %vm64, %v1987, 0.0
  %2025 = vadd.xlane.f32.xlu0 %v2024
  %v2026 = vpop.xlane.xlu0 %2025
  %v2027 = vsel %vm64, %v1989, 0.0
  %2028 = vadd.xlane.f32.xlu0 %v2027
  %v2029 = vpop.xlane.xlu0 %2028
  %v2030 = vsel %vm64, %v1991, 0.0
  %2031 = vadd.xlane.f32.xlu0 %v2030
  %v2032 = vpop.xlane.xlu0 %2031
  %v2033 = vsel %vm64, %v1993, 0.0
  %2034 = vadd.xlane.f32.xlu0 %v2033
  %v2035 = vpop.xlane.xlu0 %2034
  %v2036 = vsel %vm64, %v1995, 0.0
  %2037 = vadd.xlane.f32.xlu0 %v2036
  %v2038 = vpop.xlane.xlu0 %2037
  %v2039 = vsel %vm64, %v1997, 0.0
  %2040 = vadd.xlane.f32.xlu0 %v2039
  %v2041 = vpop.xlane.xlu0 %2040
  %v2042 = vsel %vm64, %v1999, 0.0
  %2043 = vadd.xlane.f32.xlu0 %v2042
  %v2044 = vpop.xlane.xlu0 %2043
  %v2045 = vsel %vm64, %v2001, 0.0
  %2046 = vadd.xlane.f32.xlu0 %v2045
  %v2047 = vpop.xlane.xlu0 %2046
  %v2048 = vsel %vm64, %v2003, 0.0
  %2049 = vadd.xlane.f32.xlu0 %v2048
  %v2050 = vpop.xlane.xlu0 %2049
  %v2051 = vsel %vm64, %v2005, 0.0
  %2052 = vadd.xlane.f32.xlu0 %v2051
  %v2053 = vpop.xlane.xlu0 %2052
  %v2054 = vrcp.pop %v2008
  %v2055 = vrcp.pop %v2011
  %v2056 = vrcp.pop %v2014
  %v2057 = vrcp.pop %v2017
  %v2058 = vrcp.pop %v2020
  %v2059 = vrcp.pop %v2023
  %v2060 = vrcp.pop %v2026
  %v2061 = vrcp.pop %v2029
  %v2062 = vrcp.pop %v2032
  %v2063 = vrcp.pop %v2035
  %v2064 = vrcp.pop %v2038
  %v2065 = vrcp.pop %v2041
  %v2066 = vrcp.pop %v2044
  %v2067 = vrcp.pop %v2047
  %v2068 = vrcp.pop %v2050
  %v2069 = vrcp.pop %v2053
  %v2070 = vmul.f32 %v1975, %v2054
  %v2071 = vmul.f32 %v1977, %v2055
  %v2072 = vmul.f32 %v1979, %v2056
  %v2073 = vmul.f32 %v1981, %v2057
  %v2074 = vmul.f32 %v1983, %v2058
  %v2075 = vmul.f32 %v1985, %v2059
  %v2076 = vmul.f32 %v1987, %v2060
  %v2077 = vmul.f32 %v1989, %v2061
  %v2078 = vmul.f32 %v1991, %v2062
  %v2079 = vmul.f32 %v1993, %v2063
  %v2080 = vmul.f32 %v1995, %v2064
  %v2081 = vmul.f32 %v1997, %v2065
  %v2082 = vmul.f32 %v1999, %v2066
  %v2083 = vmul.f32 %v2001, %v2067
  %v2084 = vmul.f32 %v2003, %v2068
  %v2085 = vmul.f32 %v2005, %v2069
  %v2086 = vpack.c.bf16 %v2071, %v2070
  %v2087 = vpack.c.bf16 %v2073, %v2072
  %v2088 = vpack.c.bf16 %v2075, %v2074
  %v2089 = vpack.c.bf16 %v2077, %v2076
  %v2090 = vpack.c.bf16 %v2079, %v2078
  %v2091 = vpack.c.bf16 %v2081, %v2080
  %v2092 = vpack.c.bf16 %v2083, %v2082
  %v2093 = vpack.c.bf16 %v2085, %v2084
  %2094 = vrot.lane.b32.xlu0 %v488, 88
  %v2095 = vpop.permute.xlu0 %2094
  %v2098 = vsel %vm64, %v2086, 0
  %2100 = vmatprep.subr.bf16.mxu0 0
  %2101 = vmatpush1.bf16.msra.mxu0 0
  %2102 = vmatprep.subr.bf16.mxu0 0
  %2103 = vmatpush1.bf16.msra.mxu0 0
  %2104 = vmatprep.subr.bf16.mxu0 0
  %2105 = vmatpush1.bf16.msra.mxu0 0
  %2106 = vmatprep.subr.bf16.mxu0 0
  %2107 = vmatpush1.bf16.msra.mxu0 0
  %2108 = vmatprep.subr.bf16.mxu0 0
  %2109 = vmatpush1.bf16.msra.mxu0 0
  %2110 = vmatprep.subr.bf16.mxu0 0
  %2111 = vmatpush1.bf16.msra.mxu0 0
  %2112 = vmatprep.subr.bf16.mxu0 0
  %2113 = vmatpush1.bf16.msra.mxu0 0
  %2114 = vmatprep.subr.bf16.mxu0 0
  %2115 = vmatpush1.bf16.msra.mxu0 %v2095
  %2116 = vmatprep.subr.bf16.mxu0 0
  %2117 = vmatpush2.bf16.msra.mxu0 0
  %2118 = vmatprep.subr.bf16.mxu0 0
  %2119 = vmatpush2.bf16.msra.mxu0 0
  %2120 = vmatprep.subr.bf16.mxu0 0
  %2121 = vmatpush2.bf16.msra.mxu0 0
  %2122 = vmatprep.subr.bf16.mxu0 0
  %2123 = vmatpush2.bf16.msra.mxu0 0
  %2124 = vmatprep.subr.bf16.mxu0 0
  %2125 = vmatpush2.bf16.msra.mxu0 0
  %2126 = vmatprep.subr.bf16.mxu0 0
  %2127 = vmatpush2.bf16.msra.mxu0 0
  %2128 = vmatprep.subr.bf16.mxu0 0
  %2129 = vmatpush2.bf16.msra.mxu0 0
  %2130 = vmatprep.subr.bf16.mxu0 0
  %2131 = vmatpush2.bf16.msra.mxu0 0
  %2132 = vmatprep.mubr.bf16.mxu0 0
  %2133 = vmatmul.mubr.bf16.gmra.mxu0 %v2098
  %v2134 = vpop.f32.mrf.mxu0
  %v2135 = vadd.f32 0.0, %v2134
  %v2136 = vpop.f32.mrf.mxu0
  %v2137 = vpop.f32.mrf.mxu0
  %v2138 = vadd.f32 0.0, %v2137
  %v2139 = vpop.f32.mrf.mxu0
  %2140 = vdwg.mxu0
  %2141 = vrot.lane.b32.xlu0 %v489, 88
  %v2142 = vpop.permute.xlu0 %2141
  %v2145 = vsel %vm64, %v2087, 0
  %2147 = vmatprep.subr.bf16.mxu0 0
  %2148 = vmatpush1.bf16.msra.mxu0 0
  %2149 = vmatprep.subr.bf16.mxu0 0
  %2150 = vmatpush1.bf16.msra.mxu0 0
  %2151 = vmatprep.subr.bf16.mxu0 0
  %2152 = vmatpush1.bf16.msra.mxu0 0
  %2153 = vmatprep.subr.bf16.mxu0 0
  %2154 = vmatpush1.bf16.msra.mxu0 0
  %2155 = vmatprep.subr.bf16.mxu0 0
  %2156 = vmatpush1.bf16.msra.mxu0 0
  %2157 = vmatprep.subr.bf16.mxu0 0
  %2158 = vmatpush1.bf16.msra.mxu0 0
  %2159 = vmatprep.subr.bf16.mxu0 0
  %2160 = vmatpush1.bf16.msra.mxu0 0
  %2161 = vmatprep.subr.bf16.mxu0 0
  %2162 = vmatpush1.bf16.msra.mxu0 %v2142
  %2163 = vmatprep.subr.bf16.mxu0 0
  %2164 = vmatpush2.bf16.msra.mxu0 0
  %2165 = vmatprep.subr.bf16.mxu0 0
  %2166 = vmatpush2.bf16.msra.mxu0 0
  %2167 = vmatprep.subr.bf16.mxu0 0
  %2168 = vmatpush2.bf16.msra.mxu0 0
  %2169 = vmatprep.subr.bf16.mxu0 0
  %2170 = vmatpush2.bf16.msra.mxu0 0
  %2171 = vmatprep.subr.bf16.mxu0 0
  %2172 = vmatpush2.bf16.msra.mxu0 0
  %2173 = vmatprep.subr.bf16.mxu0 0
  %2174 = vmatpush2.bf16.msra.mxu0 0
  %2175 = vmatprep.subr.bf16.mxu0 0
  %2176 = vmatpush2.bf16.msra.mxu0 0
  %2177 = vmatprep.subr.bf16.mxu0 0
  %2178 = vmatpush2.bf16.msra.mxu0 0
  %2179 = vmatprep.mubr.bf16.mxu0 0
  %2180 = vmatmul.mubr.bf16.gmra.mxu0 %v2145
  %v2181 = vpop.f32.mrf.mxu0
  %v2182 = vadd.f32 0.0, %v2181
  %v2183 = vpop.f32.mrf.mxu0
  %v2184 = vpop.f32.mrf.mxu0
  %v2185 = vadd.f32 0.0, %v2184
  %v2186 = vpop.f32.mrf.mxu0
  %2187 = vdwg.mxu0
  %2188 = vrot.lane.b32.xlu0 %v490, 88
  %v2189 = vpop.permute.xlu0 %2188
  %v2192 = vsel %vm64, %v2088, 0
  %2194 = vmatprep.subr.bf16.mxu0 0
  %2195 = vmatpush1.bf16.msra.mxu0 0
  %2196 = vmatprep.subr.bf16.mxu0 0
  %2197 = vmatpush1.bf16.msra.mxu0 0
  %2198 = vmatprep.subr.bf16.mxu0 0
  %2199 = vmatpush1.bf16.msra.mxu0 0
  %2200 = vmatprep.subr.bf16.mxu0 0
  %2201 = vmatpush1.bf16.msra.mxu0 0
  %2202 = vmatprep.subr.bf16.mxu0 0
  %2203 = vmatpush1.bf16.msra.mxu0 0
  %2204 = vmatprep.subr.bf16.mxu0 0
  %2205 = vmatpush1.bf16.msra.mxu0 0
  %2206 = vmatprep.subr.bf16.mxu0 0
  %2207 = vmatpush1.bf16.msra.mxu0 0
  %2208 = vmatprep.subr.bf16.mxu0 0
  %2209 = vmatpush1.bf16.msra.mxu0 %v2189
  %2210 = vmatprep.subr.bf16.mxu0 0
  %2211 = vmatpush2.bf16.msra.mxu0 0
  %2212 = vmatprep.subr.bf16.mxu0 0
  %2213 = vmatpush2.bf16.msra.mxu0 0
  %2214 = vmatprep.subr.bf16.mxu0 0
  %2215 = vmatpush2.bf16.msra.mxu0 0
  %2216 = vmatprep.subr.bf16.mxu0 0
  %2217 = vmatpush2.bf16.msra.mxu0 0
  %2218 = vmatprep.subr.bf16.mxu0 0
  %2219 = vmatpush2.bf16.msra.mxu0 0
  %2220 = vmatprep.subr.bf16.mxu0 0
  %2221 = vmatpush2.bf16.msra.mxu0 0
  %2222 = vmatprep.subr.bf16.mxu0 0
  %2223 = vmatpush2.bf16.msra.mxu0 0
  %2224 = vmatprep.subr.bf16.mxu0 0
  %2225 = vmatpush2.bf16.msra.mxu0 0
  %2226 = vmatprep.mubr.bf16.mxu0 0
  %2227 = vmatmul.mubr.bf16.gmra.mxu0 %v2192
  %v2228 = vpop.f32.mrf.mxu0
  %v2229 = vadd.f32 0.0, %v2228
  %v2230 = vpop.f32.mrf.mxu0
  %v2231 = vpop.f32.mrf.mxu0
  %v2232 = vadd.f32 0.0, %v2231
  %v2233 = vpop.f32.mrf.mxu0
  %2234 = vdwg.mxu0
  %2235 = vrot.lane.b32.xlu0 %v491, 88
  %v2236 = vpop.permute.xlu0 %2235
  %v2239 = vsel %vm64, %v2089, 0
  %2241 = vmatprep.subr.bf16.mxu0 0
  %2242 = vmatpush1.bf16.msra.mxu0 0
  %2243 = vmatprep.subr.bf16.mxu0 0
  %2244 = vmatpush1.bf16.msra.mxu0 0
  %2245 = vmatprep.subr.bf16.mxu0 0
  %2246 = vmatpush1.bf16.msra.mxu0 0
  %2247 = vmatprep.subr.bf16.mxu0 0
  %2248 = vmatpush1.bf16.msra.mxu0 0
  %2249 = vmatprep.subr.bf16.mxu0 0
  %2250 = vmatpush1.bf16.msra.mxu0 0
  %2251 = vmatprep.subr.bf16.mxu0 0
  %2252 = vmatpush1.bf16.msra.mxu0 0
  %2253 = vmatprep.subr.bf16.mxu0 0
  %2254 = vmatpush1.bf16.msra.mxu0 0
  %2255 = vmatprep.subr.bf16.mxu0 0
  %2256 = vmatpush1.bf16.msra.mxu0 %v2236
  %2257 = vmatprep.subr.bf16.mxu0 0
  %2258 = vmatpush2.bf16.msra.mxu0 0
  %2259 = vmatprep.subr.bf16.mxu0 0
  %2260 = vmatpush2.bf16.msra.mxu0 0
  %2261 = vmatprep.subr.bf16.mxu0 0
  %2262 = vmatpush2.bf16.msra.mxu0 0
  %2263 = vmatprep.subr.bf16.mxu0 0
  %2264 = vmatpush2.bf16.msra.mxu0 0
  %2265 = vmatprep.subr.bf16.mxu0 0
  %2266 = vmatpush2.bf16.msra.mxu0 0
  %2267 = vmatprep.subr.bf16.mxu0 0
  %2268 = vmatpush2.bf16.msra.mxu0 0
  %2269 = vmatprep.subr.bf16.mxu0 0
  %2270 = vmatpush2.bf16.msra.mxu0 0
  %2271 = vmatprep.subr.bf16.mxu0 0
  %2272 = vmatpush2.bf16.msra.mxu0 0
  %2273 = vmatprep.mubr.bf16.mxu0 0
  %2274 = vmatmul.mubr.bf16.gmra.mxu0 %v2239
  %v2275 = vpop.f32.mrf.mxu0
  %v2276 = vadd.f32 0.0, %v2275
  %v2277 = vpop.f32.mrf.mxu0
  %v2278 = vpop.f32.mrf.mxu0
  %v2279 = vadd.f32 0.0, %v2278
  %v2280 = vpop.f32.mrf.mxu0
  %2281 = vdwg.mxu0
  %2282 = vrot.lane.b32.xlu0 %v492, 88
  %v2283 = vpop.permute.xlu0 %2282
  %v2286 = vsel %vm64, %v2090, 0
  %2288 = vmatprep.subr.bf16.mxu0 0
  %2289 = vmatpush1.bf16.msra.mxu0 0
  %2290 = vmatprep.subr.bf16.mxu0 0
  %2291 = vmatpush1.bf16.msra.mxu0 0
  %2292 = vmatprep.subr.bf16.mxu0 0
  %2293 = vmatpush1.bf16.msra.mxu0 0
  %2294 = vmatprep.subr.bf16.mxu0 0
  %2295 = vmatpush1.bf16.msra.mxu0 0
  %2296 = vmatprep.subr.bf16.mxu0 0
  %2297 = vmatpush1.bf16.msra.mxu0 0
  %2298 = vmatprep.subr.bf16.mxu0 0
  %2299 = vmatpush1.bf16.msra.mxu0 0
  %2300 = vmatprep.subr.bf16.mxu0 0
  %2301 = vmatpush1.bf16.msra.mxu0 0
  %2302 = vmatprep.subr.bf16.mxu0 0
  %2303 = vmatpush1.bf16.msra.mxu0 %v2283
  %2304 = vmatprep.subr.bf16.mxu0 0
  %2305 = vmatpush2.bf16.msra.mxu0 0
  %2306 = vmatprep.subr.bf16.mxu0 0
  %2307 = vmatpush2.bf16.msra.mxu0 0
  %2308 = vmatprep.subr.bf16.mxu0 0
  %2309 = vmatpush2.bf16.msra.mxu0 0
  %2310 = vmatprep.subr.bf16.mxu0 0
  %2311 = vmatpush2.bf16.msra.mxu0 0
  %2312 = vmatprep.subr.bf16.mxu0 0
  %2313 = vmatpush2.bf16.msra.mxu0 0
  %2314 = vmatprep.subr.bf16.mxu0 0
  %2315 = vmatpush2.bf16.msra.mxu0 0
  %2316 = vmatprep.subr.bf16.mxu0 0
  %2317 = vmatpush2.bf16.msra.mxu0 0
  %2318 = vmatprep.subr.bf16.mxu0 0
  %2319 = vmatpush2.bf16.msra.mxu0 0
  %2320 = vmatprep.mubr.bf16.mxu0 0
  %2321 = vmatmul.mubr.bf16.gmra.mxu0 %v2286
  %v2322 = vpop.f32.mrf.mxu0
  %v2323 = vadd.f32 0.0, %v2322
  %v2324 = vpop.f32.mrf.mxu0
  %v2325 = vpop.f32.mrf.mxu0
  %v2326 = vadd.f32 0.0, %v2325
  %v2327 = vpop.f32.mrf.mxu0
  %2328 = vdwg.mxu0
  %2329 = vrot.lane.b32.xlu0 %v493, 88
  %v2330 = vpop.permute.xlu0 %2329
  %v2333 = vsel %vm64, %v2091, 0
  %2335 = vmatprep.subr.bf16.mxu0 0
  %2336 = vmatpush1.bf16.msra.mxu0 0
  %2337 = vmatprep.subr.bf16.mxu0 0
  %2338 = vmatpush1.bf16.msra.mxu0 0
  %2339 = vmatprep.subr.bf16.mxu0 0
  %2340 = vmatpush1.bf16.msra.mxu0 0
  %2341 = vmatprep.subr.bf16.mxu0 0
  %2342 = vmatpush1.bf16.msra.mxu0 0
  %2343 = vmatprep.subr.bf16.mxu0 0
  %2344 = vmatpush1.bf16.msra.mxu0 0
  %2345 = vmatprep.subr.bf16.mxu0 0
  %2346 = vmatpush1.bf16.msra.mxu0 0
  %2347 = vmatprep.subr.bf16.mxu0 0
  %2348 = vmatpush1.bf16.msra.mxu0 0
  %2349 = vmatprep.subr.bf16.mxu0 0
  %2350 = vmatpush1.bf16.msra.mxu0 %v2330
  %2351 = vmatprep.subr.bf16.mxu0 0
  %2352 = vmatpush2.bf16.msra.mxu0 0
  %2353 = vmatprep.subr.bf16.mxu0 0
  %2354 = vmatpush2.bf16.msra.mxu0 0
  %2355 = vmatprep.subr.bf16.mxu0 0
  %2356 = vmatpush2.bf16.msra.mxu0 0
  %2357 = vmatprep.subr.bf16.mxu0 0
  %2358 = vmatpush2.bf16.msra.mxu0 0
  %2359 = vmatprep.subr.bf16.mxu0 0
  %2360 = vmatpush2.bf16.msra.mxu0 0
  %2361 = vmatprep.subr.bf16.mxu0 0
  %2362 = vmatpush2.bf16.msra.mxu0 0
  %2363 = vmatprep.subr.bf16.mxu0 0
  %2364 = vmatpush2.bf16.msra.mxu0 0
  %2365 = vmatprep.subr.bf16.mxu0 0
  %2366 = vmatpush2.bf16.msra.mxu0 0
  %2367 = vmatprep.mubr.bf16.mxu0 0
  %2368 = vmatmul.mubr.bf16.gmra.mxu0 %v2333
  %v2369 = vpop.f32.mrf.mxu0
  %v2370 = vadd.f32 0.0, %v2369
  %v2371 = vpop.f32.mrf.mxu0
  %v2372 = vpop.f32.mrf.mxu0
  %v2373 = vadd.f32 0.0, %v2372
  %v2374 = vpop.f32.mrf.mxu0
  %2375 = vdwg.mxu0
  %2376 = vrot.lane.b32.xlu0 %v494, 88
  %v2377 = vpop.permute.xlu0 %2376
  %v2380 = vsel %vm64, %v2092, 0
  %2382 = vmatprep.subr.bf16.mxu0 0
  %2383 = vmatpush1.bf16.msra.mxu0 0
  %2384 = vmatprep.subr.bf16.mxu0 0
  %2385 = vmatpush1.bf16.msra.mxu0 0
  %2386 = vmatprep.subr.bf16.mxu0 0
  %2387 = vmatpush1.bf16.msra.mxu0 0
  %2388 = vmatprep.subr.bf16.mxu0 0
  %2389 = vmatpush1.bf16.msra.mxu0 0
  %2390 = vmatprep.subr.bf16.mxu0 0
  %2391 = vmatpush1.bf16.msra.mxu0 0
  %2392 = vmatprep.subr.bf16.mxu0 0
  %2393 = vmatpush1.bf16.msra.mxu0 0
  %2394 = vmatprep.subr.bf16.mxu0 0
  %2395 = vmatpush1.bf16.msra.mxu0 0
  %2396 = vmatprep.subr.bf16.mxu0 0
  %2397 = vmatpush1.bf16.msra.mxu0 %v2377
  %2398 = vmatprep.subr.bf16.mxu0 0
  %2399 = vmatpush2.bf16.msra.mxu0 0
  %2400 = vmatprep.subr.bf16.mxu0 0
  %2401 = vmatpush2.bf16.msra.mxu0 0
  %2402 = vmatprep.subr.bf16.mxu0 0
  %2403 = vmatpush2.bf16.msra.mxu0 0
  %2404 = vmatprep.subr.bf16.mxu0 0
  %2405 = vmatpush2.bf16.msra.mxu0 0
  %2406 = vmatprep.subr.bf16.mxu0 0
  %2407 = vmatpush2.bf16.msra.mxu0 0
  %2408 = vmatprep.subr.bf16.mxu0 0
  %2409 = vmatpush2.bf16.msra.mxu0 0
  %2410 = vmatprep.subr.bf16.mxu0 0
  %2411 = vmatpush2.bf16.msra.mxu0 0
  %2412 = vmatprep.subr.bf16.mxu0 0
  %2413 = vmatpush2.bf16.msra.mxu0 0
  %2414 = vmatprep.mubr.bf16.mxu0 0
  %2415 = vmatmul.mubr.bf16.gmra.mxu0 %v2380
  %v2416 = vpop.f32.mrf.mxu0
  %v2417 = vadd.f32 0.0, %v2416
  %v2418 = vpop.f32.mrf.mxu0
  %v2419 = vpop.f32.mrf.mxu0
  %v2420 = vadd.f32 0.0, %v2419
  %v2421 = vpop.f32.mrf.mxu0
  %2422 = vdwg.mxu0
  %2423 = vrot.lane.b32.xlu0 %v495, 88
  %v2424 = vpop.permute.xlu0 %2423
  %v2427 = vsel %vm64, %v2093, 0
  %2429 = vmatprep.subr.bf16.mxu0 0
  %2430 = vmatpush1.bf16.msra.mxu0 0
  %2431 = vmatprep.subr.bf16.mxu0 0
  %2432 = vmatpush1.bf16.msra.mxu0 0
  %2433 = vmatprep.subr.bf16.mxu0 0
  %2434 = vmatpush1.bf16.msra.mxu0 0
  %2435 = vmatprep.subr.bf16.mxu0 0
  %2436 = vmatpush1.bf16.msra.mxu0 0
  %2437 = vmatprep.subr.bf16.mxu0 0
  %2438 = vmatpush1.bf16.msra.mxu0 0
  %2439 = vmatprep.subr.bf16.mxu0 0
  %2440 = vmatpush1.bf16.msra.mxu0 0
  %2441 = vmatprep.subr.bf16.mxu0 0
  %2442 = vmatpush1.bf16.msra.mxu0 0
  %2443 = vmatprep.subr.bf16.mxu0 0
  %2444 = vmatpush1.bf16.msra.mxu0 %v2424
  %2445 = vmatprep.subr.bf16.mxu0 0
  %2446 = vmatpush2.bf16.msra.mxu0 0
  %2447 = vmatprep.subr.bf16.mxu0 0
  %2448 = vmatpush2.bf16.msra.mxu0 0
  %2449 = vmatprep.subr.bf16.mxu0 0
  %2450 = vmatpush2.bf16.msra.mxu0 0
  %2451 = vmatprep.subr.bf16.mxu0 0
  %2452 = vmatpush2.bf16.msra.mxu0 0
  %2453 = vmatprep.subr.bf16.mxu0 0
  %2454 = vmatpush2.bf16.msra.mxu0 0
  %2455 = vmatprep.subr.bf16.mxu0 0
  %2456 = vmatpush2.bf16.msra.mxu0 0
  %2457 = vmatprep.subr.bf16.mxu0 0
  %2458 = vmatpush2.bf16.msra.mxu0 0
  %2459 = vmatprep.subr.bf16.mxu0 0
  %2460 = vmatpush2.bf16.msra.mxu0 0
  %2461 = vmatprep.mubr.bf16.mxu0 0
  %2462 = vmatmul.mubr.bf16.gmra.mxu0 %v2427
  %v2463 = vpop.f32.mrf.mxu0
  %v2464 = vadd.f32 0.0, %v2463
  %v2465 = vpop.f32.mrf.mxu0
  %v2466 = vpop.f32.mrf.mxu0
  %v2467 = vadd.f32 0.0, %v2466
  %v2468 = vpop.f32.mrf.mxu0
  %2469 = vdwg.mxu0
  %2486 = vrot.lane.b32.xlu0 %v2135, 8
  %v2487 = vpop.permute.xlu0 %2486
  %2488 = vrot.lane.b32.xlu0 %v2138, 8
  %v2489 = vpop.permute.xlu0 %2488
  %2490 = vrot.lane.b32.xlu0 %v2182, 8
  %v2491 = vpop.permute.xlu0 %2490
  %2492 = vrot.lane.b32.xlu0 %v2185, 8
  %v2493 = vpop.permute.xlu0 %2492
  %2494 = vrot.lane.b32.xlu0 %v2229, 8
  %v2495 = vpop.permute.xlu0 %2494
  %2496 = vrot.lane.b32.xlu0 %v2232, 8
  %v2497 = vpop.permute.xlu0 %2496
  %2498 = vrot.lane.b32.xlu0 %v2276, 8
  %v2499 = vpop.permute.xlu0 %2498
  %2500 = vrot.lane.b32.xlu0 %v2279, 8
  %v2501 = vpop.permute.xlu0 %2500
  %2502 = vrot.lane.b32.xlu0 %v2323, 8
  %v2503 = vpop.permute.xlu0 %2502
  %2504 = vrot.lane.b32.xlu0 %v2326, 8
  %v2505 = vpop.permute.xlu0 %2504
  %2506 = vrot.lane.b32.xlu0 %v2370, 8
  %v2507 = vpop.permute.xlu0 %2506
  %2508 = vrot.lane.b32.xlu0 %v2373, 8
  %v2509 = vpop.permute.xlu0 %2508
  %2510 = vrot.lane.b32.xlu0 %v2417, 8
  %v2511 = vpop.permute.xlu0 %2510
  %2512 = vrot.lane.b32.xlu0 %v2420, 8
  %v2513 = vpop.permute.xlu0 %2512
  %2514 = vrot.lane.b32.xlu0 %v2464, 8
  %v2515 = vpop.permute.xlu0 %2514
  %2516 = vrot.lane.b32.xlu0 %v2467, 8
  %v2517 = vpop.permute.xlu0 %2516
  %v2534 = vsel %vm499, %v1140, %v2487
  %v2535 = vsel %vm499, %v1143, %v2489
  %v2536 = vsel %vm499, %v1187, %v2491
  %v2537 = vsel %vm499, %v1190, %v2493
  %v2538 = vsel %vm499, %v1234, %v2495
  %v2539 = vsel %vm499, %v1237, %v2497
  %v2540 = vsel %vm499, %v1281, %v2499
  %v2541 = vsel %vm499, %v1284, %v2501
  %v2542 = vsel %vm499, %v1328, %v2503
  %v2543 = vsel %vm499, %v1331, %v2505
  %v2544 = vsel %vm499, %v1375, %v2507
  %v2545 = vsel %vm499, %v1378, %v2509
  %v2546 = vsel %vm499, %v1422, %v2511
  %v2547 = vsel %vm499, %v1425, %v2513
  %v2548 = vsel %vm499, %v1469, %v2515
  %v2549 = vsel %vm499, %v1472, %v2517
  %v2550 = vpack.c.bf16 %v2535, %v2534
  %v2551 = vpack.c.bf16 %v2537, %v2536
  %v2552 = vpack.c.bf16 %v2539, %v2538
  %v2553 = vpack.c.bf16 %v2541, %v2540
  %v2554 = vpack.c.bf16 %v2543, %v2542
  %v2555 = vpack.c.bf16 %v2545, %v2544
  %v2556 = vpack.c.bf16 %v2547, %v2546
  %v2557 = vpack.c.bf16 %v2549, %v2548
  %v2558 = vld [vmem:[%s6] sm:$0xf]
  %v2559 = vld [vmem:[%s6 + $0x4] sm:$0xf]
  %v2562 = vunpack.c.l.b16 %v2558
  %v2563 = vunpack.c.l.b16 %v2559
  %v2564 = vpack.c.b16 %v2563, %v2562
  %v2567 = vsel %vm64, %v2550, 0
  %v2570 = vsel %vm64, %v2551, 0
  %v2573 = vsel %vm64, %v2552, 0
  %v2576 = vsel %vm64, %v2553, 0
  %v2579 = vsel %vm64, %v2554, 0
  %v2582 = vsel %vm64, %v2555, 0
  %v2585 = vsel %vm64, %v2556, 0
  %v2588 = vsel %vm64, %v2557, 0
  %2590 = vmatprep.subr.bf16.mxu0 0
  %2591 = vmatpush1.bf16.msra.mxu0 0
  %2592 = vmatprep.subr.bf16.mxu0 0
  %2593 = vmatpush1.bf16.msra.mxu0 0
  %2594 = vmatprep.subr.bf16.mxu0 0
  %2595 = vmatpush1.bf16.msra.mxu0 0
  %2596 = vmatprep.subr.bf16.mxu0 0
  %2597 = vmatpush1.bf16.msra.mxu0 0
  %2598 = vmatprep.subr.bf16.mxu0 0
  %2599 = vmatpush1.bf16.msra.mxu0 0
  %2600 = vmatprep.subr.bf16.mxu0 0
  %2601 = vmatpush1.bf16.msra.mxu0 0
  %2602 = vmatprep.subr.bf16.mxu0 0
  %2603 = vmatpush1.bf16.msra.mxu0 0
  %2604 = vmatprep.subr.bf16.mxu0 0
  %2605 = vmatpush1.bf16.msra.mxu0 %v2564
  %2606 = vmatprep.subr.bf16.mxu0 0
  %2607 = vmatpush2.bf16.msra.mxu0 0
  %2608 = vmatprep.subr.bf16.mxu0 0
  %2609 = vmatpush2.bf16.msra.mxu0 0
  %2610 = vmatprep.subr.bf16.mxu0 0
  %2611 = vmatpush2.bf16.msra.mxu0 0
  %2612 = vmatprep.subr.bf16.mxu0 0
  %2613 = vmatpush2.bf16.msra.mxu0 0
  %2614 = vmatprep.subr.bf16.mxu0 0
  %2615 = vmatpush2.bf16.msra.mxu0 0
  %2616 = vmatprep.subr.bf16.mxu0 0
  %2617 = vmatpush2.bf16.msra.mxu0 0
  %2618 = vmatprep.subr.bf16.mxu0 0
  %2619 = vmatpush2.bf16.msra.mxu0 0
  %2620 = vmatprep.subr.bf16.mxu0 0
  %2621 = vmatpush2.bf16.msra.mxu0 0
  %2622 = vmatprep.mubr.bf16.mxu0 0
  %2623 = vmatmul.mubr.bf16.gmra.mxu0 %v2567
  %v2624 = vpop.f32.mrf.mxu0
  %v2625 = vadd.f32 0.0, %v2624
  %v2626 = vpop.f32.mrf.mxu0
  %v2627 = vpop.f32.mrf.mxu0
  %v2628 = vadd.f32 0.0, %v2627
  %v2629 = vpop.f32.mrf.mxu0
  %2630 = vmatprep.mubr.bf16.mxu0 0
  %2631 = vmatmul.mubr.bf16.gmra.mxu0 %v2570
  %v2632 = vpop.f32.mrf.mxu0
  %v2633 = vadd.f32 0.0, %v2632
  %v2634 = vpop.f32.mrf.mxu0
  %v2635 = vpop.f32.mrf.mxu0
  %v2636 = vadd.f32 0.0, %v2635
  %v2637 = vpop.f32.mrf.mxu0
  %2638 = vmatprep.mubr.bf16.mxu0 0
  %2639 = vmatmul.mubr.bf16.gmra.mxu0 %v2573
  %v2640 = vpop.f32.mrf.mxu0
  %v2641 = vadd.f32 0.0, %v2640
  %v2642 = vpop.f32.mrf.mxu0
  %v2643 = vpop.f32.mrf.mxu0
  %v2644 = vadd.f32 0.0, %v2643
  %v2645 = vpop.f32.mrf.mxu0
  %2646 = vmatprep.mubr.bf16.mxu0 0
  %2647 = vmatmul.mubr.bf16.gmra.mxu0 %v2576
  %v2648 = vpop.f32.mrf.mxu0
  %v2649 = vadd.f32 0.0, %v2648
  %v2650 = vpop.f32.mrf.mxu0
  %v2651 = vpop.f32.mrf.mxu0
  %v2652 = vadd.f32 0.0, %v2651
  %v2653 = vpop.f32.mrf.mxu0
  %2654 = vmatprep.mubr.bf16.mxu0 0
  %2655 = vmatmul.mubr.bf16.gmra.mxu0 %v2579
  %v2656 = vpop.f32.mrf.mxu0
  %v2657 = vadd.f32 0.0, %v2656
  %v2658 = vpop.f32.mrf.mxu0
  %v2659 = vpop.f32.mrf.mxu0
  %v2660 = vadd.f32 0.0, %v2659
  %v2661 = vpop.f32.mrf.mxu0
  %2662 = vmatprep.mubr.bf16.mxu0 0
  %2663 = vmatmul.mubr.bf16.gmra.mxu0 %v2582
  %v2664 = vpop.f32.mrf.mxu0
  %v2665 = vadd.f32 0.0, %v2664
  %v2666 = vpop.f32.mrf.mxu0
  %v2667 = vpop.f32.mrf.mxu0
  %v2668 = vadd.f32 0.0, %v2667
  %v2669 = vpop.f32.mrf.mxu0
  %2670 = vmatprep.mubr.bf16.mxu0 0
  %2671 = vmatmul.mubr.bf16.gmra.mxu0 %v2585
  %v2672 = vpop.f32.mrf.mxu0
  %v2673 = vadd.f32 0.0, %v2672
  %v2674 = vpop.f32.mrf.mxu0
  %v2675 = vpop.f32.mrf.mxu0
  %v2676 = vadd.f32 0.0, %v2675
  %v2677 = vpop.f32.mrf.mxu0
  %2678 = vmatprep.mubr.bf16.mxu0 0
  %2679 = vmatmul.mubr.bf16.gmra.mxu0 %v2588
  %v2680 = vpop.f32.mrf.mxu0
  %v2681 = vadd.f32 0.0, %v2680
  %v2682 = vpop.f32.mrf.mxu0
  %v2683 = vpop.f32.mrf.mxu0
  %v2684 = vadd.f32 0.0, %v2683
  %v2685 = vpop.f32.mrf.mxu0
  %2686 = vdwg.mxu0
  %v2687 = vadd.f32 %v48, %v2625
  %v2688 = vadd.f32 %v49, %v2628
  %v2689 = vadd.f32 %v50, %v2633
  %v2690 = vadd.f32 %v51, %v2636
  %v2691 = vadd.f32 %v52, %v2641
  %v2692 = vadd.f32 %v53, %v2644
  %v2693 = vadd.f32 %v54, %v2649
  %v2694 = vadd.f32 %v55, %v2652
  %v2695 = vadd.f32 %v56, %v2657
  %v2696 = vadd.f32 %v57, %v2660
  %v2697 = vadd.f32 %v58, %v2665
  %v2698 = vadd.f32 %v59, %v2668
  %v2699 = vadd.f32 %v60, %v2673
  %v2700 = vadd.f32 %v61, %v2676
  %v2701 = vadd.f32 %v62, %v2681
  %v2702 = vadd.f32 %v63, %v2684
  %v2703 = vld [vmem:[%s7] sm:$0x1]
  %v2705 = vlaneseq
  %v2706 = vshrl.u32 %v2705, 7
  %v2707 = vsub.s32 0, %v2706
  %v2708 = vrot.slane %v2703, %v2707
  %v2710 = vadd.f32 %v2687, %v2708
  %v2711 = vadd.f32 %v2688, %v2708
  %v2712 = vadd.f32 %v2689, %v2708
  %v2713 = vadd.f32 %v2690, %v2708
  %v2714 = vadd.f32 %v2691, %v2708
  %v2715 = vadd.f32 %v2692, %v2708
  %v2716 = vadd.f32 %v2693, %v2708
  %v2717 = vadd.f32 %v2694, %v2708
  %v2718 = vadd.f32 %v2695, %v2708
  %v2719 = vadd.f32 %v2696, %v2708
  %v2720 = vadd.f32 %v2697, %v2708
  %v2721 = vadd.f32 %v2698, %v2708
  %v2722 = vadd.f32 %v2699, %v2708
  %v2723 = vadd.f32 %v2700, %v2708
  %v2724 = vadd.f32 %v2701, %v2708
  %v2725 = vadd.f32 %v2702, %v2708
  %v2726 = vsel %vm64, %v2710, 0.0
  %2727 = vadd.xlane.f32.xlu0 %v2726
  %v2728 = vpop.xlane.xlu0 %2727
  %v2729 = vsel %vm64, %v2711, 0.0
  %2730 = vadd.xlane.f32.xlu0 %v2729
  %v2731 = vpop.xlane.xlu0 %2730
  %v2732 = vsel %vm64, %v2712, 0.0
  %2733 = vadd.xlane.f32.xlu0 %v2732
  %v2734 = vpop.xlane.xlu0 %2733
  %v2735 = vsel %vm64, %v2713, 0.0
  %2736 = vadd.xlane.f32.xlu0 %v2735
  %v2737 = vpop.xlane.xlu0 %2736
  %v2738 = vsel %vm64, %v2714, 0.0
  %2739 = vadd.xlane.f32.xlu0 %v2738
  %v2740 = vpop.xlane.xlu0 %2739
  %v2741 = vsel %vm64, %v2715, 0.0
  %2742 = vadd.xlane.f32.xlu0 %v2741
  %v2743 = vpop.xlane.xlu0 %2742
  %v2744 = vsel %vm64, %v2716, 0.0
  %2745 = vadd.xlane.f32.xlu0 %v2744
  %v2746 = vpop.xlane.xlu0 %2745
  %v2747 = vsel %vm64, %v2717, 0.0
  %2748 = vadd.xlane.f32.xlu0 %v2747
  %v2749 = vpop.xlane.xlu0 %2748
  %v2750 = vsel %vm64, %v2718, 0.0
  %2751 = vadd.xlane.f32.xlu0 %v2750
  %v2752 = vpop.xlane.xlu0 %2751
  %v2753 = vsel %vm64, %v2719, 0.0
  %2754 = vadd.xlane.f32.xlu0 %v2753
  %v2755 = vpop.xlane.xlu0 %2754
  %v2756 = vsel %vm64, %v2720, 0.0
  %2757 = vadd.xlane.f32.xlu0 %v2756
  %v2758 = vpop.xlane.xlu0 %2757
  %v2759 = vsel %vm64, %v2721, 0.0
  %2760 = vadd.xlane.f32.xlu0 %v2759
  %v2761 = vpop.xlane.xlu0 %2760
  %v2762 = vsel %vm64, %v2722, 0.0
  %2763 = vadd.xlane.f32.xlu0 %v2762
  %v2764 = vpop.xlane.xlu0 %2763
  %v2765 = vsel %vm64, %v2723, 0.0
  %2766 = vadd.xlane.f32.xlu0 %v2765
  %v2767 = vpop.xlane.xlu0 %2766
  %v2768 = vsel %vm64, %v2724, 0.0
  %2769 = vadd.xlane.f32.xlu0 %v2768
  %v2770 = vpop.xlane.xlu0 %2769
  %v2771 = vsel %vm64, %v2725, 0.0
  %2772 = vadd.xlane.f32.xlu0 %v2771
  %v2773 = vpop.xlane.xlu0 %2772
  %v2774 = vmul.f32 %v2728, %v113
  %v2775 = vmul.f32 %v2731, %v113
  %v2776 = vmul.f32 %v2734, %v113
  %v2777 = vmul.f32 %v2737, %v113
  %v2778 = vmul.f32 %v2740, %v113
  %v2779 = vmul.f32 %v2743, %v113
  %v2780 = vmul.f32 %v2746, %v113
  %v2781 = vmul.f32 %v2749, %v113
  %v2782 = vmul.f32 %v2752, %v113
  %v2783 = vmul.f32 %v2755, %v113
  %v2784 = vmul.f32 %v2758, %v113
  %v2785 = vmul.f32 %v2761, %v113
  %v2786 = vmul.f32 %v2764, %v113
  %v2787 = vmul.f32 %v2767, %v113
  %v2788 = vmul.f32 %v2770, %v113
  %v2789 = vmul.f32 %v2773, %v113
  %v2790 = vsub.f32 %v2710, %v2774
  %v2791 = vsub.f32 %v2711, %v2775
  %v2792 = vsub.f32 %v2712, %v2776
  %v2793 = vsub.f32 %v2713, %v2777
  %v2794 = vsub.f32 %v2714, %v2778
  %v2795 = vsub.f32 %v2715, %v2779
  %v2796 = vsub.f32 %v2716, %v2780
  %v2797 = vsub.f32 %v2717, %v2781
  %v2798 = vsub.f32 %v2718, %v2782
  %v2799 = vsub.f32 %v2719, %v2783
  %v2800 = vsub.f32 %v2720, %v2784
  %v2801 = vsub.f32 %v2721, %v2785
  %v2802 = vsub.f32 %v2722, %v2786
  %v2803 = vsub.f32 %v2723, %v2787
  %v2804 = vsub.f32 %v2724, %v2788
  %v2805 = vsub.f32 %v2725, %v2789
  %v2806 = vmul.f32 %v2790, %v2790
  %v2807 = vmul.f32 %v2791, %v2791
  %v2808 = vmul.f32 %v2792, %v2792
  %v2809 = vmul.f32 %v2793, %v2793
  %v2810 = vmul.f32 %v2794, %v2794
  %v2811 = vmul.f32 %v2795, %v2795
  %v2812 = vmul.f32 %v2796, %v2796
  %v2813 = vmul.f32 %v2797, %v2797
  %v2814 = vmul.f32 %v2798, %v2798
  %v2815 = vmul.f32 %v2799, %v2799
  %v2816 = vmul.f32 %v2800, %v2800
  %v2817 = vmul.f32 %v2801, %v2801
  %v2818 = vmul.f32 %v2802, %v2802
  %v2819 = vmul.f32 %v2803, %v2803
  %v2820 = vmul.f32 %v2804, %v2804
  %v2821 = vmul.f32 %v2805, %v2805
  %v2822 = vsel %vm64, %v2806, 0.0
  %2823 = vadd.xlane.f32.xlu0 %v2822
  %v2824 = vpop.xlane.xlu0 %2823
  %v2825 = vsel %vm64, %v2807, 0.0
  %2826 = vadd.xlane.f32.xlu0 %v2825
  %v2827 = vpop.xlane.xlu0 %2826
  %v2828 = vsel %vm64, %v2808, 0.0
  %2829 = vadd.xlane.f32.xlu0 %v2828
  %v2830 = vpop.xlane.xlu0 %2829
  %v2831 = vsel %vm64, %v2809, 0.0
  %2832 = vadd.xlane.f32.xlu0 %v2831
  %v2833 = vpop.xlane.xlu0 %2832
  %v2834 = vsel %vm64, %v2810, 0.0
  %2835 = vadd.xlane.f32.xlu0 %v2834
  %v2836 = vpop.xlane.xlu0 %2835
  %v2837 = vsel %vm64, %v2811, 0.0
  %2838 = vadd.xlane.f32.xlu0 %v2837
  %v2839 = vpop.xlane.xlu0 %2838
  %v2840 = vsel %vm64, %v2812, 0.0
  %2841 = vadd.xlane.f32.xlu0 %v2840
  %v2842 = vpop.xlane.xlu0 %2841
  %v2843 = vsel %vm64, %v2813, 0.0
  %2844 = vadd.xlane.f32.xlu0 %v2843
  %v2845 = vpop.xlane.xlu0 %2844
  %v2846 = vsel %vm64, %v2814, 0.0
  %2847 = vadd.xlane.f32.xlu0 %v2846
  %v2848 = vpop.xlane.xlu0 %2847
  %v2849 = vsel %vm64, %v2815, 0.0
  %2850 = vadd.xlane.f32.xlu0 %v2849
  %v2851 = vpop.xlane.xlu0 %2850
  %v2852 = vsel %vm64, %v2816, 0.0
  %2853 = vadd.xlane.f32.xlu0 %v2852
  %v2854 = vpop.xlane.xlu0 %2853
  %v2855 = vsel %vm64, %v2817, 0.0
  %2856 = vadd.xlane.f32.xlu0 %v2855
  %v2857 = vpop.xlane.xlu0 %2856
  %v2858 = vsel %vm64, %v2818, 0.0
  %2859 = vadd.xlane.f32.xlu0 %v2858
  %v2860 = vpop.xlane.xlu0 %2859
  %v2861 = vsel %vm64, %v2819, 0.0
  %2862 = vadd.xlane.f32.xlu0 %v2861
  %v2863 = vpop.xlane.xlu0 %2862
  %v2864 = vsel %vm64, %v2820, 0.0
  %2865 = vadd.xlane.f32.xlu0 %v2864
  %v2866 = vpop.xlane.xlu0 %2865
  %v2867 = vsel %vm64, %v2821, 0.0
  %2868 = vadd.xlane.f32.xlu0 %v2867
  %v2869 = vpop.xlane.xlu0 %2868
  %v2870 = vmul.f32 %v2824, %v113
  %v2871 = vmul.f32 %v2827, %v113
  %v2872 = vmul.f32 %v2830, %v113
  %v2873 = vmul.f32 %v2833, %v113
  %v2874 = vmul.f32 %v2836, %v113
  %v2875 = vmul.f32 %v2839, %v113
  %v2876 = vmul.f32 %v2842, %v113
  %v2877 = vmul.f32 %v2845, %v113
  %v2878 = vmul.f32 %v2848, %v113
  %v2879 = vmul.f32 %v2851, %v113
  %v2880 = vmul.f32 %v2854, %v113
  %v2881 = vmul.f32 %v2857, %v113
  %v2882 = vmul.f32 %v2860, %v113
  %v2883 = vmul.f32 %v2863, %v113
  %v2884 = vmul.f32 %v2866, %v113
  %v2885 = vmul.f32 %v2869, %v113
  %v2886 = vadd.f32 %v2870, 1e-05
  %v2887 = vadd.f32 %v2871, 1e-05
  %v2888 = vadd.f32 %v2872, 1e-05
  %v2889 = vadd.f32 %v2873, 1e-05
  %v2890 = vadd.f32 %v2874, 1e-05
  %v2891 = vadd.f32 %v2875, 1e-05
  %v2892 = vadd.f32 %v2876, 1e-05
  %v2893 = vadd.f32 %v2877, 1e-05
  %v2894 = vadd.f32 %v2878, 1e-05
  %v2895 = vadd.f32 %v2879, 1e-05
  %v2896 = vadd.f32 %v2880, 1e-05
  %v2897 = vadd.f32 %v2881, 1e-05
  %v2898 = vadd.f32 %v2882, 1e-05
  %v2899 = vadd.f32 %v2883, 1e-05
  %v2900 = vadd.f32 %v2884, 1e-05
  %v2901 = vadd.f32 %v2885, 1e-05
  %v2902 = vrsqrt.pop %v2886
  %v2903 = vrsqrt.pop %v2887
  %v2904 = vrsqrt.pop %v2888
  %v2905 = vrsqrt.pop %v2889
  %v2906 = vrsqrt.pop %v2890
  %v2907 = vrsqrt.pop %v2891
  %v2908 = vrsqrt.pop %v2892
  %v2909 = vrsqrt.pop %v2893
  %v2910 = vrsqrt.pop %v2894
  %v2911 = vrsqrt.pop %v2895
  %v2912 = vrsqrt.pop %v2896
  %v2913 = vrsqrt.pop %v2897
  %v2914 = vrsqrt.pop %v2898
  %v2915 = vrsqrt.pop %v2899
  %v2916 = vrsqrt.pop %v2900
  %v2917 = vrsqrt.pop %v2901
  %v2918 = vmul.f32 %v2790, %v2902
  %v2919 = vmul.f32 %v2791, %v2903
  %v2920 = vmul.f32 %v2792, %v2904
  %v2921 = vmul.f32 %v2793, %v2905
  %v2922 = vmul.f32 %v2794, %v2906
  %v2923 = vmul.f32 %v2795, %v2907
  %v2924 = vmul.f32 %v2796, %v2908
  %v2925 = vmul.f32 %v2797, %v2909
  %v2926 = vmul.f32 %v2798, %v2910
  %v2927 = vmul.f32 %v2799, %v2911
  %v2928 = vmul.f32 %v2800, %v2912
  %v2929 = vmul.f32 %v2801, %v2913
  %v2930 = vmul.f32 %v2802, %v2914
  %v2931 = vmul.f32 %v2803, %v2915
  %v2932 = vmul.f32 %v2804, %v2916
  %v2933 = vmul.f32 %v2805, %v2917
  %v2934 = vld [vmem:[%s8] sm:$0x1]
  %v2936 = vlaneseq
  %v2937 = vshrl.u32 %v2936, 7
  %v2938 = vsub.s32 0, %v2937
  %v2939 = vrot.slane %v2934, %v2938
  %v2941 = vmul.f32 %v2918, %v2939
  %v2942 = vmul.f32 %v2919, %v2939
  %v2943 = vmul.f32 %v2920, %v2939
  %v2944 = vmul.f32 %v2921, %v2939
  %v2945 = vmul.f32 %v2922, %v2939
  %v2946 = vmul.f32 %v2923, %v2939
  %v2947 = vmul.f32 %v2924, %v2939
  %v2948 = vmul.f32 %v2925, %v2939
  %v2949 = vmul.f32 %v2926, %v2939
  %v2950 = vmul.f32 %v2927, %v2939
  %v2951 = vmul.f32 %v2928, %v2939
  %v2952 = vmul.f32 %v2929, %v2939
  %v2953 = vmul.f32 %v2930, %v2939
  %v2954 = vmul.f32 %v2931, %v2939
  %v2955 = vmul.f32 %v2932, %v2939
  %v2956 = vmul.f32 %v2933, %v2939
  %v2957 = vld [vmem:[%s9] sm:$0x1]
  %v2959 = vlaneseq
  %v2960 = vshrl.u32 %v2959, 7
  %v2961 = vsub.s32 0, %v2960
  %v2962 = vrot.slane %v2957, %v2961
  %v2964 = vadd.f32 %v2941, %v2962
  %v2965 = vadd.f32 %v2942, %v2962
  %v2966 = vadd.f32 %v2943, %v2962
  %v2967 = vadd.f32 %v2944, %v2962
  %v2968 = vadd.f32 %v2945, %v2962
  %v2969 = vadd.f32 %v2946, %v2962
  %v2970 = vadd.f32 %v2947, %v2962
  %v2971 = vadd.f32 %v2948, %v2962
  %v2972 = vadd.f32 %v2949, %v2962
  %v2973 = vadd.f32 %v2950, %v2962
  %v2974 = vadd.f32 %v2951, %v2962
  %v2975 = vadd.f32 %v2952, %v2962
  %v2976 = vadd.f32 %v2953, %v2962
  %v2977 = vadd.f32 %v2954, %v2962
  %v2978 = vadd.f32 %v2955, %v2962
  %v2979 = vadd.f32 %v2956, %v2962
  %v2980 = vpack.c.bf16 %v2965, %v2964
  %v2981 = vpack.c.bf16 %v2967, %v2966
  %v2982 = vpack.c.bf16 %v2969, %v2968
  %v2983 = vpack.c.bf16 %v2971, %v2970
  %v2984 = vpack.c.bf16 %v2973, %v2972
  %v2985 = vpack.c.bf16 %v2975, %v2974
  %v2986 = vpack.c.bf16 %v2977, %v2976
  %v2987 = vpack.c.bf16 %v2979, %v2978
  %v2988 = vld [vmem:[%s10] sm:$0xf]
  %v2989 = vld [vmem:[%s10 + $0x4] sm:$0xf]
  %v2990 = vld [vmem:[%s11] sm:$0x1]
  %v2992 = vlaneseq
  %v2993 = vshrl.u32 %v2992, 7
  %v2994 = vsub.s32 0, %v2993
  %v2995 = vrot.slane %v2990, %v2994
  %v2999 = vunpack.c.l.b16 %v2988
  %v3000 = vunpack.c.l.b16 %v2989
  %v3001 = vpack.c.b16 %v3000, %v2999
  %v3004 = vsel %vm64, %v2980, 0
  %v3007 = vsel %vm64, %v2981, 0
  %v3010 = vsel %vm64, %v2982, 0
  %v3013 = vsel %vm64, %v2983, 0
  %v3016 = vsel %vm64, %v2984, 0
  %v3019 = vsel %vm64, %v2985, 0
  %v3022 = vsel %vm64, %v2986, 0
  %v3025 = vsel %vm64, %v2987, 0
  %3027 = vmatprep.subr.bf16.mxu0 0
  %3028 = vmatpush1.bf16.msra.mxu0 0
  %3029 = vmatprep.subr.bf16.mxu0 0
  %3030 = vmatpush1.bf16.msra.mxu0 0
  %3031 = vmatprep.subr.bf16.mxu0 0
  %3032 = vmatpush1.bf16.msra.mxu0 0
  %3033 = vmatprep.subr.bf16.mxu0 0
  %3034 = vmatpush1.bf16.msra.mxu0 0
  %3035 = vmatprep.subr.bf16.mxu0 0
  %3036 = vmatpush1.bf16.msra.mxu0 0
  %3037 = vmatprep.subr.bf16.mxu0 0
  %3038 = vmatpush1.bf16.msra.mxu0 0
  %3039 = vmatprep.subr.bf16.mxu0 0
  %3040 = vmatpush1.bf16.msra.mxu0 0
  %3041 = vmatprep.subr.bf16.mxu0 0
  %3042 = vmatpush1.bf16.msra.mxu0 %v3001
  %3043 = vmatprep.subr.bf16.mxu0 0
  %3044 = vmatpush2.bf16.msra.mxu0 0
  %3045 = vmatprep.subr.bf16.mxu0 0
  %3046 = vmatpush2.bf16.msra.mxu0 0
  %3047 = vmatprep.subr.bf16.mxu0 0
  %3048 = vmatpush2.bf16.msra.mxu0 0
  %3049 = vmatprep.subr.bf16.mxu0 0
  %3050 = vmatpush2.bf16.msra.mxu0 0
  %3051 = vmatprep.subr.bf16.mxu0 0
  %3052 = vmatpush2.bf16.msra.mxu0 0
  %3053 = vmatprep.subr.bf16.mxu0 0
  %3054 = vmatpush2.bf16.msra.mxu0 0
  %3055 = vmatprep.subr.bf16.mxu0 0
  %3056 = vmatpush2.bf16.msra.mxu0 0
  %3057 = vmatprep.subr.bf16.mxu0 0
  %3058 = vmatpush2.bf16.msra.mxu0 0
  %3059 = vmatprep.mubr.bf16.mxu0 0
  %3060 = vmatmul.mubr.bf16.gmra.mxu0 %v3004
  %v3061 = vpop.f32.mrf.mxu0
  %v3062 = vadd.f32 %v2995, %v3061
  %v3063 = vpop.f32.mrf.mxu0
  %v3064 = vpop.f32.mrf.mxu0
  %v3065 = vadd.f32 %v2995, %v3064
  %v3066 = vpop.f32.mrf.mxu0
  %3067 = vmatprep.mubr.bf16.mxu0 0
  %3068 = vmatmul.mubr.bf16.gmra.mxu0 %v3007
  %v3069 = vpop.f32.mrf.mxu0
  %v3070 = vadd.f32 %v2995, %v3069
  %v3071 = vpop.f32.mrf.mxu0
  %v3072 = vpop.f32.mrf.mxu0
  %v3073 = vadd.f32 %v2995, %v3072
  %v3074 = vpop.f32.mrf.mxu0
  %3075 = vmatprep.mubr.bf16.mxu0 0
  %3076 = vmatmul.mubr.bf16.gmra.mxu0 %v3010
  %v3077 = vpop.f32.mrf.mxu0
  %v3078 = vadd.f32 %v2995, %v3077
  %v3079 = vpop.f32.mrf.mxu0
  %v3080 = vpop.f32.mrf.mxu0
  %v3081 = vadd.f32 %v2995, %v3080
  %v3082 = vpop.f32.mrf.mxu0
  %3083 = vmatprep.mubr.bf16.mxu0 0
  %3084 = vmatmul.mubr.bf16.gmra.mxu0 %v3013
  %v3085 = vpop.f32.mrf.mxu0
  %v3086 = vadd.f32 %v2995, %v3085
  %v3087 = vpop.f32.mrf.mxu0
  %v3088 = vpop.f32.mrf.mxu0
  %v3089 = vadd.f32 %v2995, %v3088
  %v3090 = vpop.f32.mrf.mxu0
  %3091 = vmatprep.mubr.bf16.mxu0 0
  %3092 = vmatmul.mubr.bf16.gmra.mxu0 %v3016
  %v3093 = vpop.f32.mrf.mxu0
  %v3094 = vadd.f32 %v2995, %v3093
  %v3095 = vpop.f32.mrf.mxu0
  %v3096 = vpop.f32.mrf.mxu0
  %v3097 = vadd.f32 %v2995, %v3096
  %v3098 = vpop.f32.mrf.mxu0
  %3099 = vmatprep.mubr.bf16.mxu0 0
  %3100 = vmatmul.mubr.bf16.gmra.mxu0 %v3019
  %v3101 = vpop.f32.mrf.mxu0
  %v3102 = vadd.f32 %v2995, %v3101
  %v3103 = vpop.f32.mrf.mxu0
  %v3104 = vpop.f32.mrf.mxu0
  %v3105 = vadd.f32 %v2995, %v3104
  %v3106 = vpop.f32.mrf.mxu0
  %3107 = vmatprep.mubr.bf16.mxu0 0
  %3108 = vmatmul.mubr.bf16.gmra.mxu0 %v3022
  %v3109 = vpop.f32.mrf.mxu0
  %v3110 = vadd.f32 %v2995, %v3109
  %v3111 = vpop.f32.mrf.mxu0
  %v3112 = vpop.f32.mrf.mxu0
  %v3113 = vadd.f32 %v2995, %v3112
  %v3114 = vpop.f32.mrf.mxu0
  %3115 = vmatprep.mubr.bf16.mxu0 0
  %3116 = vmatmul.mubr.bf16.gmra.mxu0 %v3025
  %v3117 = vpop.f32.mrf.mxu0
  %v3118 = vadd.f32 %v2995, %v3117
  %v3119 = vpop.f32.mrf.mxu0
  %v3120 = vpop.f32.mrf.mxu0
  %v3121 = vadd.f32 %v2995, %v3120
  %v3122 = vpop.f32.mrf.mxu0
  %3123 = vdwg.mxu0
  %v3124 = vmul.f32 %v3062, 0.5
  %v3125 = vmul.f32 %v3065, 0.5
  %v3126 = vmul.f32 %v3070, 0.5
  %v3127 = vmul.f32 %v3073, 0.5
  %v3128 = vmul.f32 %v3078, 0.5
  %v3129 = vmul.f32 %v3081, 0.5
  %v3130 = vmul.f32 %v3086, 0.5
  %v3131 = vmul.f32 %v3089, 0.5
  %v3132 = vmul.f32 %v3094, 0.5
  %v3133 = vmul.f32 %v3097, 0.5
  %v3134 = vmul.f32 %v3102, 0.5
  %v3135 = vmul.f32 %v3105, 0.5
  %v3136 = vmul.f32 %v3110, 0.5
  %v3137 = vmul.f32 %v3113, 0.5
  %v3138 = vmul.f32 %v3118, 0.5
  %v3139 = vmul.f32 %v3121, 0.5
  %v3140 = vmul.f32 %v3062, 0.70710677
  %v3141 = vmul.f32 %v3065, 0.70710677
  %v3142 = vmul.f32 %v3070, 0.70710677
  %v3143 = vmul.f32 %v3073, 0.70710677
  %v3144 = vmul.f32 %v3078, 0.70710677
  %v3145 = vmul.f32 %v3081, 0.70710677
  %v3146 = vmul.f32 %v3086, 0.70710677
  %v3147 = vmul.f32 %v3089, 0.70710677
  %v3148 = vmul.f32 %v3094, 0.70710677
  %v3149 = vmul.f32 %v3097, 0.70710677
  %v3150 = vmul.f32 %v3102, 0.70710677
  %v3151 = vmul.f32 %v3105, 0.70710677
  %v3152 = vmul.f32 %v3110, 0.70710677
  %v3153 = vmul.f32 %v3113, 0.70710677
  %v3154 = vmul.f32 %v3118, 0.70710677
  %v3155 = vmul.f32 %v3121, 0.70710677
  %v3156 = verf.f32.pop %v3140
  %v3157 = verf.f32.pop %v3141
  %v3158 = verf.f32.pop %v3142
  %v3159 = verf.f32.pop %v3143
  %v3160 = verf.f32.pop %v3144
  %v3161 = verf.f32.pop %v3145
  %v3162 = verf.f32.pop %v3146
  %v3163 = verf.f32.pop %v3147
  %v3164 = verf.f32.pop %v3148
  %v3165 = verf.f32.pop %v3149
  %v3166 = verf.f32.pop %v3150
  %v3167 = verf.f32.pop %v3151
  %v3168 = verf.f32.pop %v3152
  %v3169 = verf.f32.pop %v3153
  %v3170 = verf.f32.pop %v3154
  %v3171 = verf.f32.pop %v3155
  %v3172 = vadd.f32 %v3156, 1.0
  %v3173 = vadd.f32 %v3157, 1.0
  %v3174 = vadd.f32 %v3158, 1.0
  %v3175 = vadd.f32 %v3159, 1.0
  %v3176 = vadd.f32 %v3160, 1.0
  %v3177 = vadd.f32 %v3161, 1.0
  %v3178 = vadd.f32 %v3162, 1.0
  %v3179 = vadd.f32 %v3163, 1.0
  %v3180 = vadd.f32 %v3164, 1.0
  %v3181 = vadd.f32 %v3165, 1.0
  %v3182 = vadd.f32 %v3166, 1.0
  %v3183 = vadd.f32 %v3167, 1.0
  %v3184 = vadd.f32 %v3168, 1.0
  %v3185 = vadd.f32 %v3169, 1.0
  %v3186 = vadd.f32 %v3170, 1.0
  %v3187 = vadd.f32 %v3171, 1.0
  %v3188 = vmul.f32 %v3124, %v3172
  %v3189 = vmul.f32 %v3125, %v3173
  %v3190 = vmul.f32 %v3126, %v3174
  %v3191 = vmul.f32 %v3127, %v3175
  %v3192 = vmul.f32 %v3128, %v3176
  %v3193 = vmul.f32 %v3129, %v3177
  %v3194 = vmul.f32 %v3130, %v3178
  %v3195 = vmul.f32 %v3131, %v3179
  %v3196 = vmul.f32 %v3132, %v3180
  %v3197 = vmul.f32 %v3133, %v3181
  %v3198 = vmul.f32 %v3134, %v3182
  %v3199 = vmul.f32 %v3135, %v3183
  %v3200 = vmul.f32 %v3136, %v3184
  %v3201 = vmul.f32 %v3137, %v3185
  %v3202 = vmul.f32 %v3138, %v3186
  %v3203 = vmul.f32 %v3139, %v3187
  %v3204 = vpack.c.bf16 %v3189, %v3188
  %v3205 = vpack.c.bf16 %v3191, %v3190
  %v3206 = vpack.c.bf16 %v3193, %v3192
  %v3207 = vpack.c.bf16 %v3195, %v3194
  %v3208 = vpack.c.bf16 %v3197, %v3196
  %v3209 = vpack.c.bf16 %v3199, %v3198
  %v3210 = vpack.c.bf16 %v3201, %v3200
  %v3211 = vpack.c.bf16 %v3203, %v3202
  %v3212 = vld [vmem:[%s12] sm:$0xf]
  %v3213 = vld [vmem:[%s12 + $0x4] sm:$0xf]
  %v3214 = vld [vmem:[%s12 + $0x8] sm:$0xf]
  %v3215 = vld [vmem:[%s12 + $0xc] sm:$0xf]
  %v3216 = vld [vmem:[%s12 + $0x10] sm:$0xf]
  %v3217 = vld [vmem:[%s12 + $0x14] sm:$0xf]
  %v3218 = vld [vmem:[%s12 + $0x18] sm:$0xf]
  %v3219 = vld [vmem:[%s12 + $0x1c] sm:$0xf]
  %v3220 = vld [vmem:[%s13] sm:$0x1]
  %v3222 = vlaneseq
  %v3223 = vshrl.u32 %v3222, 7
  %v3224 = vsub.s32 0, %v3223
  %v3225 = vrot.slane %v3220, %v3224
  %v3235 = vunpack.c.l.b16 %v3212
  %v3236 = vunpack.c.l.b16 %v3213
  %v3237 = vunpack.c.l.b16 %v3214
  %v3238 = vunpack.c.l.b16 %v3215
  %v3239 = vunpack.c.l.b16 %v3216
  %v3240 = vunpack.c.l.b16 %v3217
  %v3241 = vunpack.c.l.b16 %v3218
  %v3242 = vunpack.c.l.b16 %v3219
  %v3243 = vpack.c.b16 %v3236, %v3235
  %v3244 = vpack.c.b16 %v3238, %v3237
  %v3245 = vpack.c.b16 %v3240, %v3239
  %v3246 = vpack.c.b16 %v3242, %v3241
  %vm3251 = vcmask 523264
  %v3253 = vsel %vm3251, %v3204, 0
  %v3256 = vsel %vm3251, %v3205, 0
  %v3259 = vsel %vm3251, %v3206, 0
  %v3262 = vsel %vm3251, %v3207, 0
  %v3265 = vsel %vm3251, %v3208, 0
  %v3268 = vsel %vm3251, %v3209, 0
  %v3271 = vsel %vm3251, %v3210, 0
  %v3274 = vsel %vm3251, %v3211, 0
  %3276 = vmatprep.subr.bf16.mxu0 0
  %3277 = vmatpush1.bf16.msra.mxu0 0
  %3278 = vmatprep.subr.bf16.mxu0 0
  %3279 = vmatpush1.bf16.msra.mxu0 0
  %3280 = vmatprep.subr.bf16.mxu0 0
  %3281 = vmatpush1.bf16.msra.mxu0 0
  %3282 = vmatprep.subr.bf16.mxu0 0
  %3283 = vmatpush1.bf16.msra.mxu0 0
  %3284 = vmatprep.subr.bf16.mxu0 0
  %3285 = vmatpush1.bf16.msra.mxu0 %v3246
  %3286 = vmatprep.subr.bf16.mxu0 0
  %3287 = vmatpush1.bf16.msra.mxu0 %v3245
  %3288 = vmatprep.subr.bf16.mxu0 0
  %3289 = vmatpush1.bf16.msra.mxu0 %v3244
  %3290 = vmatprep.subr.bf16.mxu0 0
  %3291 = vmatpush1.bf16.msra.mxu0 %v3243
  %3292 = vmatprep.subr.bf16.mxu0 0
  %3293 = vmatpush2.bf16.msra.mxu0 0
  %3294 = vmatprep.subr.bf16.mxu0 0
  %3295 = vmatpush2.bf16.msra.mxu0 0
  %3296 = vmatprep.subr.bf16.mxu0 0
  %3297 = vmatpush2.bf16.msra.mxu0 0
  %3298 = vmatprep.subr.bf16.mxu0 0
  %3299 = vmatpush2.bf16.msra.mxu0 0
  %3300 = vmatprep.subr.bf16.mxu0 0
  %3301 = vmatpush2.bf16.msra.mxu0 0
  %3302 = vmatprep.subr.bf16.mxu0 0
  %3303 = vmatpush2.bf16.msra.mxu0 0
  %3304 = vmatprep.subr.bf16.mxu0 0
  %3305 = vmatpush2.bf16.msra.mxu0 0
  %3306 = vmatprep.subr.bf16.mxu0 0
  %3307 = vmatpush2.bf16.msra.mxu0 0
  %3308 = vmatprep.mubr.bf16.mxu0 0
  %3309 = vmatmul.mubr.bf16.gmra.mxu0 %v3253
  %v3310 = vpop.f32.mrf.mxu0
  %v3311 = vadd.f32 %v3225, %v3310
  %v3312 = vpop.f32.mrf.mxu0
  %v3313 = vpop.f32.mrf.mxu0
  %v3314 = vadd.f32 %v3225, %v3313
  %v3315 = vpop.f32.mrf.mxu0
  %3316 = vmatprep.mubr.bf16.mxu0 0
  %3317 = vmatmul.mubr.bf16.gmra.mxu0 %v3256
  %v3318 = vpop.f32.mrf.mxu0
  %v3319 = vadd.f32 %v3225, %v3318
  %v3320 = vpop.f32.mrf.mxu0
  %v3321 = vpop.f32.mrf.mxu0
  %v3322 = vadd.f32 %v3225, %v3321
  %v3323 = vpop.f32.mrf.mxu0
  %3324 = vmatprep.mubr.bf16.mxu0 0
  %3325 = vmatmul.mubr.bf16.gmra.mxu0 %v3259
  %v3326 = vpop.f32.mrf.mxu0
  %v3327 = vadd.f32 %v3225, %v3326
  %v3328 = vpop.f32.mrf.mxu0
  %v3329 = vpop.f32.mrf.mxu0
  %v3330 = vadd.f32 %v3225, %v3329
  %v3331 = vpop.f32.mrf.mxu0
  %3332 = vmatprep.mubr.bf16.mxu0 0
  %3333 = vmatmul.mubr.bf16.gmra.mxu0 %v3262
  %v3334 = vpop.f32.mrf.mxu0
  %v3335 = vadd.f32 %v3225, %v3334
  %v3336 = vpop.f32.mrf.mxu0
  %v3337 = vpop.f32.mrf.mxu0
  %v3338 = vadd.f32 %v3225, %v3337
  %v3339 = vpop.f32.mrf.mxu0
  %3340 = vmatprep.mubr.bf16.mxu0 0
  %3341 = vmatmul.mubr.bf16.gmra.mxu0 %v3265
  %v3342 = vpop.f32.mrf.mxu0
  %v3343 = vadd.f32 %v3225, %v3342
  %v3344 = vpop.f32.mrf.mxu0
  %v3345 = vpop.f32.mrf.mxu0
  %v3346 = vadd.f32 %v3225, %v3345
  %v3347 = vpop.f32.mrf.mxu0
  %3348 = vmatprep.mubr.bf16.mxu0 0
  %3349 = vmatmul.mubr.bf16.gmra.mxu0 %v3268
  %v3350 = vpop.f32.mrf.mxu0
  %v3351 = vadd.f32 %v3225, %v3350
  %v3352 = vpop.f32.mrf.mxu0
  %v3353 = vpop.f32.mrf.mxu0
  %v3354 = vadd.f32 %v3225, %v3353
  %v3355 = vpop.f32.mrf.mxu0
  %3356 = vmatprep.mubr.bf16.mxu0 0
  %3357 = vmatmul.mubr.bf16.gmra.mxu0 %v3271
  %v3358 = vpop.f32.mrf.mxu0
  %v3359 = vadd.f32 %v3225, %v3358
  %v3360 = vpop.f32.mrf.mxu0
  %v3361 = vpop.f32.mrf.mxu0
  %v3362 = vadd.f32 %v3225, %v3361
  %v3363 = vpop.f32.mrf.mxu0
  %3364 = vmatprep.mubr.bf16.mxu0 0
  %3365 = vmatmul.mubr.bf16.gmra.mxu0 %v3274
  %v3366 = vpop.f32.mrf.mxu0
  %v3367 = vadd.f32 %v3225, %v3366
  %v3368 = vpop.f32.mrf.mxu0
  %v3369 = vpop.f32.mrf.mxu0
  %v3370 = vadd.f32 %v3225, %v3369
  %v3371 = vpop.f32.mrf.mxu0
  %3372 = vdwg.mxu0
  %v3373 = vadd.f32 %v2710, %v3311
  %v3374 = vadd.f32 %v2711, %v3314
  %v3375 = vadd.f32 %v2712, %v3319
  %v3376 = vadd.f32 %v2713, %v3322
  %v3377 = vadd.f32 %v2714, %v3327
  %v3378 = vadd.f32 %v2715, %v3330
  %v3379 = vadd.f32 %v2716, %v3335
  %v3380 = vadd.f32 %v2717, %v3338
  %v3381 = vadd.f32 %v2718, %v3343
  %v3382 = vadd.f32 %v2719, %v3346
  %v3383 = vadd.f32 %v2720, %v3351
  %v3384 = vadd.f32 %v2721, %v3354
  %v3385 = vadd.f32 %v2722, %v3359
  %v3386 = vadd.f32 %v2723, %v3362
  %v3387 = vadd.f32 %v2724, %v3367
  %v3388 = vadd.f32 %v2725, %v3370
  %3389 = vst.msk [vmem:[%s14] sm:$0xff] %vm64, %v3373
  %3390 = vst.msk [vmem:[%s14 + $0x8] sm:$0xff] %vm64, %v3374
  %3391 = vst.msk [vmem:[%s14 + $0x10] sm:$0xff] %vm64, %v3375
  %3392 = vst.msk [vmem:[%s14 + $0x18] sm:$0xff] %vm64, %v3376
  %3393 = vst.msk [vmem:[%s14 + $0x20] sm:$0xff] %vm64, %v3377
  %3394 = vst.msk [vmem:[%s14 + $0x28] sm:$0xff] %vm64, %v3378
  %3395 = vst.msk [vmem:[%s14 + $0x30] sm:$0xff] %vm64, %v3379
  %3396 = vst.msk [vmem:[%s14 + $0x38] sm:$0xff] %vm64, %v3380
  %3397 = vst.msk [vmem:[%s14 + $0x40] sm:$0xff] %vm64, %v3381
  %3398 = vst.msk [vmem:[%s14 + $0x48] sm:$0xff] %vm64, %v3382
  %3399 = vst.msk [vmem:[%s14 + $0x50] sm:$0xff] %vm64, %v3383
  %3400 = vst.msk [vmem:[%s14 + $0x58] sm:$0xff] %vm64, %v3384
  %3401 = vst.msk [vmem:[%s14 + $0x60] sm:$0xff] %vm64, %v3385
  %3402 = vst.msk [vmem:[%s14 + $0x68] sm:$0xff] %vm64, %v3386
  %3403 = vst.msk [vmem:[%s14 + $0x70] sm:$0xff] %vm64, %v3387
  %3404 = vst.msk [vmem:[%s14 + $0x78] sm:$0xff] %vm64, %v3388
  // Predicated region
  $region58: #{deform_transformer_forward.9} parent=0 // pred_check
    _
  $region59: #{deform_transformer_forward.9} parent=0 // pred_check_branch
    %3406 = sbr.rel (0) target = $region61
  $region60: #{deform_transformer_forward.9} parent=0 // pred_region
    _
  $region61: #{deform_transformer_forward.9} parent=0 // pred_fallthru
    _
  // Predicated region
  $region62: #{deform_transformer_forward.9} parent=0 // pred_check
    _
  $region63: #{deform_transformer_forward.9} parent=0 // pred_check_branch
    %3408 = sbr.rel (0) target = $region65
  $region64: #{deform_transformer_forward.9} parent=0 // pred_region
    _
  $region65: #{deform_transformer_forward.9} parent=0 // pred_fallthru
    _

// kernel: deform_transformer_forward.13
$region0: #{deform_transformer_forward.13}
  #allocation0 [shape = 'u32[]', space=smem, size = 0x4, offset = 0x4, fixed_abs, tag = 'smem constant byte address 0x4 - core index']
  #allocation1 [shape = 'u32[144,128]{1,0:T(1,128)}', space=vmem, size = 0x12000, scoped, tag = 'internal scratch']
  %s0 = inlined_call_operand.vmem [shape: f32[2,16,32], index: 0, kind: input, shape index: {}]
  %s1 = inlined_call_operand.vmem [shape: f32[1,32], index: 1, kind: input, shape index: {}]
  %s2 = inlined_call_operand.vmem [shape: f32[1,32], index: 2, kind: input, shape index: {}]
  %s3 = inlined_call_operand.vmem [shape: f32[32,10], index: 3, kind: input, shape index: {}]
  %s4 = inlined_call_operand.vmem [shape: f32[1,10], index: 4, kind: input, shape index: {}]
  %s5 = inlined_call_operand.hbm [shape: f32[2,10], index: 5, kind: output, shape index: {}]
  %s6 = sld [smem:[#allocation0]]
  $region30: #{deform_transformer_forward.13} parent=0
    _
  %s8 = ssub.s32 1, %s6
  %s9 = scalar_select 0, %s8, %s6
  $region1: #{deform_transformer_forward.13} parent=0
    #allocation2 [shape = 'u8[1024]{0}', space=vmem, size = 0x400, scoped, tag = 'output window, operand 0, single buffered']
    #allocation3 [shape = 's32[1]{0}', space=sflag, size = 0x4, scoped, tag = 'scoped memory for deform_transformer_forward.13']
    %10 = vsyncpa [#allocation3], 0
    // Predicated region
    $region2: #{deform_transformer_forward.13} parent=1 // pred_check
      _
    $region3: #{deform_transformer_forward.13} parent=1 // pred_check_branch
      %12 = sbr.rel (0) target = $region5
    $region4: #{deform_transformer_forward.13} parent=1 // pred_region
      _
    $region5: #{deform_transformer_forward.13} parent=1 // pred_fallthru
      _
    // Predicated region
    $region6: #{deform_transformer_forward.13} parent=1 // pred_check
      _
    $region7: #{deform_transformer_forward.13} parent=1 // pred_check_branch
      %14 = sbr.rel (0) target = $region9
    $region8: #{deform_transformer_forward.13} parent=1 // pred_region
      _
    $region9: #{deform_transformer_forward.13} parent=1 // pred_fallthru
      _
    // Predicated region
    $region10: #{deform_transformer_forward.13} parent=1 // pred_check
      _
    $region11: #{deform_transformer_forward.13} parent=1 // pred_check_branch
      %16 = sbr.rel (0) target = $region13
    $region12: #{deform_transformer_forward.13} parent=1 // pred_region
      _
    $region13: #{deform_transformer_forward.13} parent=1 // pred_fallthru
      _
    // Predicated region
    $region14: #{deform_transformer_forward.13} parent=1 // pred_check
      _
    $region15: #{deform_transformer_forward.13} parent=1 // pred_check_branch
      %18 = sbr.rel (0) target = $region17
    $region16: #{deform_transformer_forward.13} parent=1 // pred_region
      _
    $region17: #{deform_transformer_forward.13} parent=1 // pred_fallthru
      _
    // Predicated region
    $region18: #{deform_transformer_forward.13} parent=1 // pred_check
      _
    $region19: #{deform_transformer_forward.13} parent=1 // pred_check_branch
      %20 = sbr.rel (0) target = $region21
    $region20: #{deform_transformer_forward.13} parent=1 // pred_region
      _
    $region21: #{deform_transformer_forward.13} parent=1 // pred_fallthru
      _
    %v21 = vld [vmem:[%s0] sm:$0xff]
    %v22 = vld [vmem:[%s0 + $0x8] sm:$0xff]
    %v23 = vld [vmem:[%s0 + $0x10] sm:$0xff]
    %v24 = vld [vmem:[%s0 + $0x18] sm:$0xff]
    %vm25 = vcmask 261120
    %v26 = vsel %vm25, %v21, 0.0
    %27 = vadd.xlane.f32.xlu0 %v26
    %v28 = vpop.xlane.xlu0 %27
    %v29 = vsel %vm25, %v22, 0.0
    %30 = vadd.xlane.f32.xlu0 %v29
    %v31 = vpop.xlane.xlu0 %30
    %v32 = vsel %vm25, %v23, 0.0
    %33 = vadd.xlane.f32.xlu0 %v32
    %v34 = vpop.xlane.xlu0 %33
    %v35 = vsel %vm25, %v24, 0.0
    %36 = vadd.xlane.f32.xlu0 %v35
    %v37 = vpop.xlane.xlu0 %36
    %v38 = vrcp.pop 32.0
    %v39 = vmul.f32 %v28, %v38
    %v40 = vmul.f32 %v31, %v38
    %v41 = vmul.f32 %v34, %v38
    %v42 = vmul.f32 %v37, %v38
    %v43 = vsub.f32 %v21, %v39
    %v44 = vsub.f32 %v22, %v40
    %v45 = vsub.f32 %v23, %v41
    %v46 = vsub.f32 %v24, %v42
    %v47 = vmul.f32 %v43, %v43
    %v48 = vmul.f32 %v44, %v44
    %v49 = vmul.f32 %v45, %v45
    %v50 = vmul.f32 %v46, %v46
    %v51 = vsel %vm25, %v47, 0.0
    %52 = vadd.xlane.f32.xlu0 %v51
    %v53 = vpop.xlane.xlu0 %52
    %v54 = vsel %vm25, %v48, 0.0
    %55 = vadd.xlane.f32.xlu0 %v54
    %v56 = vpop.xlane.xlu0 %55
    %v57 = vsel %vm25, %v49, 0.0
    %58 = vadd.xlane.f32.xlu0 %v57
    %v59 = vpop.xlane.xlu0 %58
    %v60 = vsel %vm25, %v50, 0.0
    %61 = vadd.xlane.f32.xlu0 %v60
    %v62 = vpop.xlane.xlu0 %61
    %v63 = vmul.f32 %v53, %v38
    %v64 = vmul.f32 %v56, %v38
    %v65 = vmul.f32 %v59, %v38
    %v66 = vmul.f32 %v62, %v38
    %v67 = vadd.f32 %v63, 1e-05
    %v68 = vadd.f32 %v64, 1e-05
    %v69 = vadd.f32 %v65, 1e-05
    %v70 = vadd.f32 %v66, 1e-05
    %v71 = vrsqrt.pop %v67
    %v72 = vrsqrt.pop %v68
    %v73 = vrsqrt.pop %v69
    %v74 = vrsqrt.pop %v70
    %v75 = vmul.f32 %v43, %v71
    %v76 = vmul.f32 %v44, %v72
    %v77 = vmul.f32 %v45, %v73
    %v78 = vmul.f32 %v46, %v74
    %v79 = vld [vmem:[%s1] sm:$0x1]
    %v81 = vlaneseq
    %v82 = vshrl.u32 %v81, 7
    %v83 = vsub.s32 0, %v82
    %v84 = vrot.slane %v79, %v83
    %v86 = vmul.f32 %v75, %v84
    %v87 = vmul.f32 %v76, %v84
    %v88 = vmul.f32 %v77, %v84
    %v89 = vmul.f32 %v78, %v84
    %v90 = vld [vmem:[%s2] sm:$0x1]
    %v92 = vlaneseq
    %v93 = vshrl.u32 %v92, 7
    %v94 = vsub.s32 0, %v93
    %v95 = vrot.slane %v90, %v94
    %v97 = vadd.f32 %v86, %v95
    %v98 = vadd.f32 %v87, %v95
    %v99 = vadd.f32 %v88, %v95
    %v100 = vadd.f32 %v89, %v95
    %v101 = vsel %vm25, %v97, 0.0
    %v102 = vsel %vm25, %v98, 0.0
    %v103 = vadd.f32 %v101, %v102
    %v104 = vrot.slane %v103, 4
    %v105 = vadd.f32 %v103, %v104
    %v106 = vrot.slane %v105, 2
    %v107 = vadd.f32 %v105, %v106
    %v108 = vrot.slane %v107, 1
    %v109 = vadd.f32 %v107, %v108
    %v110 = vsel %vm25, %v99, 0.0
    %v111 = vsel %vm25, %v100, 0.0
    %v112 = vadd.f32 %v110, %v111
    %v113 = vrot.slane %v112, 4
    %v114 = vadd.f32 %v112, %v113
    %v115 = vrot.slane %v114, 2
    %v116 = vadd.f32 %v114, %v115
    %v117 = vrot.slane %v116, 1
    %v118 = vadd.f32 %v116, %v117
    %v119 = vrcp.pop 16.0
    %v120 = vmul.f32 %v109, %v119
    %v121 = vmul.f32 %v118, %v119
    %v122 = vld [vmem:[%s3] sm:$0xff]
    %v123 = vld [vmem:[%s3 + $0x8] sm:$0xff]
    %v124 = vld [vmem:[%s3 + $0x10] sm:$0xff]
    %v125 = vld [vmem:[%s3 + $0x18] sm:$0xff]
    %v126 = vld [vmem:[%s4] sm:$0x1]
    %v128 = vlaneseq
    %v129 = vshrl.u32 %v128, 7
    %v130 = vsub.s32 0, %v129
    %v131 = vrot.slane %v126, %v130
    %vm135 = vcmask 1041409
    %v136 = vsel %vm135, %v121, %v120
    %v137 = vsel %vm25, %v136, 0
    %139 = vmatprep.subr.mxu0 0.0
    %140 = vmatpush1.msra.mxu0 0.0
    %141 = vmatprep.subr.mxu0 0.0
    %142 = vmatpush1.msra.mxu0 0.0
    %143 = vmatprep.subr.mxu0 0.0
    %144 = vmatpush1.msra.mxu0 0.0
    %145 = vmatprep.subr.mxu0 0.0
    %146 = vmatpush1.msra.mxu0 0.0
    %147 = vmatprep.subr.mxu0 0.0
    %148 = vmatpush1.msra.mxu0 0.0
    %149 = vmatprep.subr.mxu0 0.0
    %150 = vmatpush1.msra.mxu0 0.0
    %151 = vmatprep.subr.mxu0 0.0
    %152 = vmatpush1.msra.mxu0 0.0
    %153 = vmatprep.subr.mxu0 0.0
    %154 = vmatpush1.msra.mxu0 0.0
    %155 = vmatprep.subr.mxu0 0.0
    %156 = vmatpush1.msra.mxu0 0.0
    %157 = vmatprep.subr.mxu0 0.0
    %158 = vmatpush1.msra.mxu0 0.0
    %159 = vmatprep.subr.mxu0 0.0
    %160 = vmatpush1.msra.mxu0 0.0
    %161 = vmatprep.subr.mxu0 0.0
    %162 = vmatpush1.msra.mxu0 0.0
    %163 = vmatprep.subr.mxu0 0.0
    %164 = vmatpush1.msra.mxu0 %v125
    %165 = vmatprep.subr.mxu0 0.0
    %166 = vmatpush1.msra.mxu0 %v124
    %167 = vmatprep.subr.mxu0 0.0
    %168 = vmatpush1.msra.mxu0 %v123
    %169 = vmatprep.subr.mxu0 0.0
    %170 = vmatpush1.msra.mxu0 %v122
    %171 = vmatprep.subr.mxu0 0.0
    %172 = vmatpush2.msra.mxu0 0.0
    %173 = vmatprep.subr.mxu0 0.0
    %174 = vmatpush2.msra.mxu0 0.0
    %175 = vmatprep.subr.mxu0 0.0
    %176 = vmatpush2.msra.mxu0 0.0
    %177 = vmatprep.subr.mxu0 0.0
    %178 = vmatpush2.msra.mxu0 0.0
    %179 = vmatprep.subr.mxu0 0.0
    %180 = vmatpush2.msra.mxu0 0.0
    %181 = vmatprep.subr.mxu0 0.0
    %182 = vmatpush2.msra.mxu0 0.0
    %183 = vmatprep.subr.mxu0 0.0
    %184 = vmatpush2.msra.mxu0 0.0
    %185 = vmatprep.subr.mxu0 0.0
    %186 = vmatpush2.msra.mxu0 0.0
    %187 = vmatprep.subr.mxu0 0.0
    %188 = vmatpush2.msra.mxu0 0.0
    %189 = vmatprep.subr.mxu0 0.0
    %190 = vmatpush2.msra.mxu0 0.0
    %191 = vmatprep.subr.mxu0 0.0
    %192 = vmatpush2.msra.mxu0 0.0
    %193 = vmatprep.subr.mxu0 0.0
    %194 = vmatpush2.msra.mxu0 0.0
    %195 = vmatprep.subr.mxu0 0.0
    %196 = vmatpush2.msra.mxu0 0.0
    %197 = vmatprep.subr.mxu0 0.0
    %198 = vmatpush2.msra.mxu0 0.0
    %199 = vmatprep.subr.mxu0 0.0
    %200 = vmatpush2.msra.mxu0 0.0
    %201 = vmatprep.subr.mxu0 0.0
    %202 = vmatpush2.msra.mxu0 0.0
    %203 = vmatprep.mubr.f32.mxu0 0.0
    %204 = vmatmul.mubr.f32.gmra.mxu0 %v137
    %v205 = vpop.f32.mrf.mxu0
    %v206 = vadd.f32 %v131, %v205
    %v207 = vpop.f32.mrf.mxu0
    %208 = vdwg.mxu0
    %vm209 = vcmask 74752
    %210 = vst.msk [vmem:[#allocation2] sm:$0x3] %vm209, %v206
    // Predicated region
    $region22: #{deform_transformer_forward.13} parent=1 // pred_check
      _
    $region23: #{deform_transformer_forward.13} parent=1 // pred_check_branch
      %212 = sbr.rel (0) target = $region25
    $region24: #{deform_transformer_forward.13} parent=1 // pred_region
      %s214 = ssub.s32 32, 32
      %215 = vsyncadd [#allocation3], %s214
      %s217 = sshll.u32 [#allocation2], 4
      %s218 = int_to_ptr.vmem [resolvable:$true] %s217
      %220 = dma.vmem_to_hbm [thread:$0]  %s218, 32, %s5, [#allocation3]
    $region25: #{deform_transformer_forward.13} parent=1 // pred_fallthru
      _
    // Predicated region
    $region26: #{deform_transformer_forward.13} parent=1 // pred_check
      _
    $region27: #{deform_transformer_forward.13} parent=1 // pred_check_branch
      %222 = sbr.rel (0) target = $region29
    $region28: #{deform_transformer_forward.13} parent=1 // pred_region
      %223 = dma.done [#allocation3], 32
    $region29: #{deform_transformer_forward.13} parent=1 // pred_fallthru
      _
    %224 = vsyncpa [#allocation3], 1

// kernel: deform_transformer_forward.10
$region0: #{deform_transformer_forward.10}
  #allocation0 [shape = 'u32[]', space=smem, size = 0x4, offset = 0x4, fixed_abs, tag = 'smem constant byte address 0x4 - core index']
  #allocation1 [shape = 'u32[144,128]{1,0:T(1,128)}', space=vmem, size = 0x12000, scoped, tag = 'internal scratch']
  %s0 = inlined_call_operand.vmem [shape: f32[2,4,16,16], index: 0, kind: input, shape index: {}]
  %s1 = inlined_call_operand.vmem [shape: f32[2,4,16,16], index: 1, kind: input, shape index: {}]
  %s2 = inlined_call_operand.vmem [shape: f32[1,16], index: 2, kind: input, shape index: {}]
  %s3 = inlined_call_operand.vmem [shape: f32[1,16], index: 3, kind: input, shape index: {}]
  %s4 = inlined_call_operand.vmem [shape: bf16[16,48], index: 4, kind: input, shape index: {}]
  %s5 = inlined_call_operand.vmem [shape: f32[1,48], index: 5, kind: input, shape index: {}]
  %s6 = inlined_call_operand.vmem [shape: bf16[16,16], index: 6, kind: input, shape index: {}]
  %s7 = inlined_call_operand.vmem [shape: f32[1,16], index: 7, kind: input, shape index: {}]
  %s8 = inlined_call_operand.vmem [shape: f32[1,16], index: 8, kind: input, shape index: {}]
  %s9 = inlined_call_operand.vmem [shape: f32[1,16], index: 9, kind: input, shape index: {}]
  %s10 = inlined_call_operand.vmem [shape: bf16[16,64], index: 10, kind: input, shape index: {}]
  %s11 = inlined_call_operand.vmem [shape: f32[1,64], index: 11, kind: input, shape index: {}]
  %s12 = inlined_call_operand.vmem [shape: bf16[64,16], index: 12, kind: input, shape index: {}]
  %s13 = inlined_call_operand.vmem [shape: f32[1,16], index: 13, kind: input, shape index: {}]
  %s14 = inlined_call_operand.vmem [shape: f32[2,4,16,16], index: 14, kind: output, shape index: {}]
  %s15 = sld [smem:[#allocation0]]
  $region66: #{deform_transformer_forward.10} parent=0
    _
  %s17 = ssub.s32 1, %s15
  %s18 = scalar_select 0, %s17, %s15
  // Predicated region
  $region2: #{deform_transformer_forward.10} parent=0 // pred_check
    _
  $region3: #{deform_transformer_forward.10} parent=0 // pred_check_branch
    %20 = sbr.rel (0) target = $region5
  $region4: #{deform_transformer_forward.10} parent=0 // pred_region
    _
  $region5: #{deform_transformer_forward.10} parent=0 // pred_fallthru
    _
  // Predicated region
  $region6: #{deform_transformer_forward.10} parent=0 // pred_check
    _
  $region7: #{deform_transformer_forward.10} parent=0 // pred_check_branch
    %22 = sbr.rel (0) target = $region9
  $region8: #{deform_transformer_forward.10} parent=0 // pred_region
    _
  $region9: #{deform_transformer_forward.10} parent=0 // pred_fallthru
    _
  // Predicated region
  $region10: #{deform_transformer_forward.10} parent=0 // pred_check
    _
  $region11: #{deform_transformer_forward.10} parent=0 // pred_check_branch
    %24 = sbr.rel (0) target = $region13
  $region12: #{deform_transformer_forward.10} parent=0 // pred_region
    _
  $region13: #{deform_transformer_forward.10} parent=0 // pred_fallthru
    _
  // Predicated region
  $region14: #{deform_transformer_forward.10} parent=0 // pred_check
    _
  $region15: #{deform_transformer_forward.10} parent=0 // pred_check_branch
    %26 = sbr.rel (0) target = $region17
  $region16: #{deform_transformer_forward.10} parent=0 // pred_region
    _
  $region17: #{deform_transformer_forward.10} parent=0 // pred_fallthru
    _
  // Predicated region
  $region18: #{deform_transformer_forward.10} parent=0 // pred_check
    _
  $region19: #{deform_transformer_forward.10} parent=0 // pred_check_branch
    %28 = sbr.rel (0) target = $region21
  $region20: #{deform_transformer_forward.10} parent=0 // pred_region
    _
  $region21: #{deform_transformer_forward.10} parent=0 // pred_fallthru
    _
  // Predicated region
  $region22: #{deform_transformer_forward.10} parent=0 // pred_check
    _
  $region23: #{deform_transformer_forward.10} parent=0 // pred_check_branch
    %30 = sbr.rel (0) target = $region25
  $region24: #{deform_transformer_forward.10} parent=0 // pred_region
    _
  $region25: #{deform_transformer_forward.10} parent=0 // pred_fallthru
    _
  // Predicated region
  $region26: #{deform_transformer_forward.10} parent=0 // pred_check
    _
  $region27: #{deform_transformer_forward.10} parent=0 // pred_check_branch
    %32 = sbr.rel (0) target = $region29
  $region28: #{deform_transformer_forward.10} parent=0 // pred_region
    _
  $region29: #{deform_transformer_forward.10} parent=0 // pred_fallthru
    _
  // Predicated region
  $region30: #{deform_transformer_forward.10} parent=0 // pred_check
    _
  $region31: #{deform_transformer_forward.10} parent=0 // pred_check_branch
    %34 = sbr.rel (0) target = $region33
  $region32: #{deform_transformer_forward.10} parent=0 // pred_region
    _
  $region33: #{deform_transformer_forward.10} parent=0 // pred_fallthru
    _
  // Predicated region
  $region34: #{deform_transformer_forward.10} parent=0 // pred_check
    _
  $region35: #{deform_transformer_forward.10} parent=0 // pred_check_branch
    %36 = sbr.rel (0) target = $region37
  $region36: #{deform_transformer_forward.10} parent=0 // pred_region
    _
  $region37: #{deform_transformer_forward.10} parent=0 // pred_fallthru
    _
  // Predicated region
  $region38: #{deform_transformer_forward.10} parent=0 // pred_check
    _
  $region39: #{deform_transformer_forward.10} parent=0 // pred_check_branch
    %38 = sbr.rel (0) target = $region41
  $region40: #{deform_transformer_forward.10} parent=0 // pred_region
    _
  $region41: #{deform_transformer_forward.10} parent=0 // pred_fallthru
    _
  // Predicated region
  $region42: #{deform_transformer_forward.10} parent=0 // pred_check
    _
  $region43: #{deform_transformer_forward.10} parent=0 // pred_check_branch
    %40 = sbr.rel (0) target = $region45
  $region44: #{deform_transformer_forward.10} parent=0 // pred_region
    _
  $region45: #{deform_transformer_forward.10} parent=0 // pred_fallthru
    _
  // Predicated region
  $region46: #{deform_transformer_forward.10} parent=0 // pred_check
    _
  $region47: #{deform_transformer_forward.10} parent=0 // pred_check_branch
    %42 = sbr.rel (0) target = $region49
  $region48: #{deform_transformer_forward.10} parent=0 // pred_region
    _
  $region49: #{deform_transformer_forward.10} parent=0 // pred_fallthru
    _
  // Predicated region
  $region50: #{deform_transformer_forward.10} parent=0 // pred_check
    _
  $region51: #{deform_transformer_forward.10} parent=0 // pred_check_branch
    %44 = sbr.rel (0) target = $region53
  $region52: #{deform_transformer_forward.10} parent=0 // pred_region
    _
  $region53: #{deform_transformer_forward.10} parent=0 // pred_fallthru
    _
  // Predicated region
  $region54: #{deform_transformer_forward.10} parent=0 // pred_check
    _
  $region55: #{deform_transformer_forward.10} parent=0 // pred_check_branch
    %46 = sbr.rel (0) target = $region57
  $region56: #{deform_transformer_forward.10} parent=0 // pred_region
    _
  $region57: #{deform_transformer_forward.10} parent=0 // pred_fallthru
    _
  %v48 = vld [vmem:[%s0] sm:$0xff]
  %v49 = vld [vmem:[%s0 + $0x8] sm:$0xff]
  %v50 = vld [vmem:[%s0 + $0x10] sm:$0xff]
  %v51 = vld [vmem:[%s0 + $0x18] sm:$0xff]
  %v52 = vld [vmem:[%s0 + $0x20] sm:$0xff]
  %v53 = vld [vmem:[%s0 + $0x28] sm:$0xff]
  %v54 = vld [vmem:[%s0 + $0x30] sm:$0xff]
  %v55 = vld [vmem:[%s0 + $0x38] sm:$0xff]
  %v56 = vld [vmem:[%s0 + $0x40] sm:$0xff]
  %v57 = vld [vmem:[%s0 + $0x48] sm:$0xff]
  %v58 = vld [vmem:[%s0 + $0x50] sm:$0xff]
  %v59 = vld [vmem:[%s0 + $0x58] sm:$0xff]
  %v60 = vld [vmem:[%s0 + $0x60] sm:$0xff]
  %v61 = vld [vmem:[%s0 + $0x68] sm:$0xff]
  %v62 = vld [vmem:[%s0 + $0x70] sm:$0xff]
  %v63 = vld [vmem:[%s0 + $0x78] sm:$0xff]
  %vm64 = vcmask 130048
  %v65 = vsel %vm64, %v48, 0.0
  %66 = vadd.xlane.f32.xlu0 %v65
  %v67 = vpop.xlane.xlu0 %66
  %v68 = vsel %vm64, %v49, 0.0
  %69 = vadd.xlane.f32.xlu0 %v68
  %v70 = vpop.xlane.xlu0 %69
  %v71 = vsel %vm64, %v50, 0.0
  %72 = vadd.xlane.f32.xlu0 %v71
  %v73 = vpop.xlane.xlu0 %72
  %v74 = vsel %vm64, %v51, 0.0
  %75 = vadd.xlane.f32.xlu0 %v74
  %v76 = vpop.xlane.xlu0 %75
  %v77 = vsel %vm64, %v52, 0.0
  %78 = vadd.xlane.f32.xlu0 %v77
  %v79 = vpop.xlane.xlu0 %78
  %v80 = vsel %vm64, %v53, 0.0
  %81 = vadd.xlane.f32.xlu0 %v80
  %v82 = vpop.xlane.xlu0 %81
  %v83 = vsel %vm64, %v54, 0.0
  %84 = vadd.xlane.f32.xlu0 %v83
  %v85 = vpop.xlane.xlu0 %84
  %v86 = vsel %vm64, %v55, 0.0
  %87 = vadd.xlane.f32.xlu0 %v86
  %v88 = vpop.xlane.xlu0 %87
  %v89 = vsel %vm64, %v56, 0.0
  %90 = vadd.xlane.f32.xlu0 %v89
  %v91 = vpop.xlane.xlu0 %90
  %v92 = vsel %vm64, %v57, 0.0
  %93 = vadd.xlane.f32.xlu0 %v92
  %v94 = vpop.xlane.xlu0 %93
  %v95 = vsel %vm64, %v58, 0.0
  %96 = vadd.xlane.f32.xlu0 %v95
  %v97 = vpop.xlane.xlu0 %96
  %v98 = vsel %vm64, %v59, 0.0
  %99 = vadd.xlane.f32.xlu0 %v98
  %v100 = vpop.xlane.xlu0 %99
  %v101 = vsel %vm64, %v60, 0.0
  %102 = vadd.xlane.f32.xlu0 %v101
  %v103 = vpop.xlane.xlu0 %102
  %v104 = vsel %vm64, %v61, 0.0
  %105 = vadd.xlane.f32.xlu0 %v104
  %v106 = vpop.xlane.xlu0 %105
  %v107 = vsel %vm64, %v62, 0.0
  %108 = vadd.xlane.f32.xlu0 %v107
  %v109 = vpop.xlane.xlu0 %108
  %v110 = vsel %vm64, %v63, 0.0
  %111 = vadd.xlane.f32.xlu0 %v110
  %v112 = vpop.xlane.xlu0 %111
  %v113 = vrcp.pop 16.0
  %v114 = vmul.f32 %v67, %v113
  %v115 = vmul.f32 %v70, %v113
  %v116 = vmul.f32 %v73, %v113
  %v117 = vmul.f32 %v76, %v113
  %v118 = vmul.f32 %v79, %v113
  %v119 = vmul.f32 %v82, %v113
  %v120 = vmul.f32 %v85, %v113
  %v121 = vmul.f32 %v88, %v113
  %v122 = vmul.f32 %v91, %v113
  %v123 = vmul.f32 %v94, %v113
  %v124 = vmul.f32 %v97, %v113
  %v125 = vmul.f32 %v100, %v113
  %v126 = vmul.f32 %v103, %v113
  %v127 = vmul.f32 %v106, %v113
  %v128 = vmul.f32 %v109, %v113
  %v129 = vmul.f32 %v112, %v113
  %v130 = vsub.f32 %v48, %v114
  %v131 = vsub.f32 %v49, %v115
  %v132 = vsub.f32 %v50, %v116
  %v133 = vsub.f32 %v51, %v117
  %v134 = vsub.f32 %v52, %v118
  %v135 = vsub.f32 %v53, %v119
  %v136 = vsub.f32 %v54, %v120
  %v137 = vsub.f32 %v55, %v121
  %v138 = vsub.f32 %v56, %v122
  %v139 = vsub.f32 %v57, %v123
  %v140 = vsub.f32 %v58, %v124
  %v141 = vsub.f32 %v59, %v125
  %v142 = vsub.f32 %v60, %v126
  %v143 = vsub.f32 %v61, %v127
  %v144 = vsub.f32 %v62, %v128
  %v145 = vsub.f32 %v63, %v129
  %v146 = vmul.f32 %v130, %v130
  %v147 = vmul.f32 %v131, %v131
  %v148 = vmul.f32 %v132, %v132
  %v149 = vmul.f32 %v133, %v133
  %v150 = vmul.f32 %v134, %v134
  %v151 = vmul.f32 %v135, %v135
  %v152 = vmul.f32 %v136, %v136
  %v153 = vmul.f32 %v137, %v137
  %v154 = vmul.f32 %v138, %v138
  %v155 = vmul.f32 %v139, %v139
  %v156 = vmul.f32 %v140, %v140
  %v157 = vmul.f32 %v141, %v141
  %v158 = vmul.f32 %v142, %v142
  %v159 = vmul.f32 %v143, %v143
  %v160 = vmul.f32 %v144, %v144
  %v161 = vmul.f32 %v145, %v145
  %v162 = vsel %vm64, %v146, 0.0
  %163 = vadd.xlane.f32.xlu0 %v162
  %v164 = vpop.xlane.xlu0 %163
  %v165 = vsel %vm64, %v147, 0.0
  %166 = vadd.xlane.f32.xlu0 %v165
  %v167 = vpop.xlane.xlu0 %166
  %v168 = vsel %vm64, %v148, 0.0
  %169 = vadd.xlane.f32.xlu0 %v168
  %v170 = vpop.xlane.xlu0 %169
  %v171 = vsel %vm64, %v149, 0.0
  %172 = vadd.xlane.f32.xlu0 %v171
  %v173 = vpop.xlane.xlu0 %172
  %v174 = vsel %vm64, %v150, 0.0
  %175 = vadd.xlane.f32.xlu0 %v174
  %v176 = vpop.xlane.xlu0 %175
  %v177 = vsel %vm64, %v151, 0.0
  %178 = vadd.xlane.f32.xlu0 %v177
  %v179 = vpop.xlane.xlu0 %178
  %v180 = vsel %vm64, %v152, 0.0
  %181 = vadd.xlane.f32.xlu0 %v180
  %v182 = vpop.xlane.xlu0 %181
  %v183 = vsel %vm64, %v153, 0.0
  %184 = vadd.xlane.f32.xlu0 %v183
  %v185 = vpop.xlane.xlu0 %184
  %v186 = vsel %vm64, %v154, 0.0
  %187 = vadd.xlane.f32.xlu0 %v186
  %v188 = vpop.xlane.xlu0 %187
  %v189 = vsel %vm64, %v155, 0.0
  %190 = vadd.xlane.f32.xlu0 %v189
  %v191 = vpop.xlane.xlu0 %190
  %v192 = vsel %vm64, %v156, 0.0
  %193 = vadd.xlane.f32.xlu0 %v192
  %v194 = vpop.xlane.xlu0 %193
  %v195 = vsel %vm64, %v157, 0.0
  %196 = vadd.xlane.f32.xlu0 %v195
  %v197 = vpop.xlane.xlu0 %196
  %v198 = vsel %vm64, %v158, 0.0
  %199 = vadd.xlane.f32.xlu0 %v198
  %v200 = vpop.xlane.xlu0 %199
  %v201 = vsel %vm64, %v159, 0.0
  %202 = vadd.xlane.f32.xlu0 %v201
  %v203 = vpop.xlane.xlu0 %202
  %v204 = vsel %vm64, %v160, 0.0
  %205 = vadd.xlane.f32.xlu0 %v204
  %v206 = vpop.xlane.xlu0 %205
  %v207 = vsel %vm64, %v161, 0.0
  %208 = vadd.xlane.f32.xlu0 %v207
  %v209 = vpop.xlane.xlu0 %208
  %v210 = vmul.f32 %v164, %v113
  %v211 = vmul.f32 %v167, %v113
  %v212 = vmul.f32 %v170, %v113
  %v213 = vmul.f32 %v173, %v113
  %v214 = vmul.f32 %v176, %v113
  %v215 = vmul.f32 %v179, %v113
  %v216 = vmul.f32 %v182, %v113
  %v217 = vmul.f32 %v185, %v113
  %v218 = vmul.f32 %v188, %v113
  %v219 = vmul.f32 %v191, %v113
  %v220 = vmul.f32 %v194, %v113
  %v221 = vmul.f32 %v197, %v113
  %v222 = vmul.f32 %v200, %v113
  %v223 = vmul.f32 %v203, %v113
  %v224 = vmul.f32 %v206, %v113
  %v225 = vmul.f32 %v209, %v113
  %v226 = vadd.f32 %v210, 1e-05
  %v227 = vadd.f32 %v211, 1e-05
  %v228 = vadd.f32 %v212, 1e-05
  %v229 = vadd.f32 %v213, 1e-05
  %v230 = vadd.f32 %v214, 1e-05
  %v231 = vadd.f32 %v215, 1e-05
  %v232 = vadd.f32 %v216, 1e-05
  %v233 = vadd.f32 %v217, 1e-05
  %v234 = vadd.f32 %v218, 1e-05
  %v235 = vadd.f32 %v219, 1e-05
  %v236 = vadd.f32 %v220, 1e-05
  %v237 = vadd.f32 %v221, 1e-05
  %v238 = vadd.f32 %v222, 1e-05
  %v239 = vadd.f32 %v223, 1e-05
  %v240 = vadd.f32 %v224, 1e-05
  %v241 = vadd.f32 %v225, 1e-05
  %v242 = vrsqrt.pop %v226
  %v243 = vrsqrt.pop %v227
  %v244 = vrsqrt.pop %v228
  %v245 = vrsqrt.pop %v229
  %v246 = vrsqrt.pop %v230
  %v247 = vrsqrt.pop %v231
  %v248 = vrsqrt.pop %v232
  %v249 = vrsqrt.pop %v233
  %v250 = vrsqrt.pop %v234
  %v251 = vrsqrt.pop %v235
  %v252 = vrsqrt.pop %v236
  %v253 = vrsqrt.pop %v237
  %v254 = vrsqrt.pop %v238
  %v255 = vrsqrt.pop %v239
  %v256 = vrsqrt.pop %v240
  %v257 = vrsqrt.pop %v241
  %v258 = vmul.f32 %v130, %v242
  %v259 = vmul.f32 %v131, %v243
  %v260 = vmul.f32 %v132, %v244
  %v261 = vmul.f32 %v133, %v245
  %v262 = vmul.f32 %v134, %v246
  %v263 = vmul.f32 %v135, %v247
  %v264 = vmul.f32 %v136, %v248
  %v265 = vmul.f32 %v137, %v249
  %v266 = vmul.f32 %v138, %v250
  %v267 = vmul.f32 %v139, %v251
  %v268 = vmul.f32 %v140, %v252
  %v269 = vmul.f32 %v141, %v253
  %v270 = vmul.f32 %v142, %v254
  %v271 = vmul.f32 %v143, %v255
  %v272 = vmul.f32 %v144, %v256
  %v273 = vmul.f32 %v145, %v257
  %v274 = vld [vmem:[%s2] sm:$0x1]
  %v276 = vlaneseq
  %v277 = vshrl.u32 %v276, 7
  %v278 = vsub.s32 0, %v277
  %v279 = vrot.slane %v274, %v278
  %v281 = vmul.f32 %v258, %v279
  %v282 = vmul.f32 %v259, %v279
  %v283 = vmul.f32 %v260, %v279
  %v284 = vmul.f32 %v261, %v279
  %v285 = vmul.f32 %v262, %v279
  %v286 = vmul.f32 %v263, %v279
  %v287 = vmul.f32 %v264, %v279
  %v288 = vmul.f32 %v265, %v279
  %v289 = vmul.f32 %v266, %v279
  %v290 = vmul.f32 %v267, %v279
  %v291 = vmul.f32 %v268, %v279
  %v292 = vmul.f32 %v269, %v279
  %v293 = vmul.f32 %v270, %v279
  %v294 = vmul.f32 %v271, %v279
  %v295 = vmul.f32 %v272, %v279
  %v296 = vmul.f32 %v273, %v279
  %v297 = vld [vmem:[%s3] sm:$0x1]
  %v299 = vlaneseq
  %v300 = vshrl.u32 %v299, 7
  %v301 = vsub.s32 0, %v300
  %v302 = vrot.slane %v297, %v301
  %v304 = vadd.f32 %v281, %v302
  %v305 = vadd.f32 %v282, %v302
  %v306 = vadd.f32 %v283, %v302
  %v307 = vadd.f32 %v284, %v302
  %v308 = vadd.f32 %v285, %v302
  %v309 = vadd.f32 %v286, %v302
  %v310 = vadd.f32 %v287, %v302
  %v311 = vadd.f32 %v288, %v302
  %v312 = vadd.f32 %v289, %v302
  %v313 = vadd.f32 %v290, %v302
  %v314 = vadd.f32 %v291, %v302
  %v315 = vadd.f32 %v292, %v302
  %v316 = vadd.f32 %v293, %v302
  %v317 = vadd.f32 %v294, %v302
  %v318 = vadd.f32 %v295, %v302
  %v319 = vadd.f32 %v296, %v302
  %v320 = vpack.c.bf16 %v305, %v304
  %v321 = vpack.c.bf16 %v307, %v306
  %v322 = vpack.c.bf16 %v309, %v308
  %v323 = vpack.c.bf16 %v311, %v310
  %v324 = vpack.c.bf16 %v313, %v312
  %v325 = vpack.c.bf16 %v315, %v314
  %v326 = vpack.c.bf16 %v317, %v316
  %v327 = vpack.c.bf16 %v319, %v318
  %v328 = vld [vmem:[%s4] sm:$0xf]
  %v329 = vld [vmem:[%s4 + $0x4] sm:$0xf]
  %v330 = vld [vmem:[%s5] sm:$0x1]
  %v332 = vlaneseq
  %v333 = vshrl.u32 %v332, 7
  %v334 = vsub.s32 0, %v333
  %v335 = vrot.slane %v330, %v334
  %v339 = vunpack.c.l.b16 %v328
  %v340 = vunpack.c.l.b16 %v329
  %v341 = vpack.c.b16 %v340, %v339
  %v344 = vsel %vm64, %v320, 0
  %v347 = vsel %vm64, %v321, 0
  %v350 = vsel %vm64, %v322, 0
  %v353 = vsel %vm64, %v323, 0
  %v356 = vsel %vm64, %v324, 0
  %v359 = vsel %vm64, %v325, 0
  %v362 = vsel %vm64, %v326, 0
  %v365 = vsel %vm64, %v327, 0
  %367 = vmatprep.subr.bf16.mxu0 0
  %368 = vmatpush1.bf16.msra.mxu0 0
  %369 = vmatprep.subr.bf16.mxu0 0
  %370 = vmatpush1.bf16.msra.mxu0 0
  %371 = vmatprep.subr.bf16.mxu0 0
  %372 = vmatpush1.bf16.msra.mxu0 0
  %373 = vmatprep.subr.bf16.mxu0 0
  %374 = vmatpush1.bf16.msra.mxu0 0
  %375 = vmatprep.subr.bf16.mxu0 0
  %376 = vmatpush1.bf16.msra.mxu0 0
  %377 = vmatprep.subr.bf16.mxu0 0
  %378 = vmatpush1.bf16.msra.mxu0 0
  %379 = vmatprep.subr.bf16.mxu0 0
  %380 = vmatpush1.bf16.msra.mxu0 0
  %381 = vmatprep.subr.bf16.mxu0 0
  %382 = vmatpush1.bf16.msra.mxu0 %v341
  %383 = vmatprep.subr.bf16.mxu0 0
  %384 = vmatpush2.bf16.msra.mxu0 0
  %385 = vmatprep.subr.bf16.mxu0 0
  %386 = vmatpush2.bf16.msra.mxu0 0
  %387 = vmatprep.subr.bf16.mxu0 0
  %388 = vmatpush2.bf16.msra.mxu0 0
  %389 = vmatprep.subr.bf16.mxu0 0
  %390 = vmatpush2.bf16.msra.mxu0 0
  %391 = vmatprep.subr.bf16.mxu0 0
  %392 = vmatpush2.bf16.msra.mxu0 0
  %393 = vmatprep.subr.bf16.mxu0 0
  %394 = vmatpush2.bf16.msra.mxu0 0
  %395 = vmatprep.subr.bf16.mxu0 0
  %396 = vmatpush2.bf16.msra.mxu0 0
  %397 = vmatprep.subr.bf16.mxu0 0
  %398 = vmatpush2.bf16.msra.mxu0 0
  %399 = vmatprep.mubr.bf16.mxu0 0
  %400 = vmatmul.mubr.bf16.gmra.mxu0 %v344
  %v401 = vpop.f32.mrf.mxu0
  %v402 = vadd.f32 %v335, %v401
  %v403 = vpop.f32.mrf.mxu0
  %v404 = vpop.f32.mrf.mxu0
  %v405 = vadd.f32 %v335, %v404
  %v406 = vpop.f32.mrf.mxu0
  %407 = vmatprep.mubr.bf16.mxu0 0
  %408 = vmatmul.mubr.bf16.gmra.mxu0 %v347
  %v409 = vpop.f32.mrf.mxu0
  %v410 = vadd.f32 %v335, %v409
  %v411 = vpop.f32.mrf.mxu0
  %v412 = vpop.f32.mrf.mxu0
  %v413 = vadd.f32 %v335, %v412
  %v414 = vpop.f32.mrf.mxu0
  %415 = vmatprep.mubr.bf16.mxu0 0
  %416 = vmatmul.mubr.bf16.gmra.mxu0 %v350
  %v417 = vpop.f32.mrf.mxu0
  %v418 = vadd.f32 %v335, %v417
  %v419 = vpop.f32.mrf.mxu0
  %v420 = vpop.f32.mrf.mxu0
  %v421 = vadd.f32 %v335, %v420
  %v422 = vpop.f32.mrf.mxu0
  %423 = vmatprep.mubr.bf16.mxu0 0
  %424 = vmatmul.mubr.bf16.gmra.mxu0 %v353
  %v425 = vpop.f32.mrf.mxu0
  %v426 = vadd.f32 %v335, %v425
  %v427 = vpop.f32.mrf.mxu0
  %v428 = vpop.f32.mrf.mxu0
  %v429 = vadd.f32 %v335, %v428
  %v430 = vpop.f32.mrf.mxu0
  %431 = vmatprep.mubr.bf16.mxu0 0
  %432 = vmatmul.mubr.bf16.gmra.mxu0 %v356
  %v433 = vpop.f32.mrf.mxu0
  %v434 = vadd.f32 %v335, %v433
  %v435 = vpop.f32.mrf.mxu0
  %v436 = vpop.f32.mrf.mxu0
  %v437 = vadd.f32 %v335, %v436
  %v438 = vpop.f32.mrf.mxu0
  %439 = vmatprep.mubr.bf16.mxu0 0
  %440 = vmatmul.mubr.bf16.gmra.mxu0 %v359
  %v441 = vpop.f32.mrf.mxu0
  %v442 = vadd.f32 %v335, %v441
  %v443 = vpop.f32.mrf.mxu0
  %v444 = vpop.f32.mrf.mxu0
  %v445 = vadd.f32 %v335, %v444
  %v446 = vpop.f32.mrf.mxu0
  %447 = vmatprep.mubr.bf16.mxu0 0
  %448 = vmatmul.mubr.bf16.gmra.mxu0 %v362
  %v449 = vpop.f32.mrf.mxu0
  %v450 = vadd.f32 %v335, %v449
  %v451 = vpop.f32.mrf.mxu0
  %v452 = vpop.f32.mrf.mxu0
  %v453 = vadd.f32 %v335, %v452
  %v454 = vpop.f32.mrf.mxu0
  %455 = vmatprep.mubr.bf16.mxu0 0
  %456 = vmatmul.mubr.bf16.gmra.mxu0 %v365
  %v457 = vpop.f32.mrf.mxu0
  %v458 = vadd.f32 %v335, %v457
  %v459 = vpop.f32.mrf.mxu0
  %v460 = vpop.f32.mrf.mxu0
  %v461 = vadd.f32 %v335, %v460
  %v462 = vpop.f32.mrf.mxu0
  %463 = vdwg.mxu0
  %v464 = vmul.f32 %v402, 0.35355338
  %v465 = vmul.f32 %v405, 0.35355338
  %v466 = vmul.f32 %v410, 0.35355338
  %v467 = vmul.f32 %v413, 0.35355338
  %v468 = vmul.f32 %v418, 0.35355338
  %v469 = vmul.f32 %v421, 0.35355338
  %v470 = vmul.f32 %v426, 0.35355338
  %v471 = vmul.f32 %v429, 0.35355338
  %v472 = vmul.f32 %v434, 0.35355338
  %v473 = vmul.f32 %v437, 0.35355338
  %v474 = vmul.f32 %v442, 0.35355338
  %v475 = vmul.f32 %v445, 0.35355338
  %v476 = vmul.f32 %v450, 0.35355338
  %v477 = vmul.f32 %v453, 0.35355338
  %v478 = vmul.f32 %v458, 0.35355338
  %v479 = vmul.f32 %v461, 0.35355338
  %v480 = vpack.c.bf16 %v465, %v464
  %v481 = vpack.c.bf16 %v467, %v466
  %v482 = vpack.c.bf16 %v469, %v468
  %v483 = vpack.c.bf16 %v471, %v470
  %v484 = vpack.c.bf16 %v473, %v472
  %v485 = vpack.c.bf16 %v475, %v474
  %v486 = vpack.c.bf16 %v477, %v476
  %v487 = vpack.c.bf16 %v479, %v478
  %v488 = vpack.c.bf16 %v405, %v402
  %v489 = vpack.c.bf16 %v413, %v410
  %v490 = vpack.c.bf16 %v421, %v418
  %v491 = vpack.c.bf16 %v429, %v426
  %v492 = vpack.c.bf16 %v437, %v434
  %v493 = vpack.c.bf16 %v445, %v442
  %v494 = vpack.c.bf16 %v453, %v450
  %v495 = vpack.c.bf16 %v461, %v458
  %497 = vrot.lane.b32.xlu0 %v488, 112
  %v498 = vpop.permute.xlu0 %497
  %vm499 = vcmask 64512
  %v501 = vsel %vm499, %v480, 0
  %v504 = vsel %vm499, %v498, 0
  %506 = vmatprep.subr.bf16.mxu0 0
  %507 = vmatpush1.bf16.xpose.msra.mxu0 0
  %508 = vmatprep.subr.bf16.mxu0 0
  %509 = vmatpush1.bf16.xpose.msra.mxu0 0
  %510 = vmatprep.subr.bf16.mxu0 0
  %511 = vmatpush1.bf16.xpose.msra.mxu0 0
  %512 = vmatprep.subr.bf16.mxu0 0
  %513 = vmatpush1.bf16.xpose.msra.mxu0 0
  %514 = vmatprep.subr.bf16.mxu0 0
  %515 = vmatpush1.bf16.xpose.msra.mxu0 0
  %516 = vmatprep.subr.bf16.mxu0 0
  %517 = vmatpush1.bf16.xpose.msra.mxu0 0
  %518 = vmatprep.subr.bf16.mxu0 0
  %519 = vmatpush1.bf16.xpose.msra.mxu0 0
  %520 = vmatprep.subr.bf16.mxu0 0
  %521 = vmatpush1.bf16.xpose.msra.mxu0 %v504
  %522 = vmatprep.subr.bf16.mxu0 0
  %523 = vmatpush2.bf16.xpose.msra.mxu0 0
  %524 = vmatprep.subr.bf16.mxu0 0
  %525 = vmatpush2.bf16.xpose.msra.mxu0 0
  %526 = vmatprep.subr.bf16.mxu0 0
  %527 = vmatpush2.bf16.xpose.msra.mxu0 0
  %528 = vmatprep.subr.bf16.mxu0 0
  %529 = vmatpush2.bf16.xpose.msra.mxu0 0
  %530 = vmatprep.subr.bf16.mxu0 0
  %531 = vmatpush2.bf16.xpose.msra.mxu0 0
  %532 = vmatprep.subr.bf16.mxu0 0
  %533 = vmatpush2.bf16.xpose.msra.mxu0 0
  %534 = vmatprep.subr.bf16.mxu0 0
  %535 = vmatpush2.bf16.xpose.msra.mxu0 0
  %536 = vmatprep.subr.bf16.mxu0 0
  %537 = vmatpush2.bf16.xpose.msra.mxu0 0
  %538 = vmatprep.mubr.bf16.mxu0 0
  %539 = vmatmul.mubr.bf16.gmra.mxu0 %v501
  %v540 = vpop.f32.mrf.mxu0
  %v541 = vadd.f32 0.0, %v540
  %v542 = vpop.f32.mrf.mxu0
  %v543 = vpop.f32.mrf.mxu0
  %v544 = vadd.f32 0.0, %v543
  %v545 = vpop.f32.mrf.mxu0
  %546 = vdwg.mxu0
  %548 = vrot.lane.b32.xlu0 %v489, 112
  %v549 = vpop.permute.xlu0 %548
  %v551 = vsel %vm499, %v481, 0
  %v554 = vsel %vm499, %v549, 0
  %556 = vmatprep.subr.bf16.mxu0 0
  %557 = vmatpush1.bf16.xpose.msra.mxu0 0
  %558 = vmatprep.subr.bf16.mxu0 0
  %559 = vmatpush1.bf16.xpose.msra.mxu0 0
  %560 = vmatprep.subr.bf16.mxu0 0
  %561 = vmatpush1.bf16.xpose.msra.mxu0 0
  %562 = vmatprep.subr.bf16.mxu0 0
  %563 = vmatpush1.bf16.xpose.msra.mxu0 0
  %564 = vmatprep.subr.bf16.mxu0 0
  %565 = vmatpush1.bf16.xpose.msra.mxu0 0
  %566 = vmatprep.subr.bf16.mxu0 0
  %567 = vmatpush1.bf16.xpose.msra.mxu0 0
  %568 = vmatprep.subr.bf16.mxu0 0
  %569 = vmatpush1.bf16.xpose.msra.mxu0 0
  %570 = vmatprep.subr.bf16.mxu0 0
  %571 = vmatpush1.bf16.xpose.msra.mxu0 %v554
  %572 = vmatprep.subr.bf16.mxu0 0
  %573 = vmatpush2.bf16.xpose.msra.mxu0 0
  %574 = vmatprep.subr.bf16.mxu0 0
  %575 = vmatpush2.bf16.xpose.msra.mxu0 0
  %576 = vmatprep.subr.bf16.mxu0 0
  %577 = vmatpush2.bf16.xpose.msra.mxu0 0
  %578 = vmatprep.subr.bf16.mxu0 0
  %579 = vmatpush2.bf16.xpose.msra.mxu0 0
  %580 = vmatprep.subr.bf16.mxu0 0
  %581 = vmatpush2.bf16.xpose.msra.mxu0 0
  %582 = vmatprep.subr.bf16.mxu0 0
  %583 = vmatpush2.bf16.xpose.msra.mxu0 0
  %584 = vmatprep.subr.bf16.mxu0 0
  %585 = vmatpush2.bf16.xpose.msra.mxu0 0
  %586 = vmatprep.subr.bf16.mxu0 0
  %587 = vmatpush2.bf16.xpose.msra.mxu0 0
  %588 = vmatprep.mubr.bf16.mxu0 0
  %589 = vmatmul.mubr.bf16.gmra.mxu0 %v551
  %v590 = vpop.f32.mrf.mxu0
  %v591 = vadd.f32 0.0, %v590
  %v592 = vpop.f32.mrf.mxu0
  %v593 = vpop.f32.mrf.mxu0
  %v594 = vadd.f32 0.0, %v593
  %v595 = vpop.f32.mrf.mxu0
  %596 = vdwg.mxu0
  %598 = vrot.lane.b32.xlu0 %v490, 112
  %v599 = vpop.permute.xlu0 %598
  %v601 = vsel %vm499, %v482, 0
  %v604 = vsel %vm499, %v599, 0
  %606 = vmatprep.subr.bf16.mxu0 0
  %607 = vmatpush1.bf16.xpose.msra.mxu0 0
  %608 = vmatprep.subr.bf16.mxu0 0
  %609 = vmatpush1.bf16.xpose.msra.mxu0 0
  %610 = vmatprep.subr.bf16.mxu0 0
  %611 = vmatpush1.bf16.xpose.msra.mxu0 0
  %612 = vmatprep.subr.bf16.mxu0 0
  %613 = vmatpush1.bf16.xpose.msra.mxu0 0
  %614 = vmatprep.subr.bf16.mxu0 0
  %615 = vmatpush1.bf16.xpose.msra.mxu0 0
  %616 = vmatprep.subr.bf16.mxu0 0
  %617 = vmatpush1.bf16.xpose.msra.mxu0 0
  %618 = vmatprep.subr.bf16.mxu0 0
  %619 = vmatpush1.bf16.xpose.msra.mxu0 0
  %620 = vmatprep.subr.bf16.mxu0 0
  %621 = vmatpush1.bf16.xpose.msra.mxu0 %v604
  %622 = vmatprep.subr.bf16.mxu0 0
  %623 = vmatpush2.bf16.xpose.msra.mxu0 0
  %624 = vmatprep.subr.bf16.mxu0 0
  %625 = vmatpush2.bf16.xpose.msra.mxu0 0
  %626 = vmatprep.subr.bf16.mxu0 0
  %627 = vmatpush2.bf16.xpose.msra.mxu0 0
  %628 = vmatprep.subr.bf16.mxu0 0
  %629 = vmatpush2.bf16.xpose.msra.mxu0 0
  %630 = vmatprep.subr.bf16.mxu0 0
  %631 = vmatpush2.bf16.xpose.msra.mxu0 0
  %632 = vmatprep.subr.bf16.mxu0 0
  %633 = vmatpush2.bf16.xpose.msra.mxu0 0
  %634 = vmatprep.subr.bf16.mxu0 0
  %635 = vmatpush2.bf16.xpose.msra.mxu0 0
  %636 = vmatprep.subr.bf16.mxu0 0
  %637 = vmatpush2.bf16.xpose.msra.mxu0 0
  %638 = vmatprep.mubr.bf16.mxu0 0
  %639 = vmatmul.mubr.bf16.gmra.mxu0 %v601
  %v640 = vpop.f32.mrf.mxu0
  %v641 = vadd.f32 0.0, %v640
  %v642 = vpop.f32.mrf.mxu0
  %v643 = vpop.f32.mrf.mxu0
  %v644 = vadd.f32 0.0, %v643
  %v645 = vpop.f32.mrf.mxu0
  %646 = vdwg.mxu0
  %648 = vrot.lane.b32.xlu0 %v491, 112
  %v649 = vpop.permute.xlu0 %648
  %v651 = vsel %vm499, %v483, 0
  %v654 = vsel %vm499, %v649, 0
  %656 = vmatprep.subr.bf16.mxu0 0
  %657 = vmatpush1.bf16.xpose.msra.mxu0 0
  %658 = vmatprep.subr.bf16.mxu0 0
  %659 = vmatpush1.bf16.xpose.msra.mxu0 0
  %660 = vmatprep.subr.bf16.mxu0 0
  %661 = vmatpush1.bf16.xpose.msra.mxu0 0
  %662 = vmatprep.subr.bf16.mxu0 0
  %663 = vmatpush1.bf16.xpose.msra.mxu0 0
  %664 = vmatprep.subr.bf16.mxu0 0
  %665 = vmatpush1.bf16.xpose.msra.mxu0 0
  %666 = vmatprep.subr.bf16.mxu0 0
  %667 = vmatpush1.bf16.xpose.msra.mxu0 0
  %668 = vmatprep.subr.bf16.mxu0 0
  %669 = vmatpush1.bf16.xpose.msra.mxu0 0
  %670 = vmatprep.subr.bf16.mxu0 0
  %671 = vmatpush1.bf16.xpose.msra.mxu0 %v654
  %672 = vmatprep.subr.bf16.mxu0 0
  %673 = vmatpush2.bf16.xpose.msra.mxu0 0
  %674 = vmatprep.subr.bf16.mxu0 0
  %675 = vmatpush2.bf16.xpose.msra.mxu0 0
  %676 = vmatprep.subr.bf16.mxu0 0
  %677 = vmatpush2.bf16.xpose.msra.mxu0 0
  %678 = vmatprep.subr.bf16.mxu0 0
  %679 = vmatpush2.bf16.xpose.msra.mxu0 0
  %680 = vmatprep.subr.bf16.mxu0 0
  %681 = vmatpush2.bf16.xpose.msra.mxu0 0
  %682 = vmatprep.subr.bf16.mxu0 0
  %683 = vmatpush2.bf16.xpose.msra.mxu0 0
  %684 = vmatprep.subr.bf16.mxu0 0
  %685 = vmatpush2.bf16.xpose.msra.mxu0 0
  %686 = vmatprep.subr.bf16.mxu0 0
  %687 = vmatpush2.bf16.xpose.msra.mxu0 0
  %688 = vmatprep.mubr.bf16.mxu0 0
  %689 = vmatmul.mubr.bf16.gmra.mxu0 %v651
  %v690 = vpop.f32.mrf.mxu0
  %v691 = vadd.f32 0.0, %v690
  %v692 = vpop.f32.mrf.mxu0
  %v693 = vpop.f32.mrf.mxu0
  %v694 = vadd.f32 0.0, %v693
  %v695 = vpop.f32.mrf.mxu0
  %696 = vdwg.mxu0
  %698 = vrot.lane.b32.xlu0 %v492, 112
  %v699 = vpop.permute.xlu0 %698
  %v701 = vsel %vm499, %v484, 0
  %v704 = vsel %vm499, %v699, 0
  %706 = vmatprep.subr.bf16.mxu0 0
  %707 = vmatpush1.bf16.xpose.msra.mxu0 0
  %708 = vmatprep.subr.bf16.mxu0 0
  %709 = vmatpush1.bf16.xpose.msra.mxu0 0
  %710 = vmatprep.subr.bf16.mxu0 0
  %711 = vmatpush1.bf16.xpose.msra.mxu0 0
  %712 = vmatprep.subr.bf16.mxu0 0
  %713 = vmatpush1.bf16.xpose.msra.mxu0 0
  %714 = vmatprep.subr.bf16.mxu0 0
  %715 = vmatpush1.bf16.xpose.msra.mxu0 0
  %716 = vmatprep.subr.bf16.mxu0 0
  %717 = vmatpush1.bf16.xpose.msra.mxu0 0
  %718 = vmatprep.subr.bf16.mxu0 0
  %719 = vmatpush1.bf16.xpose.msra.mxu0 0
  %720 = vmatprep.subr.bf16.mxu0 0
  %721 = vmatpush1.bf16.xpose.msra.mxu0 %v704
  %722 = vmatprep.subr.bf16.mxu0 0
  %723 = vmatpush2.bf16.xpose.msra.mxu0 0
  %724 = vmatprep.subr.bf16.mxu0 0
  %725 = vmatpush2.bf16.xpose.msra.mxu0 0
  %726 = vmatprep.subr.bf16.mxu0 0
  %727 = vmatpush2.bf16.xpose.msra.mxu0 0
  %728 = vmatprep.subr.bf16.mxu0 0
  %729 = vmatpush2.bf16.xpose.msra.mxu0 0
  %730 = vmatprep.subr.bf16.mxu0 0
  %731 = vmatpush2.bf16.xpose.msra.mxu0 0
  %732 = vmatprep.subr.bf16.mxu0 0
  %733 = vmatpush2.bf16.xpose.msra.mxu0 0
  %734 = vmatprep.subr.bf16.mxu0 0
  %735 = vmatpush2.bf16.xpose.msra.mxu0 0
  %736 = vmatprep.subr.bf16.mxu0 0
  %737 = vmatpush2.bf16.xpose.msra.mxu0 0
  %738 = vmatprep.mubr.bf16.mxu0 0
  %739 = vmatmul.mubr.bf16.gmra.mxu0 %v701
  %v740 = vpop.f32.mrf.mxu0
  %v741 = vadd.f32 0.0, %v740
  %v742 = vpop.f32.mrf.mxu0
  %v743 = vpop.f32.mrf.mxu0
  %v744 = vadd.f32 0.0, %v743
  %v745 = vpop.f32.mrf.mxu0
  %746 = vdwg.mxu0
  %748 = vrot.lane.b32.xlu0 %v493, 112
  %v749 = vpop.permute.xlu0 %748
  %v751 = vsel %vm499, %v485, 0
  %v754 = vsel %vm499, %v749, 0
  %756 = vmatprep.subr.bf16.mxu0 0
  %757 = vmatpush1.bf16.xpose.msra.mxu0 0
  %758 = vmatprep.subr.bf16.mxu0 0
  %759 = vmatpush1.bf16.xpose.msra.mxu0 0
  %760 = vmatprep.subr.bf16.mxu0 0
  %761 = vmatpush1.bf16.xpose.msra.mxu0 0
  %762 = vmatprep.subr.bf16.mxu0 0
  %763 = vmatpush1.bf16.xpose.msra.mxu0 0
  %764 = vmatprep.subr.bf16.mxu0 0
  %765 = vmatpush1.bf16.xpose.msra.mxu0 0
  %766 = vmatprep.subr.bf16.mxu0 0
  %767 = vmatpush1.bf16.xpose.msra.mxu0 0
  %768 = vmatprep.subr.bf16.mxu0 0
  %769 = vmatpush1.bf16.xpose.msra.mxu0 0
  %770 = vmatprep.subr.bf16.mxu0 0
  %771 = vmatpush1.bf16.xpose.msra.mxu0 %v754
  %772 = vmatprep.subr.bf16.mxu0 0
  %773 = vmatpush2.bf16.xpose.msra.mxu0 0
  %774 = vmatprep.subr.bf16.mxu0 0
  %775 = vmatpush2.bf16.xpose.msra.mxu0 0
  %776 = vmatprep.subr.bf16.mxu0 0
  %777 = vmatpush2.bf16.xpose.msra.mxu0 0
  %778 = vmatprep.subr.bf16.mxu0 0
  %779 = vmatpush2.bf16.xpose.msra.mxu0 0
  %780 = vmatprep.subr.bf16.mxu0 0
  %781 = vmatpush2.bf16.xpose.msra.mxu0 0
  %782 = vmatprep.subr.bf16.mxu0 0
  %783 = vmatpush2.bf16.xpose.msra.mxu0 0
  %784 = vmatprep.subr.bf16.mxu0 0
  %785 = vmatpush2.bf16.xpose.msra.mxu0 0
  %786 = vmatprep.subr.bf16.mxu0 0
  %787 = vmatpush2.bf16.xpose.msra.mxu0 0
  %788 = vmatprep.mubr.bf16.mxu0 0
  %789 = vmatmul.mubr.bf16.gmra.mxu0 %v751
  %v790 = vpop.f32.mrf.mxu0
  %v791 = vadd.f32 0.0, %v790
  %v792 = vpop.f32.mrf.mxu0
  %v793 = vpop.f32.mrf.mxu0
  %v794 = vadd.f32 0.0, %v793
  %v795 = vpop.f32.mrf.mxu0
  %796 = vdwg.mxu0
  %798 = vrot.lane.b32.xlu0 %v494, 112
  %v799 = vpop.permute.xlu0 %798
  %v801 = vsel %vm499, %v486, 0
  %v804 = vsel %vm499, %v799, 0
  %806 = vmatprep.subr.bf16.mxu0 0
  %807 = vmatpush1.bf16.xpose.msra.mxu0 0
  %808 = vmatprep.subr.bf16.mxu0 0
  %809 = vmatpush1.bf16.xpose.msra.mxu0 0
  %810 = vmatprep.subr.bf16.mxu0 0
  %811 = vmatpush1.bf16.xpose.msra.mxu0 0
  %812 = vmatprep.subr.bf16.mxu0 0
  %813 = vmatpush1.bf16.xpose.msra.mxu0 0
  %814 = vmatprep.subr.bf16.mxu0 0
  %815 = vmatpush1.bf16.xpose.msra.mxu0 0
  %816 = vmatprep.subr.bf16.mxu0 0
  %817 = vmatpush1.bf16.xpose.msra.mxu0 0
  %818 = vmatprep.subr.bf16.mxu0 0
  %819 = vmatpush1.bf16.xpose.msra.mxu0 0
  %820 = vmatprep.subr.bf16.mxu0 0
  %821 = vmatpush1.bf16.xpose.msra.mxu0 %v804
  %822 = vmatprep.subr.bf16.mxu0 0
  %823 = vmatpush2.bf16.xpose.msra.mxu0 0
  %824 = vmatprep.subr.bf16.mxu0 0
  %825 = vmatpush2.bf16.xpose.msra.mxu0 0
  %826 = vmatprep.subr.bf16.mxu0 0
  %827 = vmatpush2.bf16.xpose.msra.mxu0 0
  %828 = vmatprep.subr.bf16.mxu0 0
  %829 = vmatpush2.bf16.xpose.msra.mxu0 0
  %830 = vmatprep.subr.bf16.mxu0 0
  %831 = vmatpush2.bf16.xpose.msra.mxu0 0
  %832 = vmatprep.subr.bf16.mxu0 0
  %833 = vmatpush2.bf16.xpose.msra.mxu0 0
  %834 = vmatprep.subr.bf16.mxu0 0
  %835 = vmatpush2.bf16.xpose.msra.mxu0 0
  %836 = vmatprep.subr.bf16.mxu0 0
  %837 = vmatpush2.bf16.xpose.msra.mxu0 0
  %838 = vmatprep.mubr.bf16.mxu0 0
  %839 = vmatmul.mubr.bf16.gmra.mxu0 %v801
  %v840 = vpop.f32.mrf.mxu0
  %v841 = vadd.f32 0.0, %v840
  %v842 = vpop.f32.mrf.mxu0
  %v843 = vpop.f32.mrf.mxu0
  %v844 = vadd.f32 0.0, %v843
  %v845 = vpop.f32.mrf.mxu0
  %846 = vdwg.mxu0
  %848 = vrot.lane.b32.xlu0 %v495, 112
  %v849 = vpop.permute.xlu0 %848
  %v851 = vsel %vm499, %v487, 0
  %v854 = vsel %vm499, %v849, 0
  %856 = vmatprep.subr.bf16.mxu0 0
  %857 = vmatpush1.bf16.xpose.msra.mxu0 0
  %858 = vmatprep.subr.bf16.mxu0 0
  %859 = vmatpush1.bf16.xpose.msra.mxu0 0
  %860 = vmatprep.subr.bf16.mxu0 0
  %861 = vmatpush1.bf16.xpose.msra.mxu0 0
  %862 = vmatprep.subr.bf16.mxu0 0
  %863 = vmatpush1.bf16.xpose.msra.mxu0 0
  %864 = vmatprep.subr.bf16.mxu0 0
  %865 = vmatpush1.bf16.xpose.msra.mxu0 0
  %866 = vmatprep.subr.bf16.mxu0 0
  %867 = vmatpush1.bf16.xpose.msra.mxu0 0
  %868 = vmatprep.subr.bf16.mxu0 0
  %869 = vmatpush1.bf16.xpose.msra.mxu0 0
  %870 = vmatprep.subr.bf16.mxu0 0
  %871 = vmatpush1.bf16.xpose.msra.mxu0 %v854
  %872 = vmatprep.subr.bf16.mxu0 0
  %873 = vmatpush2.bf16.xpose.msra.mxu0 0
  %874 = vmatprep.subr.bf16.mxu0 0
  %875 = vmatpush2.bf16.xpose.msra.mxu0 0
  %876 = vmatprep.subr.bf16.mxu0 0
  %877 = vmatpush2.bf16.xpose.msra.mxu0 0
  %878 = vmatprep.subr.bf16.mxu0 0
  %879 = vmatpush2.bf16.xpose.msra.mxu0 0
  %880 = vmatprep.subr.bf16.mxu0 0
  %881 = vmatpush2.bf16.xpose.msra.mxu0 0
  %882 = vmatprep.subr.bf16.mxu0 0
  %883 = vmatpush2.bf16.xpose.msra.mxu0 0
  %884 = vmatprep.subr.bf16.mxu0 0
  %885 = vmatpush2.bf16.xpose.msra.mxu0 0
  %886 = vmatprep.subr.bf16.mxu0 0
  %887 = vmatpush2.bf16.xpose.msra.mxu0 0
  %888 = vmatprep.mubr.bf16.mxu0 0
  %889 = vmatmul.mubr.bf16.gmra.mxu0 %v851
  %v890 = vpop.f32.mrf.mxu0
  %v891 = vadd.f32 0.0, %v890
  %v892 = vpop.f32.mrf.mxu0
  %v893 = vpop.f32.mrf.mxu0
  %v894 = vadd.f32 0.0, %v893
  %v895 = vpop.f32.mrf.mxu0
  %896 = vdwg.mxu0
  %v897 = vld [vmem:[%s1] sm:$0xff]
  %v898 = vld [vmem:[%s1 + $0x8] sm:$0xff]
  %v899 = vld [vmem:[%s1 + $0x10] sm:$0xff]
  %v900 = vld [vmem:[%s1 + $0x18] sm:$0xff]
  %v901 = vld [vmem:[%s1 + $0x20] sm:$0xff]
  %v902 = vld [vmem:[%s1 + $0x28] sm:$0xff]
  %v903 = vld [vmem:[%s1 + $0x30] sm:$0xff]
  %v904 = vld [vmem:[%s1 + $0x38] sm:$0xff]
  %v905 = vadd.f32 %v541, %v897
  %v906 = vadd.f32 %v544, %v898
  %v907 = vadd.f32 %v591, %v899
  %v908 = vadd.f32 %v594, %v900
  %v909 = vadd.f32 %v641, %v901
  %v910 = vadd.f32 %v644, %v902
  %v911 = vadd.f32 %v691, %v903
  %v912 = vadd.f32 %v694, %v904
  %v913 = vadd.f32 %v741, %v897
  %v914 = vadd.f32 %v744, %v898
  %v915 = vadd.f32 %v791, %v899
  %v916 = vadd.f32 %v794, %v900
  %v917 = vadd.f32 %v841, %v901
  %v918 = vadd.f32 %v844, %v902
  %v919 = vadd.f32 %v891, %v903
  %v920 = vadd.f32 %v894, %v904
  %v921 = vsel %vm64, %v905, -inf
  %922 = vmax.xlane.f32.xlu0 %v921
  %v923 = vpop.xlane.xlu0 %922
  %v924 = vsel %vm64, %v906, -inf
  %925 = vmax.xlane.f32.xlu0 %v924
  %v926 = vpop.xlane.xlu0 %925
  %v927 = vsel %vm64, %v907, -inf
  %928 = vmax.xlane.f32.xlu0 %v927
  %v929 = vpop.xlane.xlu0 %928
  %v930 = vsel %vm64, %v908, -inf
  %931 = vmax.xlane.f32.xlu0 %v930
  %v932 = vpop.xlane.xlu0 %931
  %v933 = vsel %vm64, %v909, -inf
  %934 = vmax.xlane.f32.xlu0 %v933
  %v935 = vpop.xlane.xlu0 %934
  %v936 = vsel %vm64, %v910, -inf
  %937 = vmax.xlane.f32.xlu0 %v936
  %v938 = vpop.xlane.xlu0 %937
  %v939 = vsel %vm64, %v911, -inf
  %940 = vmax.xlane.f32.xlu0 %v939
  %v941 = vpop.xlane.xlu0 %940
  %v942 = vsel %vm64, %v912, -inf
  %943 = vmax.xlane.f32.xlu0 %v942
  %v944 = vpop.xlane.xlu0 %943
  %v945 = vsel %vm64, %v913, -inf
  %946 = vmax.xlane.f32.xlu0 %v945
  %v947 = vpop.xlane.xlu0 %946
  %v948 = vsel %vm64, %v914, -inf
  %949 = vmax.xlane.f32.xlu0 %v948
  %v950 = vpop.xlane.xlu0 %949
  %v951 = vsel %vm64, %v915, -inf
  %952 = vmax.xlane.f32.xlu0 %v951
  %v953 = vpop.xlane.xlu0 %952
  %v954 = vsel %vm64, %v916, -inf
  %955 = vmax.xlane.f32.xlu0 %v954
  %v956 = vpop.xlane.xlu0 %955
  %v957 = vsel %vm64, %v917, -inf
  %958 = vmax.xlane.f32.xlu0 %v957
  %v959 = vpop.xlane.xlu0 %958
  %v960 = vsel %vm64, %v918, -inf
  %961 = vmax.xlane.f32.xlu0 %v960
  %v962 = vpop.xlane.xlu0 %961
  %v963 = vsel %vm64, %v919, -inf
  %964 = vmax.xlane.f32.xlu0 %v963
  %v965 = vpop.xlane.xlu0 %964
  %v966 = vsel %vm64, %v920, -inf
  %967 = vmax.xlane.f32.xlu0 %v966
  %v968 = vpop.xlane.xlu0 %967
  %v969 = vsub.f32 %v905, %v923
  %v970 = vsub.f32 %v906, %v926
  %v971 = vsub.f32 %v907, %v929
  %v972 = vsub.f32 %v908, %v932
  %v973 = vsub.f32 %v909, %v935
  %v974 = vsub.f32 %v910, %v938
  %v975 = vsub.f32 %v911, %v941
  %v976 = vsub.f32 %v912, %v944
  %v977 = vsub.f32 %v913, %v947
  %v978 = vsub.f32 %v914, %v950
  %v979 = vsub.f32 %v915, %v953
  %v980 = vsub.f32 %v916, %v956
  %v981 = vsub.f32 %v917, %v959
  %v982 = vsub.f32 %v918, %v962
  %v983 = vsub.f32 %v919, %v965
  %v984 = vsub.f32 %v920, %v968
  %v985 = vmul.f32 %v969, 1.442695
  %v986 = vpow.pop %v985
  %v987 = vmul.f32 %v970, 1.442695
  %v988 = vpow.pop %v987
  %v989 = vmul.f32 %v971, 1.442695
  %v990 = vpow.pop %v989
  %v991 = vmul.f32 %v972, 1.442695
  %v992 = vpow.pop %v991
  %v993 = vmul.f32 %v973, 1.442695
  %v994 = vpow.pop %v993
  %v995 = vmul.f32 %v974, 1.442695
  %v996 = vpow.pop %v995
  %v997 = vmul.f32 %v975, 1.442695
  %v998 = vpow.pop %v997
  %v999 = vmul.f32 %v976, 1.442695
  %v1000 = vpow.pop %v999
  %v1001 = vmul.f32 %v977, 1.442695
  %v1002 = vpow.pop %v1001
  %v1003 = vmul.f32 %v978, 1.442695
  %v1004 = vpow.pop %v1003
  %v1005 = vmul.f32 %v979, 1.442695
  %v1006 = vpow.pop %v1005
  %v1007 = vmul.f32 %v980, 1.442695
  %v1008 = vpow.pop %v1007
  %v1009 = vmul.f32 %v981, 1.442695
  %v1010 = vpow.pop %v1009
  %v1011 = vmul.f32 %v982, 1.442695
  %v1012 = vpow.pop %v1011
  %v1013 = vmul.f32 %v983, 1.442695
  %v1014 = vpow.pop %v1013
  %v1015 = vmul.f32 %v984, 1.442695
  %v1016 = vpow.pop %v1015
  %v1017 = vsel %vm64, %v986, 0.0
  %1018 = vadd.xlane.f32.xlu0 %v1017
  %v1019 = vpop.xlane.xlu0 %1018
  %v1020 = vsel %vm64, %v988, 0.0
  %1021 = vadd.xlane.f32.xlu0 %v1020
  %v1022 = vpop.xlane.xlu0 %1021
  %v1023 = vsel %vm64, %v990, 0.0
  %1024 = vadd.xlane.f32.xlu0 %v1023
  %v1025 = vpop.xlane.xlu0 %1024
  %v1026 = vsel %vm64, %v992, 0.0
  %1027 = vadd.xlane.f32.xlu0 %v1026
  %v1028 = vpop.xlane.xlu0 %1027
  %v1029 = vsel %vm64, %v994, 0.0
  %1030 = vadd.xlane.f32.xlu0 %v1029
  %v1031 = vpop.xlane.xlu0 %1030
  %v1032 = vsel %vm64, %v996, 0.0
  %1033 = vadd.xlane.f32.xlu0 %v1032
  %v1034 = vpop.xlane.xlu0 %1033
  %v1035 = vsel %vm64, %v998, 0.0
  %1036 = vadd.xlane.f32.xlu0 %v1035
  %v1037 = vpop.xlane.xlu0 %1036
  %v1038 = vsel %vm64, %v1000, 0.0
  %1039 = vadd.xlane.f32.xlu0 %v1038
  %v1040 = vpop.xlane.xlu0 %1039
  %v1041 = vsel %vm64, %v1002, 0.0
  %1042 = vadd.xlane.f32.xlu0 %v1041
  %v1043 = vpop.xlane.xlu0 %1042
  %v1044 = vsel %vm64, %v1004, 0.0
  %1045 = vadd.xlane.f32.xlu0 %v1044
  %v1046 = vpop.xlane.xlu0 %1045
  %v1047 = vsel %vm64, %v1006, 0.0
  %1048 = vadd.xlane.f32.xlu0 %v1047
  %v1049 = vpop.xlane.xlu0 %1048
  %v1050 = vsel %vm64, %v1008, 0.0
  %1051 = vadd.xlane.f32.xlu0 %v1050
  %v1052 = vpop.xlane.xlu0 %1051
  %v1053 = vsel %vm64, %v1010, 0.0
  %1054 = vadd.xlane.f32.xlu0 %v1053
  %v1055 = vpop.xlane.xlu0 %1054
  %v1056 = vsel %vm64, %v1012, 0.0
  %1057 = vadd.xlane.f32.xlu0 %v1056
  %v1058 = vpop.xlane.xlu0 %1057
  %v1059 = vsel %vm64, %v1014, 0.0
  %1060 = vadd.xlane.f32.xlu0 %v1059
  %v1061 = vpop.xlane.xlu0 %1060
  %v1062 = vsel %vm64, %v1016, 0.0
  %1063 = vadd.xlane.f32.xlu0 %v1062
  %v1064 = vpop.xlane.xlu0 %1063
  %v1065 = vrcp.pop %v1019
  %v1066 = vrcp.pop %v1022
  %v1067 = vrcp.pop %v1025
  %v1068 = vrcp.pop %v1028
  %v1069 = vrcp.pop %v1031
  %v1070 = vrcp.pop %v1034
  %v1071 = vrcp.pop %v1037
  %v1072 = vrcp.pop %v1040
  %v1073 = vrcp.pop %v1043
  %v1074 = vrcp.pop %v1046
  %v1075 = vrcp.pop %v1049
  %v1076 = vrcp.pop %v1052
  %v1077 = vrcp.pop %v1055
  %v1078 = vrcp.pop %v1058
  %v1079 = vrcp.pop %v1061
  %v1080 = vrcp.pop %v1064
  %v1081 = vmul.f32 %v986, %v1065
  %v1082 = vmul.f32 %v988, %v1066
  %v1083 = vmul.f32 %v990, %v1067
  %v1084 = vmul.f32 %v992, %v1068
  %v1085 = vmul.f32 %v994, %v1069
  %v1086 = vmul.f32 %v996, %v1070
  %v1087 = vmul.f32 %v998, %v1071
  %v1088 = vmul.f32 %v1000, %v1072
  %v1089 = vmul.f32 %v1002, %v1073
  %v1090 = vmul.f32 %v1004, %v1074
  %v1091 = vmul.f32 %v1006, %v1075
  %v1092 = vmul.f32 %v1008, %v1076
  %v1093 = vmul.f32 %v1010, %v1077
  %v1094 = vmul.f32 %v1012, %v1078
  %v1095 = vmul.f32 %v1014, %v1079
  %v1096 = vmul.f32 %v1016, %v1080
  %v1097 = vpack.c.bf16 %v1082, %v1081
  %v1098 = vpack.c.bf16 %v1084, %v1083
  %v1099 = vpack.c.bf16 %v1086, %v1085
  %v1100 = vpack.c.bf16 %v1088, %v1087
  %v1101 = vpack.c.bf16 %v1090, %v1089
  %v1102 = vpack.c.bf16 %v1092, %v1091
  %v1103 = vpack.c.bf16 %v1094, %v1093
  %v1104 = vpack.c.bf16 %v1096, %v1095
  %1105 = vrot.lane.b32.xlu0 %v488, 96
  %v1106 = vpop.permute.xlu0 %1105
  %v1109 = vsel %vm64, %v1097, 0
  %1111 = vmatprep.subr.bf16.mxu0 0
  %1112 = vmatpush1.bf16.msra.mxu0 0
  %1113 = vmatprep.subr.bf16.mxu0 0
  %1114 = vmatpush1.bf16.msra.mxu0 0
  %1115 = vmatprep.subr.bf16.mxu0 0
  %1116 = vmatpush1.bf16.msra.mxu0 0
  %1117 = vmatprep.subr.bf16.mxu0 0
  %1118 = vmatpush1.bf16.msra.mxu0 0
  %1119 = vmatprep.subr.bf16.mxu0 0
  %1120 = vmatpush1.bf16.msra.mxu0 0
  %1121 = vmatprep.subr.bf16.mxu0 0
  %1122 = vmatpush1.bf16.msra.mxu0 0
  %1123 = vmatprep.subr.bf16.mxu0 0
  %1124 = vmatpush1.bf16.msra.mxu0 0
  %1125 = vmatprep.subr.bf16.mxu0 0
  %1126 = vmatpush1.bf16.msra.mxu0 %v1106
  %1127 = vmatprep.subr.bf16.mxu0 0
  %1128 = vmatpush2.bf16.msra.mxu0 0
  %1129 = vmatprep.subr.bf16.mxu0 0
  %1130 = vmatpush2.bf16.msra.mxu0 0
  %1131 = vmatprep.subr.bf16.mxu0 0
  %1132 = vmatpush2.bf16.msra.mxu0 0
  %1133 = vmatprep.subr.bf16.mxu0 0
  %1134 = vmatpush2.bf16.msra.mxu0 0
  %1135 = vmatprep.subr.bf16.mxu0 0
  %1136 = vmatpush2.bf16.msra.mxu0 0
  %1137 = vmatprep.subr.bf16.mxu0 0
  %1138 = vmatpush2.bf16.msra.mxu0 0
  %1139 = vmatprep.subr.bf16.mxu0 0
  %1140 = vmatpush2.bf16.msra.mxu0 0
  %1141 = vmatprep.subr.bf16.mxu0 0
  %1142 = vmatpush2.bf16.msra.mxu0 0
  %1143 = vmatprep.mubr.bf16.mxu0 0
  %1144 = vmatmul.mubr.bf16.gmra.mxu0 %v1109
  %v1145 = vpop.f32.mrf.mxu0
  %v1146 = vadd.f32 0.0, %v1145
  %v1147 = vpop.f32.mrf.mxu0
  %v1148 = vpop.f32.mrf.mxu0
  %v1149 = vadd.f32 0.0, %v1148
  %v1150 = vpop.f32.mrf.mxu0
  %1151 = vdwg.mxu0
  %1152 = vrot.lane.b32.xlu0 %v489, 96
  %v1153 = vpop.permute.xlu0 %1152
  %v1156 = vsel %vm64, %v1098, 0
  %1158 = vmatprep.subr.bf16.mxu0 0
  %1159 = vmatpush1.bf16.msra.mxu0 0
  %1160 = vmatprep.subr.bf16.mxu0 0
  %1161 = vmatpush1.bf16.msra.mxu0 0
  %1162 = vmatprep.subr.bf16.mxu0 0
  %1163 = vmatpush1.bf16.msra.mxu0 0
  %1164 = vmatprep.subr.bf16.mxu0 0
  %1165 = vmatpush1.bf16.msra.mxu0 0
  %1166 = vmatprep.subr.bf16.mxu0 0
  %1167 = vmatpush1.bf16.msra.mxu0 0
  %1168 = vmatprep.subr.bf16.mxu0 0
  %1169 = vmatpush1.bf16.msra.mxu0 0
  %1170 = vmatprep.subr.bf16.mxu0 0
  %1171 = vmatpush1.bf16.msra.mxu0 0
  %1172 = vmatprep.subr.bf16.mxu0 0
  %1173 = vmatpush1.bf16.msra.mxu0 %v1153
  %1174 = vmatprep.subr.bf16.mxu0 0
  %1175 = vmatpush2.bf16.msra.mxu0 0
  %1176 = vmatprep.subr.bf16.mxu0 0
  %1177 = vmatpush2.bf16.msra.mxu0 0
  %1178 = vmatprep.subr.bf16.mxu0 0
  %1179 = vmatpush2.bf16.msra.mxu0 0
  %1180 = vmatprep.subr.bf16.mxu0 0
  %1181 = vmatpush2.bf16.msra.mxu0 0
  %1182 = vmatprep.subr.bf16.mxu0 0
  %1183 = vmatpush2.bf16.msra.mxu0 0
  %1184 = vmatprep.subr.bf16.mxu0 0
  %1185 = vmatpush2.bf16.msra.mxu0 0
  %1186 = vmatprep.subr.bf16.mxu0 0
  %1187 = vmatpush2.bf16.msra.mxu0 0
  %1188 = vmatprep.subr.bf16.mxu0 0
  %1189 = vmatpush2.bf16.msra.mxu0 0
  %1190 = vmatprep.mubr.bf16.mxu0 0
  %1191 = vmatmul.mubr.bf16.gmra.mxu0 %v1156
  %v1192 = vpop.f32.mrf.mxu0
  %v1193 = vadd.f32 0.0, %v1192
  %v1194 = vpop.f32.mrf.mxu0
  %v1195 = vpop.f32.mrf.mxu0
  %v1196 = vadd.f32 0.0, %v1195
  %v1197 = vpop.f32.mrf.mxu0
  %1198 = vdwg.mxu0
  %1199 = vrot.lane.b32.xlu0 %v490, 96
  %v1200 = vpop.permute.xlu0 %1199
  %v1203 = vsel %vm64, %v1099, 0
  %1205 = vmatprep.subr.bf16.mxu0 0
  %1206 = vmatpush1.bf16.msra.mxu0 0
  %1207 = vmatprep.subr.bf16.mxu0 0
  %1208 = vmatpush1.bf16.msra.mxu0 0
  %1209 = vmatprep.subr.bf16.mxu0 0
  %1210 = vmatpush1.bf16.msra.mxu0 0
  %1211 = vmatprep.subr.bf16.mxu0 0
  %1212 = vmatpush1.bf16.msra.mxu0 0
  %1213 = vmatprep.subr.bf16.mxu0 0
  %1214 = vmatpush1.bf16.msra.mxu0 0
  %1215 = vmatprep.subr.bf16.mxu0 0
  %1216 = vmatpush1.bf16.msra.mxu0 0
  %1217 = vmatprep.subr.bf16.mxu0 0
  %1218 = vmatpush1.bf16.msra.mxu0 0
  %1219 = vmatprep.subr.bf16.mxu0 0
  %1220 = vmatpush1.bf16.msra.mxu0 %v1200
  %1221 = vmatprep.subr.bf16.mxu0 0
  %1222 = vmatpush2.bf16.msra.mxu0 0
  %1223 = vmatprep.subr.bf16.mxu0 0
  %1224 = vmatpush2.bf16.msra.mxu0 0
  %1225 = vmatprep.subr.bf16.mxu0 0
  %1226 = vmatpush2.bf16.msra.mxu0 0
  %1227 = vmatprep.subr.bf16.mxu0 0
  %1228 = vmatpush2.bf16.msra.mxu0 0
  %1229 = vmatprep.subr.bf16.mxu0 0
  %1230 = vmatpush2.bf16.msra.mxu0 0
  %1231 = vmatprep.subr.bf16.mxu0 0
  %1232 = vmatpush2.bf16.msra.mxu0 0
  %1233 = vmatprep.subr.bf16.mxu0 0
  %1234 = vmatpush2.bf16.msra.mxu0 0
  %1235 = vmatprep.subr.bf16.mxu0 0
  %1236 = vmatpush2.bf16.msra.mxu0 0
  %1237 = vmatprep.mubr.bf16.mxu0 0
  %1238 = vmatmul.mubr.bf16.gmra.mxu0 %v1203
  %v1239 = vpop.f32.mrf.mxu0
  %v1240 = vadd.f32 0.0, %v1239
  %v1241 = vpop.f32.mrf.mxu0
  %v1242 = vpop.f32.mrf.mxu0
  %v1243 = vadd.f32 0.0, %v1242
  %v1244 = vpop.f32.mrf.mxu0
  %1245 = vdwg.mxu0
  %1246 = vrot.lane.b32.xlu0 %v491, 96
  %v1247 = vpop.permute.xlu0 %1246
  %v1250 = vsel %vm64, %v1100, 0
  %1252 = vmatprep.subr.bf16.mxu0 0
  %1253 = vmatpush1.bf16.msra.mxu0 0
  %1254 = vmatprep.subr.bf16.mxu0 0
  %1255 = vmatpush1.bf16.msra.mxu0 0
  %1256 = vmatprep.subr.bf16.mxu0 0
  %1257 = vmatpush1.bf16.msra.mxu0 0
  %1258 = vmatprep.subr.bf16.mxu0 0
  %1259 = vmatpush1.bf16.msra.mxu0 0
  %1260 = vmatprep.subr.bf16.mxu0 0
  %1261 = vmatpush1.bf16.msra.mxu0 0
  %1262 = vmatprep.subr.bf16.mxu0 0
  %1263 = vmatpush1.bf16.msra.mxu0 0
  %1264 = vmatprep.subr.bf16.mxu0 0
  %1265 = vmatpush1.bf16.msra.mxu0 0
  %1266 = vmatprep.subr.bf16.mxu0 0
  %1267 = vmatpush1.bf16.msra.mxu0 %v1247
  %1268 = vmatprep.subr.bf16.mxu0 0
  %1269 = vmatpush2.bf16.msra.mxu0 0
  %1270 = vmatprep.subr.bf16.mxu0 0
  %1271 = vmatpush2.bf16.msra.mxu0 0
  %1272 = vmatprep.subr.bf16.mxu0 0
  %1273 = vmatpush2.bf16.msra.mxu0 0
  %1274 = vmatprep.subr.bf16.mxu0 0
  %1275 = vmatpush2.bf16.msra.mxu0 0
  %1276 = vmatprep.subr.bf16.mxu0 0
  %1277 = vmatpush2.bf16.msra.mxu0 0
  %1278 = vmatprep.subr.bf16.mxu0 0
  %1279 = vmatpush2.bf16.msra.mxu0 0
  %1280 = vmatprep.subr.bf16.mxu0 0
  %1281 = vmatpush2.bf16.msra.mxu0 0
  %1282 = vmatprep.subr.bf16.mxu0 0
  %1283 = vmatpush2.bf16.msra.mxu0 0
  %1284 = vmatprep.mubr.bf16.mxu0 0
  %1285 = vmatmul.mubr.bf16.gmra.mxu0 %v1250
  %v1286 = vpop.f32.mrf.mxu0
  %v1287 = vadd.f32 0.0, %v1286
  %v1288 = vpop.f32.mrf.mxu0
  %v1289 = vpop.f32.mrf.mxu0
  %v1290 = vadd.f32 0.0, %v1289
  %v1291 = vpop.f32.mrf.mxu0
  %1292 = vdwg.mxu0
  %1293 = vrot.lane.b32.xlu0 %v492, 96
  %v1294 = vpop.permute.xlu0 %1293
  %v1297 = vsel %vm64, %v1101, 0
  %1299 = vmatprep.subr.bf16.mxu0 0
  %1300 = vmatpush1.bf16.msra.mxu0 0
  %1301 = vmatprep.subr.bf16.mxu0 0
  %1302 = vmatpush1.bf16.msra.mxu0 0
  %1303 = vmatprep.subr.bf16.mxu0 0
  %1304 = vmatpush1.bf16.msra.mxu0 0
  %1305 = vmatprep.subr.bf16.mxu0 0
  %1306 = vmatpush1.bf16.msra.mxu0 0
  %1307 = vmatprep.subr.bf16.mxu0 0
  %1308 = vmatpush1.bf16.msra.mxu0 0
  %1309 = vmatprep.subr.bf16.mxu0 0
  %1310 = vmatpush1.bf16.msra.mxu0 0
  %1311 = vmatprep.subr.bf16.mxu0 0
  %1312 = vmatpush1.bf16.msra.mxu0 0
  %1313 = vmatprep.subr.bf16.mxu0 0
  %1314 = vmatpush1.bf16.msra.mxu0 %v1294
  %1315 = vmatprep.subr.bf16.mxu0 0
  %1316 = vmatpush2.bf16.msra.mxu0 0
  %1317 = vmatprep.subr.bf16.mxu0 0
  %1318 = vmatpush2.bf16.msra.mxu0 0
  %1319 = vmatprep.subr.bf16.mxu0 0
  %1320 = vmatpush2.bf16.msra.mxu0 0
  %1321 = vmatprep.subr.bf16.mxu0 0
  %1322 = vmatpush2.bf16.msra.mxu0 0
  %1323 = vmatprep.subr.bf16.mxu0 0
  %1324 = vmatpush2.bf16.msra.mxu0 0
  %1325 = vmatprep.subr.bf16.mxu0 0
  %1326 = vmatpush2.bf16.msra.mxu0 0
  %1327 = vmatprep.subr.bf16.mxu0 0
  %1328 = vmatpush2.bf16.msra.mxu0 0
  %1329 = vmatprep.subr.bf16.mxu0 0
  %1330 = vmatpush2.bf16.msra.mxu0 0
  %1331 = vmatprep.mubr.bf16.mxu0 0
  %1332 = vmatmul.mubr.bf16.gmra.mxu0 %v1297
  %v1333 = vpop.f32.mrf.mxu0
  %v1334 = vadd.f32 0.0, %v1333
  %v1335 = vpop.f32.mrf.mxu0
  %v1336 = vpop.f32.mrf.mxu0
  %v1337 = vadd.f32 0.0, %v1336
  %v1338 = vpop.f32.mrf.mxu0
  %1339 = vdwg.mxu0
  %1340 = vrot.lane.b32.xlu0 %v493, 96
  %v1341 = vpop.permute.xlu0 %1340
  %v1344 = vsel %vm64, %v1102, 0
  %1346 = vmatprep.subr.bf16.mxu0 0
  %1347 = vmatpush1.bf16.msra.mxu0 0
  %1348 = vmatprep.subr.bf16.mxu0 0
  %1349 = vmatpush1.bf16.msra.mxu0 0
  %1350 = vmatprep.subr.bf16.mxu0 0
  %1351 = vmatpush1.bf16.msra.mxu0 0
  %1352 = vmatprep.subr.bf16.mxu0 0
  %1353 = vmatpush1.bf16.msra.mxu0 0
  %1354 = vmatprep.subr.bf16.mxu0 0
  %1355 = vmatpush1.bf16.msra.mxu0 0
  %1356 = vmatprep.subr.bf16.mxu0 0
  %1357 = vmatpush1.bf16.msra.mxu0 0
  %1358 = vmatprep.subr.bf16.mxu0 0
  %1359 = vmatpush1.bf16.msra.mxu0 0
  %1360 = vmatprep.subr.bf16.mxu0 0
  %1361 = vmatpush1.bf16.msra.mxu0 %v1341
  %1362 = vmatprep.subr.bf16.mxu0 0
  %1363 = vmatpush2.bf16.msra.mxu0 0
  %1364 = vmatprep.subr.bf16.mxu0 0
  %1365 = vmatpush2.bf16.msra.mxu0 0
  %1366 = vmatprep.subr.bf16.mxu0 0
  %1367 = vmatpush2.bf16.msra.mxu0 0
  %1368 = vmatprep.subr.bf16.mxu0 0
  %1369 = vmatpush2.bf16.msra.mxu0 0
  %1370 = vmatprep.subr.bf16.mxu0 0
  %1371 = vmatpush2.bf16.msra.mxu0 0
  %1372 = vmatprep.subr.bf16.mxu0 0
  %1373 = vmatpush2.bf16.msra.mxu0 0
  %1374 = vmatprep.subr.bf16.mxu0 0
  %1375 = vmatpush2.bf16.msra.mxu0 0
  %1376 = vmatprep.subr.bf16.mxu0 0
  %1377 = vmatpush2.bf16.msra.mxu0 0
  %1378 = vmatprep.mubr.bf16.mxu0 0
  %1379 = vmatmul.mubr.bf16.gmra.mxu0 %v1344
  %v1380 = vpop.f32.mrf.mxu0
  %v1381 = vadd.f32 0.0, %v1380
  %v1382 = vpop.f32.mrf.mxu0
  %v1383 = vpop.f32.mrf.mxu0
  %v1384 = vadd.f32 0.0, %v1383
  %v1385 = vpop.f32.mrf.mxu0
  %1386 = vdwg.mxu0
  %1387 = vrot.lane.b32.xlu0 %v494, 96
  %v1388 = vpop.permute.xlu0 %1387
  %v1391 = vsel %vm64, %v1103, 0
  %1393 = vmatprep.subr.bf16.mxu0 0
  %1394 = vmatpush1.bf16.msra.mxu0 0
  %1395 = vmatprep.subr.bf16.mxu0 0
  %1396 = vmatpush1.bf16.msra.mxu0 0
  %1397 = vmatprep.subr.bf16.mxu0 0
  %1398 = vmatpush1.bf16.msra.mxu0 0
  %1399 = vmatprep.subr.bf16.mxu0 0
  %1400 = vmatpush1.bf16.msra.mxu0 0
  %1401 = vmatprep.subr.bf16.mxu0 0
  %1402 = vmatpush1.bf16.msra.mxu0 0
  %1403 = vmatprep.subr.bf16.mxu0 0
  %1404 = vmatpush1.bf16.msra.mxu0 0
  %1405 = vmatprep.subr.bf16.mxu0 0
  %1406 = vmatpush1.bf16.msra.mxu0 0
  %1407 = vmatprep.subr.bf16.mxu0 0
  %1408 = vmatpush1.bf16.msra.mxu0 %v1388
  %1409 = vmatprep.subr.bf16.mxu0 0
  %1410 = vmatpush2.bf16.msra.mxu0 0
  %1411 = vmatprep.subr.bf16.mxu0 0
  %1412 = vmatpush2.bf16.msra.mxu0 0
  %1413 = vmatprep.subr.bf16.mxu0 0
  %1414 = vmatpush2.bf16.msra.mxu0 0
  %1415 = vmatprep.subr.bf16.mxu0 0
  %1416 = vmatpush2.bf16.msra.mxu0 0
  %1417 = vmatprep.subr.bf16.mxu0 0
  %1418 = vmatpush2.bf16.msra.mxu0 0
  %1419 = vmatprep.subr.bf16.mxu0 0
  %1420 = vmatpush2.bf16.msra.mxu0 0
  %1421 = vmatprep.subr.bf16.mxu0 0
  %1422 = vmatpush2.bf16.msra.mxu0 0
  %1423 = vmatprep.subr.bf16.mxu0 0
  %1424 = vmatpush2.bf16.msra.mxu0 0
  %1425 = vmatprep.mubr.bf16.mxu0 0
  %1426 = vmatmul.mubr.bf16.gmra.mxu0 %v1391
  %v1427 = vpop.f32.mrf.mxu0
  %v1428 = vadd.f32 0.0, %v1427
  %v1429 = vpop.f32.mrf.mxu0
  %v1430 = vpop.f32.mrf.mxu0
  %v1431 = vadd.f32 0.0, %v1430
  %v1432 = vpop.f32.mrf.mxu0
  %1433 = vdwg.mxu0
  %1434 = vrot.lane.b32.xlu0 %v495, 96
  %v1435 = vpop.permute.xlu0 %1434
  %v1438 = vsel %vm64, %v1104, 0
  %1440 = vmatprep.subr.bf16.mxu0 0
  %1441 = vmatpush1.bf16.msra.mxu0 0
  %1442 = vmatprep.subr.bf16.mxu0 0
  %1443 = vmatpush1.bf16.msra.mxu0 0
  %1444 = vmatprep.subr.bf16.mxu0 0
  %1445 = vmatpush1.bf16.msra.mxu0 0
  %1446 = vmatprep.subr.bf16.mxu0 0
  %1447 = vmatpush1.bf16.msra.mxu0 0
  %1448 = vmatprep.subr.bf16.mxu0 0
  %1449 = vmatpush1.bf16.msra.mxu0 0
  %1450 = vmatprep.subr.bf16.mxu0 0
  %1451 = vmatpush1.bf16.msra.mxu0 0
  %1452 = vmatprep.subr.bf16.mxu0 0
  %1453 = vmatpush1.bf16.msra.mxu0 0
  %1454 = vmatprep.subr.bf16.mxu0 0
  %1455 = vmatpush1.bf16.msra.mxu0 %v1435
  %1456 = vmatprep.subr.bf16.mxu0 0
  %1457 = vmatpush2.bf16.msra.mxu0 0
  %1458 = vmatprep.subr.bf16.mxu0 0
  %1459 = vmatpush2.bf16.msra.mxu0 0
  %1460 = vmatprep.subr.bf16.mxu0 0
  %1461 = vmatpush2.bf16.msra.mxu0 0
  %1462 = vmatprep.subr.bf16.mxu0 0
  %1463 = vmatpush2.bf16.msra.mxu0 0
  %1464 = vmatprep.subr.bf16.mxu0 0
  %1465 = vmatpush2.bf16.msra.mxu0 0
  %1466 = vmatprep.subr.bf16.mxu0 0
  %1467 = vmatpush2.bf16.msra.mxu0 0
  %1468 = vmatprep.subr.bf16.mxu0 0
  %1469 = vmatpush2.bf16.msra.mxu0 0
  %1470 = vmatprep.subr.bf16.mxu0 0
  %1471 = vmatpush2.bf16.msra.mxu0 0
  %1472 = vmatprep.mubr.bf16.mxu0 0
  %1473 = vmatmul.mubr.bf16.gmra.mxu0 %v1438
  %v1474 = vpop.f32.mrf.mxu0
  %v1475 = vadd.f32 0.0, %v1474
  %v1476 = vpop.f32.mrf.mxu0
  %v1477 = vpop.f32.mrf.mxu0
  %v1478 = vadd.f32 0.0, %v1477
  %v1479 = vpop.f32.mrf.mxu0
  %1480 = vdwg.mxu0
  %1482 = vrot.lane.b32.xlu0 %v480, 120
  %v1483 = vpop.permute.xlu0 %1482
  %1484 = vrot.lane.b32.xlu0 %v488, 104
  %v1485 = vpop.permute.xlu0 %1484
  %v1487 = vsel %vm499, %v1483, 0
  %v1490 = vsel %vm499, %v1485, 0
  %1492 = vmatprep.subr.bf16.mxu0 0
  %1493 = vmatpush1.bf16.xpose.msra.mxu0 0
  %1494 = vmatprep.subr.bf16.mxu0 0
  %1495 = vmatpush1.bf16.xpose.msra.mxu0 0
  %1496 = vmatprep.subr.bf16.mxu0 0
  %1497 = vmatpush1.bf16.xpose.msra.mxu0 0
  %1498 = vmatprep.subr.bf16.mxu0 0
  %1499 = vmatpush1.bf16.xpose.msra.mxu0 0
  %1500 = vmatprep.subr.bf16.mxu0 0
  %1501 = vmatpush1.bf16.xpose.msra.mxu0 0
  %1502 = vmatprep.subr.bf16.mxu0 0
  %1503 = vmatpush1.bf16.xpose.msra.mxu0 0
  %1504 = vmatprep.subr.bf16.mxu0 0
  %1505 = vmatpush1.bf16.xpose.msra.mxu0 0
  %1506 = vmatprep.subr.bf16.mxu0 0
  %1507 = vmatpush1.bf16.xpose.msra.mxu0 %v1490
  %1508 = vmatprep.subr.bf16.mxu0 0
  %1509 = vmatpush2.bf16.xpose.msra.mxu0 0
  %1510 = vmatprep.subr.bf16.mxu0 0
  %1511 = vmatpush2.bf16.xpose.msra.mxu0 0
  %1512 = vmatprep.subr.bf16.mxu0 0
  %1513 = vmatpush2.bf16.xpose.msra.mxu0 0
  %1514 = vmatprep.subr.bf16.mxu0 0
  %1515 = vmatpush2.bf16.xpose.msra.mxu0 0
  %1516 = vmatprep.subr.bf16.mxu0 0
  %1517 = vmatpush2.bf16.xpose.msra.mxu0 0
  %1518 = vmatprep.subr.bf16.mxu0 0
  %1519 = vmatpush2.bf16.xpose.msra.mxu0 0
  %1520 = vmatprep.subr.bf16.mxu0 0
  %1521 = vmatpush2.bf16.xpose.msra.mxu0 0
  %1522 = vmatprep.subr.bf16.mxu0 0
  %1523 = vmatpush2.bf16.xpose.msra.mxu0 0
  %1524 = vmatprep.mubr.bf16.mxu0 0
  %1525 = vmatmul.mubr.bf16.gmra.mxu0 %v1487
  %v1526 = vpop.f32.mrf.mxu0
  %v1527 = vadd.f32 0.0, %v1526
  %v1528 = vpop.f32.mrf.mxu0
  %v1529 = vpop.f32.mrf.mxu0
  %v1530 = vadd.f32 0.0, %v1529
  %v1531 = vpop.f32.mrf.mxu0
  %1532 = vdwg.mxu0
  %1534 = vrot.lane.b32.xlu0 %v481, 120
  %v1535 = vpop.permute.xlu0 %1534
  %1536 = vrot.lane.b32.xlu0 %v489, 104
  %v1537 = vpop.permute.xlu0 %1536
  %v1539 = vsel %vm499, %v1535, 0
  %v1542 = vsel %vm499, %v1537, 0
  %1544 = vmatprep.subr.bf16.mxu0 0
  %1545 = vmatpush1.bf16.xpose.msra.mxu0 0
  %1546 = vmatprep.subr.bf16.mxu0 0
  %1547 = vmatpush1.bf16.xpose.msra.mxu0 0
  %1548 = vmatprep.subr.bf16.mxu0 0
  %1549 = vmatpush1.bf16.xpose.msra.mxu0 0
  %1550 = vmatprep.subr.bf16.mxu0 0
  %1551 = vmatpush1.bf16.xpose.msra.mxu0 0
  %1552 = vmatprep.subr.bf16.mxu0 0
  %1553 = vmatpush1.bf16.xpose.msra.mxu0 0
  %1554 = vmatprep.subr.bf16.mxu0 0
  %1555 = vmatpush1.bf16.xpose.msra.mxu0 0
  %1556 = vmatprep.subr.bf16.mxu0 0
  %1557 = vmatpush1.bf16.xpose.msra.mxu0 0
  %1558 = vmatprep.subr.bf16.mxu0 0
  %1559 = vmatpush1.bf16.xpose.msra.mxu0 %v1542
  %1560 = vmatprep.subr.bf16.mxu0 0
  %1561 = vmatpush2.bf16.xpose.msra.mxu0 0
  %1562 = vmatprep.subr.bf16.mxu0 0
  %1563 = vmatpush2.bf16.xpose.msra.mxu0 0
  %1564 = vmatprep.subr.bf16.mxu0 0
  %1565 = vmatpush2.bf16.xpose.msra.mxu0 0
  %1566 = vmatprep.subr.bf16.mxu0 0
  %1567 = vmatpush2.bf16.xpose.msra.mxu0 0
  %1568 = vmatprep.subr.bf16.mxu0 0
  %1569 = vmatpush2.bf16.xpose.msra.mxu0 0
  %1570 = vmatprep.subr.bf16.mxu0 0
  %1571 = vmatpush2.bf16.xpose.msra.mxu0 0
  %1572 = vmatprep.subr.bf16.mxu0 0
  %1573 = vmatpush2.bf16.xpose.msra.mxu0 0
  %1574 = vmatprep.subr.bf16.mxu0 0
  %1575 = vmatpush2.bf16.xpose.msra.mxu0 0
  %1576 = vmatprep.mubr.bf16.mxu0 0
  %1577 = vmatmul.mubr.bf16.gmra.mxu0 %v1539
  %v1578 = vpop.f32.mrf.mxu0
  %v1579 = vadd.f32 0.0, %v1578
  %v1580 = vpop.f32.mrf.mxu0
  %v1581 = vpop.f32.mrf.mxu0
  %v1582 = vadd.f32 0.0, %v1581
  %v1583 = vpop.f32.mrf.mxu0
  %1584 = vdwg.mxu0
  %1586 = vrot.lane.b32.xlu0 %v482, 120
  %v1587 = vpop.permute.xlu0 %1586
  %1588 = vrot.lane.b32.xlu0 %v490, 104
  %v1589 = vpop.permute.xlu0 %1588
  %v1591 = vsel %vm499, %v1587, 0
  %v1594 = vsel %vm499, %v1589, 0
  %1596 = vmatprep.subr.bf16.mxu0 0
  %1597 = vmatpush1.bf16.xpose.msra.mxu0 0
  %1598 = vmatprep.subr.bf16.mxu0 0
  %1599 = vmatpush1.bf16.xpose.msra.mxu0 0
  %1600 = vmatprep.subr.bf16.mxu0 0
  %1601 = vmatpush1.bf16.xpose.msra.mxu0 0
  %1602 = vmatprep.subr.bf16.mxu0 0
  %1603 = vmatpush1.bf16.xpose.msra.mxu0 0
  %1604 = vmatprep.subr.bf16.mxu0 0
  %1605 = vmatpush1.bf16.xpose.msra.mxu0 0
  %1606 = vmatprep.subr.bf16.mxu0 0
  %1607 = vmatpush1.bf16.xpose.msra.mxu0 0
  %1608 = vmatprep.subr.bf16.mxu0 0
  %1609 = vmatpush1.bf16.xpose.msra.mxu0 0
  %1610 = vmatprep.subr.bf16.mxu0 0
  %1611 = vmatpush1.bf16.xpose.msra.mxu0 %v1594
  %1612 = vmatprep.subr.bf16.mxu0 0
  %1613 = vmatpush2.bf16.xpose.msra.mxu0 0
  %1614 = vmatprep.subr.bf16.mxu0 0
  %1615 = vmatpush2.bf16.xpose.msra.mxu0 0
  %1616 = vmatprep.subr.bf16.mxu0 0
  %1617 = vmatpush2.bf16.xpose.msra.mxu0 0
  %1618 = vmatprep.subr.bf16.mxu0 0
  %1619 = vmatpush2.bf16.xpose.msra.mxu0 0
  %1620 = vmatprep.subr.bf16.mxu0 0
  %1621 = vmatpush2.bf16.xpose.msra.mxu0 0
  %1622 = vmatprep.subr.bf16.mxu0 0
  %1623 = vmatpush2.bf16.xpose.msra.mxu0 0
  %1624 = vmatprep.subr.bf16.mxu0 0
  %1625 = vmatpush2.bf16.xpose.msra.mxu0 0
  %1626 = vmatprep.subr.bf16.mxu0 0
  %1627 = vmatpush2.bf16.xpose.msra.mxu0 0
  %1628 = vmatprep.mubr.bf16.mxu0 0
  %1629 = vmatmul.mubr.bf16.gmra.mxu0 %v1591
  %v1630 = vpop.f32.mrf.mxu0
  %v1631 = vadd.f32 0.0, %v1630
  %v1632 = vpop.f32.mrf.mxu0
  %v1633 = vpop.f32.mrf.mxu0
  %v1634 = vadd.f32 0.0, %v1633
  %v1635 = vpop.f32.mrf.mxu0
  %1636 = vdwg.mxu0
  %1638 = vrot.lane.b32.xlu0 %v483, 120
  %v1639 = vpop.permute.xlu0 %1638
  %1640 = vrot.lane.b32.xlu0 %v491, 104
  %v1641 = vpop.permute.xlu0 %1640
  %v1643 = vsel %vm499, %v1639, 0
  %v1646 = vsel %vm499, %v1641, 0
  %1648 = vmatprep.subr.bf16.mxu0 0
  %1649 = vmatpush1.bf16.xpose.msra.mxu0 0
  %1650 = vmatprep.subr.bf16.mxu0 0
  %1651 = vmatpush1.bf16.xpose.msra.mxu0 0
  %1652 = vmatprep.subr.bf16.mxu0 0
  %1653 = vmatpush1.bf16.xpose.msra.mxu0 0
  %1654 = vmatprep.subr.bf16.mxu0 0
  %1655 = vmatpush1.bf16.xpose.msra.mxu0 0
  %1656 = vmatprep.subr.bf16.mxu0 0
  %1657 = vmatpush1.bf16.xpose.msra.mxu0 0
  %1658 = vmatprep.subr.bf16.mxu0 0
  %1659 = vmatpush1.bf16.xpose.msra.mxu0 0
  %1660 = vmatprep.subr.bf16.mxu0 0
  %1661 = vmatpush1.bf16.xpose.msra.mxu0 0
  %1662 = vmatprep.subr.bf16.mxu0 0
  %1663 = vmatpush1.bf16.xpose.msra.mxu0 %v1646
  %1664 = vmatprep.subr.bf16.mxu0 0
  %1665 = vmatpush2.bf16.xpose.msra.mxu0 0
  %1666 = vmatprep.subr.bf16.mxu0 0
  %1667 = vmatpush2.bf16.xpose.msra.mxu0 0
  %1668 = vmatprep.subr.bf16.mxu0 0
  %1669 = vmatpush2.bf16.xpose.msra.mxu0 0
  %1670 = vmatprep.subr.bf16.mxu0 0
  %1671 = vmatpush2.bf16.xpose.msra.mxu0 0
  %1672 = vmatprep.subr.bf16.mxu0 0
  %1673 = vmatpush2.bf16.xpose.msra.mxu0 0
  %1674 = vmatprep.subr.bf16.mxu0 0
  %1675 = vmatpush2.bf16.xpose.msra.mxu0 0
  %1676 = vmatprep.subr.bf16.mxu0 0
  %1677 = vmatpush2.bf16.xpose.msra.mxu0 0
  %1678 = vmatprep.subr.bf16.mxu0 0
  %1679 = vmatpush2.bf16.xpose.msra.mxu0 0
  %1680 = vmatprep.mubr.bf16.mxu0 0
  %1681 = vmatmul.mubr.bf16.gmra.mxu0 %v1643
  %v1682 = vpop.f32.mrf.mxu0
  %v1683 = vadd.f32 0.0, %v1682
  %v1684 = vpop.f32.mrf.mxu0
  %v1685 = vpop.f32.mrf.mxu0
  %v1686 = vadd.f32 0.0, %v1685
  %v1687 = vpop.f32.mrf.mxu0
  %1688 = vdwg.mxu0
  %1690 = vrot.lane.b32.xlu0 %v484, 120
  %v1691 = vpop.permute.xlu0 %1690
  %1692 = vrot.lane.b32.xlu0 %v492, 104
  %v1693 = vpop.permute.xlu0 %1692
  %v1695 = vsel %vm499, %v1691, 0
  %v1698 = vsel %vm499, %v1693, 0
  %1700 = vmatprep.subr.bf16.mxu0 0
  %1701 = vmatpush1.bf16.xpose.msra.mxu0 0
  %1702 = vmatprep.subr.bf16.mxu0 0
  %1703 = vmatpush1.bf16.xpose.msra.mxu0 0
  %1704 = vmatprep.subr.bf16.mxu0 0
  %1705 = vmatpush1.bf16.xpose.msra.mxu0 0
  %1706 = vmatprep.subr.bf16.mxu0 0
  %1707 = vmatpush1.bf16.xpose.msra.mxu0 0
  %1708 = vmatprep.subr.bf16.mxu0 0
  %1709 = vmatpush1.bf16.xpose.msra.mxu0 0
  %1710 = vmatprep.subr.bf16.mxu0 0
  %1711 = vmatpush1.bf16.xpose.msra.mxu0 0
  %1712 = vmatprep.subr.bf16.mxu0 0
  %1713 = vmatpush1.bf16.xpose.msra.mxu0 0
  %1714 = vmatprep.subr.bf16.mxu0 0
  %1715 = vmatpush1.bf16.xpose.msra.mxu0 %v1698
  %1716 = vmatprep.subr.bf16.mxu0 0
  %1717 = vmatpush2.bf16.xpose.msra.mxu0 0
  %1718 = vmatprep.subr.bf16.mxu0 0
  %1719 = vmatpush2.bf16.xpose.msra.mxu0 0
  %1720 = vmatprep.subr.bf16.mxu0 0
  %1721 = vmatpush2.bf16.xpose.msra.mxu0 0
  %1722 = vmatprep.subr.bf16.mxu0 0
  %1723 = vmatpush2.bf16.xpose.msra.mxu0 0
  %1724 = vmatprep.subr.bf16.mxu0 0
  %1725 = vmatpush2.bf16.xpose.msra.mxu0 0
  %1726 = vmatprep.subr.bf16.mxu0 0
  %1727 = vmatpush2.bf16.xpose.msra.mxu0 0
  %1728 = vmatprep.subr.bf16.mxu0 0
  %1729 = vmatpush2.bf16.xpose.msra.mxu0 0
  %1730 = vmatprep.subr.bf16.mxu0 0
  %1731 = vmatpush2.bf16.xpose.msra.mxu0 0
  %1732 = vmatprep.mubr.bf16.mxu0 0
  %1733 = vmatmul.mubr.bf16.gmra.mxu0 %v1695
  %v1734 = vpop.f32.mrf.mxu0
  %v1735 = vadd.f32 0.0, %v1734
  %v1736 = vpop.f32.mrf.mxu0
  %v1737 = vpop.f32.mrf.mxu0
  %v1738 = vadd.f32 0.0, %v1737
  %v1739 = vpop.f32.mrf.mxu0
  %1740 = vdwg.mxu0
  %1742 = vrot.lane.b32.xlu0 %v485, 120
  %v1743 = vpop.permute.xlu0 %1742
  %1744 = vrot.lane.b32.xlu0 %v493, 104
  %v1745 = vpop.permute.xlu0 %1744
  %v1747 = vsel %vm499, %v1743, 0
  %v1750 = vsel %vm499, %v1745, 0
  %1752 = vmatprep.subr.bf16.mxu0 0
  %1753 = vmatpush1.bf16.xpose.msra.mxu0 0
  %1754 = vmatprep.subr.bf16.mxu0 0
  %1755 = vmatpush1.bf16.xpose.msra.mxu0 0
  %1756 = vmatprep.subr.bf16.mxu0 0
  %1757 = vmatpush1.bf16.xpose.msra.mxu0 0
  %1758 = vmatprep.subr.bf16.mxu0 0
  %1759 = vmatpush1.bf16.xpose.msra.mxu0 0
  %1760 = vmatprep.subr.bf16.mxu0 0
  %1761 = vmatpush1.bf16.xpose.msra.mxu0 0
  %1762 = vmatprep.subr.bf16.mxu0 0
  %1763 = vmatpush1.bf16.xpose.msra.mxu0 0
  %1764 = vmatprep.subr.bf16.mxu0 0
  %1765 = vmatpush1.bf16.xpose.msra.mxu0 0
  %1766 = vmatprep.subr.bf16.mxu0 0
  %1767 = vmatpush1.bf16.xpose.msra.mxu0 %v1750
  %1768 = vmatprep.subr.bf16.mxu0 0
  %1769 = vmatpush2.bf16.xpose.msra.mxu0 0
  %1770 = vmatprep.subr.bf16.mxu0 0
  %1771 = vmatpush2.bf16.xpose.msra.mxu0 0
  %1772 = vmatprep.subr.bf16.mxu0 0
  %1773 = vmatpush2.bf16.xpose.msra.mxu0 0
  %1774 = vmatprep.subr.bf16.mxu0 0
  %1775 = vmatpush2.bf16.xpose.msra.mxu0 0
  %1776 = vmatprep.subr.bf16.mxu0 0
  %1777 = vmatpush2.bf16.xpose.msra.mxu0 0
  %1778 = vmatprep.subr.bf16.mxu0 0
  %1779 = vmatpush2.bf16.xpose.msra.mxu0 0
  %1780 = vmatprep.subr.bf16.mxu0 0
  %1781 = vmatpush2.bf16.xpose.msra.mxu0 0
  %1782 = vmatprep.subr.bf16.mxu0 0
  %1783 = vmatpush2.bf16.xpose.msra.mxu0 0
  %1784 = vmatprep.mubr.bf16.mxu0 0
  %1785 = vmatmul.mubr.bf16.gmra.mxu0 %v1747
  %v1786 = vpop.f32.mrf.mxu0
  %v1787 = vadd.f32 0.0, %v1786
  %v1788 = vpop.f32.mrf.mxu0
  %v1789 = vpop.f32.mrf.mxu0
  %v1790 = vadd.f32 0.0, %v1789
  %v1791 = vpop.f32.mrf.mxu0
  %1792 = vdwg.mxu0
  %1794 = vrot.lane.b32.xlu0 %v486, 120
  %v1795 = vpop.permute.xlu0 %1794
  %1796 = vrot.lane.b32.xlu0 %v494, 104
  %v1797 = vpop.permute.xlu0 %1796
  %v1799 = vsel %vm499, %v1795, 0
  %v1802 = vsel %vm499, %v1797, 0
  %1804 = vmatprep.subr.bf16.mxu0 0
  %1805 = vmatpush1.bf16.xpose.msra.mxu0 0
  %1806 = vmatprep.subr.bf16.mxu0 0
  %1807 = vmatpush1.bf16.xpose.msra.mxu0 0
  %1808 = vmatprep.subr.bf16.mxu0 0
  %1809 = vmatpush1.bf16.xpose.msra.mxu0 0
  %1810 = vmatprep.subr.bf16.mxu0 0
  %1811 = vmatpush1.bf16.xpose.msra.mxu0 0
  %1812 = vmatprep.subr.bf16.mxu0 0
  %1813 = vmatpush1.bf16.xpose.msra.mxu0 0
  %1814 = vmatprep.subr.bf16.mxu0 0
  %1815 = vmatpush1.bf16.xpose.msra.mxu0 0
  %1816 = vmatprep.subr.bf16.mxu0 0
  %1817 = vmatpush1.bf16.xpose.msra.mxu0 0
  %1818 = vmatprep.subr.bf16.mxu0 0
  %1819 = vmatpush1.bf16.xpose.msra.mxu0 %v1802
  %1820 = vmatprep.subr.bf16.mxu0 0
  %1821 = vmatpush2.bf16.xpose.msra.mxu0 0
  %1822 = vmatprep.subr.bf16.mxu0 0
  %1823 = vmatpush2.bf16.xpose.msra.mxu0 0
  %1824 = vmatprep.subr.bf16.mxu0 0
  %1825 = vmatpush2.bf16.xpose.msra.mxu0 0
  %1826 = vmatprep.subr.bf16.mxu0 0
  %1827 = vmatpush2.bf16.xpose.msra.mxu0 0
  %1828 = vmatprep.subr.bf16.mxu0 0
  %1829 = vmatpush2.bf16.xpose.msra.mxu0 0
  %1830 = vmatprep.subr.bf16.mxu0 0
  %1831 = vmatpush2.bf16.xpose.msra.mxu0 0
  %1832 = vmatprep.subr.bf16.mxu0 0
  %1833 = vmatpush2.bf16.xpose.msra.mxu0 0
  %1834 = vmatprep.subr.bf16.mxu0 0
  %1835 = vmatpush2.bf16.xpose.msra.mxu0 0
  %1836 = vmatprep.mubr.bf16.mxu0 0
  %1837 = vmatmul.mubr.bf16.gmra.mxu0 %v1799
  %v1838 = vpop.f32.mrf.mxu0
  %v1839 = vadd.f32 0.0, %v1838
  %v1840 = vpop.f32.mrf.mxu0
  %v1841 = vpop.f32.mrf.mxu0
  %v1842 = vadd.f32 0.0, %v1841
  %v1843 = vpop.f32.mrf.mxu0
  %1844 = vdwg.mxu0
  %1846 = vrot.lane.b32.xlu0 %v487, 120
  %v1847 = vpop.permute.xlu0 %1846
  %1848 = vrot.lane.b32.xlu0 %v495, 104
  %v1849 = vpop.permute.xlu0 %1848
  %v1851 = vsel %vm499, %v1847, 0
  %v1854 = vsel %vm499, %v1849, 0
  %1856 = vmatprep.subr.bf16.mxu0 0
  %1857 = vmatpush1.bf16.xpose.msra.mxu0 0
  %1858 = vmatprep.subr.bf16.mxu0 0
  %1859 = vmatpush1.bf16.xpose.msra.mxu0 0
  %1860 = vmatprep.subr.bf16.mxu0 0
  %1861 = vmatpush1.bf16.xpose.msra.mxu0 0
  %1862 = vmatprep.subr.bf16.mxu0 0
  %1863 = vmatpush1.bf16.xpose.msra.mxu0 0
  %1864 = vmatprep.subr.bf16.mxu0 0
  %1865 = vmatpush1.bf16.xpose.msra.mxu0 0
  %1866 = vmatprep.subr.bf16.mxu0 0
  %1867 = vmatpush1.bf16.xpose.msra.mxu0 0
  %1868 = vmatprep.subr.bf16.mxu0 0
  %1869 = vmatpush1.bf16.xpose.msra.mxu0 0
  %1870 = vmatprep.subr.bf16.mxu0 0
  %1871 = vmatpush1.bf16.xpose.msra.mxu0 %v1854
  %1872 = vmatprep.subr.bf16.mxu0 0
  %1873 = vmatpush2.bf16.xpose.msra.mxu0 0
  %1874 = vmatprep.subr.bf16.mxu0 0
  %1875 = vmatpush2.bf16.xpose.msra.mxu0 0
  %1876 = vmatprep.subr.bf16.mxu0 0
  %1877 = vmatpush2.bf16.xpose.msra.mxu0 0
  %1878 = vmatprep.subr.bf16.mxu0 0
  %1879 = vmatpush2.bf16.xpose.msra.mxu0 0
  %1880 = vmatprep.subr.bf16.mxu0 0
  %1881 = vmatpush2.bf16.xpose.msra.mxu0 0
  %1882 = vmatprep.subr.bf16.mxu0 0
  %1883 = vmatpush2.bf16.xpose.msra.mxu0 0
  %1884 = vmatprep.subr.bf16.mxu0 0
  %1885 = vmatpush2.bf16.xpose.msra.mxu0 0
  %1886 = vmatprep.subr.bf16.mxu0 0
  %1887 = vmatpush2.bf16.xpose.msra.mxu0 0
  %1888 = vmatprep.mubr.bf16.mxu0 0
  %1889 = vmatmul.mubr.bf16.gmra.mxu0 %v1851
  %v1890 = vpop.f32.mrf.mxu0
  %v1891 = vadd.f32 0.0, %v1890
  %v1892 = vpop.f32.mrf.mxu0
  %v1893 = vpop.f32.mrf.mxu0
  %v1894 = vadd.f32 0.0, %v1893
  %v1895 = vpop.f32.mrf.mxu0
  %1896 = vdwg.mxu0
  %s1897 = scalar_lea.vmem %s1, 64
  %v1898 = vld [vmem:[%s1897] sm:$0xff]
  %v1899 = vld [vmem:[%s1897 + $0x8] sm:$0xff]
  %v1900 = vld [vmem:[%s1897 + $0x10] sm:$0xff]
  %v1901 = vld [vmem:[%s1897 + $0x18] sm:$0xff]
  %v1902 = vld [vmem:[%s1897 + $0x20] sm:$0xff]
  %v1903 = vld [vmem:[%s1897 + $0x28] sm:$0xff]
  %v1904 = vld [vmem:[%s1897 + $0x30] sm:$0xff]
  %v1905 = vld [vmem:[%s1897 + $0x38] sm:$0xff]
  %v1906 = vadd.f32 %v1527, %v1898
  %v1907 = vadd.f32 %v1530, %v1899
  %v1908 = vadd.f32 %v1579, %v1900
  %v1909 = vadd.f32 %v1582, %v1901
  %v1910 = vadd.f32 %v1631, %v1902
  %v1911 = vadd.f32 %v1634, %v1903
  %v1912 = vadd.f32 %v1683, %v1904
  %v1913 = vadd.f32 %v1686, %v1905
  %v1914 = vadd.f32 %v1735, %v1898
  %v1915 = vadd.f32 %v1738, %v1899
  %v1916 = vadd.f32 %v1787, %v1900
  %v1917 = vadd.f32 %v1790, %v1901
  %v1918 = vadd.f32 %v1839, %v1902
  %v1919 = vadd.f32 %v1842, %v1903
  %v1920 = vadd.f32 %v1891, %v1904
  %v1921 = vadd.f32 %v1894, %v1905
  %v1922 = vsel %vm64, %v1906, -inf
  %1923 = vmax.xlane.f32.xlu0 %v1922
  %v1924 = vpop.xlane.xlu0 %1923
  %v1925 = vsel %vm64, %v1907, -inf
  %1926 = vmax.xlane.f32.xlu0 %v1925
  %v1927 = vpop.xlane.xlu0 %1926
  %v1928 = vsel %vm64, %v1908, -inf
  %1929 = vmax.xlane.f32.xlu0 %v1928
  %v1930 = vpop.xlane.xlu0 %1929
  %v1931 = vsel %vm64, %v1909, -inf
  %1932 = vmax.xlane.f32.xlu0 %v1931
  %v1933 = vpop.xlane.xlu0 %1932
  %v1934 = vsel %vm64, %v1910, -inf
  %1935 = vmax.xlane.f32.xlu0 %v1934
  %v1936 = vpop.xlane.xlu0 %1935
  %v1937 = vsel %vm64, %v1911, -inf
  %1938 = vmax.xlane.f32.xlu0 %v1937
  %v1939 = vpop.xlane.xlu0 %1938
  %v1940 = vsel %vm64, %v1912, -inf
  %1941 = vmax.xlane.f32.xlu0 %v1940
  %v1942 = vpop.xlane.xlu0 %1941
  %v1943 = vsel %vm64, %v1913, -inf
  %1944 = vmax.xlane.f32.xlu0 %v1943
  %v1945 = vpop.xlane.xlu0 %1944
  %v1946 = vsel %vm64, %v1914, -inf
  %1947 = vmax.xlane.f32.xlu0 %v1946
  %v1948 = vpop.xlane.xlu0 %1947
  %v1949 = vsel %vm64, %v1915, -inf
  %1950 = vmax.xlane.f32.xlu0 %v1949
  %v1951 = vpop.xlane.xlu0 %1950
  %v1952 = vsel %vm64, %v1916, -inf
  %1953 = vmax.xlane.f32.xlu0 %v1952
  %v1954 = vpop.xlane.xlu0 %1953
  %v1955 = vsel %vm64, %v1917, -inf
  %1956 = vmax.xlane.f32.xlu0 %v1955
  %v1957 = vpop.xlane.xlu0 %1956
  %v1958 = vsel %vm64, %v1918, -inf
  %1959 = vmax.xlane.f32.xlu0 %v1958
  %v1960 = vpop.xlane.xlu0 %1959
  %v1961 = vsel %vm64, %v1919, -inf
  %1962 = vmax.xlane.f32.xlu0 %v1961
  %v1963 = vpop.xlane.xlu0 %1962
  %v1964 = vsel %vm64, %v1920, -inf
  %1965 = vmax.xlane.f32.xlu0 %v1964
  %v1966 = vpop.xlane.xlu0 %1965
  %v1967 = vsel %vm64, %v1921, -inf
  %1968 = vmax.xlane.f32.xlu0 %v1967
  %v1969 = vpop.xlane.xlu0 %1968
  %v1970 = vsub.f32 %v1906, %v1924
  %v1971 = vsub.f32 %v1907, %v1927
  %v1972 = vsub.f32 %v1908, %v1930
  %v1973 = vsub.f32 %v1909, %v1933
  %v1974 = vsub.f32 %v1910, %v1936
  %v1975 = vsub.f32 %v1911, %v1939
  %v1976 = vsub.f32 %v1912, %v1942
  %v1977 = vsub.f32 %v1913, %v1945
  %v1978 = vsub.f32 %v1914, %v1948
  %v1979 = vsub.f32 %v1915, %v1951
  %v1980 = vsub.f32 %v1916, %v1954
  %v1981 = vsub.f32 %v1917, %v1957
  %v1982 = vsub.f32 %v1918, %v1960
  %v1983 = vsub.f32 %v1919, %v1963
  %v1984 = vsub.f32 %v1920, %v1966
  %v1985 = vsub.f32 %v1921, %v1969
  %v1986 = vmul.f32 %v1970, 1.442695
  %v1987 = vpow.pop %v1986
  %v1988 = vmul.f32 %v1971, 1.442695
  %v1989 = vpow.pop %v1988
  %v1990 = vmul.f32 %v1972, 1.442695
  %v1991 = vpow.pop %v1990
  %v1992 = vmul.f32 %v1973, 1.442695
  %v1993 = vpow.pop %v1992
  %v1994 = vmul.f32 %v1974, 1.442695
  %v1995 = vpow.pop %v1994
  %v1996 = vmul.f32 %v1975, 1.442695
  %v1997 = vpow.pop %v1996
  %v1998 = vmul.f32 %v1976, 1.442695
  %v1999 = vpow.pop %v1998
  %v2000 = vmul.f32 %v1977, 1.442695
  %v2001 = vpow.pop %v2000
  %v2002 = vmul.f32 %v1978, 1.442695
  %v2003 = vpow.pop %v2002
  %v2004 = vmul.f32 %v1979, 1.442695
  %v2005 = vpow.pop %v2004
  %v2006 = vmul.f32 %v1980, 1.442695
  %v2007 = vpow.pop %v2006
  %v2008 = vmul.f32 %v1981, 1.442695
  %v2009 = vpow.pop %v2008
  %v2010 = vmul.f32 %v1982, 1.442695
  %v2011 = vpow.pop %v2010
  %v2012 = vmul.f32 %v1983, 1.442695
  %v2013 = vpow.pop %v2012
  %v2014 = vmul.f32 %v1984, 1.442695
  %v2015 = vpow.pop %v2014
  %v2016 = vmul.f32 %v1985, 1.442695
  %v2017 = vpow.pop %v2016
  %v2018 = vsel %vm64, %v1987, 0.0
  %2019 = vadd.xlane.f32.xlu0 %v2018
  %v2020 = vpop.xlane.xlu0 %2019
  %v2021 = vsel %vm64, %v1989, 0.0
  %2022 = vadd.xlane.f32.xlu0 %v2021
  %v2023 = vpop.xlane.xlu0 %2022
  %v2024 = vsel %vm64, %v1991, 0.0
  %2025 = vadd.xlane.f32.xlu0 %v2024
  %v2026 = vpop.xlane.xlu0 %2025
  %v2027 = vsel %vm64, %v1993, 0.0
  %2028 = vadd.xlane.f32.xlu0 %v2027
  %v2029 = vpop.xlane.xlu0 %2028
  %v2030 = vsel %vm64, %v1995, 0.0
  %2031 = vadd.xlane.f32.xlu0 %v2030
  %v2032 = vpop.xlane.xlu0 %2031
  %v2033 = vsel %vm64, %v1997, 0.0
  %2034 = vadd.xlane.f32.xlu0 %v2033
  %v2035 = vpop.xlane.xlu0 %2034
  %v2036 = vsel %vm64, %v1999, 0.0
  %2037 = vadd.xlane.f32.xlu0 %v2036
  %v2038 = vpop.xlane.xlu0 %2037
  %v2039 = vsel %vm64, %v2001, 0.0
  %2040 = vadd.xlane.f32.xlu0 %v2039
  %v2041 = vpop.xlane.xlu0 %2040
  %v2042 = vsel %vm64, %v2003, 0.0
  %2043 = vadd.xlane.f32.xlu0 %v2042
  %v2044 = vpop.xlane.xlu0 %2043
  %v2045 = vsel %vm64, %v2005, 0.0
  %2046 = vadd.xlane.f32.xlu0 %v2045
  %v2047 = vpop.xlane.xlu0 %2046
  %v2048 = vsel %vm64, %v2007, 0.0
  %2049 = vadd.xlane.f32.xlu0 %v2048
  %v2050 = vpop.xlane.xlu0 %2049
  %v2051 = vsel %vm64, %v2009, 0.0
  %2052 = vadd.xlane.f32.xlu0 %v2051
  %v2053 = vpop.xlane.xlu0 %2052
  %v2054 = vsel %vm64, %v2011, 0.0
  %2055 = vadd.xlane.f32.xlu0 %v2054
  %v2056 = vpop.xlane.xlu0 %2055
  %v2057 = vsel %vm64, %v2013, 0.0
  %2058 = vadd.xlane.f32.xlu0 %v2057
  %v2059 = vpop.xlane.xlu0 %2058
  %v2060 = vsel %vm64, %v2015, 0.0
  %2061 = vadd.xlane.f32.xlu0 %v2060
  %v2062 = vpop.xlane.xlu0 %2061
  %v2063 = vsel %vm64, %v2017, 0.0
  %2064 = vadd.xlane.f32.xlu0 %v2063
  %v2065 = vpop.xlane.xlu0 %2064
  %v2066 = vrcp.pop %v2020
  %v2067 = vrcp.pop %v2023
  %v2068 = vrcp.pop %v2026
  %v2069 = vrcp.pop %v2029
  %v2070 = vrcp.pop %v2032
  %v2071 = vrcp.pop %v2035
  %v2072 = vrcp.pop %v2038
  %v2073 = vrcp.pop %v2041
  %v2074 = vrcp.pop %v2044
  %v2075 = vrcp.pop %v2047
  %v2076 = vrcp.pop %v2050
  %v2077 = vrcp.pop %v2053
  %v2078 = vrcp.pop %v2056
  %v2079 = vrcp.pop %v2059
  %v2080 = vrcp.pop %v2062
  %v2081 = vrcp.pop %v2065
  %v2082 = vmul.f32 %v1987, %v2066
  %v2083 = vmul.f32 %v1989, %v2067
  %v2084 = vmul.f32 %v1991, %v2068
  %v2085 = vmul.f32 %v1993, %v2069
  %v2086 = vmul.f32 %v1995, %v2070
  %v2087 = vmul.f32 %v1997, %v2071
  %v2088 = vmul.f32 %v1999, %v2072
  %v2089 = vmul.f32 %v2001, %v2073
  %v2090 = vmul.f32 %v2003, %v2074
  %v2091 = vmul.f32 %v2005, %v2075
  %v2092 = vmul.f32 %v2007, %v2076
  %v2093 = vmul.f32 %v2009, %v2077
  %v2094 = vmul.f32 %v2011, %v2078
  %v2095 = vmul.f32 %v2013, %v2079
  %v2096 = vmul.f32 %v2015, %v2080
  %v2097 = vmul.f32 %v2017, %v2081
  %v2098 = vpack.c.bf16 %v2083, %v2082
  %v2099 = vpack.c.bf16 %v2085, %v2084
  %v2100 = vpack.c.bf16 %v2087, %v2086
  %v2101 = vpack.c.bf16 %v2089, %v2088
  %v2102 = vpack.c.bf16 %v2091, %v2090
  %v2103 = vpack.c.bf16 %v2093, %v2092
  %v2104 = vpack.c.bf16 %v2095, %v2094
  %v2105 = vpack.c.bf16 %v2097, %v2096
  %2106 = vrot.lane.b32.xlu0 %v488, 88
  %v2107 = vpop.permute.xlu0 %2106
  %v2110 = vsel %vm64, %v2098, 0
  %2112 = vmatprep.subr.bf16.mxu0 0
  %2113 = vmatpush1.bf16.msra.mxu0 0
  %2114 = vmatprep.subr.bf16.mxu0 0
  %2115 = vmatpush1.bf16.msra.mxu0 0
  %2116 = vmatprep.subr.bf16.mxu0 0
  %2117 = vmatpush1.bf16.msra.mxu0 0
  %2118 = vmatprep.subr.bf16.mxu0 0
  %2119 = vmatpush1.bf16.msra.mxu0 0
  %2120 = vmatprep.subr.bf16.mxu0 0
  %2121 = vmatpush1.bf16.msra.mxu0 0
  %2122 = vmatprep.subr.bf16.mxu0 0
  %2123 = vmatpush1.bf16.msra.mxu0 0
  %2124 = vmatprep.subr.bf16.mxu0 0
  %2125 = vmatpush1.bf16.msra.mxu0 0
  %2126 = vmatprep.subr.bf16.mxu0 0
  %2127 = vmatpush1.bf16.msra.mxu0 %v2107
  %2128 = vmatprep.subr.bf16.mxu0 0
  %2129 = vmatpush2.bf16.msra.mxu0 0
  %2130 = vmatprep.subr.bf16.mxu0 0
  %2131 = vmatpush2.bf16.msra.mxu0 0
  %2132 = vmatprep.subr.bf16.mxu0 0
  %2133 = vmatpush2.bf16.msra.mxu0 0
  %2134 = vmatprep.subr.bf16.mxu0 0
  %2135 = vmatpush2.bf16.msra.mxu0 0
  %2136 = vmatprep.subr.bf16.mxu0 0
  %2137 = vmatpush2.bf16.msra.mxu0 0
  %2138 = vmatprep.subr.bf16.mxu0 0
  %2139 = vmatpush2.bf16.msra.mxu0 0
  %2140 = vmatprep.subr.bf16.mxu0 0
  %2141 = vmatpush2.bf16.msra.mxu0 0
  %2142 = vmatprep.subr.bf16.mxu0 0
  %2143 = vmatpush2.bf16.msra.mxu0 0
  %2144 = vmatprep.mubr.bf16.mxu0 0
  %2145 = vmatmul.mubr.bf16.gmra.mxu0 %v2110
  %v2146 = vpop.f32.mrf.mxu0
  %v2147 = vadd.f32 0.0, %v2146
  %v2148 = vpop.f32.mrf.mxu0
  %v2149 = vpop.f32.mrf.mxu0
  %v2150 = vadd.f32 0.0, %v2149
  %v2151 = vpop.f32.mrf.mxu0
  %2152 = vdwg.mxu0
  %2153 = vrot.lane.b32.xlu0 %v489, 88
  %v2154 = vpop.permute.xlu0 %2153
  %v2157 = vsel %vm64, %v2099, 0
  %2159 = vmatprep.subr.bf16.mxu0 0
  %2160 = vmatpush1.bf16.msra.mxu0 0
  %2161 = vmatprep.subr.bf16.mxu0 0
  %2162 = vmatpush1.bf16.msra.mxu0 0
  %2163 = vmatprep.subr.bf16.mxu0 0
  %2164 = vmatpush1.bf16.msra.mxu0 0
  %2165 = vmatprep.subr.bf16.mxu0 0
  %2166 = vmatpush1.bf16.msra.mxu0 0
  %2167 = vmatprep.subr.bf16.mxu0 0
  %2168 = vmatpush1.bf16.msra.mxu0 0
  %2169 = vmatprep.subr.bf16.mxu0 0
  %2170 = vmatpush1.bf16.msra.mxu0 0
  %2171 = vmatprep.subr.bf16.mxu0 0
  %2172 = vmatpush1.bf16.msra.mxu0 0
  %2173 = vmatprep.subr.bf16.mxu0 0
  %2174 = vmatpush1.bf16.msra.mxu0 %v2154
  %2175 = vmatprep.subr.bf16.mxu0 0
  %2176 = vmatpush2.bf16.msra.mxu0 0
  %2177 = vmatprep.subr.bf16.mxu0 0
  %2178 = vmatpush2.bf16.msra.mxu0 0
  %2179 = vmatprep.subr.bf16.mxu0 0
  %2180 = vmatpush2.bf16.msra.mxu0 0
  %2181 = vmatprep.subr.bf16.mxu0 0
  %2182 = vmatpush2.bf16.msra.mxu0 0
  %2183 = vmatprep.subr.bf16.mxu0 0
  %2184 = vmatpush2.bf16.msra.mxu0 0
  %2185 = vmatprep.subr.bf16.mxu0 0
  %2186 = vmatpush2.bf16.msra.mxu0 0
  %2187 = vmatprep.subr.bf16.mxu0 0
  %2188 = vmatpush2.bf16.msra.mxu0 0
  %2189 = vmatprep.subr.bf16.mxu0 0
  %2190 = vmatpush2.bf16.msra.mxu0 0
  %2191 = vmatprep.mubr.bf16.mxu0 0
  %2192 = vmatmul.mubr.bf16.gmra.mxu0 %v2157
  %v2193 = vpop.f32.mrf.mxu0
  %v2194 = vadd.f32 0.0, %v2193
  %v2195 = vpop.f32.mrf.mxu0
  %v2196 = vpop.f32.mrf.mxu0
  %v2197 = vadd.f32 0.0, %v2196
  %v2198 = vpop.f32.mrf.mxu0
  %2199 = vdwg.mxu0
  %2200 = vrot.lane.b32.xlu0 %v490, 88
  %v2201 = vpop.permute.xlu0 %2200
  %v2204 = vsel %vm64, %v2100, 0
  %2206 = vmatprep.subr.bf16.mxu0 0
  %2207 = vmatpush1.bf16.msra.mxu0 0
  %2208 = vmatprep.subr.bf16.mxu0 0
  %2209 = vmatpush1.bf16.msra.mxu0 0
  %2210 = vmatprep.subr.bf16.mxu0 0
  %2211 = vmatpush1.bf16.msra.mxu0 0
  %2212 = vmatprep.subr.bf16.mxu0 0
  %2213 = vmatpush1.bf16.msra.mxu0 0
  %2214 = vmatprep.subr.bf16.mxu0 0
  %2215 = vmatpush1.bf16.msra.mxu0 0
  %2216 = vmatprep.subr.bf16.mxu0 0
  %2217 = vmatpush1.bf16.msra.mxu0 0
  %2218 = vmatprep.subr.bf16.mxu0 0
  %2219 = vmatpush1.bf16.msra.mxu0 0
  %2220 = vmatprep.subr.bf16.mxu0 0
  %2221 = vmatpush1.bf16.msra.mxu0 %v2201
  %2222 = vmatprep.subr.bf16.mxu0 0
  %2223 = vmatpush2.bf16.msra.mxu0 0
  %2224 = vmatprep.subr.bf16.mxu0 0
  %2225 = vmatpush2.bf16.msra.mxu0 0
  %2226 = vmatprep.subr.bf16.mxu0 0
  %2227 = vmatpush2.bf16.msra.mxu0 0
  %2228 = vmatprep.subr.bf16.mxu0 0
  %2229 = vmatpush2.bf16.msra.mxu0 0
  %2230 = vmatprep.subr.bf16.mxu0 0
  %2231 = vmatpush2.bf16.msra.mxu0 0
  %2232 = vmatprep.subr.bf16.mxu0 0
  %2233 = vmatpush2.bf16.msra.mxu0 0
  %2234 = vmatprep.subr.bf16.mxu0 0
  %2235 = vmatpush2.bf16.msra.mxu0 0
  %2236 = vmatprep.subr.bf16.mxu0 0
  %2237 = vmatpush2.bf16.msra.mxu0 0
  %2238 = vmatprep.mubr.bf16.mxu0 0
  %2239 = vmatmul.mubr.bf16.gmra.mxu0 %v2204
  %v2240 = vpop.f32.mrf.mxu0
  %v2241 = vadd.f32 0.0, %v2240
  %v2242 = vpop.f32.mrf.mxu0
  %v2243 = vpop.f32.mrf.mxu0
  %v2244 = vadd.f32 0.0, %v2243
  %v2245 = vpop.f32.mrf.mxu0
  %2246 = vdwg.mxu0
  %2247 = vrot.lane.b32.xlu0 %v491, 88
  %v2248 = vpop.permute.xlu0 %2247
  %v2251 = vsel %vm64, %v2101, 0
  %2253 = vmatprep.subr.bf16.mxu0 0
  %2254 = vmatpush1.bf16.msra.mxu0 0
  %2255 = vmatprep.subr.bf16.mxu0 0
  %2256 = vmatpush1.bf16.msra.mxu0 0
  %2257 = vmatprep.subr.bf16.mxu0 0
  %2258 = vmatpush1.bf16.msra.mxu0 0
  %2259 = vmatprep.subr.bf16.mxu0 0
  %2260 = vmatpush1.bf16.msra.mxu0 0
  %2261 = vmatprep.subr.bf16.mxu0 0
  %2262 = vmatpush1.bf16.msra.mxu0 0
  %2263 = vmatprep.subr.bf16.mxu0 0
  %2264 = vmatpush1.bf16.msra.mxu0 0
  %2265 = vmatprep.subr.bf16.mxu0 0
  %2266 = vmatpush1.bf16.msra.mxu0 0
  %2267 = vmatprep.subr.bf16.mxu0 0
  %2268 = vmatpush1.bf16.msra.mxu0 %v2248
  %2269 = vmatprep.subr.bf16.mxu0 0
  %2270 = vmatpush2.bf16.msra.mxu0 0
  %2271 = vmatprep.subr.bf16.mxu0 0
  %2272 = vmatpush2.bf16.msra.mxu0 0
  %2273 = vmatprep.subr.bf16.mxu0 0
  %2274 = vmatpush2.bf16.msra.mxu0 0
  %2275 = vmatprep.subr.bf16.mxu0 0
  %2276 = vmatpush2.bf16.msra.mxu0 0
  %2277 = vmatprep.subr.bf16.mxu0 0
  %2278 = vmatpush2.bf16.msra.mxu0 0
  %2279 = vmatprep.subr.bf16.mxu0 0
  %2280 = vmatpush2.bf16.msra.mxu0 0
  %2281 = vmatprep.subr.bf16.mxu0 0
  %2282 = vmatpush2.bf16.msra.mxu0 0
  %2283 = vmatprep.subr.bf16.mxu0 0
  %2284 = vmatpush2.bf16.msra.mxu0 0
  %2285 = vmatprep.mubr.bf16.mxu0 0
  %2286 = vmatmul.mubr.bf16.gmra.mxu0 %v2251
  %v2287 = vpop.f32.mrf.mxu0
  %v2288 = vadd.f32 0.0, %v2287
  %v2289 = vpop.f32.mrf.mxu0
  %v2290 = vpop.f32.mrf.mxu0
  %v2291 = vadd.f32 0.0, %v2290
  %v2292 = vpop.f32.mrf.mxu0
  %2293 = vdwg.mxu0
  %2294 = vrot.lane.b32.xlu0 %v492, 88
  %v2295 = vpop.permute.xlu0 %2294
  %v2298 = vsel %vm64, %v2102, 0
  %2300 = vmatprep.subr.bf16.mxu0 0
  %2301 = vmatpush1.bf16.msra.mxu0 0
  %2302 = vmatprep.subr.bf16.mxu0 0
  %2303 = vmatpush1.bf16.msra.mxu0 0
  %2304 = vmatprep.subr.bf16.mxu0 0
  %2305 = vmatpush1.bf16.msra.mxu0 0
  %2306 = vmatprep.subr.bf16.mxu0 0
  %2307 = vmatpush1.bf16.msra.mxu0 0
  %2308 = vmatprep.subr.bf16.mxu0 0
  %2309 = vmatpush1.bf16.msra.mxu0 0
  %2310 = vmatprep.subr.bf16.mxu0 0
  %2311 = vmatpush1.bf16.msra.mxu0 0
  %2312 = vmatprep.subr.bf16.mxu0 0
  %2313 = vmatpush1.bf16.msra.mxu0 0
  %2314 = vmatprep.subr.bf16.mxu0 0
  %2315 = vmatpush1.bf16.msra.mxu0 %v2295
  %2316 = vmatprep.subr.bf16.mxu0 0
  %2317 = vmatpush2.bf16.msra.mxu0 0
  %2318 = vmatprep.subr.bf16.mxu0 0
  %2319 = vmatpush2.bf16.msra.mxu0 0
  %2320 = vmatprep.subr.bf16.mxu0 0
  %2321 = vmatpush2.bf16.msra.mxu0 0
  %2322 = vmatprep.subr.bf16.mxu0 0
  %2323 = vmatpush2.bf16.msra.mxu0 0
  %2324 = vmatprep.subr.bf16.mxu0 0
  %2325 = vmatpush2.bf16.msra.mxu0 0
  %2326 = vmatprep.subr.bf16.mxu0 0
  %2327 = vmatpush2.bf16.msra.mxu0 0
  %2328 = vmatprep.subr.bf16.mxu0 0
  %2329 = vmatpush2.bf16.msra.mxu0 0
  %2330 = vmatprep.subr.bf16.mxu0 0
  %2331 = vmatpush2.bf16.msra.mxu0 0
  %2332 = vmatprep.mubr.bf16.mxu0 0
  %2333 = vmatmul.mubr.bf16.gmra.mxu0 %v2298
  %v2334 = vpop.f32.mrf.mxu0
  %v2335 = vadd.f32 0.0, %v2334
  %v2336 = vpop.f32.mrf.mxu0
  %v2337 = vpop.f32.mrf.mxu0
  %v2338 = vadd.f32 0.0, %v2337
  %v2339 = vpop.f32.mrf.mxu0
  %2340 = vdwg.mxu0
  %2341 = vrot.lane.b32.xlu0 %v493, 88
  %v2342 = vpop.permute.xlu0 %2341
  %v2345 = vsel %vm64, %v2103, 0
  %2347 = vmatprep.subr.bf16.mxu0 0
  %2348 = vmatpush1.bf16.msra.mxu0 0
  %2349 = vmatprep.subr.bf16.mxu0 0
  %2350 = vmatpush1.bf16.msra.mxu0 0
  %2351 = vmatprep.subr.bf16.mxu0 0
  %2352 = vmatpush1.bf16.msra.mxu0 0
  %2353 = vmatprep.subr.bf16.mxu0 0
  %2354 = vmatpush1.bf16.msra.mxu0 0
  %2355 = vmatprep.subr.bf16.mxu0 0
  %2356 = vmatpush1.bf16.msra.mxu0 0
  %2357 = vmatprep.subr.bf16.mxu0 0
  %2358 = vmatpush1.bf16.msra.mxu0 0
  %2359 = vmatprep.subr.bf16.mxu0 0
  %2360 = vmatpush1.bf16.msra.mxu0 0
  %2361 = vmatprep.subr.bf16.mxu0 0
  %2362 = vmatpush1.bf16.msra.mxu0 %v2342
  %2363 = vmatprep.subr.bf16.mxu0 0
  %2364 = vmatpush2.bf16.msra.mxu0 0
  %2365 = vmatprep.subr.bf16.mxu0 0
  %2366 = vmatpush2.bf16.msra.mxu0 0
  %2367 = vmatprep.subr.bf16.mxu0 0
  %2368 = vmatpush2.bf16.msra.mxu0 0
  %2369 = vmatprep.subr.bf16.mxu0 0
  %2370 = vmatpush2.bf16.msra.mxu0 0
  %2371 = vmatprep.subr.bf16.mxu0 0
  %2372 = vmatpush2.bf16.msra.mxu0 0
  %2373 = vmatprep.subr.bf16.mxu0 0
  %2374 = vmatpush2.bf16.msra.mxu0 0
  %2375 = vmatprep.subr.bf16.mxu0 0
  %2376 = vmatpush2.bf16.msra.mxu0 0
  %2377 = vmatprep.subr.bf16.mxu0 0
  %2378 = vmatpush2.bf16.msra.mxu0 0
  %2379 = vmatprep.mubr.bf16.mxu0 0
  %2380 = vmatmul.mubr.bf16.gmra.mxu0 %v2345
  %v2381 = vpop.f32.mrf.mxu0
  %v2382 = vadd.f32 0.0, %v2381
  %v2383 = vpop.f32.mrf.mxu0
  %v2384 = vpop.f32.mrf.mxu0
  %v2385 = vadd.f32 0.0, %v2384
  %v2386 = vpop.f32.mrf.mxu0
  %2387 = vdwg.mxu0
  %2388 = vrot.lane.b32.xlu0 %v494, 88
  %v2389 = vpop.permute.xlu0 %2388
  %v2392 = vsel %vm64, %v2104, 0
  %2394 = vmatprep.subr.bf16.mxu0 0
  %2395 = vmatpush1.bf16.msra.mxu0 0
  %2396 = vmatprep.subr.bf16.mxu0 0
  %2397 = vmatpush1.bf16.msra.mxu0 0
  %2398 = vmatprep.subr.bf16.mxu0 0
  %2399 = vmatpush1.bf16.msra.mxu0 0
  %2400 = vmatprep.subr.bf16.mxu0 0
  %2401 = vmatpush1.bf16.msra.mxu0 0
  %2402 = vmatprep.subr.bf16.mxu0 0
  %2403 = vmatpush1.bf16.msra.mxu0 0
  %2404 = vmatprep.subr.bf16.mxu0 0
  %2405 = vmatpush1.bf16.msra.mxu0 0
  %2406 = vmatprep.subr.bf16.mxu0 0
  %2407 = vmatpush1.bf16.msra.mxu0 0
  %2408 = vmatprep.subr.bf16.mxu0 0
  %2409 = vmatpush1.bf16.msra.mxu0 %v2389
  %2410 = vmatprep.subr.bf16.mxu0 0
  %2411 = vmatpush2.bf16.msra.mxu0 0
  %2412 = vmatprep.subr.bf16.mxu0 0
  %2413 = vmatpush2.bf16.msra.mxu0 0
  %2414 = vmatprep.subr.bf16.mxu0 0
  %2415 = vmatpush2.bf16.msra.mxu0 0
  %2416 = vmatprep.subr.bf16.mxu0 0
  %2417 = vmatpush2.bf16.msra.mxu0 0
  %2418 = vmatprep.subr.bf16.mxu0 0
  %2419 = vmatpush2.bf16.msra.mxu0 0
  %2420 = vmatprep.subr.bf16.mxu0 0
  %2421 = vmatpush2.bf16.msra.mxu0 0
  %2422 = vmatprep.subr.bf16.mxu0 0
  %2423 = vmatpush2.bf16.msra.mxu0 0
  %2424 = vmatprep.subr.bf16.mxu0 0
  %2425 = vmatpush2.bf16.msra.mxu0 0
  %2426 = vmatprep.mubr.bf16.mxu0 0
  %2427 = vmatmul.mubr.bf16.gmra.mxu0 %v2392
  %v2428 = vpop.f32.mrf.mxu0
  %v2429 = vadd.f32 0.0, %v2428
  %v2430 = vpop.f32.mrf.mxu0
  %v2431 = vpop.f32.mrf.mxu0
  %v2432 = vadd.f32 0.0, %v2431
  %v2433 = vpop.f32.mrf.mxu0
  %2434 = vdwg.mxu0
  %2435 = vrot.lane.b32.xlu0 %v495, 88
  %v2436 = vpop.permute.xlu0 %2435
  %v2439 = vsel %vm64, %v2105, 0
  %2441 = vmatprep.subr.bf16.mxu0 0
  %2442 = vmatpush1.bf16.msra.mxu0 0
  %2443 = vmatprep.subr.bf16.mxu0 0
  %2444 = vmatpush1.bf16.msra.mxu0 0
  %2445 = vmatprep.subr.bf16.mxu0 0
  %2446 = vmatpush1.bf16.msra.mxu0 0
  %2447 = vmatprep.subr.bf16.mxu0 0
  %2448 = vmatpush1.bf16.msra.mxu0 0
  %2449 = vmatprep.subr.bf16.mxu0 0
  %2450 = vmatpush1.bf16.msra.mxu0 0
  %2451 = vmatprep.subr.bf16.mxu0 0
  %2452 = vmatpush1.bf16.msra.mxu0 0
  %2453 = vmatprep.subr.bf16.mxu0 0
  %2454 = vmatpush1.bf16.msra.mxu0 0
  %2455 = vmatprep.subr.bf16.mxu0 0
  %2456 = vmatpush1.bf16.msra.mxu0 %v2436
  %2457 = vmatprep.subr.bf16.mxu0 0
  %2458 = vmatpush2.bf16.msra.mxu0 0
  %2459 = vmatprep.subr.bf16.mxu0 0
  %2460 = vmatpush2.bf16.msra.mxu0 0
  %2461 = vmatprep.subr.bf16.mxu0 0
  %2462 = vmatpush2.bf16.msra.mxu0 0
  %2463 = vmatprep.subr.bf16.mxu0 0
  %2464 = vmatpush2.bf16.msra.mxu0 0
  %2465 = vmatprep.subr.bf16.mxu0 0
  %2466 = vmatpush2.bf16.msra.mxu0 0
  %2467 = vmatprep.subr.bf16.mxu0 0
  %2468 = vmatpush2.bf16.msra.mxu0 0
  %2469 = vmatprep.subr.bf16.mxu0 0
  %2470 = vmatpush2.bf16.msra.mxu0 0
  %2471 = vmatprep.subr.bf16.mxu0 0
  %2472 = vmatpush2.bf16.msra.mxu0 0
  %2473 = vmatprep.mubr.bf16.mxu0 0
  %2474 = vmatmul.mubr.bf16.gmra.mxu0 %v2439
  %v2475 = vpop.f32.mrf.mxu0
  %v2476 = vadd.f32 0.0, %v2475
  %v2477 = vpop.f32.mrf.mxu0
  %v2478 = vpop.f32.mrf.mxu0
  %v2479 = vadd.f32 0.0, %v2478
  %v2480 = vpop.f32.mrf.mxu0
  %2481 = vdwg.mxu0
  %2498 = vrot.lane.b32.xlu0 %v2147, 8
  %v2499 = vpop.permute.xlu0 %2498
  %2500 = vrot.lane.b32.xlu0 %v2150, 8
  %v2501 = vpop.permute.xlu0 %2500
  %2502 = vrot.lane.b32.xlu0 %v2194, 8
  %v2503 = vpop.permute.xlu0 %2502
  %2504 = vrot.lane.b32.xlu0 %v2197, 8
  %v2505 = vpop.permute.xlu0 %2504
  %2506 = vrot.lane.b32.xlu0 %v2241, 8
  %v2507 = vpop.permute.xlu0 %2506
  %2508 = vrot.lane.b32.xlu0 %v2244, 8
  %v2509 = vpop.permute.xlu0 %2508
  %2510 = vrot.lane.b32.xlu0 %v2288, 8
  %v2511 = vpop.permute.xlu0 %2510
  %2512 = vrot.lane.b32.xlu0 %v2291, 8
  %v2513 = vpop.permute.xlu0 %2512
  %2514 = vrot.lane.b32.xlu0 %v2335, 8
  %v2515 = vpop.permute.xlu0 %2514
  %2516 = vrot.lane.b32.xlu0 %v2338, 8
  %v2517 = vpop.permute.xlu0 %2516
  %2518 = vrot.lane.b32.xlu0 %v2382, 8
  %v2519 = vpop.permute.xlu0 %2518
  %2520 = vrot.lane.b32.xlu0 %v2385, 8
  %v2521 = vpop.permute.xlu0 %2520
  %2522 = vrot.lane.b32.xlu0 %v2429, 8
  %v2523 = vpop.permute.xlu0 %2522
  %2524 = vrot.lane.b32.xlu0 %v2432, 8
  %v2525 = vpop.permute.xlu0 %2524
  %2526 = vrot.lane.b32.xlu0 %v2476, 8
  %v2527 = vpop.permute.xlu0 %2526
  %2528 = vrot.lane.b32.xlu0 %v2479, 8
  %v2529 = vpop.permute.xlu0 %2528
  %v2546 = vsel %vm499, %v1146, %v2499
  %v2547 = vsel %vm499, %v1149, %v2501
  %v2548 = vsel %vm499, %v1193, %v2503
  %v2549 = vsel %vm499, %v1196, %v2505
  %v2550 = vsel %vm499, %v1240, %v2507
  %v2551 = vsel %vm499, %v1243, %v2509
  %v2552 = vsel %vm499, %v1287, %v2511
  %v2553 = vsel %vm499, %v1290, %v2513
  %v2554 = vsel %vm499, %v1334, %v2515
  %v2555 = vsel %vm499, %v1337, %v2517
  %v2556 = vsel %vm499, %v1381, %v2519
  %v2557 = vsel %vm499, %v1384, %v2521
  %v2558 = vsel %vm499, %v1428, %v2523
  %v2559 = vsel %vm499, %v1431, %v2525
  %v2560 = vsel %vm499, %v1475, %v2527
  %v2561 = vsel %vm499, %v1478, %v2529
  %v2562 = vpack.c.bf16 %v2547, %v2546
  %v2563 = vpack.c.bf16 %v2549, %v2548
  %v2564 = vpack.c.bf16 %v2551, %v2550
  %v2565 = vpack.c.bf16 %v2553, %v2552
  %v2566 = vpack.c.bf16 %v2555, %v2554
  %v2567 = vpack.c.bf16 %v2557, %v2556
  %v2568 = vpack.c.bf16 %v2559, %v2558
  %v2569 = vpack.c.bf16 %v2561, %v2560
  %v2570 = vld [vmem:[%s6] sm:$0xf]
  %v2571 = vld [vmem:[%s6 + $0x4] sm:$0xf]
  %v2574 = vunpack.c.l.b16 %v2570
  %v2575 = vunpack.c.l.b16 %v2571
  %v2576 = vpack.c.b16 %v2575, %v2574
  %v2579 = vsel %vm64, %v2562, 0
  %v2582 = vsel %vm64, %v2563, 0
  %v2585 = vsel %vm64, %v2564, 0
  %v2588 = vsel %vm64, %v2565, 0
  %v2591 = vsel %vm64, %v2566, 0
  %v2594 = vsel %vm64, %v2567, 0
  %v2597 = vsel %vm64, %v2568, 0
  %v2600 = vsel %vm64, %v2569, 0
  %2602 = vmatprep.subr.bf16.mxu0 0
  %2603 = vmatpush1.bf16.msra.mxu0 0
  %2604 = vmatprep.subr.bf16.mxu0 0
  %2605 = vmatpush1.bf16.msra.mxu0 0
  %2606 = vmatprep.subr.bf16.mxu0 0
  %2607 = vmatpush1.bf16.msra.mxu0 0
  %2608 = vmatprep.subr.bf16.mxu0 0
  %2609 = vmatpush1.bf16.msra.mxu0 0
  %2610 = vmatprep.subr.bf16.mxu0 0
  %2611 = vmatpush1.bf16.msra.mxu0 0
  %2612 = vmatprep.subr.bf16.mxu0 0
  %2613 = vmatpush1.bf16.msra.mxu0 0
  %2614 = vmatprep.subr.bf16.mxu0 0
  %2615 = vmatpush1.bf16.msra.mxu0 0
  %2616 = vmatprep.subr.bf16.mxu0 0
  %2617 = vmatpush1.bf16.msra.mxu0 %v2576
  %2618 = vmatprep.subr.bf16.mxu0 0
  %2619 = vmatpush2.bf16.msra.mxu0 0
  %2620 = vmatprep.subr.bf16.mxu0 0
  %2621 = vmatpush2.bf16.msra.mxu0 0
  %2622 = vmatprep.subr.bf16.mxu0 0
  %2623 = vmatpush2.bf16.msra.mxu0 0
  %2624 = vmatprep.subr.bf16.mxu0 0
  %2625 = vmatpush2.bf16.msra.mxu0 0
  %2626 = vmatprep.subr.bf16.mxu0 0
  %2627 = vmatpush2.bf16.msra.mxu0 0
  %2628 = vmatprep.subr.bf16.mxu0 0
  %2629 = vmatpush2.bf16.msra.mxu0 0
  %2630 = vmatprep.subr.bf16.mxu0 0
  %2631 = vmatpush2.bf16.msra.mxu0 0
  %2632 = vmatprep.subr.bf16.mxu0 0
  %2633 = vmatpush2.bf16.msra.mxu0 0
  %2634 = vmatprep.mubr.bf16.mxu0 0
  %2635 = vmatmul.mubr.bf16.gmra.mxu0 %v2579
  %v2636 = vpop.f32.mrf.mxu0
  %v2637 = vadd.f32 0.0, %v2636
  %v2638 = vpop.f32.mrf.mxu0
  %v2639 = vpop.f32.mrf.mxu0
  %v2640 = vadd.f32 0.0, %v2639
  %v2641 = vpop.f32.mrf.mxu0
  %2642 = vmatprep.mubr.bf16.mxu0 0
  %2643 = vmatmul.mubr.bf16.gmra.mxu0 %v2582
  %v2644 = vpop.f32.mrf.mxu0
  %v2645 = vadd.f32 0.0, %v2644
  %v2646 = vpop.f32.mrf.mxu0
  %v2647 = vpop.f32.mrf.mxu0
  %v2648 = vadd.f32 0.0, %v2647
  %v2649 = vpop.f32.mrf.mxu0
  %2650 = vmatprep.mubr.bf16.mxu0 0
  %2651 = vmatmul.mubr.bf16.gmra.mxu0 %v2585
  %v2652 = vpop.f32.mrf.mxu0
  %v2653 = vadd.f32 0.0, %v2652
  %v2654 = vpop.f32.mrf.mxu0
  %v2655 = vpop.f32.mrf.mxu0
  %v2656 = vadd.f32 0.0, %v2655
  %v2657 = vpop.f32.mrf.mxu0
  %2658 = vmatprep.mubr.bf16.mxu0 0
  %2659 = vmatmul.mubr.bf16.gmra.mxu0 %v2588
  %v2660 = vpop.f32.mrf.mxu0
  %v2661 = vadd.f32 0.0, %v2660
  %v2662 = vpop.f32.mrf.mxu0
  %v2663 = vpop.f32.mrf.mxu0
  %v2664 = vadd.f32 0.0, %v2663
  %v2665 = vpop.f32.mrf.mxu0
  %2666 = vmatprep.mubr.bf16.mxu0 0
  %2667 = vmatmul.mubr.bf16.gmra.mxu0 %v2591
  %v2668 = vpop.f32.mrf.mxu0
  %v2669 = vadd.f32 0.0, %v2668
  %v2670 = vpop.f32.mrf.mxu0
  %v2671 = vpop.f32.mrf.mxu0
  %v2672 = vadd.f32 0.0, %v2671
  %v2673 = vpop.f32.mrf.mxu0
  %2674 = vmatprep.mubr.bf16.mxu0 0
  %2675 = vmatmul.mubr.bf16.gmra.mxu0 %v2594
  %v2676 = vpop.f32.mrf.mxu0
  %v2677 = vadd.f32 0.0, %v2676
  %v2678 = vpop.f32.mrf.mxu0
  %v2679 = vpop.f32.mrf.mxu0
  %v2680 = vadd.f32 0.0, %v2679
  %v2681 = vpop.f32.mrf.mxu0
  %2682 = vmatprep.mubr.bf16.mxu0 0
  %2683 = vmatmul.mubr.bf16.gmra.mxu0 %v2597
  %v2684 = vpop.f32.mrf.mxu0
  %v2685 = vadd.f32 0.0, %v2684
  %v2686 = vpop.f32.mrf.mxu0
  %v2687 = vpop.f32.mrf.mxu0
  %v2688 = vadd.f32 0.0, %v2687
  %v2689 = vpop.f32.mrf.mxu0
  %2690 = vmatprep.mubr.bf16.mxu0 0
  %2691 = vmatmul.mubr.bf16.gmra.mxu0 %v2600
  %v2692 = vpop.f32.mrf.mxu0
  %v2693 = vadd.f32 0.0, %v2692
  %v2694 = vpop.f32.mrf.mxu0
  %v2695 = vpop.f32.mrf.mxu0
  %v2696 = vadd.f32 0.0, %v2695
  %v2697 = vpop.f32.mrf.mxu0
  %2698 = vdwg.mxu0
  %v2699 = vadd.f32 %v48, %v2637
  %v2700 = vadd.f32 %v49, %v2640
  %v2701 = vadd.f32 %v50, %v2645
  %v2702 = vadd.f32 %v51, %v2648
  %v2703 = vadd.f32 %v52, %v2653
  %v2704 = vadd.f32 %v53, %v2656
  %v2705 = vadd.f32 %v54, %v2661
  %v2706 = vadd.f32 %v55, %v2664
  %v2707 = vadd.f32 %v56, %v2669
  %v2708 = vadd.f32 %v57, %v2672
  %v2709 = vadd.f32 %v58, %v2677
  %v2710 = vadd.f32 %v59, %v2680
  %v2711 = vadd.f32 %v60, %v2685
  %v2712 = vadd.f32 %v61, %v2688
  %v2713 = vadd.f32 %v62, %v2693
  %v2714 = vadd.f32 %v63, %v2696
  %v2715 = vld [vmem:[%s7] sm:$0x1]
  %v2717 = vlaneseq
  %v2718 = vshrl.u32 %v2717, 7
  %v2719 = vsub.s32 0, %v2718
  %v2720 = vrot.slane %v2715, %v2719
  %v2722 = vadd.f32 %v2699, %v2720
  %v2723 = vadd.f32 %v2700, %v2720
  %v2724 = vadd.f32 %v2701, %v2720
  %v2725 = vadd.f32 %v2702, %v2720
  %v2726 = vadd.f32 %v2703, %v2720
  %v2727 = vadd.f32 %v2704, %v2720
  %v2728 = vadd.f32 %v2705, %v2720
  %v2729 = vadd.f32 %v2706, %v2720
  %v2730 = vadd.f32 %v2707, %v2720
  %v2731 = vadd.f32 %v2708, %v2720
  %v2732 = vadd.f32 %v2709, %v2720
  %v2733 = vadd.f32 %v2710, %v2720
  %v2734 = vadd.f32 %v2711, %v2720
  %v2735 = vadd.f32 %v2712, %v2720
  %v2736 = vadd.f32 %v2713, %v2720
  %v2737 = vadd.f32 %v2714, %v2720
  %v2738 = vsel %vm64, %v2722, 0.0
  %2739 = vadd.xlane.f32.xlu0 %v2738
  %v2740 = vpop.xlane.xlu0 %2739
  %v2741 = vsel %vm64, %v2723, 0.0
  %2742 = vadd.xlane.f32.xlu0 %v2741
  %v2743 = vpop.xlane.xlu0 %2742
  %v2744 = vsel %vm64, %v2724, 0.0
  %2745 = vadd.xlane.f32.xlu0 %v2744
  %v2746 = vpop.xlane.xlu0 %2745
  %v2747 = vsel %vm64, %v2725, 0.0
  %2748 = vadd.xlane.f32.xlu0 %v2747
  %v2749 = vpop.xlane.xlu0 %2748
  %v2750 = vsel %vm64, %v2726, 0.0
  %2751 = vadd.xlane.f32.xlu0 %v2750
  %v2752 = vpop.xlane.xlu0 %2751
  %v2753 = vsel %vm64, %v2727, 0.0
  %2754 = vadd.xlane.f32.xlu0 %v2753
  %v2755 = vpop.xlane.xlu0 %2754
  %v2756 = vsel %vm64, %v2728, 0.0
  %2757 = vadd.xlane.f32.xlu0 %v2756
  %v2758 = vpop.xlane.xlu0 %2757
  %v2759 = vsel %vm64, %v2729, 0.0
  %2760 = vadd.xlane.f32.xlu0 %v2759
  %v2761 = vpop.xlane.xlu0 %2760
  %v2762 = vsel %vm64, %v2730, 0.0
  %2763 = vadd.xlane.f32.xlu0 %v2762
  %v2764 = vpop.xlane.xlu0 %2763
  %v2765 = vsel %vm64, %v2731, 0.0
  %2766 = vadd.xlane.f32.xlu0 %v2765
  %v2767 = vpop.xlane.xlu0 %2766
  %v2768 = vsel %vm64, %v2732, 0.0
  %2769 = vadd.xlane.f32.xlu0 %v2768
  %v2770 = vpop.xlane.xlu0 %2769
  %v2771 = vsel %vm64, %v2733, 0.0
  %2772 = vadd.xlane.f32.xlu0 %v2771
  %v2773 = vpop.xlane.xlu0 %2772
  %v2774 = vsel %vm64, %v2734, 0.0
  %2775 = vadd.xlane.f32.xlu0 %v2774
  %v2776 = vpop.xlane.xlu0 %2775
  %v2777 = vsel %vm64, %v2735, 0.0
  %2778 = vadd.xlane.f32.xlu0 %v2777
  %v2779 = vpop.xlane.xlu0 %2778
  %v2780 = vsel %vm64, %v2736, 0.0
  %2781 = vadd.xlane.f32.xlu0 %v2780
  %v2782 = vpop.xlane.xlu0 %2781
  %v2783 = vsel %vm64, %v2737, 0.0
  %2784 = vadd.xlane.f32.xlu0 %v2783
  %v2785 = vpop.xlane.xlu0 %2784
  %v2786 = vmul.f32 %v2740, %v113
  %v2787 = vmul.f32 %v2743, %v113
  %v2788 = vmul.f32 %v2746, %v113
  %v2789 = vmul.f32 %v2749, %v113
  %v2790 = vmul.f32 %v2752, %v113
  %v2791 = vmul.f32 %v2755, %v113
  %v2792 = vmul.f32 %v2758, %v113
  %v2793 = vmul.f32 %v2761, %v113
  %v2794 = vmul.f32 %v2764, %v113
  %v2795 = vmul.f32 %v2767, %v113
  %v2796 = vmul.f32 %v2770, %v113
  %v2797 = vmul.f32 %v2773, %v113
  %v2798 = vmul.f32 %v2776, %v113
  %v2799 = vmul.f32 %v2779, %v113
  %v2800 = vmul.f32 %v2782, %v113
  %v2801 = vmul.f32 %v2785, %v113
  %v2802 = vsub.f32 %v2722, %v2786
  %v2803 = vsub.f32 %v2723, %v2787
  %v2804 = vsub.f32 %v2724, %v2788
  %v2805 = vsub.f32 %v2725, %v2789
  %v2806 = vsub.f32 %v2726, %v2790
  %v2807 = vsub.f32 %v2727, %v2791
  %v2808 = vsub.f32 %v2728, %v2792
  %v2809 = vsub.f32 %v2729, %v2793
  %v2810 = vsub.f32 %v2730, %v2794
  %v2811 = vsub.f32 %v2731, %v2795
  %v2812 = vsub.f32 %v2732, %v2796
  %v2813 = vsub.f32 %v2733, %v2797
  %v2814 = vsub.f32 %v2734, %v2798
  %v2815 = vsub.f32 %v2735, %v2799
  %v2816 = vsub.f32 %v2736, %v2800
  %v2817 = vsub.f32 %v2737, %v2801
  %v2818 = vmul.f32 %v2802, %v2802
  %v2819 = vmul.f32 %v2803, %v2803
  %v2820 = vmul.f32 %v2804, %v2804
  %v2821 = vmul.f32 %v2805, %v2805
  %v2822 = vmul.f32 %v2806, %v2806
  %v2823 = vmul.f32 %v2807, %v2807
  %v2824 = vmul.f32 %v2808, %v2808
  %v2825 = vmul.f32 %v2809, %v2809
  %v2826 = vmul.f32 %v2810, %v2810
  %v2827 = vmul.f32 %v2811, %v2811
  %v2828 = vmul.f32 %v2812, %v2812
  %v2829 = vmul.f32 %v2813, %v2813
  %v2830 = vmul.f32 %v2814, %v2814
  %v2831 = vmul.f32 %v2815, %v2815
  %v2832 = vmul.f32 %v2816, %v2816
  %v2833 = vmul.f32 %v2817, %v2817
  %v2834 = vsel %vm64, %v2818, 0.0
  %2835 = vadd.xlane.f32.xlu0 %v2834
  %v2836 = vpop.xlane.xlu0 %2835
  %v2837 = vsel %vm64, %v2819, 0.0
  %2838 = vadd.xlane.f32.xlu0 %v2837
  %v2839 = vpop.xlane.xlu0 %2838
  %v2840 = vsel %vm64, %v2820, 0.0
  %2841 = vadd.xlane.f32.xlu0 %v2840
  %v2842 = vpop.xlane.xlu0 %2841
  %v2843 = vsel %vm64, %v2821, 0.0
  %2844 = vadd.xlane.f32.xlu0 %v2843
  %v2845 = vpop.xlane.xlu0 %2844
  %v2846 = vsel %vm64, %v2822, 0.0
  %2847 = vadd.xlane.f32.xlu0 %v2846
  %v2848 = vpop.xlane.xlu0 %2847
  %v2849 = vsel %vm64, %v2823, 0.0
  %2850 = vadd.xlane.f32.xlu0 %v2849
  %v2851 = vpop.xlane.xlu0 %2850
  %v2852 = vsel %vm64, %v2824, 0.0
  %2853 = vadd.xlane.f32.xlu0 %v2852
  %v2854 = vpop.xlane.xlu0 %2853
  %v2855 = vsel %vm64, %v2825, 0.0
  %2856 = vadd.xlane.f32.xlu0 %v2855
  %v2857 = vpop.xlane.xlu0 %2856
  %v2858 = vsel %vm64, %v2826, 0.0
  %2859 = vadd.xlane.f32.xlu0 %v2858
  %v2860 = vpop.xlane.xlu0 %2859
  %v2861 = vsel %vm64, %v2827, 0.0
  %2862 = vadd.xlane.f32.xlu0 %v2861
  %v2863 = vpop.xlane.xlu0 %2862
  %v2864 = vsel %vm64, %v2828, 0.0
  %2865 = vadd.xlane.f32.xlu0 %v2864
  %v2866 = vpop.xlane.xlu0 %2865
  %v2867 = vsel %vm64, %v2829, 0.0
  %2868 = vadd.xlane.f32.xlu0 %v2867
  %v2869 = vpop.xlane.xlu0 %2868
  %v2870 = vsel %vm64, %v2830, 0.0
  %2871 = vadd.xlane.f32.xlu0 %v2870
  %v2872 = vpop.xlane.xlu0 %2871
  %v2873 = vsel %vm64, %v2831, 0.0
  %2874 = vadd.xlane.f32.xlu0 %v2873
  %v2875 = vpop.xlane.xlu0 %2874
  %v2876 = vsel %vm64, %v2832, 0.0
  %2877 = vadd.xlane.f32.xlu0 %v2876
  %v2878 = vpop.xlane.xlu0 %2877
  %v2879 = vsel %vm64, %v2833, 0.0
  %2880 = vadd.xlane.f32.xlu0 %v2879
  %v2881 = vpop.xlane.xlu0 %2880
  %v2882 = vmul.f32 %v2836, %v113
  %v2883 = vmul.f32 %v2839, %v113
  %v2884 = vmul.f32 %v2842, %v113
  %v2885 = vmul.f32 %v2845, %v113
  %v2886 = vmul.f32 %v2848, %v113
  %v2887 = vmul.f32 %v2851, %v113
  %v2888 = vmul.f32 %v2854, %v113
  %v2889 = vmul.f32 %v2857, %v113
  %v2890 = vmul.f32 %v2860, %v113
  %v2891 = vmul.f32 %v2863, %v113
  %v2892 = vmul.f32 %v2866, %v113
  %v2893 = vmul.f32 %v2869, %v113
  %v2894 = vmul.f32 %v2872, %v113
  %v2895 = vmul.f32 %v2875, %v113
  %v2896 = vmul.f32 %v2878, %v113
  %v2897 = vmul.f32 %v2881, %v113
  %v2898 = vadd.f32 %v2882, 1e-05
  %v2899 = vadd.f32 %v2883, 1e-05
  %v2900 = vadd.f32 %v2884, 1e-05
  %v2901 = vadd.f32 %v2885, 1e-05
  %v2902 = vadd.f32 %v2886, 1e-05
  %v2903 = vadd.f32 %v2887, 1e-05
  %v2904 = vadd.f32 %v2888, 1e-05
  %v2905 = vadd.f32 %v2889, 1e-05
  %v2906 = vadd.f32 %v2890, 1e-05
  %v2907 = vadd.f32 %v2891, 1e-05
  %v2908 = vadd.f32 %v2892, 1e-05
  %v2909 = vadd.f32 %v2893, 1e-05
  %v2910 = vadd.f32 %v2894, 1e-05
  %v2911 = vadd.f32 %v2895, 1e-05
  %v2912 = vadd.f32 %v2896, 1e-05
  %v2913 = vadd.f32 %v2897, 1e-05
  %v2914 = vrsqrt.pop %v2898
  %v2915 = vrsqrt.pop %v2899
  %v2916 = vrsqrt.pop %v2900
  %v2917 = vrsqrt.pop %v2901
  %v2918 = vrsqrt.pop %v2902
  %v2919 = vrsqrt.pop %v2903
  %v2920 = vrsqrt.pop %v2904
  %v2921 = vrsqrt.pop %v2905
  %v2922 = vrsqrt.pop %v2906
  %v2923 = vrsqrt.pop %v2907
  %v2924 = vrsqrt.pop %v2908
  %v2925 = vrsqrt.pop %v2909
  %v2926 = vrsqrt.pop %v2910
  %v2927 = vrsqrt.pop %v2911
  %v2928 = vrsqrt.pop %v2912
  %v2929 = vrsqrt.pop %v2913
  %v2930 = vmul.f32 %v2802, %v2914
  %v2931 = vmul.f32 %v2803, %v2915
  %v2932 = vmul.f32 %v2804, %v2916
  %v2933 = vmul.f32 %v2805, %v2917
  %v2934 = vmul.f32 %v2806, %v2918
  %v2935 = vmul.f32 %v2807, %v2919
  %v2936 = vmul.f32 %v2808, %v2920
  %v2937 = vmul.f32 %v2809, %v2921
  %v2938 = vmul.f32 %v2810, %v2922
  %v2939 = vmul.f32 %v2811, %v2923
  %v2940 = vmul.f32 %v2812, %v2924
  %v2941 = vmul.f32 %v2813, %v2925
  %v2942 = vmul.f32 %v2814, %v2926
  %v2943 = vmul.f32 %v2815, %v2927
  %v2944 = vmul.f32 %v2816, %v2928
  %v2945 = vmul.f32 %v2817, %v2929
  %v2946 = vld [vmem:[%s8] sm:$0x1]
  %v2948 = vlaneseq
  %v2949 = vshrl.u32 %v2948, 7
  %v2950 = vsub.s32 0, %v2949
  %v2951 = vrot.slane %v2946, %v2950
  %v2953 = vmul.f32 %v2930, %v2951
  %v2954 = vmul.f32 %v2931, %v2951
  %v2955 = vmul.f32 %v2932, %v2951
  %v2956 = vmul.f32 %v2933, %v2951
  %v2957 = vmul.f32 %v2934, %v2951
  %v2958 = vmul.f32 %v2935, %v2951
  %v2959 = vmul.f32 %v2936, %v2951
  %v2960 = vmul.f32 %v2937, %v2951
  %v2961 = vmul.f32 %v2938, %v2951
  %v2962 = vmul.f32 %v2939, %v2951
  %v2963 = vmul.f32 %v2940, %v2951
  %v2964 = vmul.f32 %v2941, %v2951
  %v2965 = vmul.f32 %v2942, %v2951
  %v2966 = vmul.f32 %v2943, %v2951
  %v2967 = vmul.f32 %v2944, %v2951
  %v2968 = vmul.f32 %v2945, %v2951
  %v2969 = vld [vmem:[%s9] sm:$0x1]
  %v2971 = vlaneseq
  %v2972 = vshrl.u32 %v2971, 7
  %v2973 = vsub.s32 0, %v2972
  %v2974 = vrot.slane %v2969, %v2973
  %v2976 = vadd.f32 %v2953, %v2974
  %v2977 = vadd.f32 %v2954, %v2974
  %v2978 = vadd.f32 %v2955, %v2974
  %v2979 = vadd.f32 %v2956, %v2974
  %v2980 = vadd.f32 %v2957, %v2974
  %v2981 = vadd.f32 %v2958, %v2974
  %v2982 = vadd.f32 %v2959, %v2974
  %v2983 = vadd.f32 %v2960, %v2974
  %v2984 = vadd.f32 %v2961, %v2974
  %v2985 = vadd.f32 %v2962, %v2974
  %v2986 = vadd.f32 %v2963, %v2974
  %v2987 = vadd.f32 %v2964, %v2974
  %v2988 = vadd.f32 %v2965, %v2974
  %v2989 = vadd.f32 %v2966, %v2974
  %v2990 = vadd.f32 %v2967, %v2974
  %v2991 = vadd.f32 %v2968, %v2974
  %v2992 = vpack.c.bf16 %v2977, %v2976
  %v2993 = vpack.c.bf16 %v2979, %v2978
  %v2994 = vpack.c.bf16 %v2981, %v2980
  %v2995 = vpack.c.bf16 %v2983, %v2982
  %v2996 = vpack.c.bf16 %v2985, %v2984
  %v2997 = vpack.c.bf16 %v2987, %v2986
  %v2998 = vpack.c.bf16 %v2989, %v2988
  %v2999 = vpack.c.bf16 %v2991, %v2990
  %v3000 = vld [vmem:[%s10] sm:$0xf]
  %v3001 = vld [vmem:[%s10 + $0x4] sm:$0xf]
  %v3002 = vld [vmem:[%s11] sm:$0x1]
  %v3004 = vlaneseq
  %v3005 = vshrl.u32 %v3004, 7
  %v3006 = vsub.s32 0, %v3005
  %v3007 = vrot.slane %v3002, %v3006
  %v3011 = vunpack.c.l.b16 %v3000
  %v3012 = vunpack.c.l.b16 %v3001
  %v3013 = vpack.c.b16 %v3012, %v3011
  %v3016 = vsel %vm64, %v2992, 0
  %v3019 = vsel %vm64, %v2993, 0
  %v3022 = vsel %vm64, %v2994, 0
  %v3025 = vsel %vm64, %v2995, 0
  %v3028 = vsel %vm64, %v2996, 0
  %v3031 = vsel %vm64, %v2997, 0
  %v3034 = vsel %vm64, %v2998, 0
  %v3037 = vsel %vm64, %v2999, 0
  %3039 = vmatprep.subr.bf16.mxu0 0
  %3040 = vmatpush1.bf16.msra.mxu0 0
  %3041 = vmatprep.subr.bf16.mxu0 0
  %3042 = vmatpush1.bf16.msra.mxu0 0
  %3043 = vmatprep.subr.bf16.mxu0 0
  %3044 = vmatpush1.bf16.msra.mxu0 0
  %3045 = vmatprep.subr.bf16.mxu0 0
  %3046 = vmatpush1.bf16.msra.mxu0 0
  %3047 = vmatprep.subr.bf16.mxu0 0
  %3048 = vmatpush1.bf16.msra.mxu0 0
  %3049 = vmatprep.subr.bf16.mxu0 0
  %3050 = vmatpush1.bf16.msra.mxu0 0
  %3051 = vmatprep.subr.bf16.mxu0 0
  %3052 = vmatpush1.bf16.msra.mxu0 0
  %3053 = vmatprep.subr.bf16.mxu0 0
  %3054 = vmatpush1.bf16.msra.mxu0 %v3013
  %3055 = vmatprep.subr.bf16.mxu0 0
  %3056 = vmatpush2.bf16.msra.mxu0 0
  %3057 = vmatprep.subr.bf16.mxu0 0
  %3058 = vmatpush2.bf16.msra.mxu0 0
  %3059 = vmatprep.subr.bf16.mxu0 0
  %3060 = vmatpush2.bf16.msra.mxu0 0
  %3061 = vmatprep.subr.bf16.mxu0 0
  %3062 = vmatpush2.bf16.msra.mxu0 0
  %3063 = vmatprep.subr.bf16.mxu0 0
  %3064 = vmatpush2.bf16.msra.mxu0 0
  %3065 = vmatprep.subr.bf16.mxu0 0
  %3066 = vmatpush2.bf16.msra.mxu0 0
  %3067 = vmatprep.subr.bf16.mxu0 0
  %3068 = vmatpush2.bf16.msra.mxu0 0
  %3069 = vmatprep.subr.bf16.mxu0 0
  %3070 = vmatpush2.bf16.msra.mxu0 0
  %3071 = vmatprep.mubr.bf16.mxu0 0
  %3072 = vmatmul.mubr.bf16.gmra.mxu0 %v3016
  %v3073 = vpop.f32.mrf.mxu0
  %v3074 = vadd.f32 %v3007, %v3073
  %v3075 = vpop.f32.mrf.mxu0
  %v3076 = vpop.f32.mrf.mxu0
  %v3077 = vadd.f32 %v3007, %v3076
  %v3078 = vpop.f32.mrf.mxu0
  %3079 = vmatprep.mubr.bf16.mxu0 0
  %3080 = vmatmul.mubr.bf16.gmra.mxu0 %v3019
  %v3081 = vpop.f32.mrf.mxu0
  %v3082 = vadd.f32 %v3007, %v3081
  %v3083 = vpop.f32.mrf.mxu0
  %v3084 = vpop.f32.mrf.mxu0
  %v3085 = vadd.f32 %v3007, %v3084
  %v3086 = vpop.f32.mrf.mxu0
  %3087 = vmatprep.mubr.bf16.mxu0 0
  %3088 = vmatmul.mubr.bf16.gmra.mxu0 %v3022
  %v3089 = vpop.f32.mrf.mxu0
  %v3090 = vadd.f32 %v3007, %v3089
  %v3091 = vpop.f32.mrf.mxu0
  %v3092 = vpop.f32.mrf.mxu0
  %v3093 = vadd.f32 %v3007, %v3092
  %v3094 = vpop.f32.mrf.mxu0
  %3095 = vmatprep.mubr.bf16.mxu0 0
  %3096 = vmatmul.mubr.bf16.gmra.mxu0 %v3025
  %v3097 = vpop.f32.mrf.mxu0
  %v3098 = vadd.f32 %v3007, %v3097
  %v3099 = vpop.f32.mrf.mxu0
  %v3100 = vpop.f32.mrf.mxu0
  %v3101 = vadd.f32 %v3007, %v3100
  %v3102 = vpop.f32.mrf.mxu0
  %3103 = vmatprep.mubr.bf16.mxu0 0
  %3104 = vmatmul.mubr.bf16.gmra.mxu0 %v3028
  %v3105 = vpop.f32.mrf.mxu0
  %v3106 = vadd.f32 %v3007, %v3105
  %v3107 = vpop.f32.mrf.mxu0
  %v3108 = vpop.f32.mrf.mxu0
  %v3109 = vadd.f32 %v3007, %v3108
  %v3110 = vpop.f32.mrf.mxu0
  %3111 = vmatprep.mubr.bf16.mxu0 0
  %3112 = vmatmul.mubr.bf16.gmra.mxu0 %v3031
  %v3113 = vpop.f32.mrf.mxu0
  %v3114 = vadd.f32 %v3007, %v3113
  %v3115 = vpop.f32.mrf.mxu0
  %v3116 = vpop.f32.mrf.mxu0
  %v3117 = vadd.f32 %v3007, %v3116
  %v3118 = vpop.f32.mrf.mxu0
  %3119 = vmatprep.mubr.bf16.mxu0 0
  %3120 = vmatmul.mubr.bf16.gmra.mxu0 %v3034
  %v3121 = vpop.f32.mrf.mxu0
  %v3122 = vadd.f32 %v3007, %v3121
  %v3123 = vpop.f32.mrf.mxu0
  %v3124 = vpop.f32.mrf.mxu0
  %v3125 = vadd.f32 %v3007, %v3124
  %v3126 = vpop.f32.mrf.mxu0
  %3127 = vmatprep.mubr.bf16.mxu0 0
  %3128 = vmatmul.mubr.bf16.gmra.mxu0 %v3037
  %v3129 = vpop.f32.mrf.mxu0
  %v3130 = vadd.f32 %v3007, %v3129
  %v3131 = vpop.f32.mrf.mxu0
  %v3132 = vpop.f32.mrf.mxu0
  %v3133 = vadd.f32 %v3007, %v3132
  %v3134 = vpop.f32.mrf.mxu0
  %3135 = vdwg.mxu0
  %v3136 = vmul.f32 %v3074, 0.5
  %v3137 = vmul.f32 %v3077, 0.5
  %v3138 = vmul.f32 %v3082, 0.5
  %v3139 = vmul.f32 %v3085, 0.5
  %v3140 = vmul.f32 %v3090, 0.5
  %v3141 = vmul.f32 %v3093, 0.5
  %v3142 = vmul.f32 %v3098, 0.5
  %v3143 = vmul.f32 %v3101, 0.5
  %v3144 = vmul.f32 %v3106, 0.5
  %v3145 = vmul.f32 %v3109, 0.5
  %v3146 = vmul.f32 %v3114, 0.5
  %v3147 = vmul.f32 %v3117, 0.5
  %v3148 = vmul.f32 %v3122, 0.5
  %v3149 = vmul.f32 %v3125, 0.5
  %v3150 = vmul.f32 %v3130, 0.5
  %v3151 = vmul.f32 %v3133, 0.5
  %v3152 = vmul.f32 %v3074, 0.70710677
  %v3153 = vmul.f32 %v3077, 0.70710677
  %v3154 = vmul.f32 %v3082, 0.70710677
  %v3155 = vmul.f32 %v3085, 0.70710677
  %v3156 = vmul.f32 %v3090, 0.70710677
  %v3157 = vmul.f32 %v3093, 0.70710677
  %v3158 = vmul.f32 %v3098, 0.70710677
  %v3159 = vmul.f32 %v3101, 0.70710677
  %v3160 = vmul.f32 %v3106, 0.70710677
  %v3161 = vmul.f32 %v3109, 0.70710677
  %v3162 = vmul.f32 %v3114, 0.70710677
  %v3163 = vmul.f32 %v3117, 0.70710677
  %v3164 = vmul.f32 %v3122, 0.70710677
  %v3165 = vmul.f32 %v3125, 0.70710677
  %v3166 = vmul.f32 %v3130, 0.70710677
  %v3167 = vmul.f32 %v3133, 0.70710677
  %v3168 = verf.f32.pop %v3152
  %v3169 = verf.f32.pop %v3153
  %v3170 = verf.f32.pop %v3154
  %v3171 = verf.f32.pop %v3155
  %v3172 = verf.f32.pop %v3156
  %v3173 = verf.f32.pop %v3157
  %v3174 = verf.f32.pop %v3158
  %v3175 = verf.f32.pop %v3159
  %v3176 = verf.f32.pop %v3160
  %v3177 = verf.f32.pop %v3161
  %v3178 = verf.f32.pop %v3162
  %v3179 = verf.f32.pop %v3163
  %v3180 = verf.f32.pop %v3164
  %v3181 = verf.f32.pop %v3165
  %v3182 = verf.f32.pop %v3166
  %v3183 = verf.f32.pop %v3167
  %v3184 = vadd.f32 %v3168, 1.0
  %v3185 = vadd.f32 %v3169, 1.0
  %v3186 = vadd.f32 %v3170, 1.0
  %v3187 = vadd.f32 %v3171, 1.0
  %v3188 = vadd.f32 %v3172, 1.0
  %v3189 = vadd.f32 %v3173, 1.0
  %v3190 = vadd.f32 %v3174, 1.0
  %v3191 = vadd.f32 %v3175, 1.0
  %v3192 = vadd.f32 %v3176, 1.0
  %v3193 = vadd.f32 %v3177, 1.0
  %v3194 = vadd.f32 %v3178, 1.0
  %v3195 = vadd.f32 %v3179, 1.0
  %v3196 = vadd.f32 %v3180, 1.0
  %v3197 = vadd.f32 %v3181, 1.0
  %v3198 = vadd.f32 %v3182, 1.0
  %v3199 = vadd.f32 %v3183, 1.0
  %v3200 = vmul.f32 %v3136, %v3184
  %v3201 = vmul.f32 %v3137, %v3185
  %v3202 = vmul.f32 %v3138, %v3186
  %v3203 = vmul.f32 %v3139, %v3187
  %v3204 = vmul.f32 %v3140, %v3188
  %v3205 = vmul.f32 %v3141, %v3189
  %v3206 = vmul.f32 %v3142, %v3190
  %v3207 = vmul.f32 %v3143, %v3191
  %v3208 = vmul.f32 %v3144, %v3192
  %v3209 = vmul.f32 %v3145, %v3193
  %v3210 = vmul.f32 %v3146, %v3194
  %v3211 = vmul.f32 %v3147, %v3195
  %v3212 = vmul.f32 %v3148, %v3196
  %v3213 = vmul.f32 %v3149, %v3197
  %v3214 = vmul.f32 %v3150, %v3198
  %v3215 = vmul.f32 %v3151, %v3199
  %v3216 = vpack.c.bf16 %v3201, %v3200
  %v3217 = vpack.c.bf16 %v3203, %v3202
  %v3218 = vpack.c.bf16 %v3205, %v3204
  %v3219 = vpack.c.bf16 %v3207, %v3206
  %v3220 = vpack.c.bf16 %v3209, %v3208
  %v3221 = vpack.c.bf16 %v3211, %v3210
  %v3222 = vpack.c.bf16 %v3213, %v3212
  %v3223 = vpack.c.bf16 %v3215, %v3214
  %v3224 = vld [vmem:[%s12] sm:$0xf]
  %v3225 = vld [vmem:[%s12 + $0x4] sm:$0xf]
  %v3226 = vld [vmem:[%s12 + $0x8] sm:$0xf]
  %v3227 = vld [vmem:[%s12 + $0xc] sm:$0xf]
  %v3228 = vld [vmem:[%s12 + $0x10] sm:$0xf]
  %v3229 = vld [vmem:[%s12 + $0x14] sm:$0xf]
  %v3230 = vld [vmem:[%s12 + $0x18] sm:$0xf]
  %v3231 = vld [vmem:[%s12 + $0x1c] sm:$0xf]
  %v3232 = vld [vmem:[%s13] sm:$0x1]
  %v3234 = vlaneseq
  %v3235 = vshrl.u32 %v3234, 7
  %v3236 = vsub.s32 0, %v3235
  %v3237 = vrot.slane %v3232, %v3236
  %v3247 = vunpack.c.l.b16 %v3224
  %v3248 = vunpack.c.l.b16 %v3225
  %v3249 = vunpack.c.l.b16 %v3226
  %v3250 = vunpack.c.l.b16 %v3227
  %v3251 = vunpack.c.l.b16 %v3228
  %v3252 = vunpack.c.l.b16 %v3229
  %v3253 = vunpack.c.l.b16 %v3230
  %v3254 = vunpack.c.l.b16 %v3231
  %v3255 = vpack.c.b16 %v3248, %v3247
  %v3256 = vpack.c.b16 %v3250, %v3249
  %v3257 = vpack.c.b16 %v3252, %v3251
  %v3258 = vpack.c.b16 %v3254, %v3253
  %vm3263 = vcmask 523264
  %v3265 = vsel %vm3263, %v3216, 0
  %v3268 = vsel %vm3263, %v3217, 0
  %v3271 = vsel %vm3263, %v3218, 0
  %v3274 = vsel %vm3263, %v3219, 0
  %v3277 = vsel %vm3263, %v3220, 0
  %v3280 = vsel %vm3263, %v3221, 0
  %v3283 = vsel %vm3263, %v3222, 0
  %v3286 = vsel %vm3263, %v3223, 0
  %3288 = vmatprep.subr.bf16.mxu0 0
  %3289 = vmatpush1.bf16.msra.mxu0 0
  %3290 = vmatprep.subr.bf16.mxu0 0
  %3291 = vmatpush1.bf16.msra.mxu0 0
  %3292 = vmatprep.subr.bf16.mxu0 0
  %3293 = vmatpush1.bf16.msra.mxu0 0
  %3294 = vmatprep.subr.bf16.mxu0 0
  %3295 = vmatpush1.bf16.msra.mxu0 0
  %3296 = vmatprep.subr.bf16.mxu0 0
  %3297 = vmatpush1.bf16.msra.mxu0 %v3258
  %3298 = vmatprep.subr.bf16.mxu0 0
  %3299 = vmatpush1.bf16.msra.mxu0 %v3257
  %3300 = vmatprep.subr.bf16.mxu0 0
  %3301 = vmatpush1.bf16.msra.mxu0 %v3256
  %3302 = vmatprep.subr.bf16.mxu0 0
  %3303 = vmatpush1.bf16.msra.mxu0 %v3255
  %3304 = vmatprep.subr.bf16.mxu0 0
  %3305 = vmatpush2.bf16.msra.mxu0 0
  %3306 = vmatprep.subr.bf16.mxu0 0
  %3307 = vmatpush2.bf16.msra.mxu0 0
  %3308 = vmatprep.subr.bf16.mxu0 0
  %3309 = vmatpush2.bf16.msra.mxu0 0
  %3310 = vmatprep.subr.bf16.mxu0 0
  %3311 = vmatpush2.bf16.msra.mxu0 0
  %3312 = vmatprep.subr.bf16.mxu0 0
  %3313 = vmatpush2.bf16.msra.mxu0 0
  %3314 = vmatprep.subr.bf16.mxu0 0
  %3315 = vmatpush2.bf16.msra.mxu0 0
  %3316 = vmatprep.subr.bf16.mxu0 0
  %3317 = vmatpush2.bf16.msra.mxu0 0
  %3318 = vmatprep.subr.bf16.mxu0 0
  %3319 = vmatpush2.bf16.msra.mxu0 0
  %3320 = vmatprep.mubr.bf16.mxu0 0
  %3321 = vmatmul.mubr.bf16.gmra.mxu0 %v3265
  %v3322 = vpop.f32.mrf.mxu0
  %v3323 = vadd.f32 %v3237, %v3322
  %v3324 = vpop.f32.mrf.mxu0
  %v3325 = vpop.f32.mrf.mxu0
  %v3326 = vadd.f32 %v3237, %v3325
  %v3327 = vpop.f32.mrf.mxu0
  %3328 = vmatprep.mubr.bf16.mxu0 0
  %3329 = vmatmul.mubr.bf16.gmra.mxu0 %v3268
  %v3330 = vpop.f32.mrf.mxu0
  %v3331 = vadd.f32 %v3237, %v3330
  %v3332 = vpop.f32.mrf.mxu0
  %v3333 = vpop.f32.mrf.mxu0
  %v3334 = vadd.f32 %v3237, %v3333
  %v3335 = vpop.f32.mrf.mxu0
  %3336 = vmatprep.mubr.bf16.mxu0 0
  %3337 = vmatmul.mubr.bf16.gmra.mxu0 %v3271
  %v3338 = vpop.f32.mrf.mxu0
  %v3339 = vadd.f32 %v3237, %v3338
  %v3340 = vpop.f32.mrf.mxu0
  %v3341 = vpop.f32.mrf.mxu0
  %v3342 = vadd.f32 %v3237, %v3341
  %v3343 = vpop.f32.mrf.mxu0
  %3344 = vmatprep.mubr.bf16.mxu0 0
  %3345 = vmatmul.mubr.bf16.gmra.mxu0 %v3274
  %v3346 = vpop.f32.mrf.mxu0
  %v3347 = vadd.f32 %v3237, %v3346
  %v3348 = vpop.f32.mrf.mxu0
  %v3349 = vpop.f32.mrf.mxu0
  %v3350 = vadd.f32 %v3237, %v3349
  %v3351 = vpop.f32.mrf.mxu0
  %3352 = vmatprep.mubr.bf16.mxu0 0
  %3353 = vmatmul.mubr.bf16.gmra.mxu0 %v3277
  %v3354 = vpop.f32.mrf.mxu0
  %v3355 = vadd.f32 %v3237, %v3354
  %v3356 = vpop.f32.mrf.mxu0
  %v3357 = vpop.f32.mrf.mxu0
  %v3358 = vadd.f32 %v3237, %v3357
  %v3359 = vpop.f32.mrf.mxu0
  %3360 = vmatprep.mubr.bf16.mxu0 0
  %3361 = vmatmul.mubr.bf16.gmra.mxu0 %v3280
  %v3362 = vpop.f32.mrf.mxu0
  %v3363 = vadd.f32 %v3237, %v3362
  %v3364 = vpop.f32.mrf.mxu0
  %v3365 = vpop.f32.mrf.mxu0
  %v3366 = vadd.f32 %v3237, %v3365
  %v3367 = vpop.f32.mrf.mxu0
  %3368 = vmatprep.mubr.bf16.mxu0 0
  %3369 = vmatmul.mubr.bf16.gmra.mxu0 %v3283
  %v3370 = vpop.f32.mrf.mxu0
  %v3371 = vadd.f32 %v3237, %v3370
  %v3372 = vpop.f32.mrf.mxu0
  %v3373 = vpop.f32.mrf.mxu0
  %v3374 = vadd.f32 %v3237, %v3373
  %v3375 = vpop.f32.mrf.mxu0
  %3376 = vmatprep.mubr.bf16.mxu0 0
  %3377 = vmatmul.mubr.bf16.gmra.mxu0 %v3286
  %v3378 = vpop.f32.mrf.mxu0
  %v3379 = vadd.f32 %v3237, %v3378
  %v3380 = vpop.f32.mrf.mxu0
  %v3381 = vpop.f32.mrf.mxu0
  %v3382 = vadd.f32 %v3237, %v3381
  %v3383 = vpop.f32.mrf.mxu0
  %3384 = vdwg.mxu0
  %v3385 = vadd.f32 %v2722, %v3323
  %v3386 = vadd.f32 %v2723, %v3326
  %v3387 = vadd.f32 %v2724, %v3331
  %v3388 = vadd.f32 %v2725, %v3334
  %v3389 = vadd.f32 %v2726, %v3339
  %v3390 = vadd.f32 %v2727, %v3342
  %v3391 = vadd.f32 %v2728, %v3347
  %v3392 = vadd.f32 %v2729, %v3350
  %v3393 = vadd.f32 %v2730, %v3355
  %v3394 = vadd.f32 %v2731, %v3358
  %v3395 = vadd.f32 %v2732, %v3363
  %v3396 = vadd.f32 %v2733, %v3366
  %v3397 = vadd.f32 %v2734, %v3371
  %v3398 = vadd.f32 %v2735, %v3374
  %v3399 = vadd.f32 %v2736, %v3379
  %v3400 = vadd.f32 %v2737, %v3382
  %3401 = vst.msk [vmem:[%s14] sm:$0xff] %vm64, %v3385
  %3402 = vst.msk [vmem:[%s14 + $0x8] sm:$0xff] %vm64, %v3386
  %3403 = vst.msk [vmem:[%s14 + $0x10] sm:$0xff] %vm64, %v3387
  %3404 = vst.msk [vmem:[%s14 + $0x18] sm:$0xff] %vm64, %v3388
  %3405 = vst.msk [vmem:[%s14 + $0x20] sm:$0xff] %vm64, %v3389
  %3406 = vst.msk [vmem:[%s14 + $0x28] sm:$0xff] %vm64, %v3390
  %3407 = vst.msk [vmem:[%s14 + $0x30] sm:$0xff] %vm64, %v3391
  %3408 = vst.msk [vmem:[%s14 + $0x38] sm:$0xff] %vm64, %v3392
  %3409 = vst.msk [vmem:[%s14 + $0x40] sm:$0xff] %vm64, %v3393
  %3410 = vst.msk [vmem:[%s14 + $0x48] sm:$0xff] %vm64, %v3394
  %3411 = vst.msk [vmem:[%s14 + $0x50] sm:$0xff] %vm64, %v3395
  %3412 = vst.msk [vmem:[%s14 + $0x58] sm:$0xff] %vm64, %v3396
  %3413 = vst.msk [vmem:[%s14 + $0x60] sm:$0xff] %vm64, %v3397
  %3414 = vst.msk [vmem:[%s14 + $0x68] sm:$0xff] %vm64, %v3398
  %3415 = vst.msk [vmem:[%s14 + $0x70] sm:$0xff] %vm64, %v3399
  %3416 = vst.msk [vmem:[%s14 + $0x78] sm:$0xff] %vm64, %v3400
  // Predicated region
  $region58: #{deform_transformer_forward.10} parent=0 // pred_check
    _
  $region59: #{deform_transformer_forward.10} parent=0 // pred_check_branch
    %3418 = sbr.rel (0) target = $region61
  $region60: #{deform_transformer_forward.10} parent=0 // pred_region
    _
  $region61: #{deform_transformer_forward.10} parent=0 // pred_fallthru
    _
  // Predicated region
  $region62: #{deform_transformer_forward.10} parent=0 // pred_check
    _
  $region63: #{deform_transformer_forward.10} parent=0 // pred_check_branch
    %3420 = sbr.rel (0) target = $region65
  $region64: #{deform_transformer_forward.10} parent=0 // pred_region
    _
  $region65: #{deform_transformer_forward.10} parent=0 // pred_fallthru
    _

// kernel: deform_transformer_forward.12
$region0: #{deform_transformer_forward.12}
  #allocation0 [shape = 'u32[]', space=smem, size = 0x4, offset = 0x4, fixed_abs, tag = 'smem constant byte address 0x4 - core index']
  #allocation1 [shape = 'u32[144,128]{1,0:T(1,128)}', space=vmem, size = 0x12000, scoped, tag = 'internal scratch']
  %s0 = inlined_call_operand.vmem [shape: f32[2,1,16,32], index: 0, kind: input, shape index: {}]
  %s1 = inlined_call_operand.vmem [shape: f32[4,1,16,16], index: 1, kind: input, shape index: {}]
  %s2 = inlined_call_operand.vmem [shape: f32[1,32], index: 2, kind: input, shape index: {}]
  %s3 = inlined_call_operand.vmem [shape: f32[1,32], index: 3, kind: input, shape index: {}]
  %s4 = inlined_call_operand.vmem [shape: bf16[32,96], index: 4, kind: input, shape index: {}]
  %s5 = inlined_call_operand.vmem [shape: f32[1,96], index: 5, kind: input, shape index: {}]
  %s6 = inlined_call_operand.vmem [shape: bf16[32,32], index: 6, kind: input, shape index: {}]
  %s7 = inlined_call_operand.vmem [shape: f32[1,32], index: 7, kind: input, shape index: {}]
  %s8 = inlined_call_operand.vmem [shape: f32[1,32], index: 8, kind: input, shape index: {}]
  %s9 = inlined_call_operand.vmem [shape: f32[1,32], index: 9, kind: input, shape index: {}]
  %s10 = inlined_call_operand.vmem [shape: bf16[32,128], index: 10, kind: input, shape index: {}]
  %s11 = inlined_call_operand.vmem [shape: f32[1,128], index: 11, kind: input, shape index: {}]
  %s12 = inlined_call_operand.vmem [shape: bf16[128,32], index: 12, kind: input, shape index: {}]
  %s13 = inlined_call_operand.vmem [shape: f32[1,32], index: 13, kind: input, shape index: {}]
  %s14 = inlined_call_operand.vmem [shape: f32[2,1,16,32], index: 14, kind: output, shape index: {}]
  %s15 = sld [smem:[#allocation0]]
  $region66: #{deform_transformer_forward.12} parent=0
    _
  %s17 = ssub.s32 1, %s15
  %s18 = scalar_select 0, %s17, %s15
  // Predicated region
  $region2: #{deform_transformer_forward.12} parent=0 // pred_check
    _
  $region3: #{deform_transformer_forward.12} parent=0 // pred_check_branch
    %20 = sbr.rel (0) target = $region5
  $region4: #{deform_transformer_forward.12} parent=0 // pred_region
    _
  $region5: #{deform_transformer_forward.12} parent=0 // pred_fallthru
    _
  // Predicated region
  $region6: #{deform_transformer_forward.12} parent=0 // pred_check
    _
  $region7: #{deform_transformer_forward.12} parent=0 // pred_check_branch
    %22 = sbr.rel (0) target = $region9
  $region8: #{deform_transformer_forward.12} parent=0 // pred_region
    _
  $region9: #{deform_transformer_forward.12} parent=0 // pred_fallthru
    _
  // Predicated region
  $region10: #{deform_transformer_forward.12} parent=0 // pred_check
    _
  $region11: #{deform_transformer_forward.12} parent=0 // pred_check_branch
    %24 = sbr.rel (0) target = $region13
  $region12: #{deform_transformer_forward.12} parent=0 // pred_region
    _
  $region13: #{deform_transformer_forward.12} parent=0 // pred_fallthru
    _
  // Predicated region
  $region14: #{deform_transformer_forward.12} parent=0 // pred_check
    _
  $region15: #{deform_transformer_forward.12} parent=0 // pred_check_branch
    %26 = sbr.rel (0) target = $region17
  $region16: #{deform_transformer_forward.12} parent=0 // pred_region
    _
  $region17: #{deform_transformer_forward.12} parent=0 // pred_fallthru
    _
  // Predicated region
  $region18: #{deform_transformer_forward.12} parent=0 // pred_check
    _
  $region19: #{deform_transformer_forward.12} parent=0 // pred_check_branch
    %28 = sbr.rel (0) target = $region21
  $region20: #{deform_transformer_forward.12} parent=0 // pred_region
    _
  $region21: #{deform_transformer_forward.12} parent=0 // pred_fallthru
    _
  // Predicated region
  $region22: #{deform_transformer_forward.12} parent=0 // pred_check
    _
  $region23: #{deform_transformer_forward.12} parent=0 // pred_check_branch
    %30 = sbr.rel (0) target = $region25
  $region24: #{deform_transformer_forward.12} parent=0 // pred_region
    _
  $region25: #{deform_transformer_forward.12} parent=0 // pred_fallthru
    _
  // Predicated region
  $region26: #{deform_transformer_forward.12} parent=0 // pred_check
    _
  $region27: #{deform_transformer_forward.12} parent=0 // pred_check_branch
    %32 = sbr.rel (0) target = $region29
  $region28: #{deform_transformer_forward.12} parent=0 // pred_region
    _
  $region29: #{deform_transformer_forward.12} parent=0 // pred_fallthru
    _
  // Predicated region
  $region30: #{deform_transformer_forward.12} parent=0 // pred_check
    _
  $region31: #{deform_transformer_forward.12} parent=0 // pred_check_branch
    %34 = sbr.rel (0) target = $region33
  $region32: #{deform_transformer_forward.12} parent=0 // pred_region
    _
  $region33: #{deform_transformer_forward.12} parent=0 // pred_fallthru
    _
  // Predicated region
  $region34: #{deform_transformer_forward.12} parent=0 // pred_check
    _
  $region35: #{deform_transformer_forward.12} parent=0 // pred_check_branch
    %36 = sbr.rel (0) target = $region37
  $region36: #{deform_transformer_forward.12} parent=0 // pred_region
    _
  $region37: #{deform_transformer_forward.12} parent=0 // pred_fallthru
    _
  // Predicated region
  $region38: #{deform_transformer_forward.12} parent=0 // pred_check
    _
  $region39: #{deform_transformer_forward.12} parent=0 // pred_check_branch
    %38 = sbr.rel (0) target = $region41
  $region40: #{deform_transformer_forward.12} parent=0 // pred_region
    _
  $region41: #{deform_transformer_forward.12} parent=0 // pred_fallthru
    _
  // Predicated region
  $region42: #{deform_transformer_forward.12} parent=0 // pred_check
    _
  $region43: #{deform_transformer_forward.12} parent=0 // pred_check_branch
    %40 = sbr.rel (0) target = $region45
  $region44: #{deform_transformer_forward.12} parent=0 // pred_region
    _
  $region45: #{deform_transformer_forward.12} parent=0 // pred_fallthru
    _
  // Predicated region
  $region46: #{deform_transformer_forward.12} parent=0 // pred_check
    _
  $region47: #{deform_transformer_forward.12} parent=0 // pred_check_branch
    %42 = sbr.rel (0) target = $region49
  $region48: #{deform_transformer_forward.12} parent=0 // pred_region
    _
  $region49: #{deform_transformer_forward.12} parent=0 // pred_fallthru
    _
  // Predicated region
  $region50: #{deform_transformer_forward.12} parent=0 // pred_check
    _
  $region51: #{deform_transformer_forward.12} parent=0 // pred_check_branch
    %44 = sbr.rel (0) target = $region53
  $region52: #{deform_transformer_forward.12} parent=0 // pred_region
    _
  $region53: #{deform_transformer_forward.12} parent=0 // pred_fallthru
    _
  // Predicated region
  $region54: #{deform_transformer_forward.12} parent=0 // pred_check
    _
  $region55: #{deform_transformer_forward.12} parent=0 // pred_check_branch
    %46 = sbr.rel (0) target = $region57
  $region56: #{deform_transformer_forward.12} parent=0 // pred_region
    _
  $region57: #{deform_transformer_forward.12} parent=0 // pred_fallthru
    _
  %v48 = vld [vmem:[%s0] sm:$0xff]
  %v49 = vld [vmem:[%s0 + $0x8] sm:$0xff]
  %v50 = vld [vmem:[%s0 + $0x10] sm:$0xff]
  %v51 = vld [vmem:[%s0 + $0x18] sm:$0xff]
  %vm52 = vcmask 261120
  %v53 = vsel %vm52, %v48, 0.0
  %54 = vadd.xlane.f32.xlu0 %v53
  %v55 = vpop.xlane.xlu0 %54
  %v56 = vsel %vm52, %v49, 0.0
  %57 = vadd.xlane.f32.xlu0 %v56
  %v58 = vpop.xlane.xlu0 %57
  %v59 = vsel %vm52, %v50, 0.0
  %60 = vadd.xlane.f32.xlu0 %v59
  %v61 = vpop.xlane.xlu0 %60
  %v62 = vsel %vm52, %v51, 0.0
  %63 = vadd.xlane.f32.xlu0 %v62
  %v64 = vpop.xlane.xlu0 %63
  %v65 = vrcp.pop 32.0
  %v66 = vmul.f32 %v55, %v65
  %v67 = vmul.f32 %v58, %v65
  %v68 = vmul.f32 %v61, %v65
  %v69 = vmul.f32 %v64, %v65
  %v70 = vsub.f32 %v48, %v66
  %v71 = vsub.f32 %v49, %v67
  %v72 = vsub.f32 %v50, %v68
  %v73 = vsub.f32 %v51, %v69
  %v74 = vmul.f32 %v70, %v70
  %v75 = vmul.f32 %v71, %v71
  %v76 = vmul.f32 %v72, %v72
  %v77 = vmul.f32 %v73, %v73
  %v78 = vsel %vm52, %v74, 0.0
  %79 = vadd.xlane.f32.xlu0 %v78
  %v80 = vpop.xlane.xlu0 %79
  %v81 = vsel %vm52, %v75, 0.0
  %82 = vadd.xlane.f32.xlu0 %v81
  %v83 = vpop.xlane.xlu0 %82
  %v84 = vsel %vm52, %v76, 0.0
  %85 = vadd.xlane.f32.xlu0 %v84
  %v86 = vpop.xlane.xlu0 %85
  %v87 = vsel %vm52, %v77, 0.0
  %88 = vadd.xlane.f32.xlu0 %v87
  %v89 = vpop.xlane.xlu0 %88
  %v90 = vmul.f32 %v80, %v65
  %v91 = vmul.f32 %v83, %v65
  %v92 = vmul.f32 %v86, %v65
  %v93 = vmul.f32 %v89, %v65
  %v94 = vadd.f32 %v90, 1e-05
  %v95 = vadd.f32 %v91, 1e-05
  %v96 = vadd.f32 %v92, 1e-05
  %v97 = vadd.f32 %v93, 1e-05
  %v98 = vrsqrt.pop %v94
  %v99 = vrsqrt.pop %v95
  %v100 = vrsqrt.pop %v96
  %v101 = vrsqrt.pop %v97
  %v102 = vmul.f32 %v70, %v98
  %v103 = vmul.f32 %v71, %v99
  %v104 = vmul.f32 %v72, %v100
  %v105 = vmul.f32 %v73, %v101
  %v106 = vld [vmem:[%s2] sm:$0x1]
  %v108 = vlaneseq
  %v109 = vshrl.u32 %v108, 7
  %v110 = vsub.s32 0, %v109
  %v111 = vrot.slane %v106, %v110
  %v113 = vmul.f32 %v102, %v111
  %v114 = vmul.f32 %v103, %v111
  %v115 = vmul.f32 %v104, %v111
  %v116 = vmul.f32 %v105, %v111
  %v117 = vld [vmem:[%s3] sm:$0x1]
  %v119 = vlaneseq
  %v120 = vshrl.u32 %v119, 7
  %v121 = vsub.s32 0, %v120
  %v122 = vrot.slane %v117, %v121
  %v124 = vadd.f32 %v113, %v122
  %v125 = vadd.f32 %v114, %v122
  %v126 = vadd.f32 %v115, %v122
  %v127 = vadd.f32 %v116, %v122
  %v128 = vpack.c.bf16 %v125, %v124
  %v129 = vpack.c.bf16 %v127, %v126
  %v130 = vld [vmem:[%s4] sm:$0xf]
  %v131 = vld [vmem:[%s4 + $0x4] sm:$0xf]
  %v132 = vld [vmem:[%s4 + $0x8] sm:$0xf]
  %v133 = vld [vmem:[%s4 + $0xc] sm:$0xf]
  %v134 = vld [vmem:[%s5] sm:$0x1]
  %v136 = vlaneseq
  %v137 = vshrl.u32 %v136, 7
  %v138 = vsub.s32 0, %v137
  %v139 = vrot.slane %v134, %v138
  %v145 = vunpack.c.l.b16 %v130
  %v146 = vunpack.c.l.b16 %v131
  %v147 = vunpack.c.l.b16 %v132
  %v148 = vunpack.c.l.b16 %v133
  %v149 = vpack.c.b16 %v146, %v145
  %v150 = vpack.c.b16 %v148, %v147
  %v154 = vsel %vm52, %v128, 0
  %v157 = vsel %vm52, %v129, 0
  %159 = vmatprep.subr.bf16.mxu0 0
  %160 = vmatpush1.bf16.msra.mxu0 0
  %161 = vmatprep.subr.bf16.mxu0 0
  %162 = vmatpush1.bf16.msra.mxu0 0
  %163 = vmatprep.subr.bf16.mxu0 0
  %164 = vmatpush1.bf16.msra.mxu0 0
  %165 = vmatprep.subr.bf16.mxu0 0
  %166 = vmatpush1.bf16.msra.mxu0 0
  %167 = vmatprep.subr.bf16.mxu0 0
  %168 = vmatpush1.bf16.msra.mxu0 0
  %169 = vmatprep.subr.bf16.mxu0 0
  %170 = vmatpush1.bf16.msra.mxu0 0
  %171 = vmatprep.subr.bf16.mxu0 0
  %172 = vmatpush1.bf16.msra.mxu0 %v150
  %173 = vmatprep.subr.bf16.mxu0 0
  %174 = vmatpush1.bf16.msra.mxu0 %v149
  %175 = vmatprep.subr.bf16.mxu0 0
  %176 = vmatpush2.bf16.msra.mxu0 0
  %177 = vmatprep.subr.bf16.mxu0 0
  %178 = vmatpush2.bf16.msra.mxu0 0
  %179 = vmatprep.subr.bf16.mxu0 0
  %180 = vmatpush2.bf16.msra.mxu0 0
  %181 = vmatprep.subr.bf16.mxu0 0
  %182 = vmatpush2.bf16.msra.mxu0 0
  %183 = vmatprep.subr.bf16.mxu0 0
  %184 = vmatpush2.bf16.msra.mxu0 0
  %185 = vmatprep.subr.bf16.mxu0 0
  %186 = vmatpush2.bf16.msra.mxu0 0
  %187 = vmatprep.subr.bf16.mxu0 0
  %188 = vmatpush2.bf16.msra.mxu0 0
  %189 = vmatprep.subr.bf16.mxu0 0
  %190 = vmatpush2.bf16.msra.mxu0 0
  %191 = vmatprep.mubr.bf16.mxu0 0
  %192 = vmatmul.mubr.bf16.gmra.mxu0 %v154
  %v193 = vpop.f32.mrf.mxu0
  %v194 = vadd.f32 %v139, %v193
  %v195 = vpop.f32.mrf.mxu0
  %v196 = vpop.f32.mrf.mxu0
  %v197 = vadd.f32 %v139, %v196
  %v198 = vpop.f32.mrf.mxu0
  %199 = vmatprep.mubr.bf16.mxu0 0
  %200 = vmatmul.mubr.bf16.gmra.mxu0 %v157
  %v201 = vpop.f32.mrf.mxu0
  %v202 = vadd.f32 %v139, %v201
  %v203 = vpop.f32.mrf.mxu0
  %v204 = vpop.f32.mrf.mxu0
  %v205 = vadd.f32 %v139, %v204
  %v206 = vpop.f32.mrf.mxu0
  %207 = vdwg.mxu0
  %v208 = vmul.f32 %v194, 0.35355338
  %v209 = vmul.f32 %v197, 0.35355338
  %v210 = vmul.f32 %v202, 0.35355338
  %v211 = vmul.f32 %v205, 0.35355338
  %v212 = vpack.c.bf16 %v209, %v208
  %v213 = vpack.c.bf16 %v211, %v210
  %v214 = vpack.c.bf16 %v197, %v194
  %v215 = vpack.c.bf16 %v205, %v202
  %217 = vrot.lane.b32.xlu0 %v214, 96
  %v218 = vpop.permute.xlu0 %217
  %vm219 = vcmask 64512
  %v221 = vsel %vm219, %v212, 0
  %v224 = vsel %vm219, %v218, 0
  %226 = vmatprep.subr.bf16.mxu0 0
  %227 = vmatpush1.bf16.xpose.msra.mxu0 0
  %228 = vmatprep.subr.bf16.mxu0 0
  %229 = vmatpush1.bf16.xpose.msra.mxu0 0
  %230 = vmatprep.subr.bf16.mxu0 0
  %231 = vmatpush1.bf16.xpose.msra.mxu0 0
  %232 = vmatprep.subr.bf16.mxu0 0
  %233 = vmatpush1.bf16.xpose.msra.mxu0 0
  %234 = vmatprep.subr.bf16.mxu0 0
  %235 = vmatpush1.bf16.xpose.msra.mxu0 0
  %236 = vmatprep.subr.bf16.mxu0 0
  %237 = vmatpush1.bf16.xpose.msra.mxu0 0
  %238 = vmatprep.subr.bf16.mxu0 0
  %239 = vmatpush1.bf16.xpose.msra.mxu0 0
  %240 = vmatprep.subr.bf16.mxu0 0
  %241 = vmatpush1.bf16.xpose.msra.mxu0 %v224
  %242 = vmatprep.subr.bf16.mxu0 0
  %243 = vmatpush2.bf16.xpose.msra.mxu0 0
  %244 = vmatprep.subr.bf16.mxu0 0
  %245 = vmatpush2.bf16.xpose.msra.mxu0 0
  %246 = vmatprep.subr.bf16.mxu0 0
  %247 = vmatpush2.bf16.xpose.msra.mxu0 0
  %248 = vmatprep.subr.bf16.mxu0 0
  %249 = vmatpush2.bf16.xpose.msra.mxu0 0
  %250 = vmatprep.subr.bf16.mxu0 0
  %251 = vmatpush2.bf16.xpose.msra.mxu0 0
  %252 = vmatprep.subr.bf16.mxu0 0
  %253 = vmatpush2.bf16.xpose.msra.mxu0 0
  %254 = vmatprep.subr.bf16.mxu0 0
  %255 = vmatpush2.bf16.xpose.msra.mxu0 0
  %256 = vmatprep.subr.bf16.mxu0 0
  %257 = vmatpush2.bf16.xpose.msra.mxu0 0
  %258 = vmatprep.mubr.bf16.mxu0 0
  %259 = vmatmul.mubr.bf16.gmra.mxu0 %v221
  %v260 = vpop.f32.mrf.mxu0
  %v261 = vadd.f32 0.0, %v260
  %v262 = vpop.f32.mrf.mxu0
  %v263 = vpop.f32.mrf.mxu0
  %v264 = vadd.f32 0.0, %v263
  %v265 = vpop.f32.mrf.mxu0
  %266 = vdwg.mxu0
  %268 = vrot.lane.b32.xlu0 %v215, 96
  %v269 = vpop.permute.xlu0 %268
  %v271 = vsel %vm219, %v213, 0
  %v274 = vsel %vm219, %v269, 0
  %276 = vmatprep.subr.bf16.mxu0 0
  %277 = vmatpush1.bf16.xpose.msra.mxu0 0
  %278 = vmatprep.subr.bf16.mxu0 0
  %279 = vmatpush1.bf16.xpose.msra.mxu0 0
  %280 = vmatprep.subr.bf16.mxu0 0
  %281 = vmatpush1.bf16.xpose.msra.mxu0 0
  %282 = vmatprep.subr.bf16.mxu0 0
  %283 = vmatpush1.bf16.xpose.msra.mxu0 0
  %284 = vmatprep.subr.bf16.mxu0 0
  %285 = vmatpush1.bf16.xpose.msra.mxu0 0
  %286 = vmatprep.subr.bf16.mxu0 0
  %287 = vmatpush1.bf16.xpose.msra.mxu0 0
  %288 = vmatprep.subr.bf16.mxu0 0
  %289 = vmatpush1.bf16.xpose.msra.mxu0 0
  %290 = vmatprep.subr.bf16.mxu0 0
  %291 = vmatpush1.bf16.xpose.msra.mxu0 %v274
  %292 = vmatprep.subr.bf16.mxu0 0
  %293 = vmatpush2.bf16.xpose.msra.mxu0 0
  %294 = vmatprep.subr.bf16.mxu0 0
  %295 = vmatpush2.bf16.xpose.msra.mxu0 0
  %296 = vmatprep.subr.bf16.mxu0 0
  %297 = vmatpush2.bf16.xpose.msra.mxu0 0
  %298 = vmatprep.subr.bf16.mxu0 0
  %299 = vmatpush2.bf16.xpose.msra.mxu0 0
  %300 = vmatprep.subr.bf16.mxu0 0
  %301 = vmatpush2.bf16.xpose.msra.mxu0 0
  %302 = vmatprep.subr.bf16.mxu0 0
  %303 = vmatpush2.bf16.xpose.msra.mxu0 0
  %304 = vmatprep.subr.bf16.mxu0 0
  %305 = vmatpush2.bf16.xpose.msra.mxu0 0
  %306 = vmatprep.subr.bf16.mxu0 0
  %307 = vmatpush2.bf16.xpose.msra.mxu0 0
  %308 = vmatprep.mubr.bf16.mxu0 0
  %309 = vmatmul.mubr.bf16.gmra.mxu0 %v271
  %v310 = vpop.f32.mrf.mxu0
  %v311 = vadd.f32 0.0, %v310
  %v312 = vpop.f32.mrf.mxu0
  %v313 = vpop.f32.mrf.mxu0
  %v314 = vadd.f32 0.0, %v313
  %v315 = vpop.f32.mrf.mxu0
  %316 = vdwg.mxu0
  %v317 = vld [vmem:[%s1] sm:$0xff]
  %v318 = vld [vmem:[%s1 + $0x8] sm:$0xff]
  %v319 = vadd.f32 %v261, %v317
  %v320 = vadd.f32 %v264, %v318
  %v321 = vadd.f32 %v311, %v317
  %v322 = vadd.f32 %v314, %v318
  %vm323 = vcmask 130048
  %v324 = vsel %vm323, %v319, -inf
  %325 = vmax.xlane.f32.xlu0 %v324
  %v326 = vpop.xlane.xlu0 %325
  %v327 = vsel %vm323, %v320, -inf
  %328 = vmax.xlane.f32.xlu0 %v327
  %v329 = vpop.xlane.xlu0 %328
  %v330 = vsel %vm323, %v321, -inf
  %331 = vmax.xlane.f32.xlu0 %v330
  %v332 = vpop.xlane.xlu0 %331
  %v333 = vsel %vm323, %v322, -inf
  %334 = vmax.xlane.f32.xlu0 %v333
  %v335 = vpop.xlane.xlu0 %334
  %v336 = vsub.f32 %v319, %v326
  %v337 = vsub.f32 %v320, %v329
  %v338 = vsub.f32 %v321, %v332
  %v339 = vsub.f32 %v322, %v335
  %v340 = vmul.f32 %v336, 1.442695
  %v341 = vpow.pop %v340
  %v342 = vmul.f32 %v337, 1.442695
  %v343 = vpow.pop %v342
  %v344 = vmul.f32 %v338, 1.442695
  %v345 = vpow.pop %v344
  %v346 = vmul.f32 %v339, 1.442695
  %v347 = vpow.pop %v346
  %v348 = vsel %vm323, %v341, 0.0
  %349 = vadd.xlane.f32.xlu0 %v348
  %v350 = vpop.xlane.xlu0 %349
  %v351 = vsel %vm323, %v343, 0.0
  %352 = vadd.xlane.f32.xlu0 %v351
  %v353 = vpop.xlane.xlu0 %352
  %v354 = vsel %vm323, %v345, 0.0
  %355 = vadd.xlane.f32.xlu0 %v354
  %v356 = vpop.xlane.xlu0 %355
  %v357 = vsel %vm323, %v347, 0.0
  %358 = vadd.xlane.f32.xlu0 %v357
  %v359 = vpop.xlane.xlu0 %358
  %v360 = vrcp.pop %v350
  %v361 = vrcp.pop %v353
  %v362 = vrcp.pop %v356
  %v363 = vrcp.pop %v359
  %v364 = vmul.f32 %v341, %v360
  %v365 = vmul.f32 %v343, %v361
  %v366 = vmul.f32 %v345, %v362
  %v367 = vmul.f32 %v347, %v363
  %v368 = vpack.c.bf16 %v365, %v364
  %v369 = vpack.c.bf16 %v367, %v366
  %370 = vrot.lane.b32.xlu0 %v214, 64
  %v371 = vpop.permute.xlu0 %370
  %v374 = vsel %vm323, %v368, 0
  %376 = vmatprep.subr.bf16.mxu0 0
  %377 = vmatpush1.bf16.msra.mxu0 0
  %378 = vmatprep.subr.bf16.mxu0 0
  %379 = vmatpush1.bf16.msra.mxu0 0
  %380 = vmatprep.subr.bf16.mxu0 0
  %381 = vmatpush1.bf16.msra.mxu0 0
  %382 = vmatprep.subr.bf16.mxu0 0
  %383 = vmatpush1.bf16.msra.mxu0 0
  %384 = vmatprep.subr.bf16.mxu0 0
  %385 = vmatpush1.bf16.msra.mxu0 0
  %386 = vmatprep.subr.bf16.mxu0 0
  %387 = vmatpush1.bf16.msra.mxu0 0
  %388 = vmatprep.subr.bf16.mxu0 0
  %389 = vmatpush1.bf16.msra.mxu0 0
  %390 = vmatprep.subr.bf16.mxu0 0
  %391 = vmatpush1.bf16.msra.mxu0 %v371
  %392 = vmatprep.subr.bf16.mxu0 0
  %393 = vmatpush2.bf16.msra.mxu0 0
  %394 = vmatprep.subr.bf16.mxu0 0
  %395 = vmatpush2.bf16.msra.mxu0 0
  %396 = vmatprep.subr.bf16.mxu0 0
  %397 = vmatpush2.bf16.msra.mxu0 0
  %398 = vmatprep.subr.bf16.mxu0 0
  %399 = vmatpush2.bf16.msra.mxu0 0
  %400 = vmatprep.subr.bf16.mxu0 0
  %401 = vmatpush2.bf16.msra.mxu0 0
  %402 = vmatprep.subr.bf16.mxu0 0
  %403 = vmatpush2.bf16.msra.mxu0 0
  %404 = vmatprep.subr.bf16.mxu0 0
  %405 = vmatpush2.bf16.msra.mxu0 0
  %406 = vmatprep.subr.bf16.mxu0 0
  %407 = vmatpush2.bf16.msra.mxu0 0
  %408 = vmatprep.mubr.bf16.mxu0 0
  %409 = vmatmul.mubr.bf16.gmra.mxu0 %v374
  %v410 = vpop.f32.mrf.mxu0
  %v411 = vadd.f32 0.0, %v410
  %v412 = vpop.f32.mrf.mxu0
  %v413 = vpop.f32.mrf.mxu0
  %v414 = vadd.f32 0.0, %v413
  %v415 = vpop.f32.mrf.mxu0
  %416 = vdwg.mxu0
  %417 = vrot.lane.b32.xlu0 %v215, 64
  %v418 = vpop.permute.xlu0 %417
  %v421 = vsel %vm323, %v369, 0
  %423 = vmatprep.subr.bf16.mxu0 0
  %424 = vmatpush1.bf16.msra.mxu0 0
  %425 = vmatprep.subr.bf16.mxu0 0
  %426 = vmatpush1.bf16.msra.mxu0 0
  %427 = vmatprep.subr.bf16.mxu0 0
  %428 = vmatpush1.bf16.msra.mxu0 0
  %429 = vmatprep.subr.bf16.mxu0 0
  %430 = vmatpush1.bf16.msra.mxu0 0
  %431 = vmatprep.subr.bf16.mxu0 0
  %432 = vmatpush1.bf16.msra.mxu0 0
  %433 = vmatprep.subr.bf16.mxu0 0
  %434 = vmatpush1.bf16.msra.mxu0 0
  %435 = vmatprep.subr.bf16.mxu0 0
  %436 = vmatpush1.bf16.msra.mxu0 0
  %437 = vmatprep.subr.bf16.mxu0 0
  %438 = vmatpush1.bf16.msra.mxu0 %v418
  %439 = vmatprep.subr.bf16.mxu0 0
  %440 = vmatpush2.bf16.msra.mxu0 0
  %441 = vmatprep.subr.bf16.mxu0 0
  %442 = vmatpush2.bf16.msra.mxu0 0
  %443 = vmatprep.subr.bf16.mxu0 0
  %444 = vmatpush2.bf16.msra.mxu0 0
  %445 = vmatprep.subr.bf16.mxu0 0
  %446 = vmatpush2.bf16.msra.mxu0 0
  %447 = vmatprep.subr.bf16.mxu0 0
  %448 = vmatpush2.bf16.msra.mxu0 0
  %449 = vmatprep.subr.bf16.mxu0 0
  %450 = vmatpush2.bf16.msra.mxu0 0
  %451 = vmatprep.subr.bf16.mxu0 0
  %452 = vmatpush2.bf16.msra.mxu0 0
  %453 = vmatprep.subr.bf16.mxu0 0
  %454 = vmatpush2.bf16.msra.mxu0 0
  %455 = vmatprep.mubr.bf16.mxu0 0
  %456 = vmatmul.mubr.bf16.gmra.mxu0 %v421
  %v457 = vpop.f32.mrf.mxu0
  %v458 = vadd.f32 0.0, %v457
  %v459 = vpop.f32.mrf.mxu0
  %v460 = vpop.f32.mrf.mxu0
  %v461 = vadd.f32 0.0, %v460
  %v462 = vpop.f32.mrf.mxu0
  %463 = vdwg.mxu0
  %465 = vrot.lane.b32.xlu0 %v212, 120
  %v466 = vpop.permute.xlu0 %465
  %467 = vrot.lane.b32.xlu0 %v214, 88
  %v468 = vpop.permute.xlu0 %467
  %v470 = vsel %vm219, %v466, 0
  %v473 = vsel %vm219, %v468, 0
  %475 = vmatprep.subr.bf16.mxu0 0
  %476 = vmatpush1.bf16.xpose.msra.mxu0 0
  %477 = vmatprep.subr.bf16.mxu0 0
  %478 = vmatpush1.bf16.xpose.msra.mxu0 0
  %479 = vmatprep.subr.bf16.mxu0 0
  %480 = vmatpush1.bf16.xpose.msra.mxu0 0
  %481 = vmatprep.subr.bf16.mxu0 0
  %482 = vmatpush1.bf16.xpose.msra.mxu0 0
  %483 = vmatprep.subr.bf16.mxu0 0
  %484 = vmatpush1.bf16.xpose.msra.mxu0 0
  %485 = vmatprep.subr.bf16.mxu0 0
  %486 = vmatpush1.bf16.xpose.msra.mxu0 0
  %487 = vmatprep.subr.bf16.mxu0 0
  %488 = vmatpush1.bf16.xpose.msra.mxu0 0
  %489 = vmatprep.subr.bf16.mxu0 0
  %490 = vmatpush1.bf16.xpose.msra.mxu0 %v473
  %491 = vmatprep.subr.bf16.mxu0 0
  %492 = vmatpush2.bf16.xpose.msra.mxu0 0
  %493 = vmatprep.subr.bf16.mxu0 0
  %494 = vmatpush2.bf16.xpose.msra.mxu0 0
  %495 = vmatprep.subr.bf16.mxu0 0
  %496 = vmatpush2.bf16.xpose.msra.mxu0 0
  %497 = vmatprep.subr.bf16.mxu0 0
  %498 = vmatpush2.bf16.xpose.msra.mxu0 0
  %499 = vmatprep.subr.bf16.mxu0 0
  %500 = vmatpush2.bf16.xpose.msra.mxu0 0
  %501 = vmatprep.subr.bf16.mxu0 0
  %502 = vmatpush2.bf16.xpose.msra.mxu0 0
  %503 = vmatprep.subr.bf16.mxu0 0
  %504 = vmatpush2.bf16.xpose.msra.mxu0 0
  %505 = vmatprep.subr.bf16.mxu0 0
  %506 = vmatpush2.bf16.xpose.msra.mxu0 0
  %507 = vmatprep.mubr.bf16.mxu0 0
  %508 = vmatmul.mubr.bf16.gmra.mxu0 %v470
  %v509 = vpop.f32.mrf.mxu0
  %v510 = vadd.f32 0.0, %v509
  %v511 = vpop.f32.mrf.mxu0
  %v512 = vpop.f32.mrf.mxu0
  %v513 = vadd.f32 0.0, %v512
  %v514 = vpop.f32.mrf.mxu0
  %515 = vdwg.mxu0
  %517 = vrot.lane.b32.xlu0 %v213, 120
  %v518 = vpop.permute.xlu0 %517
  %519 = vrot.lane.b32.xlu0 %v215, 88
  %v520 = vpop.permute.xlu0 %519
  %v522 = vsel %vm219, %v518, 0
  %v525 = vsel %vm219, %v520, 0
  %527 = vmatprep.subr.bf16.mxu0 0
  %528 = vmatpush1.bf16.xpose.msra.mxu0 0
  %529 = vmatprep.subr.bf16.mxu0 0
  %530 = vmatpush1.bf16.xpose.msra.mxu0 0
  %531 = vmatprep.subr.bf16.mxu0 0
  %532 = vmatpush1.bf16.xpose.msra.mxu0 0
  %533 = vmatprep.subr.bf16.mxu0 0
  %534 = vmatpush1.bf16.xpose.msra.mxu0 0
  %535 = vmatprep.subr.bf16.mxu0 0
  %536 = vmatpush1.bf16.xpose.msra.mxu0 0
  %537 = vmatprep.subr.bf16.mxu0 0
  %538 = vmatpush1.bf16.xpose.msra.mxu0 0
  %539 = vmatprep.subr.bf16.mxu0 0
  %540 = vmatpush1.bf16.xpose.msra.mxu0 0
  %541 = vmatprep.subr.bf16.mxu0 0
  %542 = vmatpush1.bf16.xpose.msra.mxu0 %v525
  %543 = vmatprep.subr.bf16.mxu0 0
  %544 = vmatpush2.bf16.xpose.msra.mxu0 0
  %545 = vmatprep.subr.bf16.mxu0 0
  %546 = vmatpush2.bf16.xpose.msra.mxu0 0
  %547 = vmatprep.subr.bf16.mxu0 0
  %548 = vmatpush2.bf16.xpose.msra.mxu0 0
  %549 = vmatprep.subr.bf16.mxu0 0
  %550 = vmatpush2.bf16.xpose.msra.mxu0 0
  %551 = vmatprep.subr.bf16.mxu0 0
  %552 = vmatpush2.bf16.xpose.msra.mxu0 0
  %553 = vmatprep.subr.bf16.mxu0 0
  %554 = vmatpush2.bf16.xpose.msra.mxu0 0
  %555 = vmatprep.subr.bf16.mxu0 0
  %556 = vmatpush2.bf16.xpose.msra.mxu0 0
  %557 = vmatprep.subr.bf16.mxu0 0
  %558 = vmatpush2.bf16.xpose.msra.mxu0 0
  %559 = vmatprep.mubr.bf16.mxu0 0
  %560 = vmatmul.mubr.bf16.gmra.mxu0 %v522
  %v561 = vpop.f32.mrf.mxu0
  %v562 = vadd.f32 0.0, %v561
  %v563 = vpop.f32.mrf.mxu0
  %v564 = vpop.f32.mrf.mxu0
  %v565 = vadd.f32 0.0, %v564
  %v566 = vpop.f32.mrf.mxu0
  %567 = vdwg.mxu0
  %s568 = scalar_lea.vmem %s1, 16
  %v569 = vld [vmem:[%s568] sm:$0xff]
  %v570 = vld [vmem:[%s568 + $0x8] sm:$0xff]
  %v571 = vadd.f32 %v510, %v569
  %v572 = vadd.f32 %v513, %v570
  %v573 = vadd.f32 %v562, %v569
  %v574 = vadd.f32 %v565, %v570
  %v575 = vsel %vm323, %v571, -inf
  %576 = vmax.xlane.f32.xlu0 %v575
  %v577 = vpop.xlane.xlu0 %576
  %v578 = vsel %vm323, %v572, -inf
  %579 = vmax.xlane.f32.xlu0 %v578
  %v580 = vpop.xlane.xlu0 %579
  %v581 = vsel %vm323, %v573, -inf
  %582 = vmax.xlane.f32.xlu0 %v581
  %v583 = vpop.xlane.xlu0 %582
  %v584 = vsel %vm323, %v574, -inf
  %585 = vmax.xlane.f32.xlu0 %v584
  %v586 = vpop.xlane.xlu0 %585
  %v587 = vsub.f32 %v571, %v577
  %v588 = vsub.f32 %v572, %v580
  %v589 = vsub.f32 %v573, %v583
  %v590 = vsub.f32 %v574, %v586
  %v591 = vmul.f32 %v587, 1.442695
  %v592 = vpow.pop %v591
  %v593 = vmul.f32 %v588, 1.442695
  %v594 = vpow.pop %v593
  %v595 = vmul.f32 %v589, 1.442695
  %v596 = vpow.pop %v595
  %v597 = vmul.f32 %v590, 1.442695
  %v598 = vpow.pop %v597
  %v599 = vsel %vm323, %v592, 0.0
  %600 = vadd.xlane.f32.xlu0 %v599
  %v601 = vpop.xlane.xlu0 %600
  %v602 = vsel %vm323, %v594, 0.0
  %603 = vadd.xlane.f32.xlu0 %v602
  %v604 = vpop.xlane.xlu0 %603
  %v605 = vsel %vm323, %v596, 0.0
  %606 = vadd.xlane.f32.xlu0 %v605
  %v607 = vpop.xlane.xlu0 %606
  %v608 = vsel %vm323, %v598, 0.0
  %609 = vadd.xlane.f32.xlu0 %v608
  %v610 = vpop.xlane.xlu0 %609
  %v611 = vrcp.pop %v601
  %v612 = vrcp.pop %v604
  %v613 = vrcp.pop %v607
  %v614 = vrcp.pop %v610
  %v615 = vmul.f32 %v592, %v611
  %v616 = vmul.f32 %v594, %v612
  %v617 = vmul.f32 %v596, %v613
  %v618 = vmul.f32 %v598, %v614
  %v619 = vpack.c.bf16 %v616, %v615
  %v620 = vpack.c.bf16 %v618, %v617
  %621 = vrot.lane.b32.xlu0 %v214, 56
  %v622 = vpop.permute.xlu0 %621
  %v625 = vsel %vm323, %v619, 0
  %627 = vmatprep.subr.bf16.mxu0 0
  %628 = vmatpush1.bf16.msra.mxu0 0
  %629 = vmatprep.subr.bf16.mxu0 0
  %630 = vmatpush1.bf16.msra.mxu0 0
  %631 = vmatprep.subr.bf16.mxu0 0
  %632 = vmatpush1.bf16.msra.mxu0 0
  %633 = vmatprep.subr.bf16.mxu0 0
  %634 = vmatpush1.bf16.msra.mxu0 0
  %635 = vmatprep.subr.bf16.mxu0 0
  %636 = vmatpush1.bf16.msra.mxu0 0
  %637 = vmatprep.subr.bf16.mxu0 0
  %638 = vmatpush1.bf16.msra.mxu0 0
  %639 = vmatprep.subr.bf16.mxu0 0
  %640 = vmatpush1.bf16.msra.mxu0 0
  %641 = vmatprep.subr.bf16.mxu0 0
  %642 = vmatpush1.bf16.msra.mxu0 %v622
  %643 = vmatprep.subr.bf16.mxu0 0
  %644 = vmatpush2.bf16.msra.mxu0 0
  %645 = vmatprep.subr.bf16.mxu0 0
  %646 = vmatpush2.bf16.msra.mxu0 0
  %647 = vmatprep.subr.bf16.mxu0 0
  %648 = vmatpush2.bf16.msra.mxu0 0
  %649 = vmatprep.subr.bf16.mxu0 0
  %650 = vmatpush2.bf16.msra.mxu0 0
  %651 = vmatprep.subr.bf16.mxu0 0
  %652 = vmatpush2.bf16.msra.mxu0 0
  %653 = vmatprep.subr.bf16.mxu0 0
  %654 = vmatpush2.bf16.msra.mxu0 0
  %655 = vmatprep.subr.bf16.mxu0 0
  %656 = vmatpush2.bf16.msra.mxu0 0
  %657 = vmatprep.subr.bf16.mxu0 0
  %658 = vmatpush2.bf16.msra.mxu0 0
  %659 = vmatprep.mubr.bf16.mxu0 0
  %660 = vmatmul.mubr.bf16.gmra.mxu0 %v625
  %v661 = vpop.f32.mrf.mxu0
  %v662 = vadd.f32 0.0, %v661
  %v663 = vpop.f32.mrf.mxu0
  %v664 = vpop.f32.mrf.mxu0
  %v665 = vadd.f32 0.0, %v664
  %v666 = vpop.f32.mrf.mxu0
  %667 = vdwg.mxu0
  %668 = vrot.lane.b32.xlu0 %v215, 56
  %v669 = vpop.permute.xlu0 %668
  %v672 = vsel %vm323, %v620, 0
  %674 = vmatprep.subr.bf16.mxu0 0
  %675 = vmatpush1.bf16.msra.mxu0 0
  %676 = vmatprep.subr.bf16.mxu0 0
  %677 = vmatpush1.bf16.msra.mxu0 0
  %678 = vmatprep.subr.bf16.mxu0 0
  %679 = vmatpush1.bf16.msra.mxu0 0
  %680 = vmatprep.subr.bf16.mxu0 0
  %681 = vmatpush1.bf16.msra.mxu0 0
  %682 = vmatprep.subr.bf16.mxu0 0
  %683 = vmatpush1.bf16.msra.mxu0 0
  %684 = vmatprep.subr.bf16.mxu0 0
  %685 = vmatpush1.bf16.msra.mxu0 0
  %686 = vmatprep.subr.bf16.mxu0 0
  %687 = vmatpush1.bf16.msra.mxu0 0
  %688 = vmatprep.subr.bf16.mxu0 0
  %689 = vmatpush1.bf16.msra.mxu0 %v669
  %690 = vmatprep.subr.bf16.mxu0 0
  %691 = vmatpush2.bf16.msra.mxu0 0
  %692 = vmatprep.subr.bf16.mxu0 0
  %693 = vmatpush2.bf16.msra.mxu0 0
  %694 = vmatprep.subr.bf16.mxu0 0
  %695 = vmatpush2.bf16.msra.mxu0 0
  %696 = vmatprep.subr.bf16.mxu0 0
  %697 = vmatpush2.bf16.msra.mxu0 0
  %698 = vmatprep.subr.bf16.mxu0 0
  %699 = vmatpush2.bf16.msra.mxu0 0
  %700 = vmatprep.subr.bf16.mxu0 0
  %701 = vmatpush2.bf16.msra.mxu0 0
  %702 = vmatprep.subr.bf16.mxu0 0
  %703 = vmatpush2.bf16.msra.mxu0 0
  %704 = vmatprep.subr.bf16.mxu0 0
  %705 = vmatpush2.bf16.msra.mxu0 0
  %706 = vmatprep.mubr.bf16.mxu0 0
  %707 = vmatmul.mubr.bf16.gmra.mxu0 %v672
  %v708 = vpop.f32.mrf.mxu0
  %v709 = vadd.f32 0.0, %v708
  %v710 = vpop.f32.mrf.mxu0
  %v711 = vpop.f32.mrf.mxu0
  %v712 = vadd.f32 0.0, %v711
  %v713 = vpop.f32.mrf.mxu0
  %714 = vdwg.mxu0
  %715 = vrot.lane.b32.xlu0 %v212, 112
  %v716 = vpop.permute.xlu0 %715
  %717 = vrot.lane.b32.xlu0 %v214, 80
  %v718 = vpop.permute.xlu0 %717
  %v720 = vsel %vm219, %v716, 0
  %v723 = vsel %vm219, %v718, 0
  %725 = vmatprep.subr.bf16.mxu0 0
  %726 = vmatpush1.bf16.xpose.msra.mxu0 0
  %727 = vmatprep.subr.bf16.mxu0 0
  %728 = vmatpush1.bf16.xpose.msra.mxu0 0
  %729 = vmatprep.subr.bf16.mxu0 0
  %730 = vmatpush1.bf16.xpose.msra.mxu0 0
  %731 = vmatprep.subr.bf16.mxu0 0
  %732 = vmatpush1.bf16.xpose.msra.mxu0 0
  %733 = vmatprep.subr.bf16.mxu0 0
  %734 = vmatpush1.bf16.xpose.msra.mxu0 0
  %735 = vmatprep.subr.bf16.mxu0 0
  %736 = vmatpush1.bf16.xpose.msra.mxu0 0
  %737 = vmatprep.subr.bf16.mxu0 0
  %738 = vmatpush1.bf16.xpose.msra.mxu0 0
  %739 = vmatprep.subr.bf16.mxu0 0
  %740 = vmatpush1.bf16.xpose.msra.mxu0 %v723
  %741 = vmatprep.subr.bf16.mxu0 0
  %742 = vmatpush2.bf16.xpose.msra.mxu0 0
  %743 = vmatprep.subr.bf16.mxu0 0
  %744 = vmatpush2.bf16.xpose.msra.mxu0 0
  %745 = vmatprep.subr.bf16.mxu0 0
  %746 = vmatpush2.bf16.xpose.msra.mxu0 0
  %747 = vmatprep.subr.bf16.mxu0 0
  %748 = vmatpush2.bf16.xpose.msra.mxu0 0
  %749 = vmatprep.subr.bf16.mxu0 0
  %750 = vmatpush2.bf16.xpose.msra.mxu0 0
  %751 = vmatprep.subr.bf16.mxu0 0
  %752 = vmatpush2.bf16.xpose.msra.mxu0 0
  %753 = vmatprep.subr.bf16.mxu0 0
  %754 = vmatpush2.bf16.xpose.msra.mxu0 0
  %755 = vmatprep.subr.bf16.mxu0 0
  %756 = vmatpush2.bf16.xpose.msra.mxu0 0
  %757 = vmatprep.mubr.bf16.mxu0 0
  %758 = vmatmul.mubr.bf16.gmra.mxu0 %v720
  %v759 = vpop.f32.mrf.mxu0
  %v760 = vadd.f32 0.0, %v759
  %v761 = vpop.f32.mrf.mxu0
  %v762 = vpop.f32.mrf.mxu0
  %v763 = vadd.f32 0.0, %v762
  %v764 = vpop.f32.mrf.mxu0
  %765 = vdwg.mxu0
  %766 = vrot.lane.b32.xlu0 %v213, 112
  %v767 = vpop.permute.xlu0 %766
  %768 = vrot.lane.b32.xlu0 %v215, 80
  %v769 = vpop.permute.xlu0 %768
  %v771 = vsel %vm219, %v767, 0
  %v774 = vsel %vm219, %v769, 0
  %776 = vmatprep.subr.bf16.mxu0 0
  %777 = vmatpush1.bf16.xpose.msra.mxu0 0
  %778 = vmatprep.subr.bf16.mxu0 0
  %779 = vmatpush1.bf16.xpose.msra.mxu0 0
  %780 = vmatprep.subr.bf16.mxu0 0
  %781 = vmatpush1.bf16.xpose.msra.mxu0 0
  %782 = vmatprep.subr.bf16.mxu0 0
  %783 = vmatpush1.bf16.xpose.msra.mxu0 0
  %784 = vmatprep.subr.bf16.mxu0 0
  %785 = vmatpush1.bf16.xpose.msra.mxu0 0
  %786 = vmatprep.subr.bf16.mxu0 0
  %787 = vmatpush1.bf16.xpose.msra.mxu0 0
  %788 = vmatprep.subr.bf16.mxu0 0
  %789 = vmatpush1.bf16.xpose.msra.mxu0 0
  %790 = vmatprep.subr.bf16.mxu0 0
  %791 = vmatpush1.bf16.xpose.msra.mxu0 %v774
  %792 = vmatprep.subr.bf16.mxu0 0
  %793 = vmatpush2.bf16.xpose.msra.mxu0 0
  %794 = vmatprep.subr.bf16.mxu0 0
  %795 = vmatpush2.bf16.xpose.msra.mxu0 0
  %796 = vmatprep.subr.bf16.mxu0 0
  %797 = vmatpush2.bf16.xpose.msra.mxu0 0
  %798 = vmatprep.subr.bf16.mxu0 0
  %799 = vmatpush2.bf16.xpose.msra.mxu0 0
  %800 = vmatprep.subr.bf16.mxu0 0
  %801 = vmatpush2.bf16.xpose.msra.mxu0 0
  %802 = vmatprep.subr.bf16.mxu0 0
  %803 = vmatpush2.bf16.xpose.msra.mxu0 0
  %804 = vmatprep.subr.bf16.mxu0 0
  %805 = vmatpush2.bf16.xpose.msra.mxu0 0
  %806 = vmatprep.subr.bf16.mxu0 0
  %807 = vmatpush2.bf16.xpose.msra.mxu0 0
  %808 = vmatprep.mubr.bf16.mxu0 0
  %809 = vmatmul.mubr.bf16.gmra.mxu0 %v771
  %v810 = vpop.f32.mrf.mxu0
  %v811 = vadd.f32 0.0, %v810
  %v812 = vpop.f32.mrf.mxu0
  %v813 = vpop.f32.mrf.mxu0
  %v814 = vadd.f32 0.0, %v813
  %v815 = vpop.f32.mrf.mxu0
  %816 = vdwg.mxu0
  %s817 = scalar_lea.vmem %s1, 32
  %v818 = vld [vmem:[%s817] sm:$0xff]
  %v819 = vld [vmem:[%s817 + $0x8] sm:$0xff]
  %v820 = vadd.f32 %v760, %v818
  %v821 = vadd.f32 %v763, %v819
  %v822 = vadd.f32 %v811, %v818
  %v823 = vadd.f32 %v814, %v819
  %v824 = vsel %vm323, %v820, -inf
  %825 = vmax.xlane.f32.xlu0 %v824
  %v826 = vpop.xlane.xlu0 %825
  %v827 = vsel %vm323, %v821, -inf
  %828 = vmax.xlane.f32.xlu0 %v827
  %v829 = vpop.xlane.xlu0 %828
  %v830 = vsel %vm323, %v822, -inf
  %831 = vmax.xlane.f32.xlu0 %v830
  %v832 = vpop.xlane.xlu0 %831
  %v833 = vsel %vm323, %v823, -inf
  %834 = vmax.xlane.f32.xlu0 %v833
  %v835 = vpop.xlane.xlu0 %834
  %v836 = vsub.f32 %v820, %v826
  %v837 = vsub.f32 %v821, %v829
  %v838 = vsub.f32 %v822, %v832
  %v839 = vsub.f32 %v823, %v835
  %v840 = vmul.f32 %v836, 1.442695
  %v841 = vpow.pop %v840
  %v842 = vmul.f32 %v837, 1.442695
  %v843 = vpow.pop %v842
  %v844 = vmul.f32 %v838, 1.442695
  %v845 = vpow.pop %v844
  %v846 = vmul.f32 %v839, 1.442695
  %v847 = vpow.pop %v846
  %v848 = vsel %vm323, %v841, 0.0
  %849 = vadd.xlane.f32.xlu0 %v848
  %v850 = vpop.xlane.xlu0 %849
  %v851 = vsel %vm323, %v843, 0.0
  %852 = vadd.xlane.f32.xlu0 %v851
  %v853 = vpop.xlane.xlu0 %852
  %v854 = vsel %vm323, %v845, 0.0
  %855 = vadd.xlane.f32.xlu0 %v854
  %v856 = vpop.xlane.xlu0 %855
  %v857 = vsel %vm323, %v847, 0.0
  %858 = vadd.xlane.f32.xlu0 %v857
  %v859 = vpop.xlane.xlu0 %858
  %v860 = vrcp.pop %v850
  %v861 = vrcp.pop %v853
  %v862 = vrcp.pop %v856
  %v863 = vrcp.pop %v859
  %v864 = vmul.f32 %v841, %v860
  %v865 = vmul.f32 %v843, %v861
  %v866 = vmul.f32 %v845, %v862
  %v867 = vmul.f32 %v847, %v863
  %v868 = vpack.c.bf16 %v865, %v864
  %v869 = vpack.c.bf16 %v867, %v866
  %870 = vrot.lane.b32.xlu0 %v214, 48
  %v871 = vpop.permute.xlu0 %870
  %v874 = vsel %vm323, %v868, 0
  %876 = vmatprep.subr.bf16.mxu0 0
  %877 = vmatpush1.bf16.msra.mxu0 0
  %878 = vmatprep.subr.bf16.mxu0 0
  %879 = vmatpush1.bf16.msra.mxu0 0
  %880 = vmatprep.subr.bf16.mxu0 0
  %881 = vmatpush1.bf16.msra.mxu0 0
  %882 = vmatprep.subr.bf16.mxu0 0
  %883 = vmatpush1.bf16.msra.mxu0 0
  %884 = vmatprep.subr.bf16.mxu0 0
  %885 = vmatpush1.bf16.msra.mxu0 0
  %886 = vmatprep.subr.bf16.mxu0 0
  %887 = vmatpush1.bf16.msra.mxu0 0
  %888 = vmatprep.subr.bf16.mxu0 0
  %889 = vmatpush1.bf16.msra.mxu0 0
  %890 = vmatprep.subr.bf16.mxu0 0
  %891 = vmatpush1.bf16.msra.mxu0 %v871
  %892 = vmatprep.subr.bf16.mxu0 0
  %893 = vmatpush2.bf16.msra.mxu0 0
  %894 = vmatprep.subr.bf16.mxu0 0
  %895 = vmatpush2.bf16.msra.mxu0 0
  %896 = vmatprep.subr.bf16.mxu0 0
  %897 = vmatpush2.bf16.msra.mxu0 0
  %898 = vmatprep.subr.bf16.mxu0 0
  %899 = vmatpush2.bf16.msra.mxu0 0
  %900 = vmatprep.subr.bf16.mxu0 0
  %901 = vmatpush2.bf16.msra.mxu0 0
  %902 = vmatprep.subr.bf16.mxu0 0
  %903 = vmatpush2.bf16.msra.mxu0 0
  %904 = vmatprep.subr.bf16.mxu0 0
  %905 = vmatpush2.bf16.msra.mxu0 0
  %906 = vmatprep.subr.bf16.mxu0 0
  %907 = vmatpush2.bf16.msra.mxu0 0
  %908 = vmatprep.mubr.bf16.mxu0 0
  %909 = vmatmul.mubr.bf16.gmra.mxu0 %v874
  %v910 = vpop.f32.mrf.mxu0
  %v911 = vadd.f32 0.0, %v910
  %v912 = vpop.f32.mrf.mxu0
  %v913 = vpop.f32.mrf.mxu0
  %v914 = vadd.f32 0.0, %v913
  %v915 = vpop.f32.mrf.mxu0
  %916 = vdwg.mxu0
  %917 = vrot.lane.b32.xlu0 %v215, 48
  %v918 = vpop.permute.xlu0 %917
  %v921 = vsel %vm323, %v869, 0
  %923 = vmatprep.subr.bf16.mxu0 0
  %924 = vmatpush1.bf16.msra.mxu0 0
  %925 = vmatprep.subr.bf16.mxu0 0
  %926 = vmatpush1.bf16.msra.mxu0 0
  %927 = vmatprep.subr.bf16.mxu0 0
  %928 = vmatpush1.bf16.msra.mxu0 0
  %929 = vmatprep.subr.bf16.mxu0 0
  %930 = vmatpush1.bf16.msra.mxu0 0
  %931 = vmatprep.subr.bf16.mxu0 0
  %932 = vmatpush1.bf16.msra.mxu0 0
  %933 = vmatprep.subr.bf16.mxu0 0
  %934 = vmatpush1.bf16.msra.mxu0 0
  %935 = vmatprep.subr.bf16.mxu0 0
  %936 = vmatpush1.bf16.msra.mxu0 0
  %937 = vmatprep.subr.bf16.mxu0 0
  %938 = vmatpush1.bf16.msra.mxu0 %v918
  %939 = vmatprep.subr.bf16.mxu0 0
  %940 = vmatpush2.bf16.msra.mxu0 0
  %941 = vmatprep.subr.bf16.mxu0 0
  %942 = vmatpush2.bf16.msra.mxu0 0
  %943 = vmatprep.subr.bf16.mxu0 0
  %944 = vmatpush2.bf16.msra.mxu0 0
  %945 = vmatprep.subr.bf16.mxu0 0
  %946 = vmatpush2.bf16.msra.mxu0 0
  %947 = vmatprep.subr.bf16.mxu0 0
  %948 = vmatpush2.bf16.msra.mxu0 0
  %949 = vmatprep.subr.bf16.mxu0 0
  %950 = vmatpush2.bf16.msra.mxu0 0
  %951 = vmatprep.subr.bf16.mxu0 0
  %952 = vmatpush2.bf16.msra.mxu0 0
  %953 = vmatprep.subr.bf16.mxu0 0
  %954 = vmatpush2.bf16.msra.mxu0 0
  %955 = vmatprep.mubr.bf16.mxu0 0
  %956 = vmatmul.mubr.bf16.gmra.mxu0 %v921
  %v957 = vpop.f32.mrf.mxu0
  %v958 = vadd.f32 0.0, %v957
  %v959 = vpop.f32.mrf.mxu0
  %v960 = vpop.f32.mrf.mxu0
  %v961 = vadd.f32 0.0, %v960
  %v962 = vpop.f32.mrf.mxu0
  %963 = vdwg.mxu0
  %964 = vrot.lane.b32.xlu0 %v212, 104
  %v965 = vpop.permute.xlu0 %964
  %966 = vrot.lane.b32.xlu0 %v214, 72
  %v967 = vpop.permute.xlu0 %966
  %v969 = vsel %vm219, %v965, 0
  %v972 = vsel %vm219, %v967, 0
  %974 = vmatprep.subr.bf16.mxu0 0
  %975 = vmatpush1.bf16.xpose.msra.mxu0 0
  %976 = vmatprep.subr.bf16.mxu0 0
  %977 = vmatpush1.bf16.xpose.msra.mxu0 0
  %978 = vmatprep.subr.bf16.mxu0 0
  %979 = vmatpush1.bf16.xpose.msra.mxu0 0
  %980 = vmatprep.subr.bf16.mxu0 0
  %981 = vmatpush1.bf16.xpose.msra.mxu0 0
  %982 = vmatprep.subr.bf16.mxu0 0
  %983 = vmatpush1.bf16.xpose.msra.mxu0 0
  %984 = vmatprep.subr.bf16.mxu0 0
  %985 = vmatpush1.bf16.xpose.msra.mxu0 0
  %986 = vmatprep.subr.bf16.mxu0 0
  %987 = vmatpush1.bf16.xpose.msra.mxu0 0
  %988 = vmatprep.subr.bf16.mxu0 0
  %989 = vmatpush1.bf16.xpose.msra.mxu0 %v972
  %990 = vmatprep.subr.bf16.mxu0 0
  %991 = vmatpush2.bf16.xpose.msra.mxu0 0
  %992 = vmatprep.subr.bf16.mxu0 0
  %993 = vmatpush2.bf16.xpose.msra.mxu0 0
  %994 = vmatprep.subr.bf16.mxu0 0
  %995 = vmatpush2.bf16.xpose.msra.mxu0 0
  %996 = vmatprep.subr.bf16.mxu0 0
  %997 = vmatpush2.bf16.xpose.msra.mxu0 0
  %998 = vmatprep.subr.bf16.mxu0 0
  %999 = vmatpush2.bf16.xpose.msra.mxu0 0
  %1000 = vmatprep.subr.bf16.mxu0 0
  %1001 = vmatpush2.bf16.xpose.msra.mxu0 0
  %1002 = vmatprep.subr.bf16.mxu0 0
  %1003 = vmatpush2.bf16.xpose.msra.mxu0 0
  %1004 = vmatprep.subr.bf16.mxu0 0
  %1005 = vmatpush2.bf16.xpose.msra.mxu0 0
  %1006 = vmatprep.mubr.bf16.mxu0 0
  %1007 = vmatmul.mubr.bf16.gmra.mxu0 %v969
  %v1008 = vpop.f32.mrf.mxu0
  %v1009 = vadd.f32 0.0, %v1008
  %v1010 = vpop.f32.mrf.mxu0
  %v1011 = vpop.f32.mrf.mxu0
  %v1012 = vadd.f32 0.0, %v1011
  %v1013 = vpop.f32.mrf.mxu0
  %1014 = vdwg.mxu0
  %1015 = vrot.lane.b32.xlu0 %v213, 104
  %v1016 = vpop.permute.xlu0 %1015
  %1017 = vrot.lane.b32.xlu0 %v215, 72
  %v1018 = vpop.permute.xlu0 %1017
  %v1020 = vsel %vm219, %v1016, 0
  %v1023 = vsel %vm219, %v1018, 0
  %1025 = vmatprep.subr.bf16.mxu0 0
  %1026 = vmatpush1.bf16.xpose.msra.mxu0 0
  %1027 = vmatprep.subr.bf16.mxu0 0
  %1028 = vmatpush1.bf16.xpose.msra.mxu0 0
  %1029 = vmatprep.subr.bf16.mxu0 0
  %1030 = vmatpush1.bf16.xpose.msra.mxu0 0
  %1031 = vmatprep.subr.bf16.mxu0 0
  %1032 = vmatpush1.bf16.xpose.msra.mxu0 0
  %1033 = vmatprep.subr.bf16.mxu0 0
  %1034 = vmatpush1.bf16.xpose.msra.mxu0 0
  %1035 = vmatprep.subr.bf16.mxu0 0
  %1036 = vmatpush1.bf16.xpose.msra.mxu0 0
  %1037 = vmatprep.subr.bf16.mxu0 0
  %1038 = vmatpush1.bf16.xpose.msra.mxu0 0
  %1039 = vmatprep.subr.bf16.mxu0 0
  %1040 = vmatpush1.bf16.xpose.msra.mxu0 %v1023
  %1041 = vmatprep.subr.bf16.mxu0 0
  %1042 = vmatpush2.bf16.xpose.msra.mxu0 0
  %1043 = vmatprep.subr.bf16.mxu0 0
  %1044 = vmatpush2.bf16.xpose.msra.mxu0 0
  %1045 = vmatprep.subr.bf16.mxu0 0
  %1046 = vmatpush2.bf16.xpose.msra.mxu0 0
  %1047 = vmatprep.subr.bf16.mxu0 0
  %1048 = vmatpush2.bf16.xpose.msra.mxu0 0
  %1049 = vmatprep.subr.bf16.mxu0 0
  %1050 = vmatpush2.bf16.xpose.msra.mxu0 0
  %1051 = vmatprep.subr.bf16.mxu0 0
  %1052 = vmatpush2.bf16.xpose.msra.mxu0 0
  %1053 = vmatprep.subr.bf16.mxu0 0
  %1054 = vmatpush2.bf16.xpose.msra.mxu0 0
  %1055 = vmatprep.subr.bf16.mxu0 0
  %1056 = vmatpush2.bf16.xpose.msra.mxu0 0
  %1057 = vmatprep.mubr.bf16.mxu0 0
  %1058 = vmatmul.mubr.bf16.gmra.mxu0 %v1020
  %v1059 = vpop.f32.mrf.mxu0
  %v1060 = vadd.f32 0.0, %v1059
  %v1061 = vpop.f32.mrf.mxu0
  %v1062 = vpop.f32.mrf.mxu0
  %v1063 = vadd.f32 0.0, %v1062
  %v1064 = vpop.f32.mrf.mxu0
  %1065 = vdwg.mxu0
  %s1066 = scalar_lea.vmem %s1, 48
  %v1067 = vld [vmem:[%s1066] sm:$0xff]
  %v1068 = vld [vmem:[%s1066 + $0x8] sm:$0xff]
  %v1069 = vadd.f32 %v1009, %v1067
  %v1070 = vadd.f32 %v1012, %v1068
  %v1071 = vadd.f32 %v1060, %v1067
  %v1072 = vadd.f32 %v1063, %v1068
  %v1073 = vsel %vm323, %v1069, -inf
  %1074 = vmax.xlane.f32.xlu0 %v1073
  %v1075 = vpop.xlane.xlu0 %1074
  %v1076 = vsel %vm323, %v1070, -inf
  %1077 = vmax.xlane.f32.xlu0 %v1076
  %v1078 = vpop.xlane.xlu0 %1077
  %v1079 = vsel %vm323, %v1071, -inf
  %1080 = vmax.xlane.f32.xlu0 %v1079
  %v1081 = vpop.xlane.xlu0 %1080
  %v1082 = vsel %vm323, %v1072, -inf
  %1083 = vmax.xlane.f32.xlu0 %v1082
  %v1084 = vpop.xlane.xlu0 %1083
  %v1085 = vsub.f32 %v1069, %v1075
  %v1086 = vsub.f32 %v1070, %v1078
  %v1087 = vsub.f32 %v1071, %v1081
  %v1088 = vsub.f32 %v1072, %v1084
  %v1089 = vmul.f32 %v1085, 1.442695
  %v1090 = vpow.pop %v1089
  %v1091 = vmul.f32 %v1086, 1.442695
  %v1092 = vpow.pop %v1091
  %v1093 = vmul.f32 %v1087, 1.442695
  %v1094 = vpow.pop %v1093
  %v1095 = vmul.f32 %v1088, 1.442695
  %v1096 = vpow.pop %v1095
  %v1097 = vsel %vm323, %v1090, 0.0
  %1098 = vadd.xlane.f32.xlu0 %v1097
  %v1099 = vpop.xlane.xlu0 %1098
  %v1100 = vsel %vm323, %v1092, 0.0
  %1101 = vadd.xlane.f32.xlu0 %v1100
  %v1102 = vpop.xlane.xlu0 %1101
  %v1103 = vsel %vm323, %v1094, 0.0
  %1104 = vadd.xlane.f32.xlu0 %v1103
  %v1105 = vpop.xlane.xlu0 %1104
  %v1106 = vsel %vm323, %v1096, 0.0
  %1107 = vadd.xlane.f32.xlu0 %v1106
  %v1108 = vpop.xlane.xlu0 %1107
  %v1109 = vrcp.pop %v1099
  %v1110 = vrcp.pop %v1102
  %v1111 = vrcp.pop %v1105
  %v1112 = vrcp.pop %v1108
  %v1113 = vmul.f32 %v1090, %v1109
  %v1114 = vmul.f32 %v1092, %v1110
  %v1115 = vmul.f32 %v1094, %v1111
  %v1116 = vmul.f32 %v1096, %v1112
  %v1117 = vpack.c.bf16 %v1114, %v1113
  %v1118 = vpack.c.bf16 %v1116, %v1115
  %1119 = vrot.lane.b32.xlu0 %v214, 40
  %v1120 = vpop.permute.xlu0 %1119
  %v1123 = vsel %vm323, %v1117, 0
  %1125 = vmatprep.subr.bf16.mxu0 0
  %1126 = vmatpush1.bf16.msra.mxu0 0
  %1127 = vmatprep.subr.bf16.mxu0 0
  %1128 = vmatpush1.bf16.msra.mxu0 0
  %1129 = vmatprep.subr.bf16.mxu0 0
  %1130 = vmatpush1.bf16.msra.mxu0 0
  %1131 = vmatprep.subr.bf16.mxu0 0
  %1132 = vmatpush1.bf16.msra.mxu0 0
  %1133 = vmatprep.subr.bf16.mxu0 0
  %1134 = vmatpush1.bf16.msra.mxu0 0
  %1135 = vmatprep.subr.bf16.mxu0 0
  %1136 = vmatpush1.bf16.msra.mxu0 0
  %1137 = vmatprep.subr.bf16.mxu0 0
  %1138 = vmatpush1.bf16.msra.mxu0 0
  %1139 = vmatprep.subr.bf16.mxu0 0
  %1140 = vmatpush1.bf16.msra.mxu0 %v1120
  %1141 = vmatprep.subr.bf16.mxu0 0
  %1142 = vmatpush2.bf16.msra.mxu0 0
  %1143 = vmatprep.subr.bf16.mxu0 0
  %1144 = vmatpush2.bf16.msra.mxu0 0
  %1145 = vmatprep.subr.bf16.mxu0 0
  %1146 = vmatpush2.bf16.msra.mxu0 0
  %1147 = vmatprep.subr.bf16.mxu0 0
  %1148 = vmatpush2.bf16.msra.mxu0 0
  %1149 = vmatprep.subr.bf16.mxu0 0
  %1150 = vmatpush2.bf16.msra.mxu0 0
  %1151 = vmatprep.subr.bf16.mxu0 0
  %1152 = vmatpush2.bf16.msra.mxu0 0
  %1153 = vmatprep.subr.bf16.mxu0 0
  %1154 = vmatpush2.bf16.msra.mxu0 0
  %1155 = vmatprep.subr.bf16.mxu0 0
  %1156 = vmatpush2.bf16.msra.mxu0 0
  %1157 = vmatprep.mubr.bf16.mxu0 0
  %1158 = vmatmul.mubr.bf16.gmra.mxu0 %v1123
  %v1159 = vpop.f32.mrf.mxu0
  %v1160 = vadd.f32 0.0, %v1159
  %v1161 = vpop.f32.mrf.mxu0
  %v1162 = vpop.f32.mrf.mxu0
  %v1163 = vadd.f32 0.0, %v1162
  %v1164 = vpop.f32.mrf.mxu0
  %1165 = vdwg.mxu0
  %1166 = vrot.lane.b32.xlu0 %v215, 40
  %v1167 = vpop.permute.xlu0 %1166
  %v1170 = vsel %vm323, %v1118, 0
  %1172 = vmatprep.subr.bf16.mxu0 0
  %1173 = vmatpush1.bf16.msra.mxu0 0
  %1174 = vmatprep.subr.bf16.mxu0 0
  %1175 = vmatpush1.bf16.msra.mxu0 0
  %1176 = vmatprep.subr.bf16.mxu0 0
  %1177 = vmatpush1.bf16.msra.mxu0 0
  %1178 = vmatprep.subr.bf16.mxu0 0
  %1179 = vmatpush1.bf16.msra.mxu0 0
  %1180 = vmatprep.subr.bf16.mxu0 0
  %1181 = vmatpush1.bf16.msra.mxu0 0
  %1182 = vmatprep.subr.bf16.mxu0 0
  %1183 = vmatpush1.bf16.msra.mxu0 0
  %1184 = vmatprep.subr.bf16.mxu0 0
  %1185 = vmatpush1.bf16.msra.mxu0 0
  %1186 = vmatprep.subr.bf16.mxu0 0
  %1187 = vmatpush1.bf16.msra.mxu0 %v1167
  %1188 = vmatprep.subr.bf16.mxu0 0
  %1189 = vmatpush2.bf16.msra.mxu0 0
  %1190 = vmatprep.subr.bf16.mxu0 0
  %1191 = vmatpush2.bf16.msra.mxu0 0
  %1192 = vmatprep.subr.bf16.mxu0 0
  %1193 = vmatpush2.bf16.msra.mxu0 0
  %1194 = vmatprep.subr.bf16.mxu0 0
  %1195 = vmatpush2.bf16.msra.mxu0 0
  %1196 = vmatprep.subr.bf16.mxu0 0
  %1197 = vmatpush2.bf16.msra.mxu0 0
  %1198 = vmatprep.subr.bf16.mxu0 0
  %1199 = vmatpush2.bf16.msra.mxu0 0
  %1200 = vmatprep.subr.bf16.mxu0 0
  %1201 = vmatpush2.bf16.msra.mxu0 0
  %1202 = vmatprep.subr.bf16.mxu0 0
  %1203 = vmatpush2.bf16.msra.mxu0 0
  %1204 = vmatprep.mubr.bf16.mxu0 0
  %1205 = vmatmul.mubr.bf16.gmra.mxu0 %v1170
  %v1206 = vpop.f32.mrf.mxu0
  %v1207 = vadd.f32 0.0, %v1206
  %v1208 = vpop.f32.mrf.mxu0
  %v1209 = vpop.f32.mrf.mxu0
  %v1210 = vadd.f32 0.0, %v1209
  %v1211 = vpop.f32.mrf.mxu0
  %1212 = vdwg.mxu0
  %1217 = vrot.lane.b32.xlu0 %v662, 8
  %v1218 = vpop.permute.xlu0 %1217
  %1219 = vrot.lane.b32.xlu0 %v665, 8
  %v1220 = vpop.permute.xlu0 %1219
  %1221 = vrot.lane.b32.xlu0 %v709, 8
  %v1222 = vpop.permute.xlu0 %1221
  %1223 = vrot.lane.b32.xlu0 %v712, 8
  %v1224 = vpop.permute.xlu0 %1223
  %1233 = vrot.lane.b32.xlu0 %v911, 16
  %v1234 = vpop.permute.xlu0 %1233
  %1235 = vrot.lane.b32.xlu0 %v914, 16
  %v1236 = vpop.permute.xlu0 %1235
  %1237 = vrot.lane.b32.xlu0 %v958, 16
  %v1238 = vpop.permute.xlu0 %1237
  %1239 = vrot.lane.b32.xlu0 %v961, 16
  %v1240 = vpop.permute.xlu0 %1239
  %1249 = vrot.lane.b32.xlu0 %v1160, 24
  %v1250 = vpop.permute.xlu0 %1249
  %1251 = vrot.lane.b32.xlu0 %v1163, 24
  %v1252 = vpop.permute.xlu0 %1251
  %1253 = vrot.lane.b32.xlu0 %v1207, 24
  %v1254 = vpop.permute.xlu0 %1253
  %1255 = vrot.lane.b32.xlu0 %v1210, 24
  %v1256 = vpop.permute.xlu0 %1255
  %v1261 = vsel %vm219, %v411, %v1218
  %v1262 = vsel %vm219, %v414, %v1220
  %v1263 = vsel %vm219, %v458, %v1222
  %v1264 = vsel %vm219, %v461, %v1224
  %v1265 = vsel %vm323, %v1261, %v1234
  %v1266 = vsel %vm323, %v1262, %v1236
  %v1267 = vsel %vm323, %v1263, %v1238
  %v1268 = vsel %vm323, %v1264, %v1240
  %vm1269 = vcmask 195584
  %v1270 = vsel %vm1269, %v1265, %v1250
  %v1271 = vsel %vm1269, %v1266, %v1252
  %v1272 = vsel %vm1269, %v1267, %v1254
  %v1273 = vsel %vm1269, %v1268, %v1256
  %v1274 = vpack.c.bf16 %v1271, %v1270
  %v1275 = vpack.c.bf16 %v1273, %v1272
  %v1276 = vld [vmem:[%s6] sm:$0xf]
  %v1277 = vld [vmem:[%s6 + $0x4] sm:$0xf]
  %v1278 = vld [vmem:[%s6 + $0x8] sm:$0xf]
  %v1279 = vld [vmem:[%s6 + $0xc] sm:$0xf]
  %v1284 = vunpack.c.l.b16 %v1276
  %v1285 = vunpack.c.l.b16 %v1277
  %v1286 = vunpack.c.l.b16 %v1278
  %v1287 = vunpack.c.l.b16 %v1279
  %v1288 = vpack.c.b16 %v1285, %v1284
  %v1289 = vpack.c.b16 %v1287, %v1286
  %v1293 = vsel %vm52, %v1274, 0
  %v1296 = vsel %vm52, %v1275, 0
  %1298 = vmatprep.subr.bf16.mxu0 0
  %1299 = vmatpush1.bf16.msra.mxu0 0
  %1300 = vmatprep.subr.bf16.mxu0 0
  %1301 = vmatpush1.bf16.msra.mxu0 0
  %1302 = vmatprep.subr.bf16.mxu0 0
  %1303 = vmatpush1.bf16.msra.mxu0 0
  %1304 = vmatprep.subr.bf16.mxu0 0
  %1305 = vmatpush1.bf16.msra.mxu0 0
  %1306 = vmatprep.subr.bf16.mxu0 0
  %1307 = vmatpush1.bf16.msra.mxu0 0
  %1308 = vmatprep.subr.bf16.mxu0 0
  %1309 = vmatpush1.bf16.msra.mxu0 0
  %1310 = vmatprep.subr.bf16.mxu0 0
  %1311 = vmatpush1.bf16.msra.mxu0 %v1289
  %1312 = vmatprep.subr.bf16.mxu0 0
  %1313 = vmatpush1.bf16.msra.mxu0 %v1288
  %1314 = vmatprep.subr.bf16.mxu0 0
  %1315 = vmatpush2.bf16.msra.mxu0 0
  %1316 = vmatprep.subr.bf16.mxu0 0
  %1317 = vmatpush2.bf16.msra.mxu0 0
  %1318 = vmatprep.subr.bf16.mxu0 0
  %1319 = vmatpush2.bf16.msra.mxu0 0
  %1320 = vmatprep.subr.bf16.mxu0 0
  %1321 = vmatpush2.bf16.msra.mxu0 0
  %1322 = vmatprep.subr.bf16.mxu0 0
  %1323 = vmatpush2.bf16.msra.mxu0 0
  %1324 = vmatprep.subr.bf16.mxu0 0
  %1325 = vmatpush2.bf16.msra.mxu0 0
  %1326 = vmatprep.subr.bf16.mxu0 0
  %1327 = vmatpush2.bf16.msra.mxu0 0
  %1328 = vmatprep.subr.bf16.mxu0 0
  %1329 = vmatpush2.bf16.msra.mxu0 0
  %1330 = vmatprep.mubr.bf16.mxu0 0
  %1331 = vmatmul.mubr.bf16.gmra.mxu0 %v1293
  %v1332 = vpop.f32.mrf.mxu0
  %v1333 = vadd.f32 0.0, %v1332
  %v1334 = vpop.f32.mrf.mxu0
  %v1335 = vpop.f32.mrf.mxu0
  %v1336 = vadd.f32 0.0, %v1335
  %v1337 = vpop.f32.mrf.mxu0
  %1338 = vmatprep.mubr.bf16.mxu0 0
  %1339 = vmatmul.mubr.bf16.gmra.mxu0 %v1296
  %v1340 = vpop.f32.mrf.mxu0
  %v1341 = vadd.f32 0.0, %v1340
  %v1342 = vpop.f32.mrf.mxu0
  %v1343 = vpop.f32.mrf.mxu0
  %v1344 = vadd.f32 0.0, %v1343
  %v1345 = vpop.f32.mrf.mxu0
  %1346 = vdwg.mxu0
  %v1347 = vadd.f32 %v48, %v1333
  %v1348 = vadd.f32 %v49, %v1336
  %v1349 = vadd.f32 %v50, %v1341
  %v1350 = vadd.f32 %v51, %v1344
  %v1351 = vld [vmem:[%s7] sm:$0x1]
  %v1353 = vlaneseq
  %v1354 = vshrl.u32 %v1353, 7
  %v1355 = vsub.s32 0, %v1354
  %v1356 = vrot.slane %v1351, %v1355
  %v1358 = vadd.f32 %v1347, %v1356
  %v1359 = vadd.f32 %v1348, %v1356
  %v1360 = vadd.f32 %v1349, %v1356
  %v1361 = vadd.f32 %v1350, %v1356
  %v1362 = vsel %vm52, %v1358, 0.0
  %1363 = vadd.xlane.f32.xlu0 %v1362
  %v1364 = vpop.xlane.xlu0 %1363
  %v1365 = vsel %vm52, %v1359, 0.0
  %1366 = vadd.xlane.f32.xlu0 %v1365
  %v1367 = vpop.xlane.xlu0 %1366
  %v1368 = vsel %vm52, %v1360, 0.0
  %1369 = vadd.xlane.f32.xlu0 %v1368
  %v1370 = vpop.xlane.xlu0 %1369
  %v1371 = vsel %vm52, %v1361, 0.0
  %1372 = vadd.xlane.f32.xlu0 %v1371
  %v1373 = vpop.xlane.xlu0 %1372
  %v1374 = vmul.f32 %v1364, %v65
  %v1375 = vmul.f32 %v1367, %v65
  %v1376 = vmul.f32 %v1370, %v65
  %v1377 = vmul.f32 %v1373, %v65
  %v1378 = vsub.f32 %v1358, %v1374
  %v1379 = vsub.f32 %v1359, %v1375
  %v1380 = vsub.f32 %v1360, %v1376
  %v1381 = vsub.f32 %v1361, %v1377
  %v1382 = vmul.f32 %v1378, %v1378
  %v1383 = vmul.f32 %v1379, %v1379
  %v1384 = vmul.f32 %v1380, %v1380
  %v1385 = vmul.f32 %v1381, %v1381
  %v1386 = vsel %vm52, %v1382, 0.0
  %1387 = vadd.xlane.f32.xlu0 %v1386
  %v1388 = vpop.xlane.xlu0 %1387
  %v1389 = vsel %vm52, %v1383, 0.0
  %1390 = vadd.xlane.f32.xlu0 %v1389
  %v1391 = vpop.xlane.xlu0 %1390
  %v1392 = vsel %vm52, %v1384, 0.0
  %1393 = vadd.xlane.f32.xlu0 %v1392
  %v1394 = vpop.xlane.xlu0 %1393
  %v1395 = vsel %vm52, %v1385, 0.0
  %1396 = vadd.xlane.f32.xlu0 %v1395
  %v1397 = vpop.xlane.xlu0 %1396
  %v1398 = vmul.f32 %v1388, %v65
  %v1399 = vmul.f32 %v1391, %v65
  %v1400 = vmul.f32 %v1394, %v65
  %v1401 = vmul.f32 %v1397, %v65
  %v1402 = vadd.f32 %v1398, 1e-05
  %v1403 = vadd.f32 %v1399, 1e-05
  %v1404 = vadd.f32 %v1400, 1e-05
  %v1405 = vadd.f32 %v1401, 1e-05
  %v1406 = vrsqrt.pop %v1402
  %v1407 = vrsqrt.pop %v1403
  %v1408 = vrsqrt.pop %v1404
  %v1409 = vrsqrt.pop %v1405
  %v1410 = vmul.f32 %v1378, %v1406
  %v1411 = vmul.f32 %v1379, %v1407
  %v1412 = vmul.f32 %v1380, %v1408
  %v1413 = vmul.f32 %v1381, %v1409
  %v1414 = vld [vmem:[%s8] sm:$0x1]
  %v1416 = vlaneseq
  %v1417 = vshrl.u32 %v1416, 7
  %v1418 = vsub.s32 0, %v1417
  %v1419 = vrot.slane %v1414, %v1418
  %v1421 = vmul.f32 %v1410, %v1419
  %v1422 = vmul.f32 %v1411, %v1419
  %v1423 = vmul.f32 %v1412, %v1419
  %v1424 = vmul.f32 %v1413, %v1419
  %v1425 = vld [vmem:[%s9] sm:$0x1]
  %v1427 = vlaneseq
  %v1428 = vshrl.u32 %v1427, 7
  %v1429 = vsub.s32 0, %v1428
  %v1430 = vrot.slane %v1425, %v1429
  %v1432 = vadd.f32 %v1421, %v1430
  %v1433 = vadd.f32 %v1422, %v1430
  %v1434 = vadd.f32 %v1423, %v1430
  %v1435 = vadd.f32 %v1424, %v1430
  %v1436 = vpack.c.bf16 %v1433, %v1432
  %v1437 = vpack.c.bf16 %v1435, %v1434
  %v1438 = vld [vmem:[%s10] sm:$0xf]
  %v1439 = vld [vmem:[%s10 + $0x4] sm:$0xf]
  %v1440 = vld [vmem:[%s10 + $0x8] sm:$0xf]
  %v1441 = vld [vmem:[%s10 + $0xc] sm:$0xf]
  %v1442 = vld [vmem:[%s11] sm:$0x1]
  %v1444 = vlaneseq
  %v1445 = vshrl.u32 %v1444, 7
  %v1446 = vsub.s32 0, %v1445
  %v1447 = vrot.slane %v1442, %v1446
  %v1453 = vunpack.c.l.b16 %v1438
  %v1454 = vunpack.c.l.b16 %v1439
  %v1455 = vunpack.c.l.b16 %v1440
  %v1456 = vunpack.c.l.b16 %v1441
  %v1457 = vpack.c.b16 %v1454, %v1453
  %v1458 = vpack.c.b16 %v1456, %v1455
  %v1462 = vsel %vm52, %v1436, 0
  %v1465 = vsel %vm52, %v1437, 0
  %1467 = vmatprep.subr.bf16.mxu0 0
  %1468 = vmatpush1.bf16.msra.mxu0 0
  %1469 = vmatprep.subr.bf16.mxu0 0
  %1470 = vmatpush1.bf16.msra.mxu0 0
  %1471 = vmatprep.subr.bf16.mxu0 0
  %1472 = vmatpush1.bf16.msra.mxu0 0
  %1473 = vmatprep.subr.bf16.mxu0 0
  %1474 = vmatpush1.bf16.msra.mxu0 0
  %1475 = vmatprep.subr.bf16.mxu0 0
  %1476 = vmatpush1.bf16.msra.mxu0 0
  %1477 = vmatprep.subr.bf16.mxu0 0
  %1478 = vmatpush1.bf16.msra.mxu0 0
  %1479 = vmatprep.subr.bf16.mxu0 0
  %1480 = vmatpush1.bf16.msra.mxu0 %v1458
  %1481 = vmatprep.subr.bf16.mxu0 0
  %1482 = vmatpush1.bf16.msra.mxu0 %v1457
  %1483 = vmatprep.subr.bf16.mxu0 0
  %1484 = vmatpush2.bf16.msra.mxu0 0
  %1485 = vmatprep.subr.bf16.mxu0 0
  %1486 = vmatpush2.bf16.msra.mxu0 0
  %1487 = vmatprep.subr.bf16.mxu0 0
  %1488 = vmatpush2.bf16.msra.mxu0 0
  %1489 = vmatprep.subr.bf16.mxu0 0
  %1490 = vmatpush2.bf16.msra.mxu0 0
  %1491 = vmatprep.subr.bf16.mxu0 0
  %1492 = vmatpush2.bf16.msra.mxu0 0
  %1493 = vmatprep.subr.bf16.mxu0 0
  %1494 = vmatpush2.bf16.msra.mxu0 0
  %1495 = vmatprep.subr.bf16.mxu0 0
  %1496 = vmatpush2.bf16.msra.mxu0 0
  %1497 = vmatprep.subr.bf16.mxu0 0
  %1498 = vmatpush2.bf16.msra.mxu0 0
  %1499 = vmatprep.mubr.bf16.mxu0 0
  %1500 = vmatmul.mubr.bf16.gmra.mxu0 %v1462
  %v1501 = vpop.f32.mrf.mxu0
  %v1502 = vadd.f32 %v1447, %v1501
  %v1503 = vpop.f32.mrf.mxu0
  %v1504 = vpop.f32.mrf.mxu0
  %v1505 = vadd.f32 %v1447, %v1504
  %v1506 = vpop.f32.mrf.mxu0
  %1507 = vmatprep.mubr.bf16.mxu0 0
  %1508 = vmatmul.mubr.bf16.gmra.mxu0 %v1465
  %v1509 = vpop.f32.mrf.mxu0
  %v1510 = vadd.f32 %v1447, %v1509
  %v1511 = vpop.f32.mrf.mxu0
  %v1512 = vpop.f32.mrf.mxu0
  %v1513 = vadd.f32 %v1447, %v1512
  %v1514 = vpop.f32.mrf.mxu0
  %1515 = vdwg.mxu0
  %v1516 = vmul.f32 %v1502, 0.5
  %v1517 = vmul.f32 %v1505, 0.5
  %v1518 = vmul.f32 %v1510, 0.5
  %v1519 = vmul.f32 %v1513, 0.5
  %v1520 = vmul.f32 %v1502, 0.70710677
  %v1521 = vmul.f32 %v1505, 0.70710677
  %v1522 = vmul.f32 %v1510, 0.70710677
  %v1523 = vmul.f32 %v1513, 0.70710677
  %v1524 = verf.f32.pop %v1520
  %v1525 = verf.f32.pop %v1521
  %v1526 = verf.f32.pop %v1522
  %v1527 = verf.f32.pop %v1523
  %v1528 = vadd.f32 %v1524, 1.0
  %v1529 = vadd.f32 %v1525, 1.0
  %v1530 = vadd.f32 %v1526, 1.0
  %v1531 = vadd.f32 %v1527, 1.0
  %v1532 = vmul.f32 %v1516, %v1528
  %v1533 = vmul.f32 %v1517, %v1529
  %v1534 = vmul.f32 %v1518, %v1530
  %v1535 = vmul.f32 %v1519, %v1531
  %v1536 = vpack.c.bf16 %v1533, %v1532
  %v1537 = vpack.c.bf16 %v1535, %v1534
  %v1538 = vld [vmem:[%s12] sm:$0xf]
  %v1539 = vld [vmem:[%s12 + $0x4] sm:$0xf]
  %v1540 = vld [vmem:[%s12 + $0x8] sm:$0xf]
  %v1541 = vld [vmem:[%s12 + $0xc] sm:$0xf]
  %v1542 = vld [vmem:[%s12 + $0x10] sm:$0xf]
  %v1543 = vld [vmem:[%s12 + $0x14] sm:$0xf]
  %v1544 = vld [vmem:[%s12 + $0x18] sm:$0xf]
  %v1545 = vld [vmem:[%s12 + $0x1c] sm:$0xf]
  %v1546 = vld [vmem:[%s12 + $0x20] sm:$0xf]
  %v1547 = vld [vmem:[%s12 + $0x24] sm:$0xf]
  %v1548 = vld [vmem:[%s12 + $0x28] sm:$0xf]
  %v1549 = vld [vmem:[%s12 + $0x2c] sm:$0xf]
  %v1550 = vld [vmem:[%s12 + $0x30] sm:$0xf]
  %v1551 = vld [vmem:[%s12 + $0x34] sm:$0xf]
  %v1552 = vld [vmem:[%s12 + $0x38] sm:$0xf]
  %v1553 = vld [vmem:[%s12 + $0x3c] sm:$0xf]
  %v1554 = vld [vmem:[%s13] sm:$0x1]
  %v1556 = vlaneseq
  %v1557 = vshrl.u32 %v1556, 7
  %v1558 = vsub.s32 0, %v1557
  %v1559 = vrot.slane %v1554, %v1558
  %v1577 = vunpack.c.l.b16 %v1538
  %v1578 = vunpack.c.l.b16 %v1539
  %v1579 = vunpack.c.l.b16 %v1540
  %v1580 = vunpack.c.l.b16 %v1541
  %v1581 = vunpack.c.l.b16 %v1542
  %v1582 = vunpack.c.l.b16 %v1543
  %v1583 = vunpack.c.l.b16 %v1544
  %v1584 = vunpack.c.l.b16 %v1545
  %v1585 = vunpack.c.l.b16 %v1546
  %v1586 = vunpack.c.l.b16 %v1547
  %v1587 = vunpack.c.l.b16 %v1548
  %v1588 = vunpack.c.l.b16 %v1549
  %v1589 = vunpack.c.l.b16 %v1550
  %v1590 = vunpack.c.l.b16 %v1551
  %v1591 = vunpack.c.l.b16 %v1552
  %v1592 = vunpack.c.l.b16 %v1553
  %v1593 = vpack.c.b16 %v1578, %v1577
  %v1594 = vpack.c.b16 %v1580, %v1579
  %v1595 = vpack.c.b16 %v1582, %v1581
  %v1596 = vpack.c.b16 %v1584, %v1583
  %v1597 = vpack.c.b16 %v1586, %v1585
  %v1598 = vpack.c.b16 %v1588, %v1587
  %v1599 = vpack.c.b16 %v1590, %v1589
  %v1600 = vpack.c.b16 %v1592, %v1591
  %1609 = vmatprep.subr.bf16.mxu0 0
  %1610 = vmatpush1.bf16.msra.mxu0 %v1600
  %1611 = vmatprep.subr.bf16.mxu0 0
  %1612 = vmatpush1.bf16.msra.mxu0 %v1599
  %1613 = vmatprep.subr.bf16.mxu0 0
  %1614 = vmatpush1.bf16.msra.mxu0 %v1598
  %1615 = vmatprep.subr.bf16.mxu0 0
  %1616 = vmatpush1.bf16.msra.mxu0 %v1597
  %1617 = vmatprep.subr.bf16.mxu0 0
  %1618 = vmatpush1.bf16.msra.mxu0 %v1596
  %1619 = vmatprep.subr.bf16.mxu0 0
  %1620 = vmatpush1.bf16.msra.mxu0 %v1595
  %1621 = vmatprep.subr.bf16.mxu0 0
  %1622 = vmatpush1.bf16.msra.mxu0 %v1594
  %1623 = vmatprep.subr.bf16.mxu0 0
  %1624 = vmatpush1.bf16.msra.mxu0 %v1593
  %1625 = vmatprep.subr.bf16.mxu0 0
  %1626 = vmatpush2.bf16.msra.mxu0 0
  %1627 = vmatprep.subr.bf16.mxu0 0
  %1628 = vmatpush2.bf16.msra.mxu0 0
  %1629 = vmatprep.subr.bf16.mxu0 0
  %1630 = vmatpush2.bf16.msra.mxu0 0
  %1631 = vmatprep.subr.bf16.mxu0 0
  %1632 = vmatpush2.bf16.msra.mxu0 0
  %1633 = vmatprep.subr.bf16.mxu0 0
  %1634 = vmatpush2.bf16.msra.mxu0 0
  %1635 = vmatprep.subr.bf16.mxu0 0
  %1636 = vmatpush2.bf16.msra.mxu0 0
  %1637 = vmatprep.subr.bf16.mxu0 0
  %1638 = vmatpush2.bf16.msra.mxu0 0
  %1639 = vmatprep.subr.bf16.mxu0 0
  %1640 = vmatpush2.bf16.msra.mxu0 0
  %1641 = vmatprep.mubr.bf16.mxu0 0
  %1642 = vmatmul.mubr.bf16.gmra.mxu0 %v1536
  %v1643 = vpop.f32.mrf.mxu0
  %v1644 = vadd.f32 %v1559, %v1643
  %v1645 = vpop.f32.mrf.mxu0
  %v1646 = vpop.f32.mrf.mxu0
  %v1647 = vadd.f32 %v1559, %v1646
  %v1648 = vpop.f32.mrf.mxu0
  %1649 = vmatprep.mubr.bf16.mxu0 0
  %1650 = vmatmul.mubr.bf16.gmra.mxu0 %v1537
  %v1651 = vpop.f32.mrf.mxu0
  %v1652 = vadd.f32 %v1559, %v1651
  %v1653 = vpop.f32.mrf.mxu0
  %v1654 = vpop.f32.mrf.mxu0
  %v1655 = vadd.f32 %v1559, %v1654
  %v1656 = vpop.f32.mrf.mxu0
  %1657 = vdwg.mxu0
  %v1658 = vadd.f32 %v1358, %v1644
  %v1659 = vadd.f32 %v1359, %v1647
  %v1660 = vadd.f32 %v1360, %v1652
  %v1661 = vadd.f32 %v1361, %v1655
  %1662 = vst.msk [vmem:[%s14] sm:$0xff] %vm52, %v1658
  %1663 = vst.msk [vmem:[%s14 + $0x8] sm:$0xff] %vm52, %v1659
  %1664 = vst.msk [vmem:[%s14 + $0x10] sm:$0xff] %vm52, %v1660
  %1665 = vst.msk [vmem:[%s14 + $0x18] sm:$0xff] %vm52, %v1661
  // Predicated region
  $region58: #{deform_transformer_forward.12} parent=0 // pred_check
    _
  $region59: #{deform_transformer_forward.12} parent=0 // pred_check_branch
    %1667 = sbr.rel (0) target = $region61
  $region60: #{deform_transformer_forward.12} parent=0 // pred_region
    _
  $region61: #{deform_transformer_forward.12} parent=0 // pred_fallthru
    _
  // Predicated region
  $region62: #{deform_transformer_forward.12} parent=0 // pred_check
    _
  $region63: #{deform_transformer_forward.12} parent=0 // pred_check_branch
    %1669 = sbr.rel (0) target = $region65
  $region64: #{deform_transformer_forward.12} parent=0 // pred_region
    _
  $region65: #{deform_transformer_forward.12} parent=0 // pred_fallthru
    _

</llo_original>
